<compile_context>
chip_gen: v7x
topology: tpu7x:2x2x1
jax: 0.10.0
libtpu: 0.0.40
codegen_flags: <defaults>
</compile_context>

<pallas_src>
import math

import jax
import jax.numpy as jnp
from jax.experimental import pallas as pl
from jax.experimental.pallas import tpu as pltpu

# ---------------- model config (small, consistent with the module) ----------
EMBED_SIZE = 32
NUM_HEADS = 4
HEAD_DIM = EMBED_SIZE // NUM_HEADS
FF_SIZE = 64
NUM_BLOCKS = 2
VOCAB_SIZE = 50
SEQ_LEN = 8          # decoder sequence length
ENC_LEN = 12         # encoder sequence length (cross-attention keys/values)
BATCH = 2
LN_EPS = 1e-5
NEG_INF = -1e30      # finite large-negative additive mask bias
VEC_W = max(EMBED_SIZE, FF_SIZE)   # width of the packed vector slab (=64)

# ---- packed vector-slab row layout ------------------------------------------
# per layer: ln1_g, ln1_b, ln2_g, ln2_b, ln3_g, ln3_b, sa_bo, ca_bo, b1, b2
(R_LN1G, R_LN1B, R_LN2G, R_LN2B, R_LN3G, R_LN3B,
 R_SABO, R_CABO, R_B1, R_B2) = range(10)
ROWS_PER_LAYER = 10
R_LNFG = NUM_BLOCKS * ROWS_PER_LAYER
R_LNFB = R_LNFG + 1
N_VEC_ROWS = R_LNFB + 1            # 22 rows total


# ---------------- in-kernel helpers -----------------------------------------
def _layer_norm(v, gamma, beta):
    mu = jnp.mean(v, axis=-1, keepdims=True)
    var = jnp.mean((v - mu) ** 2, axis=-1, keepdims=True)
    return (v - mu) * jax.lax.rsqrt(var + LN_EPS) * gamma + beta


def _gelu_exact(x):
    # torch nn.GELU() default (approximate='none'): 0.5*x*(1+erf(x/sqrt(2)))
    return 0.5 * x * (1.0 + jax.lax.erf(x * (1.0 / math.sqrt(2.0))))


# ---------------- fused Pallas kernel ----------------------------------------
def decoder_kernel(x_ref, enc_ref, dbias_ref, ebias_ref,
                   qkv_ref, wo_ref, w1_ref, w2_ref, vec_ref, out_ref):
    E, D, H = EMBED_SIZE, HEAD_DIM, NUM_HEADS
    inv_sqrt_d = 1.0 / math.sqrt(D)

    def vec(row, width=E):
        # (1, width) slice out of the packed parameter slab; row is static.
        return vec_ref[row:row + 1, 0:width]

    def mha(qsrc, kvsrc, bias, t, l, same):
        """qsrc (Nq,E), kvsrc (Nkv,E), bias (Nq,Nkv) additive (0 / -1e30).
        t: 0 = self-attention weights, 1 = cross-attention weights."""
        slab = qkv_ref[t, l]                                    # (E, 3E) [Q|K|V]
        pq = jnp.dot(qsrc, slab, preferred_element_type=jnp.float32)   # (Nq, 3E)
        if same:
            pkv = pq                                            # self-attn: share
        else:
            pkv = jnp.dot(kvsrc, slab, preferred_element_type=jnp.float32)
        attn = None
        for h in range(H):
            q_h = pq[:, h * D:(h + 1) * D]                      # (Nq, D)
            k_h = pkv[:, E + h * D:E + (h + 1) * D]             # (Nkv, D)
            v_h = pkv[:, 2 * E + h * D:2 * E + (h + 1) * D]     # (Nkv, D)
            s = jnp.einsum("qd,kd->qk", q_h, k_h,
                           preferred_element_type=jnp.float32)  # (Nq, Nkv)
            s = s * inv_sqrt_d + bias
            m = jnp.max(s, axis=-1, keepdims=True)
            p = jnp.exp(s - m)
            w = p / jnp.sum(p, axis=-1, keepdims=True)          # exact softmax
            ctx = jnp.dot(w, v_h, preferred_element_type=jnp.float32)  # (Nq, D)
            # head output through its Wo row block (== concat(heads) @ Wo);
            # dots emitted back-to-back into one accumulator.
            part = jnp.dot(ctx, wo_ref[t, l, h * D:(h + 1) * D, :],
                           preferred_element_type=jnp.float32)  # (Nq, E)
            attn = part if attn is None else attn + part
        bo_row = R_SABO if t == 0 else R_CABO
        return attn + vec(l * ROWS_PER_LAYER + bo_row)

    x = x_ref[...]         # (B*S, E)
    enc = enc_ref[...]     # (B*S_enc, E)
    dbias = dbias_ref[...]  # (B*S, B*S)      block-diagonal causal bias
    ebias = ebias_ref[...]  # (B*S, B*S_enc)  block-diagonal padding bias

    # Both decoder blocks unrolled inside the single kernel invocation.
    for l in range(NUM_BLOCKS):
        base = l * ROWS_PER_LAYER
        # --- self-attention sub-block ----------------------------------------
        xn1 = _layer_norm(x, vec(base + R_LN1G), vec(base + R_LN1B))
        x = x + mha(xn1, xn1, dbias, 0, l, True)
        # --- cross-attention sub-block (K/V from raw encoder output) ---------
        xn2 = _layer_norm(x, vec(base + R_LN2G), vec(base + R_LN2B))
        x = x + mha(xn2, enc, ebias, 1, l, False)
        # --- feed-forward sub-block -------------------------------------------
        xn3 = _layer_norm(x, vec(base + R_LN3G), vec(base + R_LN3B))
        f1 = jnp.dot(xn3, w1_ref[l],
                     preferred_element_type=jnp.float32) + vec(base + R_B1, FF_SIZE)
        f2 = jnp.dot(_gelu_exact(f1), w2_ref[l],
                     preferred_element_type=jnp.float32) + vec(base + R_B2)
        x = x + f2
        # dropout layers are identity in the deterministic forward

    out_ref[...] = _layer_norm(x, vec(R_LNFG), vec(R_LNFB))


# ---------------- wrapper ------------------------------------------------------
def decoder_forward(input_ids, decoder_mask, encoder_output, encoder_mask,
                    emb_table, params):
    B, S = input_ids.shape
    E = emb_table.shape[1]
    S_enc = encoder_output.shape[1]

    # Embedding gather, activation flattening and int-mask -> block-diagonal
    # additive-bias conversion are one-time glue done in XLA outside the kernel.
    x = jnp.take(emb_table, input_ids, axis=0).astype(jnp.float32).reshape(B * S, E)
    enc = encoder_output.astype(jnp.float32).reshape(B * S_enc, E)

    # bias[b*S+i, b'*Skv+j] = 0 if (b == b' and mask[b,i,j] != 0) else -1e30
    # NOTE: assumes no query row is fully masked (true for causal + our test
    # padding); a fully-masked row would give a uniform softmax, not NaN.
    same_b = jnp.eye(B, dtype=bool)
    dkeep = same_b[:, None, :, None] & (decoder_mask[:, :, None, :] != 0)
    dbias = jnp.where(dkeep, 0.0, NEG_INF).astype(jnp.float32).reshape(B * S, B * S)
    ekeep = same_b[:, None, :, None] & (encoder_mask[:, :, None, :] != 0)
    ebias = jnp.where(ekeep, 0.0, NEG_INF).astype(jnp.float32).reshape(B * S, B * S_enc)

    vmem = pl.BlockSpec(memory_space=pltpu.MemorySpace.VMEM)
    out = pl.pallas_call(
        decoder_kernel,
        out_shape=jax.ShapeDtypeStruct((B * S, E), jnp.float32),
        in_specs=[vmem] * 9,
        out_specs=vmem,
    )(x, enc, dbias, ebias,
      params["qkv_w"], params["wo_w"], params["w1"], params["w2"], params["vecs"])
    return out.reshape(B, S, E)


# ---------------- deterministic parameter init --------------------------------
def init_params(key):
    E, F, L = EMBED_SIZE, FF_SIZE, NUM_BLOCKS
    ks = iter(jax.random.split(key, 16))
    scale = 0.05

    def w(shape):
        return scale * jax.random.normal(next(ks), shape, jnp.float32)

    # Fused attention weights: index 0 = self-attn, 1 = cross-attn.
    #   qkv_w[t, l] is (E, 3E) with columns [0:E]=Wq, [E:2E]=Wk, [2E:3E]=Wv
    #   (head h occupies columns h*D:(h+1)*D within each block).
    #   wo_w[t, l] is the matmul-ready (E_in, E_out) Wo matrix.
    qkv_w = w((2, L, E, 3 * E))
    wo_w = w((2, L, E, E))
    w1 = w((L, E, F))
    w2 = w((L, F, E))

    # Packed vector slab: every LN gamma/beta and every bias, one row each.
    def row_e(v):
        return jnp.pad(v, (0, VEC_W - v.shape[0]))

    kbias = jax.random.split(next(ks), L * 3)
    rows, bi = [], 0
    ones = jnp.ones((E,), jnp.float32)
    zeros = jnp.zeros((E,), jnp.float32)
    for _ in range(L):
        sa_bo = 0.01 * jax.random.normal(kbias[bi], (E,), jnp.float32); bi += 1
        ca_bo = 0.01 * jax.random.normal(kbias[bi], (E,), jnp.float32); bi += 1
        b1 = 0.01 * jax.random.normal(kbias[bi], (F,), jnp.float32); bi += 1
        b2 = jnp.zeros((E,), jnp.float32)
        rows += [row_e(ones), row_e(zeros),     # ln1 gamma, beta
                 row_e(ones), row_e(zeros),     # ln2
                 row_e(ones), row_e(zeros),     # ln3
                 row_e(sa_bo), row_e(ca_bo),    # Wo biases
                 b1,                            # FF bias 1 (width F == VEC_W)
                 row_e(b2)]                     # FF bias 2
    rows += [row_e(ones), row_e(zeros)]         # final LayerNorm gamma, beta
    vecs = jnp.stack(rows)                      # (22, 64)
    assert vecs.shape == (N_VEC_ROWS, VEC_W)

    return {"qkv_w": qkv_w, "wo_w": wo_w, "w1": w1, "w2": w2, "vecs": vecs}


if __name__ == "__main__":
    root = jax.random.PRNGKey(0)
    k_emb, k_ids, k_enc, k_par = jax.random.split(root, 4)

    emb_table = 0.1 * jax.random.normal(k_emb, (VOCAB_SIZE, EMBED_SIZE), jnp.float32)
    input_ids = jax.random.randint(k_ids, (BATCH, SEQ_LEN), 0, VOCAB_SIZE)
    encoder_output = 0.1 * jax.random.normal(
        k_enc, (BATCH, ENC_LEN, EMBED_SIZE), jnp.float32)

    # Causal decoder self-attention mask, (B, S, S).
    pos = jnp.arange(SEQ_LEN, dtype=jnp.int32)
    causal = (pos[None, :] <= pos[:, None]).astype(jnp.int32)
    decoder_mask = jnp.broadcast_to(causal[None], (BATCH, SEQ_LEN, SEQ_LEN))

    # Encoder padding mask for cross-attention, (B, S, S_enc); batch 1 has 3
    # padded encoder positions. No query row is fully masked.
    enc_valid = jnp.array([ENC_LEN, ENC_LEN - 3], jnp.int32)
    kpos = jnp.arange(ENC_LEN, dtype=jnp.int32)
    encoder_mask = (kpos[None, None, :] < enc_valid[:, None, None]).astype(jnp.int32)
    encoder_mask = jnp.broadcast_to(encoder_mask, (BATCH, SEQ_LEN, ENC_LEN))

    params = init_params(k_par)

    out = decoder_forward(input_ids, decoder_mask, encoder_output, encoder_mask,
                          emb_table, params)
    out = jax.block_until_ready(out)
    assert out.shape == (BATCH, SEQ_LEN, EMBED_SIZE)
    assert jnp.isfinite(out).all()
    print("KERNEL_OK")
</pallas_src>

<mosaic_0001>
module attributes {stable_mosaic.version = 11 : i64} {
  func.func @decoder_kernel(%arg0: memref<16x32xf32, #tpu.memory_space<vmem>>, %arg1: memref<24x32xf32, #tpu.memory_space<vmem>>, %arg2: memref<16x16xf32, #tpu.memory_space<vmem>>, %arg3: memref<16x24xf32, #tpu.memory_space<vmem>>, %arg4: memref<2x2x32x96xf32, #tpu.memory_space<vmem>>, %arg5: memref<2x2x32x32xf32, #tpu.memory_space<vmem>>, %arg6: memref<2x32x64xf32, #tpu.memory_space<vmem>>, %arg7: memref<2x64x32xf32, #tpu.memory_space<vmem>>, %arg8: memref<22x64xf32, #tpu.memory_space<vmem>>, %arg9: memref<16x32xf32, #tpu.memory_space<vmem>>) attributes {dimension_semantics = [], scalar_prefetch = 0 : i64, scratch_operands = 0 : i64, tpu.core_type = #tpu.core_type<tc>} {
    %c0 = arith.constant 0 : index
    %c0_0 = arith.constant 0 : index
    %0 = vector.load %arg0[%c0, %c0_0] : memref<16x32xf32, #tpu.memory_space<vmem>>, vector<16x32xf32>
    %c0_1 = arith.constant 0 : index
    %c0_2 = arith.constant 0 : index
    %1 = vector.load %arg1[%c0_1, %c0_2] : memref<24x32xf32, #tpu.memory_space<vmem>>, vector<24x32xf32>
    %c0_3 = arith.constant 0 : index
    %c0_4 = arith.constant 0 : index
    %2 = vector.load %arg2[%c0_3, %c0_4] : memref<16x16xf32, #tpu.memory_space<vmem>>, vector<16x16xf32>
    %c0_5 = arith.constant 0 : index
    %c0_6 = arith.constant 0 : index
    %3 = vector.load %arg3[%c0_5, %c0_6] : memref<16x24xf32, #tpu.memory_space<vmem>>, vector<16x24xf32>
    %c0_7 = arith.constant 0 : index
    %c0_8 = arith.constant 0 : index
    %4 = vector.load %arg8[%c0_7, %c0_8] : memref<22x64xf32, #tpu.memory_space<vmem>>, vector<1x32xf32>
    %c1 = arith.constant 1 : index
    %c0_9 = arith.constant 0 : index
    %5 = vector.load %arg8[%c1, %c0_9] : memref<22x64xf32, #tpu.memory_space<vmem>>, vector<1x32xf32>
    %cst = arith.constant dense<0.000000e+00> : vector<16xf32>
    %6 = vector.multi_reduction <add>, %0, %cst [1] : vector<16x32xf32> to vector<16xf32>
    %7 = vector.shape_cast %6 : vector<16xf32> to vector<16x1xf32>
    %cst_10 = arith.constant 3.200000e+01 : f32
    %8 = vector.broadcast %cst_10 : f32 to vector<16x1xf32>
    %9 = arith.divf %7, %8 : vector<16x1xf32>
    %10 = vector.broadcast %9 : vector<16x1xf32> to vector<16x32xf32>
    %11 = arith.subf %0, %10 : vector<16x32xf32>
    %12 = arith.mulf %11, %11 : vector<16x32xf32>
    %cst_11 = arith.constant dense<0.000000e+00> : vector<16xf32>
    %13 = vector.multi_reduction <add>, %12, %cst_11 [1] : vector<16x32xf32> to vector<16xf32>
    %14 = vector.shape_cast %13 : vector<16xf32> to vector<16x1xf32>
    %cst_12 = arith.constant 3.200000e+01 : f32
    %15 = vector.broadcast %cst_12 : f32 to vector<16x1xf32>
    %16 = arith.divf %14, %15 : vector<16x1xf32>
    %17 = vector.broadcast %9 : vector<16x1xf32> to vector<16x32xf32>
    %18 = arith.subf %0, %17 : vector<16x32xf32>
    %cst_13 = arith.constant 9.99999974E-6 : f32
    %19 = vector.broadcast %cst_13 : f32 to vector<16x1xf32>
    %20 = arith.addf %16, %19 : vector<16x1xf32>
    %21 = math.rsqrt %20 : vector<16x1xf32>
    %22 = vector.broadcast %21 : vector<16x1xf32> to vector<16x32xf32>
    %23 = arith.mulf %18, %22 : vector<16x32xf32>
    %24 = vector.broadcast %4 : vector<1x32xf32> to vector<16x32xf32>
    %25 = arith.mulf %23, %24 : vector<16x32xf32>
    %26 = vector.broadcast %5 : vector<1x32xf32> to vector<16x32xf32>
    %27 = arith.addf %25, %26 : vector<16x32xf32>
    %c0_14 = arith.constant 0 : index
    %c0_15 = arith.constant 0 : index
    %c0_16 = arith.constant 0 : index
    %c0_17 = arith.constant 0 : index
    %28 = vector.load %arg4[%c0_14, %c0_15, %c0_16, %c0_17] : memref<2x2x32x96xf32, #tpu.memory_space<vmem>>, vector<1x1x32x96xf32>
    %29 = vector.shape_cast %28 : vector<1x1x32x96xf32> to vector<32x96xf32>
    %cst_18 = arith.constant dense<0.000000e+00> : vector<16x96xf32>
    %30 = tpu.matmul %27, %29, %cst_18 {dimension_numbers = #tpu.dot_dimension_numbers<[1], [0], [0], [1], [0, 0, 1, 1], [], []>} : vector<16x32xf32>, vector<32x96xf32>, vector<16x96xf32> -> vector<16x96xf32>
    %31 = vector.extract_strided_slice %30 {offsets = [0, 0], sizes = [16, 8], strides = [1, 1]} : vector<16x96xf32> to vector<16x8xf32>
    %32 = vector.extract_strided_slice %30 {offsets = [0, 32], sizes = [16, 8], strides = [1, 1]} : vector<16x96xf32> to vector<16x8xf32>
    %33 = vector.extract_strided_slice %30 {offsets = [0, 64], sizes = [16, 8], strides = [1, 1]} : vector<16x96xf32> to vector<16x8xf32>
    "tpu.trace_start"() <{level = 10 : i32, message = "qd,kd->qk"}> : () -> ()
    %cst_19 = arith.constant dense<0.000000e+00> : vector<16x16xf32>
    %34 = tpu.matmul %31, %32, %cst_19 {dimension_numbers = #tpu.dot_dimension_numbers<[1], [1], [0], [0], [0, 0, 1, 0], [], []>} : vector<16x8xf32>, vector<16x8xf32>, vector<16x16xf32> -> vector<16x16xf32>
    "tpu.trace_stop"() : () -> ()
    %cst_20 = arith.constant 0.353553385 : f32
    %35 = vector.broadcast %cst_20 : f32 to vector<16x16xf32>
    %36 = arith.mulf %34, %35 : vector<16x16xf32>
    %37 = arith.addf %36, %2 : vector<16x16xf32>
    %cst_21 = arith.constant dense<0xFF800000> : vector<16xf32>
    %38 = vector.multi_reduction <maximumf>, %37, %cst_21 [1] : vector<16x16xf32> to vector<16xf32>
    %39 = vector.shape_cast %38 : vector<16xf32> to vector<16x1xf32>
    %40 = vector.broadcast %39 : vector<16x1xf32> to vector<16x16xf32>
    %41 = arith.subf %37, %40 : vector<16x16xf32>
    %42 = math.exp %41 : vector<16x16xf32>
    %cst_22 = arith.constant dense<0.000000e+00> : vector<16xf32>
    %43 = vector.multi_reduction <add>, %42, %cst_22 [1] : vector<16x16xf32> to vector<16xf32>
    %44 = vector.shape_cast %43 : vector<16xf32> to vector<16x1xf32>
    %45 = vector.broadcast %44 : vector<16x1xf32> to vector<16x16xf32>
    %46 = arith.divf %42, %45 : vector<16x16xf32>
    %cst_23 = arith.constant dense<0.000000e+00> : vector<16x8xf32>
    %47 = tpu.matmul %46, %33, %cst_23 {dimension_numbers = #tpu.dot_dimension_numbers<[1], [0], [0], [1], [0, 0, 1, 1], [], []>} : vector<16x16xf32>, vector<16x8xf32>, vector<16x8xf32> -> vector<16x8xf32>
    %c0_24 = arith.constant 0 : index
    %c0_25 = arith.constant 0 : index
    %c0_26 = arith.constant 0 : index
    %c0_27 = arith.constant 0 : index
    %48 = vector.load %arg5[%c0_24, %c0_25, %c0_26, %c0_27] : memref<2x2x32x32xf32, #tpu.memory_space<vmem>>, vector<1x1x8x32xf32>
    %49 = vector.shape_cast %48 : vector<1x1x8x32xf32> to vector<8x32xf32>
    %cst_28 = arith.constant dense<0.000000e+00> : vector<16x32xf32>
    %50 = tpu.matmul %47, %49, %cst_28 {dimension_numbers = #tpu.dot_dimension_numbers<[1], [0], [0], [1], [0, 0, 1, 1], [], []>} : vector<16x8xf32>, vector<8x32xf32>, vector<16x32xf32> -> vector<16x32xf32>
    %51 = vector.extract_strided_slice %30 {offsets = [0, 8], sizes = [16, 8], strides = [1, 1]} : vector<16x96xf32> to vector<16x8xf32>
    %52 = vector.extract_strided_slice %30 {offsets = [0, 40], sizes = [16, 8], strides = [1, 1]} : vector<16x96xf32> to vector<16x8xf32>
    %53 = vector.extract_strided_slice %30 {offsets = [0, 72], sizes = [16, 8], strides = [1, 1]} : vector<16x96xf32> to vector<16x8xf32>
    "tpu.trace_start"() <{level = 10 : i32, message = "qd,kd->qk"}> : () -> ()
    %cst_29 = arith.constant dense<0.000000e+00> : vector<16x16xf32>
    %54 = tpu.matmul %51, %52, %cst_29 {dimension_numbers = #tpu.dot_dimension_numbers<[1], [1], [0], [0], [0, 0, 1, 0], [], []>} : vector<16x8xf32>, vector<16x8xf32>, vector<16x16xf32> -> vector<16x16xf32>
    "tpu.trace_stop"() : () -> ()
    %cst_30 = arith.constant 0.353553385 : f32
    %55 = vector.broadcast %cst_30 : f32 to vector<16x16xf32>
    %56 = arith.mulf %54, %55 : vector<16x16xf32>
    %57 = arith.addf %56, %2 : vector<16x16xf32>
    %cst_31 = arith.constant dense<0xFF800000> : vector<16xf32>
    %58 = vector.multi_reduction <maximumf>, %57, %cst_31 [1] : vector<16x16xf32> to vector<16xf32>
    %59 = vector.shape_cast %58 : vector<16xf32> to vector<16x1xf32>
    %60 = vector.broadcast %59 : vector<16x1xf32> to vector<16x16xf32>
    %61 = arith.subf %57, %60 : vector<16x16xf32>
    %62 = math.exp %61 : vector<16x16xf32>
    %cst_32 = arith.constant dense<0.000000e+00> : vector<16xf32>
    %63 = vector.multi_reduction <add>, %62, %cst_32 [1] : vector<16x16xf32> to vector<16xf32>
    %64 = vector.shape_cast %63 : vector<16xf32> to vector<16x1xf32>
    %65 = vector.broadcast %64 : vector<16x1xf32> to vector<16x16xf32>
    %66 = arith.divf %62, %65 : vector<16x16xf32>
    %cst_33 = arith.constant dense<0.000000e+00> : vector<16x8xf32>
    %67 = tpu.matmul %66, %53, %cst_33 {dimension_numbers = #tpu.dot_dimension_numbers<[1], [0], [0], [1], [0, 0, 1, 1], [], []>} : vector<16x16xf32>, vector<16x8xf32>, vector<16x8xf32> -> vector<16x8xf32>
    %c0_34 = arith.constant 0 : index
    %c0_35 = arith.constant 0 : index
    %c8 = arith.constant 8 : index
    %c0_36 = arith.constant 0 : index
    %68 = vector.load %arg5[%c0_34, %c0_35, %c8, %c0_36] : memref<2x2x32x32xf32, #tpu.memory_space<vmem>>, vector<1x1x8x32xf32>
    %69 = vector.shape_cast %68 : vector<1x1x8x32xf32> to vector<8x32xf32>
    %cst_37 = arith.constant dense<0.000000e+00> : vector<16x32xf32>
    %70 = tpu.matmul %67, %69, %cst_37 {dimension_numbers = #tpu.dot_dimension_numbers<[1], [0], [0], [1], [0, 0, 1, 1], [], []>} : vector<16x8xf32>, vector<8x32xf32>, vector<16x32xf32> -> vector<16x32xf32>
    %71 = arith.addf %50, %70 : vector<16x32xf32>
    %72 = vector.extract_strided_slice %30 {offsets = [0, 16], sizes = [16, 8], strides = [1, 1]} : vector<16x96xf32> to vector<16x8xf32>
    %73 = vector.extract_strided_slice %30 {offsets = [0, 48], sizes = [16, 8], strides = [1, 1]} : vector<16x96xf32> to vector<16x8xf32>
    %74 = vector.extract_strided_slice %30 {offsets = [0, 80], sizes = [16, 8], strides = [1, 1]} : vector<16x96xf32> to vector<16x8xf32>
    "tpu.trace_start"() <{level = 10 : i32, message = "qd,kd->qk"}> : () -> ()
    %cst_38 = arith.constant dense<0.000000e+00> : vector<16x16xf32>
    %75 = tpu.matmul %72, %73, %cst_38 {dimension_numbers = #tpu.dot_dimension_numbers<[1], [1], [0], [0], [0, 0, 1, 0], [], []>} : vector<16x8xf32>, vector<16x8xf32>, vector<16x16xf32> -> vector<16x16xf32>
    "tpu.trace_stop"() : () -> ()
    %cst_39 = arith.constant 0.353553385 : f32
    %76 = vector.broadcast %cst_39 : f32 to vector<16x16xf32>
    %77 = arith.mulf %75, %76 : vector<16x16xf32>
    %78 = arith.addf %77, %2 : vector<16x16xf32>
    %cst_40 = arith.constant dense<0xFF800000> : vector<16xf32>
    %79 = vector.multi_reduction <maximumf>, %78, %cst_40 [1] : vector<16x16xf32> to vector<16xf32>
    %80 = vector.shape_cast %79 : vector<16xf32> to vector<16x1xf32>
    %81 = vector.broadcast %80 : vector<16x1xf32> to vector<16x16xf32>
    %82 = arith.subf %78, %81 : vector<16x16xf32>
    %83 = math.exp %82 : vector<16x16xf32>
    %cst_41 = arith.constant dense<0.000000e+00> : vector<16xf32>
    %84 = vector.multi_reduction <add>, %83, %cst_41 [1] : vector<16x16xf32> to vector<16xf32>
    %85 = vector.shape_cast %84 : vector<16xf32> to vector<16x1xf32>
    %86 = vector.broadcast %85 : vector<16x1xf32> to vector<16x16xf32>
    %87 = arith.divf %83, %86 : vector<16x16xf32>
    %cst_42 = arith.constant dense<0.000000e+00> : vector<16x8xf32>
    %88 = tpu.matmul %87, %74, %cst_42 {dimension_numbers = #tpu.dot_dimension_numbers<[1], [0], [0], [1], [0, 0, 1, 1], [], []>} : vector<16x16xf32>, vector<16x8xf32>, vector<16x8xf32> -> vector<16x8xf32>
    %c0_43 = arith.constant 0 : index
    %c0_44 = arith.constant 0 : index
    %c16 = arith.constant 16 : index
    %c0_45 = arith.constant 0 : index
    %89 = vector.load %arg5[%c0_43, %c0_44, %c16, %c0_45] : memref<2x2x32x32xf32, #tpu.memory_space<vmem>>, vector<1x1x8x32xf32>
    %90 = vector.shape_cast %89 : vector<1x1x8x32xf32> to vector<8x32xf32>
    %cst_46 = arith.constant dense<0.000000e+00> : vector<16x32xf32>
    %91 = tpu.matmul %88, %90, %cst_46 {dimension_numbers = #tpu.dot_dimension_numbers<[1], [0], [0], [1], [0, 0, 1, 1], [], []>} : vector<16x8xf32>, vector<8x32xf32>, vector<16x32xf32> -> vector<16x32xf32>
    %92 = arith.addf %71, %91 : vector<16x32xf32>
    %93 = vector.extract_strided_slice %30 {offsets = [0, 24], sizes = [16, 8], strides = [1, 1]} : vector<16x96xf32> to vector<16x8xf32>
    %94 = vector.extract_strided_slice %30 {offsets = [0, 56], sizes = [16, 8], strides = [1, 1]} : vector<16x96xf32> to vector<16x8xf32>
    %95 = vector.extract_strided_slice %30 {offsets = [0, 88], sizes = [16, 8], strides = [1, 1]} : vector<16x96xf32> to vector<16x8xf32>
    "tpu.trace_start"() <{level = 10 : i32, message = "qd,kd->qk"}> : () -> ()
    %cst_47 = arith.constant dense<0.000000e+00> : vector<16x16xf32>
    %96 = tpu.matmul %93, %94, %cst_47 {dimension_numbers = #tpu.dot_dimension_numbers<[1], [1], [0], [0], [0, 0, 1, 0], [], []>} : vector<16x8xf32>, vector<16x8xf32>, vector<16x16xf32> -> vector<16x16xf32>
    "tpu.trace_stop"() : () -> ()
    %cst_48 = arith.constant 0.353553385 : f32
    %97 = vector.broadcast %cst_48 : f32 to vector<16x16xf32>
    %98 = arith.mulf %96, %97 : vector<16x16xf32>
    %99 = arith.addf %98, %2 : vector<16x16xf32>
    %cst_49 = arith.constant dense<0xFF800000> : vector<16xf32>
    %100 = vector.multi_reduction <maximumf>, %99, %cst_49 [1] : vector<16x16xf32> to vector<16xf32>
    %101 = vector.shape_cast %100 : vector<16xf32> to vector<16x1xf32>
    %102 = vector.broadcast %101 : vector<16x1xf32> to vector<16x16xf32>
    %103 = arith.subf %99, %102 : vector<16x16xf32>
    %104 = math.exp %103 : vector<16x16xf32>
    %cst_50 = arith.constant dense<0.000000e+00> : vector<16xf32>
    %105 = vector.multi_reduction <add>, %104, %cst_50 [1] : vector<16x16xf32> to vector<16xf32>
    %106 = vector.shape_cast %105 : vector<16xf32> to vector<16x1xf32>
    %107 = vector.broadcast %106 : vector<16x1xf32> to vector<16x16xf32>
    %108 = arith.divf %104, %107 : vector<16x16xf32>
    %cst_51 = arith.constant dense<0.000000e+00> : vector<16x8xf32>
    %109 = tpu.matmul %108, %95, %cst_51 {dimension_numbers = #tpu.dot_dimension_numbers<[1], [0], [0], [1], [0, 0, 1, 1], [], []>} : vector<16x16xf32>, vector<16x8xf32>, vector<16x8xf32> -> vector<16x8xf32>
    %c0_52 = arith.constant 0 : index
    %c0_53 = arith.constant 0 : index
    %c24 = arith.constant 24 : index
    %c0_54 = arith.constant 0 : index
    %110 = vector.load %arg5[%c0_52, %c0_53, %c24, %c0_54] : memref<2x2x32x32xf32, #tpu.memory_space<vmem>>, vector<1x1x8x32xf32>
    %111 = vector.shape_cast %110 : vector<1x1x8x32xf32> to vector<8x32xf32>
    %cst_55 = arith.constant dense<0.000000e+00> : vector<16x32xf32>
    %112 = tpu.matmul %109, %111, %cst_55 {dimension_numbers = #tpu.dot_dimension_numbers<[1], [0], [0], [1], [0, 0, 1, 1], [], []>} : vector<16x8xf32>, vector<8x32xf32>, vector<16x32xf32> -> vector<16x32xf32>
    %113 = arith.addf %92, %112 : vector<16x32xf32>
    %c6 = arith.constant 6 : index
    %c0_56 = arith.constant 0 : index
    %114 = vector.load %arg8[%c6, %c0_56] : memref<22x64xf32, #tpu.memory_space<vmem>>, vector<1x32xf32>
    %115 = vector.broadcast %114 : vector<1x32xf32> to vector<16x32xf32>
    %116 = arith.addf %113, %115 : vector<16x32xf32>
    %117 = arith.addf %0, %116 : vector<16x32xf32>
    %c2 = arith.constant 2 : index
    %c0_57 = arith.constant 0 : index
    %118 = vector.load %arg8[%c2, %c0_57] : memref<22x64xf32, #tpu.memory_space<vmem>>, vector<1x32xf32>
    %c3 = arith.constant 3 : index
    %c0_58 = arith.constant 0 : index
    %119 = vector.load %arg8[%c3, %c0_58] : memref<22x64xf32, #tpu.memory_space<vmem>>, vector<1x32xf32>
    %cst_59 = arith.constant dense<0.000000e+00> : vector<16xf32>
    %120 = vector.multi_reduction <add>, %117, %cst_59 [1] : vector<16x32xf32> to vector<16xf32>
    %121 = vector.shape_cast %120 : vector<16xf32> to vector<16x1xf32>
    %cst_60 = arith.constant 3.200000e+01 : f32
    %122 = vector.broadcast %cst_60 : f32 to vector<16x1xf32>
    %123 = arith.divf %121, %122 : vector<16x1xf32>
    %124 = vector.broadcast %123 : vector<16x1xf32> to vector<16x32xf32>
    %125 = arith.subf %117, %124 : vector<16x32xf32>
    %126 = arith.mulf %125, %125 : vector<16x32xf32>
    %cst_61 = arith.constant dense<0.000000e+00> : vector<16xf32>
    %127 = vector.multi_reduction <add>, %126, %cst_61 [1] : vector<16x32xf32> to vector<16xf32>
    %128 = vector.shape_cast %127 : vector<16xf32> to vector<16x1xf32>
    %cst_62 = arith.constant 3.200000e+01 : f32
    %129 = vector.broadcast %cst_62 : f32 to vector<16x1xf32>
    %130 = arith.divf %128, %129 : vector<16x1xf32>
    %131 = vector.broadcast %123 : vector<16x1xf32> to vector<16x32xf32>
    %132 = arith.subf %117, %131 : vector<16x32xf32>
    %cst_63 = arith.constant 9.99999974E-6 : f32
    %133 = vector.broadcast %cst_63 : f32 to vector<16x1xf32>
    %134 = arith.addf %130, %133 : vector<16x1xf32>
    %135 = math.rsqrt %134 : vector<16x1xf32>
    %136 = vector.broadcast %135 : vector<16x1xf32> to vector<16x32xf32>
    %137 = arith.mulf %132, %136 : vector<16x32xf32>
    %138 = vector.broadcast %118 : vector<1x32xf32> to vector<16x32xf32>
    %139 = arith.mulf %137, %138 : vector<16x32xf32>
    %140 = vector.broadcast %119 : vector<1x32xf32> to vector<16x32xf32>
    %141 = arith.addf %139, %140 : vector<16x32xf32>
    %c1_64 = arith.constant 1 : index
    %c0_65 = arith.constant 0 : index
    %c0_66 = arith.constant 0 : index
    %c0_67 = arith.constant 0 : index
    %142 = vector.load %arg4[%c1_64, %c0_65, %c0_66, %c0_67] : memref<2x2x32x96xf32, #tpu.memory_space<vmem>>, vector<1x1x32x96xf32>
    %143 = vector.shape_cast %142 : vector<1x1x32x96xf32> to vector<32x96xf32>
    %cst_68 = arith.constant dense<0.000000e+00> : vector<16x96xf32>
    %144 = tpu.matmul %141, %143, %cst_68 {dimension_numbers = #tpu.dot_dimension_numbers<[1], [0], [0], [1], [0, 0, 1, 1], [], []>} : vector<16x32xf32>, vector<32x96xf32>, vector<16x96xf32> -> vector<16x96xf32>
    %cst_69 = arith.constant dense<0.000000e+00> : vector<24x96xf32>
    %145 = tpu.matmul %1, %143, %cst_69 {dimension_numbers = #tpu.dot_dimension_numbers<[1], [0], [0], [1], [0, 0, 1, 1], [], []>} : vector<24x32xf32>, vector<32x96xf32>, vector<24x96xf32> -> vector<24x96xf32>
    %146 = vector.extract_strided_slice %144 {offsets = [0, 0], sizes = [16, 8], strides = [1, 1]} : vector<16x96xf32> to vector<16x8xf32>
    %147 = vector.extract_strided_slice %145 {offsets = [0, 32], sizes = [24, 8], strides = [1, 1]} : vector<24x96xf32> to vector<24x8xf32>
    %148 = vector.extract_strided_slice %145 {offsets = [0, 64], sizes = [24, 8], strides = [1, 1]} : vector<24x96xf32> to vector<24x8xf32>
    "tpu.trace_start"() <{level = 10 : i32, message = "qd,kd->qk"}> : () -> ()
    %cst_70 = arith.constant dense<0.000000e+00> : vector<16x24xf32>
    %149 = tpu.matmul %146, %147, %cst_70 {dimension_numbers = #tpu.dot_dimension_numbers<[1], [1], [0], [0], [0, 0, 1, 0], [], []>} : vector<16x8xf32>, vector<24x8xf32>, vector<16x24xf32> -> vector<16x24xf32>
    "tpu.trace_stop"() : () -> ()
    %cst_71 = arith.constant 0.353553385 : f32
    %150 = vector.broadcast %cst_71 : f32 to vector<16x24xf32>
    %151 = arith.mulf %149, %150 : vector<16x24xf32>
    %152 = arith.addf %151, %3 : vector<16x24xf32>
    %cst_72 = arith.constant dense<0xFF800000> : vector<16xf32>
    %153 = vector.multi_reduction <maximumf>, %152, %cst_72 [1] : vector<16x24xf32> to vector<16xf32>
    %154 = vector.shape_cast %153 : vector<16xf32> to vector<16x1xf32>
    %155 = vector.broadcast %154 : vector<16x1xf32> to vector<16x24xf32>
    %156 = arith.subf %152, %155 : vector<16x24xf32>
    %157 = math.exp %156 : vector<16x24xf32>
    %cst_73 = arith.constant dense<0.000000e+00> : vector<16xf32>
    %158 = vector.multi_reduction <add>, %157, %cst_73 [1] : vector<16x24xf32> to vector<16xf32>
    %159 = vector.shape_cast %158 : vector<16xf32> to vector<16x1xf32>
    %160 = vector.broadcast %159 : vector<16x1xf32> to vector<16x24xf32>
    %161 = arith.divf %157, %160 : vector<16x24xf32>
    %cst_74 = arith.constant dense<0.000000e+00> : vector<16x8xf32>
    %162 = tpu.matmul %161, %148, %cst_74 {dimension_numbers = #tpu.dot_dimension_numbers<[1], [0], [0], [1], [0, 0, 1, 1], [], []>} : vector<16x24xf32>, vector<24x8xf32>, vector<16x8xf32> -> vector<16x8xf32>
    %c1_75 = arith.constant 1 : index
    %c0_76 = arith.constant 0 : index
    %c0_77 = arith.constant 0 : index
    %c0_78 = arith.constant 0 : index
    %163 = vector.load %arg5[%c1_75, %c0_76, %c0_77, %c0_78] : memref<2x2x32x32xf32, #tpu.memory_space<vmem>>, vector<1x1x8x32xf32>
    %164 = vector.shape_cast %163 : vector<1x1x8x32xf32> to vector<8x32xf32>
    %cst_79 = arith.constant dense<0.000000e+00> : vector<16x32xf32>
    %165 = tpu.matmul %162, %164, %cst_79 {dimension_numbers = #tpu.dot_dimension_numbers<[1], [0], [0], [1], [0, 0, 1, 1], [], []>} : vector<16x8xf32>, vector<8x32xf32>, vector<16x32xf32> -> vector<16x32xf32>
    %166 = vector.extract_strided_slice %144 {offsets = [0, 8], sizes = [16, 8], strides = [1, 1]} : vector<16x96xf32> to vector<16x8xf32>
    %167 = vector.extract_strided_slice %145 {offsets = [0, 40], sizes = [24, 8], strides = [1, 1]} : vector<24x96xf32> to vector<24x8xf32>
    %168 = vector.extract_strided_slice %145 {offsets = [0, 72], sizes = [24, 8], strides = [1, 1]} : vector<24x96xf32> to vector<24x8xf32>
    "tpu.trace_start"() <{level = 10 : i32, message = "qd,kd->qk"}> : () -> ()
    %cst_80 = arith.constant dense<0.000000e+00> : vector<16x24xf32>
    %169 = tpu.matmul %166, %167, %cst_80 {dimension_numbers = #tpu.dot_dimension_numbers<[1], [1], [0], [0], [0, 0, 1, 0], [], []>} : vector<16x8xf32>, vector<24x8xf32>, vector<16x24xf32> -> vector<16x24xf32>
    "tpu.trace_stop"() : () -> ()
    %cst_81 = arith.constant 0.353553385 : f32
    %170 = vector.broadcast %cst_81 : f32 to vector<16x24xf32>
    %171 = arith.mulf %169, %170 : vector<16x24xf32>
    %172 = arith.addf %171, %3 : vector<16x24xf32>
    %cst_82 = arith.constant dense<0xFF800000> : vector<16xf32>
    %173 = vector.multi_reduction <maximumf>, %172, %cst_82 [1] : vector<16x24xf32> to vector<16xf32>
    %174 = vector.shape_cast %173 : vector<16xf32> to vector<16x1xf32>
    %175 = vector.broadcast %174 : vector<16x1xf32> to vector<16x24xf32>
    %176 = arith.subf %172, %175 : vector<16x24xf32>
    %177 = math.exp %176 : vector<16x24xf32>
    %cst_83 = arith.constant dense<0.000000e+00> : vector<16xf32>
    %178 = vector.multi_reduction <add>, %177, %cst_83 [1] : vector<16x24xf32> to vector<16xf32>
    %179 = vector.shape_cast %178 : vector<16xf32> to vector<16x1xf32>
    %180 = vector.broadcast %179 : vector<16x1xf32> to vector<16x24xf32>
    %181 = arith.divf %177, %180 : vector<16x24xf32>
    %cst_84 = arith.constant dense<0.000000e+00> : vector<16x8xf32>
    %182 = tpu.matmul %181, %168, %cst_84 {dimension_numbers = #tpu.dot_dimension_numbers<[1], [0], [0], [1], [0, 0, 1, 1], [], []>} : vector<16x24xf32>, vector<24x8xf32>, vector<16x8xf32> -> vector<16x8xf32>
    %c1_85 = arith.constant 1 : index
    %c0_86 = arith.constant 0 : index
    %c8_87 = arith.constant 8 : index
    %c0_88 = arith.constant 0 : index
    %183 = vector.load %arg5[%c1_85, %c0_86, %c8_87, %c0_88] : memref<2x2x32x32xf32, #tpu.memory_space<vmem>>, vector<1x1x8x32xf32>
    %184 = vector.shape_cast %183 : vector<1x1x8x32xf32> to vector<8x32xf32>
    %cst_89 = arith.constant dense<0.000000e+00> : vector<16x32xf32>
    %185 = tpu.matmul %182, %184, %cst_89 {dimension_numbers = #tpu.dot_dimension_numbers<[1], [0], [0], [1], [0, 0, 1, 1], [], []>} : vector<16x8xf32>, vector<8x32xf32>, vector<16x32xf32> -> vector<16x32xf32>
    %186 = arith.addf %165, %185 : vector<16x32xf32>
    %187 = vector.extract_strided_slice %144 {offsets = [0, 16], sizes = [16, 8], strides = [1, 1]} : vector<16x96xf32> to vector<16x8xf32>
    %188 = vector.extract_strided_slice %145 {offsets = [0, 48], sizes = [24, 8], strides = [1, 1]} : vector<24x96xf32> to vector<24x8xf32>
    %189 = vector.extract_strided_slice %145 {offsets = [0, 80], sizes = [24, 8], strides = [1, 1]} : vector<24x96xf32> to vector<24x8xf32>
    "tpu.trace_start"() <{level = 10 : i32, message = "qd,kd->qk"}> : () -> ()
    %cst_90 = arith.constant dense<0.000000e+00> : vector<16x24xf32>
    %190 = tpu.matmul %187, %188, %cst_90 {dimension_numbers = #tpu.dot_dimension_numbers<[1], [1], [0], [0], [0, 0, 1, 0], [], []>} : vector<16x8xf32>, vector<24x8xf32>, vector<16x24xf32> -> vector<16x24xf32>
    "tpu.trace_stop"() : () -> ()
    %cst_91 = arith.constant 0.353553385 : f32
    %191 = vector.broadcast %cst_91 : f32 to vector<16x24xf32>
    %192 = arith.mulf %190, %191 : vector<16x24xf32>
    %193 = arith.addf %192, %3 : vector<16x24xf32>
    %cst_92 = arith.constant dense<0xFF800000> : vector<16xf32>
    %194 = vector.multi_reduction <maximumf>, %193, %cst_92 [1] : vector<16x24xf32> to vector<16xf32>
    %195 = vector.shape_cast %194 : vector<16xf32> to vector<16x1xf32>
    %196 = vector.broadcast %195 : vector<16x1xf32> to vector<16x24xf32>
    %197 = arith.subf %193, %196 : vector<16x24xf32>
    %198 = math.exp %197 : vector<16x24xf32>
    %cst_93 = arith.constant dense<0.000000e+00> : vector<16xf32>
    %199 = vector.multi_reduction <add>, %198, %cst_93 [1] : vector<16x24xf32> to vector<16xf32>
    %200 = vector.shape_cast %199 : vector<16xf32> to vector<16x1xf32>
    %201 = vector.broadcast %200 : vector<16x1xf32> to vector<16x24xf32>
    %202 = arith.divf %198, %201 : vector<16x24xf32>
    %cst_94 = arith.constant dense<0.000000e+00> : vector<16x8xf32>
    %203 = tpu.matmul %202, %189, %cst_94 {dimension_numbers = #tpu.dot_dimension_numbers<[1], [0], [0], [1], [0, 0, 1, 1], [], []>} : vector<16x24xf32>, vector<24x8xf32>, vector<16x8xf32> -> vector<16x8xf32>
    %c1_95 = arith.constant 1 : index
    %c0_96 = arith.constant 0 : index
    %c16_97 = arith.constant 16 : index
    %c0_98 = arith.constant 0 : index
    %204 = vector.load %arg5[%c1_95, %c0_96, %c16_97, %c0_98] : memref<2x2x32x32xf32, #tpu.memory_space<vmem>>, vector<1x1x8x32xf32>
    %205 = vector.shape_cast %204 : vector<1x1x8x32xf32> to vector<8x32xf32>
    %cst_99 = arith.constant dense<0.000000e+00> : vector<16x32xf32>
    %206 = tpu.matmul %203, %205, %cst_99 {dimension_numbers = #tpu.dot_dimension_numbers<[1], [0], [0], [1], [0, 0, 1, 1], [], []>} : vector<16x8xf32>, vector<8x32xf32>, vector<16x32xf32> -> vector<16x32xf32>
    %207 = arith.addf %186, %206 : vector<16x32xf32>
    %208 = vector.extract_strided_slice %144 {offsets = [0, 24], sizes = [16, 8], strides = [1, 1]} : vector<16x96xf32> to vector<16x8xf32>
    %209 = vector.extract_strided_slice %145 {offsets = [0, 56], sizes = [24, 8], strides = [1, 1]} : vector<24x96xf32> to vector<24x8xf32>
    %210 = vector.extract_strided_slice %145 {offsets = [0, 88], sizes = [24, 8], strides = [1, 1]} : vector<24x96xf32> to vector<24x8xf32>
    "tpu.trace_start"() <{level = 10 : i32, message = "qd,kd->qk"}> : () -> ()
    %cst_100 = arith.constant dense<0.000000e+00> : vector<16x24xf32>
    %211 = tpu.matmul %208, %209, %cst_100 {dimension_numbers = #tpu.dot_dimension_numbers<[1], [1], [0], [0], [0, 0, 1, 0], [], []>} : vector<16x8xf32>, vector<24x8xf32>, vector<16x24xf32> -> vector<16x24xf32>
    "tpu.trace_stop"() : () -> ()
    %cst_101 = arith.constant 0.353553385 : f32
    %212 = vector.broadcast %cst_101 : f32 to vector<16x24xf32>
    %213 = arith.mulf %211, %212 : vector<16x24xf32>
    %214 = arith.addf %213, %3 : vector<16x24xf32>
    %cst_102 = arith.constant dense<0xFF800000> : vector<16xf32>
    %215 = vector.multi_reduction <maximumf>, %214, %cst_102 [1] : vector<16x24xf32> to vector<16xf32>
    %216 = vector.shape_cast %215 : vector<16xf32> to vector<16x1xf32>
    %217 = vector.broadcast %216 : vector<16x1xf32> to vector<16x24xf32>
    %218 = arith.subf %214, %217 : vector<16x24xf32>
    %219 = math.exp %218 : vector<16x24xf32>
    %cst_103 = arith.constant dense<0.000000e+00> : vector<16xf32>
    %220 = vector.multi_reduction <add>, %219, %cst_103 [1] : vector<16x24xf32> to vector<16xf32>
    %221 = vector.shape_cast %220 : vector<16xf32> to vector<16x1xf32>
    %222 = vector.broadcast %221 : vector<16x1xf32> to vector<16x24xf32>
    %223 = arith.divf %219, %222 : vector<16x24xf32>
    %cst_104 = arith.constant dense<0.000000e+00> : vector<16x8xf32>
    %224 = tpu.matmul %223, %210, %cst_104 {dimension_numbers = #tpu.dot_dimension_numbers<[1], [0], [0], [1], [0, 0, 1, 1], [], []>} : vector<16x24xf32>, vector<24x8xf32>, vector<16x8xf32> -> vector<16x8xf32>
    %c1_105 = arith.constant 1 : index
    %c0_106 = arith.constant 0 : index
    %c24_107 = arith.constant 24 : index
    %c0_108 = arith.constant 0 : index
    %225 = vector.load %arg5[%c1_105, %c0_106, %c24_107, %c0_108] : memref<2x2x32x32xf32, #tpu.memory_space<vmem>>, vector<1x1x8x32xf32>
    %226 = vector.shape_cast %225 : vector<1x1x8x32xf32> to vector<8x32xf32>
    %cst_109 = arith.constant dense<0.000000e+00> : vector<16x32xf32>
    %227 = tpu.matmul %224, %226, %cst_109 {dimension_numbers = #tpu.dot_dimension_numbers<[1], [0], [0], [1], [0, 0, 1, 1], [], []>} : vector<16x8xf32>, vector<8x32xf32>, vector<16x32xf32> -> vector<16x32xf32>
    %228 = arith.addf %207, %227 : vector<16x32xf32>
    %c7 = arith.constant 7 : index
    %c0_110 = arith.constant 0 : index
    %229 = vector.load %arg8[%c7, %c0_110] : memref<22x64xf32, #tpu.memory_space<vmem>>, vector<1x32xf32>
    %230 = vector.broadcast %229 : vector<1x32xf32> to vector<16x32xf32>
    %231 = arith.addf %228, %230 : vector<16x32xf32>
    %232 = arith.addf %117, %231 : vector<16x32xf32>
    %c4 = arith.constant 4 : index
    %c0_111 = arith.constant 0 : index
    %233 = vector.load %arg8[%c4, %c0_111] : memref<22x64xf32, #tpu.memory_space<vmem>>, vector<1x32xf32>
    %c5 = arith.constant 5 : index
    %c0_112 = arith.constant 0 : index
    %234 = vector.load %arg8[%c5, %c0_112] : memref<22x64xf32, #tpu.memory_space<vmem>>, vector<1x32xf32>
    %cst_113 = arith.constant dense<0.000000e+00> : vector<16xf32>
    %235 = vector.multi_reduction <add>, %232, %cst_113 [1] : vector<16x32xf32> to vector<16xf32>
    %236 = vector.shape_cast %235 : vector<16xf32> to vector<16x1xf32>
    %cst_114 = arith.constant 3.200000e+01 : f32
    %237 = vector.broadcast %cst_114 : f32 to vector<16x1xf32>
    %238 = arith.divf %236, %237 : vector<16x1xf32>
    %239 = vector.broadcast %238 : vector<16x1xf32> to vector<16x32xf32>
    %240 = arith.subf %232, %239 : vector<16x32xf32>
    %241 = arith.mulf %240, %240 : vector<16x32xf32>
    %cst_115 = arith.constant dense<0.000000e+00> : vector<16xf32>
    %242 = vector.multi_reduction <add>, %241, %cst_115 [1] : vector<16x32xf32> to vector<16xf32>
    %243 = vector.shape_cast %242 : vector<16xf32> to vector<16x1xf32>
    %cst_116 = arith.constant 3.200000e+01 : f32
    %244 = vector.broadcast %cst_116 : f32 to vector<16x1xf32>
    %245 = arith.divf %243, %244 : vector<16x1xf32>
    %246 = vector.broadcast %238 : vector<16x1xf32> to vector<16x32xf32>
    %247 = arith.subf %232, %246 : vector<16x32xf32>
    %cst_117 = arith.constant 9.99999974E-6 : f32
    %248 = vector.broadcast %cst_117 : f32 to vector<16x1xf32>
    %249 = arith.addf %245, %248 : vector<16x1xf32>
    %250 = math.rsqrt %249 : vector<16x1xf32>
    %251 = vector.broadcast %250 : vector<16x1xf32> to vector<16x32xf32>
    %252 = arith.mulf %247, %251 : vector<16x32xf32>
    %253 = vector.broadcast %233 : vector<1x32xf32> to vector<16x32xf32>
    %254 = arith.mulf %252, %253 : vector<16x32xf32>
    %255 = vector.broadcast %234 : vector<1x32xf32> to vector<16x32xf32>
    %256 = arith.addf %254, %255 : vector<16x32xf32>
    %c0_118 = arith.constant 0 : index
    %c0_119 = arith.constant 0 : index
    %c0_120 = arith.constant 0 : index
    %257 = vector.load %arg6[%c0_118, %c0_119, %c0_120] : memref<2x32x64xf32, #tpu.memory_space<vmem>>, vector<1x32x64xf32>
    %258 = vector.shape_cast %257 : vector<1x32x64xf32> to vector<32x64xf32>
    %cst_121 = arith.constant dense<0.000000e+00> : vector<16x64xf32>
    %259 = tpu.matmul %256, %258, %cst_121 {dimension_numbers = #tpu.dot_dimension_numbers<[1], [0], [0], [1], [0, 0, 1, 1], [], []>} : vector<16x32xf32>, vector<32x64xf32>, vector<16x64xf32> -> vector<16x64xf32>
    %c8_122 = arith.constant 8 : index
    %c0_123 = arith.constant 0 : index
    %260 = vector.load %arg8[%c8_122, %c0_123] : memref<22x64xf32, #tpu.memory_space<vmem>>, vector<1x64xf32>
    %261 = vector.broadcast %260 : vector<1x64xf32> to vector<16x64xf32>
    %262 = arith.addf %259, %261 : vector<16x64xf32>
    %cst_124 = arith.constant 5.000000e-01 : f32
    %263 = vector.broadcast %cst_124 : f32 to vector<16x64xf32>
    %264 = arith.mulf %263, %262 : vector<16x64xf32>
    %cst_125 = arith.constant 0.707106769 : f32
    %265 = vector.broadcast %cst_125 : f32 to vector<16x64xf32>
    %266 = arith.mulf %262, %265 : vector<16x64xf32>
    %267 = math.erf %266 : vector<16x64xf32>
    %cst_126 = arith.constant 1.000000e+00 : f32
    %268 = vector.broadcast %cst_126 : f32 to vector<16x64xf32>
    %269 = arith.addf %268, %267 : vector<16x64xf32>
    %270 = arith.mulf %264, %269 : vector<16x64xf32>
    %c0_127 = arith.constant 0 : index
    %c0_128 = arith.constant 0 : index
    %c0_129 = arith.constant 0 : index
    %271 = vector.load %arg7[%c0_127, %c0_128, %c0_129] : memref<2x64x32xf32, #tpu.memory_space<vmem>>, vector<1x64x32xf32>
    %272 = vector.shape_cast %271 : vector<1x64x32xf32> to vector<64x32xf32>
    %cst_130 = arith.constant dense<0.000000e+00> : vector<16x32xf32>
    %273 = tpu.matmul %270, %272, %cst_130 {dimension_numbers = #tpu.dot_dimension_numbers<[1], [0], [0], [1], [0, 0, 1, 1], [], []>} : vector<16x64xf32>, vector<64x32xf32>, vector<16x32xf32> -> vector<16x32xf32>
    %c9 = arith.constant 9 : index
    %c0_131 = arith.constant 0 : index
    %274 = vector.load %arg8[%c9, %c0_131] : memref<22x64xf32, #tpu.memory_space<vmem>>, vector<1x32xf32>
    %275 = vector.broadcast %274 : vector<1x32xf32> to vector<16x32xf32>
    %276 = arith.addf %273, %275 : vector<16x32xf32>
    %277 = arith.addf %232, %276 : vector<16x32xf32>
    %c10 = arith.constant 10 : index
    %c0_132 = arith.constant 0 : index
    %278 = vector.load %arg8[%c10, %c0_132] : memref<22x64xf32, #tpu.memory_space<vmem>>, vector<1x32xf32>
    %c11 = arith.constant 11 : index
    %c0_133 = arith.constant 0 : index
    %279 = vector.load %arg8[%c11, %c0_133] : memref<22x64xf32, #tpu.memory_space<vmem>>, vector<1x32xf32>
    %cst_134 = arith.constant dense<0.000000e+00> : vector<16xf32>
    %280 = vector.multi_reduction <add>, %277, %cst_134 [1] : vector<16x32xf32> to vector<16xf32>
    %281 = vector.shape_cast %280 : vector<16xf32> to vector<16x1xf32>
    %cst_135 = arith.constant 3.200000e+01 : f32
    %282 = vector.broadcast %cst_135 : f32 to vector<16x1xf32>
    %283 = arith.divf %281, %282 : vector<16x1xf32>
    %284 = vector.broadcast %283 : vector<16x1xf32> to vector<16x32xf32>
    %285 = arith.subf %277, %284 : vector<16x32xf32>
    %286 = arith.mulf %285, %285 : vector<16x32xf32>
    %cst_136 = arith.constant dense<0.000000e+00> : vector<16xf32>
    %287 = vector.multi_reduction <add>, %286, %cst_136 [1] : vector<16x32xf32> to vector<16xf32>
    %288 = vector.shape_cast %287 : vector<16xf32> to vector<16x1xf32>
    %cst_137 = arith.constant 3.200000e+01 : f32
    %289 = vector.broadcast %cst_137 : f32 to vector<16x1xf32>
    %290 = arith.divf %288, %289 : vector<16x1xf32>
    %291 = vector.broadcast %283 : vector<16x1xf32> to vector<16x32xf32>
    %292 = arith.subf %277, %291 : vector<16x32xf32>
    %cst_138 = arith.constant 9.99999974E-6 : f32
    %293 = vector.broadcast %cst_138 : f32 to vector<16x1xf32>
    %294 = arith.addf %290, %293 : vector<16x1xf32>
    %295 = math.rsqrt %294 : vector<16x1xf32>
    %296 = vector.broadcast %295 : vector<16x1xf32> to vector<16x32xf32>
    %297 = arith.mulf %292, %296 : vector<16x32xf32>
    %298 = vector.broadcast %278 : vector<1x32xf32> to vector<16x32xf32>
    %299 = arith.mulf %297, %298 : vector<16x32xf32>
    %300 = vector.broadcast %279 : vector<1x32xf32> to vector<16x32xf32>
    %301 = arith.addf %299, %300 : vector<16x32xf32>
    %c0_139 = arith.constant 0 : index
    %c1_140 = arith.constant 1 : index
    %c0_141 = arith.constant 0 : index
    %c0_142 = arith.constant 0 : index
    %302 = vector.load %arg4[%c0_139, %c1_140, %c0_141, %c0_142] : memref<2x2x32x96xf32, #tpu.memory_space<vmem>>, vector<1x1x32x96xf32>
    %303 = vector.shape_cast %302 : vector<1x1x32x96xf32> to vector<32x96xf32>
    %cst_143 = arith.constant dense<0.000000e+00> : vector<16x96xf32>
    %304 = tpu.matmul %301, %303, %cst_143 {dimension_numbers = #tpu.dot_dimension_numbers<[1], [0], [0], [1], [0, 0, 1, 1], [], []>} : vector<16x32xf32>, vector<32x96xf32>, vector<16x96xf32> -> vector<16x96xf32>
    %305 = vector.extract_strided_slice %304 {offsets = [0, 0], sizes = [16, 8], strides = [1, 1]} : vector<16x96xf32> to vector<16x8xf32>
    %306 = vector.extract_strided_slice %304 {offsets = [0, 32], sizes = [16, 8], strides = [1, 1]} : vector<16x96xf32> to vector<16x8xf32>
    %307 = vector.extract_strided_slice %304 {offsets = [0, 64], sizes = [16, 8], strides = [1, 1]} : vector<16x96xf32> to vector<16x8xf32>
    "tpu.trace_start"() <{level = 10 : i32, message = "qd,kd->qk"}> : () -> ()
    %cst_144 = arith.constant dense<0.000000e+00> : vector<16x16xf32>
    %308 = tpu.matmul %305, %306, %cst_144 {dimension_numbers = #tpu.dot_dimension_numbers<[1], [1], [0], [0], [0, 0, 1, 0], [], []>} : vector<16x8xf32>, vector<16x8xf32>, vector<16x16xf32> -> vector<16x16xf32>
    "tpu.trace_stop"() : () -> ()
    %cst_145 = arith.constant 0.353553385 : f32
    %309 = vector.broadcast %cst_145 : f32 to vector<16x16xf32>
    %310 = arith.mulf %308, %309 : vector<16x16xf32>
    %311 = arith.addf %310, %2 : vector<16x16xf32>
    %cst_146 = arith.constant dense<0xFF800000> : vector<16xf32>
    %312 = vector.multi_reduction <maximumf>, %311, %cst_146 [1] : vector<16x16xf32> to vector<16xf32>
    %313 = vector.shape_cast %312 : vector<16xf32> to vector<16x1xf32>
    %314 = vector.broadcast %313 : vector<16x1xf32> to vector<16x16xf32>
    %315 = arith.subf %311, %314 : vector<16x16xf32>
    %316 = math.exp %315 : vector<16x16xf32>
    %cst_147 = arith.constant dense<0.000000e+00> : vector<16xf32>
    %317 = vector.multi_reduction <add>, %316, %cst_147 [1] : vector<16x16xf32> to vector<16xf32>
    %318 = vector.shape_cast %317 : vector<16xf32> to vector<16x1xf32>
    %319 = vector.broadcast %318 : vector<16x1xf32> to vector<16x16xf32>
    %320 = arith.divf %316, %319 : vector<16x16xf32>
    %cst_148 = arith.constant dense<0.000000e+00> : vector<16x8xf32>
    %321 = tpu.matmul %320, %307, %cst_148 {dimension_numbers = #tpu.dot_dimension_numbers<[1], [0], [0], [1], [0, 0, 1, 1], [], []>} : vector<16x16xf32>, vector<16x8xf32>, vector<16x8xf32> -> vector<16x8xf32>
    %c0_149 = arith.constant 0 : index
    %c1_150 = arith.constant 1 : index
    %c0_151 = arith.constant 0 : index
    %c0_152 = arith.constant 0 : index
    %322 = vector.load %arg5[%c0_149, %c1_150, %c0_151, %c0_152] : memref<2x2x32x32xf32, #tpu.memory_space<vmem>>, vector<1x1x8x32xf32>
    %323 = vector.shape_cast %322 : vector<1x1x8x32xf32> to vector<8x32xf32>
    %cst_153 = arith.constant dense<0.000000e+00> : vector<16x32xf32>
    %324 = tpu.matmul %321, %323, %cst_153 {dimension_numbers = #tpu.dot_dimension_numbers<[1], [0], [0], [1], [0, 0, 1, 1], [], []>} : vector<16x8xf32>, vector<8x32xf32>, vector<16x32xf32> -> vector<16x32xf32>
    %325 = vector.extract_strided_slice %304 {offsets = [0, 8], sizes = [16, 8], strides = [1, 1]} : vector<16x96xf32> to vector<16x8xf32>
    %326 = vector.extract_strided_slice %304 {offsets = [0, 40], sizes = [16, 8], strides = [1, 1]} : vector<16x96xf32> to vector<16x8xf32>
    %327 = vector.extract_strided_slice %304 {offsets = [0, 72], sizes = [16, 8], strides = [1, 1]} : vector<16x96xf32> to vector<16x8xf32>
    "tpu.trace_start"() <{level = 10 : i32, message = "qd,kd->qk"}> : () -> ()
    %cst_154 = arith.constant dense<0.000000e+00> : vector<16x16xf32>
    %328 = tpu.matmul %325, %326, %cst_154 {dimension_numbers = #tpu.dot_dimension_numbers<[1], [1], [0], [0], [0, 0, 1, 0], [], []>} : vector<16x8xf32>, vector<16x8xf32>, vector<16x16xf32> -> vector<16x16xf32>
    "tpu.trace_stop"() : () -> ()
    %cst_155 = arith.constant 0.353553385 : f32
    %329 = vector.broadcast %cst_155 : f32 to vector<16x16xf32>
    %330 = arith.mulf %328, %329 : vector<16x16xf32>
    %331 = arith.addf %330, %2 : vector<16x16xf32>
    %cst_156 = arith.constant dense<0xFF800000> : vector<16xf32>
    %332 = vector.multi_reduction <maximumf>, %331, %cst_156 [1] : vector<16x16xf32> to vector<16xf32>
    %333 = vector.shape_cast %332 : vector<16xf32> to vector<16x1xf32>
    %334 = vector.broadcast %333 : vector<16x1xf32> to vector<16x16xf32>
    %335 = arith.subf %331, %334 : vector<16x16xf32>
    %336 = math.exp %335 : vector<16x16xf32>
    %cst_157 = arith.constant dense<0.000000e+00> : vector<16xf32>
    %337 = vector.multi_reduction <add>, %336, %cst_157 [1] : vector<16x16xf32> to vector<16xf32>
    %338 = vector.shape_cast %337 : vector<16xf32> to vector<16x1xf32>
    %339 = vector.broadcast %338 : vector<16x1xf32> to vector<16x16xf32>
    %340 = arith.divf %336, %339 : vector<16x16xf32>
    %cst_158 = arith.constant dense<0.000000e+00> : vector<16x8xf32>
    %341 = tpu.matmul %340, %327, %cst_158 {dimension_numbers = #tpu.dot_dimension_numbers<[1], [0], [0], [1], [0, 0, 1, 1], [], []>} : vector<16x16xf32>, vector<16x8xf32>, vector<16x8xf32> -> vector<16x8xf32>
    %c0_159 = arith.constant 0 : index
    %c1_160 = arith.constant 1 : index
    %c8_161 = arith.constant 8 : index
    %c0_162 = arith.constant 0 : index
    %342 = vector.load %arg5[%c0_159, %c1_160, %c8_161, %c0_162] : memref<2x2x32x32xf32, #tpu.memory_space<vmem>>, vector<1x1x8x32xf32>
    %343 = vector.shape_cast %342 : vector<1x1x8x32xf32> to vector<8x32xf32>
    %cst_163 = arith.constant dense<0.000000e+00> : vector<16x32xf32>
    %344 = tpu.matmul %341, %343, %cst_163 {dimension_numbers = #tpu.dot_dimension_numbers<[1], [0], [0], [1], [0, 0, 1, 1], [], []>} : vector<16x8xf32>, vector<8x32xf32>, vector<16x32xf32> -> vector<16x32xf32>
    %345 = arith.addf %324, %344 : vector<16x32xf32>
    %346 = vector.extract_strided_slice %304 {offsets = [0, 16], sizes = [16, 8], strides = [1, 1]} : vector<16x96xf32> to vector<16x8xf32>
    %347 = vector.extract_strided_slice %304 {offsets = [0, 48], sizes = [16, 8], strides = [1, 1]} : vector<16x96xf32> to vector<16x8xf32>
    %348 = vector.extract_strided_slice %304 {offsets = [0, 80], sizes = [16, 8], strides = [1, 1]} : vector<16x96xf32> to vector<16x8xf32>
    "tpu.trace_start"() <{level = 10 : i32, message = "qd,kd->qk"}> : () -> ()
    %cst_164 = arith.constant dense<0.000000e+00> : vector<16x16xf32>
    %349 = tpu.matmul %346, %347, %cst_164 {dimension_numbers = #tpu.dot_dimension_numbers<[1], [1], [0], [0], [0, 0, 1, 0], [], []>} : vector<16x8xf32>, vector<16x8xf32>, vector<16x16xf32> -> vector<16x16xf32>
    "tpu.trace_stop"() : () -> ()
    %cst_165 = arith.constant 0.353553385 : f32
    %350 = vector.broadcast %cst_165 : f32 to vector<16x16xf32>
    %351 = arith.mulf %349, %350 : vector<16x16xf32>
    %352 = arith.addf %351, %2 : vector<16x16xf32>
    %cst_166 = arith.constant dense<0xFF800000> : vector<16xf32>
    %353 = vector.multi_reduction <maximumf>, %352, %cst_166 [1] : vector<16x16xf32> to vector<16xf32>
    %354 = vector.shape_cast %353 : vector<16xf32> to vector<16x1xf32>
    %355 = vector.broadcast %354 : vector<16x1xf32> to vector<16x16xf32>
    %356 = arith.subf %352, %355 : vector<16x16xf32>
    %357 = math.exp %356 : vector<16x16xf32>
    %cst_167 = arith.constant dense<0.000000e+00> : vector<16xf32>
    %358 = vector.multi_reduction <add>, %357, %cst_167 [1] : vector<16x16xf32> to vector<16xf32>
    %359 = vector.shape_cast %358 : vector<16xf32> to vector<16x1xf32>
    %360 = vector.broadcast %359 : vector<16x1xf32> to vector<16x16xf32>
    %361 = arith.divf %357, %360 : vector<16x16xf32>
    %cst_168 = arith.constant dense<0.000000e+00> : vector<16x8xf32>
    %362 = tpu.matmul %361, %348, %cst_168 {dimension_numbers = #tpu.dot_dimension_numbers<[1], [0], [0], [1], [0, 0, 1, 1], [], []>} : vector<16x16xf32>, vector<16x8xf32>, vector<16x8xf32> -> vector<16x8xf32>
    %c0_169 = arith.constant 0 : index
    %c1_170 = arith.constant 1 : index
    %c16_171 = arith.constant 16 : index
    %c0_172 = arith.constant 0 : index
    %363 = vector.load %arg5[%c0_169, %c1_170, %c16_171, %c0_172] : memref<2x2x32x32xf32, #tpu.memory_space<vmem>>, vector<1x1x8x32xf32>
    %364 = vector.shape_cast %363 : vector<1x1x8x32xf32> to vector<8x32xf32>
    %cst_173 = arith.constant dense<0.000000e+00> : vector<16x32xf32>
    %365 = tpu.matmul %362, %364, %cst_173 {dimension_numbers = #tpu.dot_dimension_numbers<[1], [0], [0], [1], [0, 0, 1, 1], [], []>} : vector<16x8xf32>, vector<8x32xf32>, vector<16x32xf32> -> vector<16x32xf32>
    %366 = arith.addf %345, %365 : vector<16x32xf32>
    %367 = vector.extract_strided_slice %304 {offsets = [0, 24], sizes = [16, 8], strides = [1, 1]} : vector<16x96xf32> to vector<16x8xf32>
    %368 = vector.extract_strided_slice %304 {offsets = [0, 56], sizes = [16, 8], strides = [1, 1]} : vector<16x96xf32> to vector<16x8xf32>
    %369 = vector.extract_strided_slice %304 {offsets = [0, 88], sizes = [16, 8], strides = [1, 1]} : vector<16x96xf32> to vector<16x8xf32>
    "tpu.trace_start"() <{level = 10 : i32, message = "qd,kd->qk"}> : () -> ()
    %cst_174 = arith.constant dense<0.000000e+00> : vector<16x16xf32>
    %370 = tpu.matmul %367, %368, %cst_174 {dimension_numbers = #tpu.dot_dimension_numbers<[1], [1], [0], [0], [0, 0, 1, 0], [], []>} : vector<16x8xf32>, vector<16x8xf32>, vector<16x16xf32> -> vector<16x16xf32>
    "tpu.trace_stop"() : () -> ()
    %cst_175 = arith.constant 0.353553385 : f32
    %371 = vector.broadcast %cst_175 : f32 to vector<16x16xf32>
    %372 = arith.mulf %370, %371 : vector<16x16xf32>
    %373 = arith.addf %372, %2 : vector<16x16xf32>
    %cst_176 = arith.constant dense<0xFF800000> : vector<16xf32>
    %374 = vector.multi_reduction <maximumf>, %373, %cst_176 [1] : vector<16x16xf32> to vector<16xf32>
    %375 = vector.shape_cast %374 : vector<16xf32> to vector<16x1xf32>
    %376 = vector.broadcast %375 : vector<16x1xf32> to vector<16x16xf32>
    %377 = arith.subf %373, %376 : vector<16x16xf32>
    %378 = math.exp %377 : vector<16x16xf32>
    %cst_177 = arith.constant dense<0.000000e+00> : vector<16xf32>
    %379 = vector.multi_reduction <add>, %378, %cst_177 [1] : vector<16x16xf32> to vector<16xf32>
    %380 = vector.shape_cast %379 : vector<16xf32> to vector<16x1xf32>
    %381 = vector.broadcast %380 : vector<16x1xf32> to vector<16x16xf32>
    %382 = arith.divf %378, %381 : vector<16x16xf32>
    %cst_178 = arith.constant dense<0.000000e+00> : vector<16x8xf32>
    %383 = tpu.matmul %382, %369, %cst_178 {dimension_numbers = #tpu.dot_dimension_numbers<[1], [0], [0], [1], [0, 0, 1, 1], [], []>} : vector<16x16xf32>, vector<16x8xf32>, vector<16x8xf32> -> vector<16x8xf32>
    %c0_179 = arith.constant 0 : index
    %c1_180 = arith.constant 1 : index
    %c24_181 = arith.constant 24 : index
    %c0_182 = arith.constant 0 : index
    %384 = vector.load %arg5[%c0_179, %c1_180, %c24_181, %c0_182] : memref<2x2x32x32xf32, #tpu.memory_space<vmem>>, vector<1x1x8x32xf32>
    %385 = vector.shape_cast %384 : vector<1x1x8x32xf32> to vector<8x32xf32>
    %cst_183 = arith.constant dense<0.000000e+00> : vector<16x32xf32>
    %386 = tpu.matmul %383, %385, %cst_183 {dimension_numbers = #tpu.dot_dimension_numbers<[1], [0], [0], [1], [0, 0, 1, 1], [], []>} : vector<16x8xf32>, vector<8x32xf32>, vector<16x32xf32> -> vector<16x32xf32>
    %387 = arith.addf %366, %386 : vector<16x32xf32>
    %c16_184 = arith.constant 16 : index
    %c0_185 = arith.constant 0 : index
    %388 = vector.load %arg8[%c16_184, %c0_185] : memref<22x64xf32, #tpu.memory_space<vmem>>, vector<1x32xf32>
    %389 = vector.broadcast %388 : vector<1x32xf32> to vector<16x32xf32>
    %390 = arith.addf %387, %389 : vector<16x32xf32>
    %391 = arith.addf %277, %390 : vector<16x32xf32>
    %c12 = arith.constant 12 : index
    %c0_186 = arith.constant 0 : index
    %392 = vector.load %arg8[%c12, %c0_186] : memref<22x64xf32, #tpu.memory_space<vmem>>, vector<1x32xf32>
    %c13 = arith.constant 13 : index
    %c0_187 = arith.constant 0 : index
    %393 = vector.load %arg8[%c13, %c0_187] : memref<22x64xf32, #tpu.memory_space<vmem>>, vector<1x32xf32>
    %cst_188 = arith.constant dense<0.000000e+00> : vector<16xf32>
    %394 = vector.multi_reduction <add>, %391, %cst_188 [1] : vector<16x32xf32> to vector<16xf32>
    %395 = vector.shape_cast %394 : vector<16xf32> to vector<16x1xf32>
    %cst_189 = arith.constant 3.200000e+01 : f32
    %396 = vector.broadcast %cst_189 : f32 to vector<16x1xf32>
    %397 = arith.divf %395, %396 : vector<16x1xf32>
    %398 = vector.broadcast %397 : vector<16x1xf32> to vector<16x32xf32>
    %399 = arith.subf %391, %398 : vector<16x32xf32>
    %400 = arith.mulf %399, %399 : vector<16x32xf32>
    %cst_190 = arith.constant dense<0.000000e+00> : vector<16xf32>
    %401 = vector.multi_reduction <add>, %400, %cst_190 [1] : vector<16x32xf32> to vector<16xf32>
    %402 = vector.shape_cast %401 : vector<16xf32> to vector<16x1xf32>
    %cst_191 = arith.constant 3.200000e+01 : f32
    %403 = vector.broadcast %cst_191 : f32 to vector<16x1xf32>
    %404 = arith.divf %402, %403 : vector<16x1xf32>
    %405 = vector.broadcast %397 : vector<16x1xf32> to vector<16x32xf32>
    %406 = arith.subf %391, %405 : vector<16x32xf32>
    %cst_192 = arith.constant 9.99999974E-6 : f32
    %407 = vector.broadcast %cst_192 : f32 to vector<16x1xf32>
    %408 = arith.addf %404, %407 : vector<16x1xf32>
    %409 = math.rsqrt %408 : vector<16x1xf32>
    %410 = vector.broadcast %409 : vector<16x1xf32> to vector<16x32xf32>
    %411 = arith.mulf %406, %410 : vector<16x32xf32>
    %412 = vector.broadcast %392 : vector<1x32xf32> to vector<16x32xf32>
    %413 = arith.mulf %411, %412 : vector<16x32xf32>
    %414 = vector.broadcast %393 : vector<1x32xf32> to vector<16x32xf32>
    %415 = arith.addf %413, %414 : vector<16x32xf32>
    %c1_193 = arith.constant 1 : index
    %c1_194 = arith.constant 1 : index
    %c0_195 = arith.constant 0 : index
    %c0_196 = arith.constant 0 : index
    %416 = vector.load %arg4[%c1_193, %c1_194, %c0_195, %c0_196] : memref<2x2x32x96xf32, #tpu.memory_space<vmem>>, vector<1x1x32x96xf32>
    %417 = vector.shape_cast %416 : vector<1x1x32x96xf32> to vector<32x96xf32>
    %cst_197 = arith.constant dense<0.000000e+00> : vector<16x96xf32>
    %418 = tpu.matmul %415, %417, %cst_197 {dimension_numbers = #tpu.dot_dimension_numbers<[1], [0], [0], [1], [0, 0, 1, 1], [], []>} : vector<16x32xf32>, vector<32x96xf32>, vector<16x96xf32> -> vector<16x96xf32>
    %cst_198 = arith.constant dense<0.000000e+00> : vector<24x96xf32>
    %419 = tpu.matmul %1, %417, %cst_198 {dimension_numbers = #tpu.dot_dimension_numbers<[1], [0], [0], [1], [0, 0, 1, 1], [], []>} : vector<24x32xf32>, vector<32x96xf32>, vector<24x96xf32> -> vector<24x96xf32>
    %420 = vector.extract_strided_slice %418 {offsets = [0, 0], sizes = [16, 8], strides = [1, 1]} : vector<16x96xf32> to vector<16x8xf32>
    %421 = vector.extract_strided_slice %419 {offsets = [0, 32], sizes = [24, 8], strides = [1, 1]} : vector<24x96xf32> to vector<24x8xf32>
    %422 = vector.extract_strided_slice %419 {offsets = [0, 64], sizes = [24, 8], strides = [1, 1]} : vector<24x96xf32> to vector<24x8xf32>
    "tpu.trace_start"() <{level = 10 : i32, message = "qd,kd->qk"}> : () -> ()
    %cst_199 = arith.constant dense<0.000000e+00> : vector<16x24xf32>
    %423 = tpu.matmul %420, %421, %cst_199 {dimension_numbers = #tpu.dot_dimension_numbers<[1], [1], [0], [0], [0, 0, 1, 0], [], []>} : vector<16x8xf32>, vector<24x8xf32>, vector<16x24xf32> -> vector<16x24xf32>
    "tpu.trace_stop"() : () -> ()
    %cst_200 = arith.constant 0.353553385 : f32
    %424 = vector.broadcast %cst_200 : f32 to vector<16x24xf32>
    %425 = arith.mulf %423, %424 : vector<16x24xf32>
    %426 = arith.addf %425, %3 : vector<16x24xf32>
    %cst_201 = arith.constant dense<0xFF800000> : vector<16xf32>
    %427 = vector.multi_reduction <maximumf>, %426, %cst_201 [1] : vector<16x24xf32> to vector<16xf32>
    %428 = vector.shape_cast %427 : vector<16xf32> to vector<16x1xf32>
    %429 = vector.broadcast %428 : vector<16x1xf32> to vector<16x24xf32>
    %430 = arith.subf %426, %429 : vector<16x24xf32>
    %431 = math.exp %430 : vector<16x24xf32>
    %cst_202 = arith.constant dense<0.000000e+00> : vector<16xf32>
    %432 = vector.multi_reduction <add>, %431, %cst_202 [1] : vector<16x24xf32> to vector<16xf32>
    %433 = vector.shape_cast %432 : vector<16xf32> to vector<16x1xf32>
    %434 = vector.broadcast %433 : vector<16x1xf32> to vector<16x24xf32>
    %435 = arith.divf %431, %434 : vector<16x24xf32>
    %cst_203 = arith.constant dense<0.000000e+00> : vector<16x8xf32>
    %436 = tpu.matmul %435, %422, %cst_203 {dimension_numbers = #tpu.dot_dimension_numbers<[1], [0], [0], [1], [0, 0, 1, 1], [], []>} : vector<16x24xf32>, vector<24x8xf32>, vector<16x8xf32> -> vector<16x8xf32>
    %c1_204 = arith.constant 1 : index
    %c1_205 = arith.constant 1 : index
    %c0_206 = arith.constant 0 : index
    %c0_207 = arith.constant 0 : index
    %437 = vector.load %arg5[%c1_204, %c1_205, %c0_206, %c0_207] : memref<2x2x32x32xf32, #tpu.memory_space<vmem>>, vector<1x1x8x32xf32>
    %438 = vector.shape_cast %437 : vector<1x1x8x32xf32> to vector<8x32xf32>
    %cst_208 = arith.constant dense<0.000000e+00> : vector<16x32xf32>
    %439 = tpu.matmul %436, %438, %cst_208 {dimension_numbers = #tpu.dot_dimension_numbers<[1], [0], [0], [1], [0, 0, 1, 1], [], []>} : vector<16x8xf32>, vector<8x32xf32>, vector<16x32xf32> -> vector<16x32xf32>
    %440 = vector.extract_strided_slice %418 {offsets = [0, 8], sizes = [16, 8], strides = [1, 1]} : vector<16x96xf32> to vector<16x8xf32>
    %441 = vector.extract_strided_slice %419 {offsets = [0, 40], sizes = [24, 8], strides = [1, 1]} : vector<24x96xf32> to vector<24x8xf32>
    %442 = vector.extract_strided_slice %419 {offsets = [0, 72], sizes = [24, 8], strides = [1, 1]} : vector<24x96xf32> to vector<24x8xf32>
    "tpu.trace_start"() <{level = 10 : i32, message = "qd,kd->qk"}> : () -> ()
    %cst_209 = arith.constant dense<0.000000e+00> : vector<16x24xf32>
    %443 = tpu.matmul %440, %441, %cst_209 {dimension_numbers = #tpu.dot_dimension_numbers<[1], [1], [0], [0], [0, 0, 1, 0], [], []>} : vector<16x8xf32>, vector<24x8xf32>, vector<16x24xf32> -> vector<16x24xf32>
    "tpu.trace_stop"() : () -> ()
    %cst_210 = arith.constant 0.353553385 : f32
    %444 = vector.broadcast %cst_210 : f32 to vector<16x24xf32>
    %445 = arith.mulf %443, %444 : vector<16x24xf32>
    %446 = arith.addf %445, %3 : vector<16x24xf32>
    %cst_211 = arith.constant dense<0xFF800000> : vector<16xf32>
    %447 = vector.multi_reduction <maximumf>, %446, %cst_211 [1] : vector<16x24xf32> to vector<16xf32>
    %448 = vector.shape_cast %447 : vector<16xf32> to vector<16x1xf32>
    %449 = vector.broadcast %448 : vector<16x1xf32> to vector<16x24xf32>
    %450 = arith.subf %446, %449 : vector<16x24xf32>
    %451 = math.exp %450 : vector<16x24xf32>
    %cst_212 = arith.constant dense<0.000000e+00> : vector<16xf32>
    %452 = vector.multi_reduction <add>, %451, %cst_212 [1] : vector<16x24xf32> to vector<16xf32>
    %453 = vector.shape_cast %452 : vector<16xf32> to vector<16x1xf32>
    %454 = vector.broadcast %453 : vector<16x1xf32> to vector<16x24xf32>
    %455 = arith.divf %451, %454 : vector<16x24xf32>
    %cst_213 = arith.constant dense<0.000000e+00> : vector<16x8xf32>
    %456 = tpu.matmul %455, %442, %cst_213 {dimension_numbers = #tpu.dot_dimension_numbers<[1], [0], [0], [1], [0, 0, 1, 1], [], []>} : vector<16x24xf32>, vector<24x8xf32>, vector<16x8xf32> -> vector<16x8xf32>
    %c1_214 = arith.constant 1 : index
    %c1_215 = arith.constant 1 : index
    %c8_216 = arith.constant 8 : index
    %c0_217 = arith.constant 0 : index
    %457 = vector.load %arg5[%c1_214, %c1_215, %c8_216, %c0_217] : memref<2x2x32x32xf32, #tpu.memory_space<vmem>>, vector<1x1x8x32xf32>
    %458 = vector.shape_cast %457 : vector<1x1x8x32xf32> to vector<8x32xf32>
    %cst_218 = arith.constant dense<0.000000e+00> : vector<16x32xf32>
    %459 = tpu.matmul %456, %458, %cst_218 {dimension_numbers = #tpu.dot_dimension_numbers<[1], [0], [0], [1], [0, 0, 1, 1], [], []>} : vector<16x8xf32>, vector<8x32xf32>, vector<16x32xf32> -> vector<16x32xf32>
    %460 = arith.addf %439, %459 : vector<16x32xf32>
    %461 = vector.extract_strided_slice %418 {offsets = [0, 16], sizes = [16, 8], strides = [1, 1]} : vector<16x96xf32> to vector<16x8xf32>
    %462 = vector.extract_strided_slice %419 {offsets = [0, 48], sizes = [24, 8], strides = [1, 1]} : vector<24x96xf32> to vector<24x8xf32>
    %463 = vector.extract_strided_slice %419 {offsets = [0, 80], sizes = [24, 8], strides = [1, 1]} : vector<24x96xf32> to vector<24x8xf32>
    "tpu.trace_start"() <{level = 10 : i32, message = "qd,kd->qk"}> : () -> ()
    %cst_219 = arith.constant dense<0.000000e+00> : vector<16x24xf32>
    %464 = tpu.matmul %461, %462, %cst_219 {dimension_numbers = #tpu.dot_dimension_numbers<[1], [1], [0], [0], [0, 0, 1, 0], [], []>} : vector<16x8xf32>, vector<24x8xf32>, vector<16x24xf32> -> vector<16x24xf32>
    "tpu.trace_stop"() : () -> ()
    %cst_220 = arith.constant 0.353553385 : f32
    %465 = vector.broadcast %cst_220 : f32 to vector<16x24xf32>
    %466 = arith.mulf %464, %465 : vector<16x24xf32>
    %467 = arith.addf %466, %3 : vector<16x24xf32>
    %cst_221 = arith.constant dense<0xFF800000> : vector<16xf32>
    %468 = vector.multi_reduction <maximumf>, %467, %cst_221 [1] : vector<16x24xf32> to vector<16xf32>
    %469 = vector.shape_cast %468 : vector<16xf32> to vector<16x1xf32>
    %470 = vector.broadcast %469 : vector<16x1xf32> to vector<16x24xf32>
    %471 = arith.subf %467, %470 : vector<16x24xf32>
    %472 = math.exp %471 : vector<16x24xf32>
    %cst_222 = arith.constant dense<0.000000e+00> : vector<16xf32>
    %473 = vector.multi_reduction <add>, %472, %cst_222 [1] : vector<16x24xf32> to vector<16xf32>
    %474 = vector.shape_cast %473 : vector<16xf32> to vector<16x1xf32>
    %475 = vector.broadcast %474 : vector<16x1xf32> to vector<16x24xf32>
    %476 = arith.divf %472, %475 : vector<16x24xf32>
    %cst_223 = arith.constant dense<0.000000e+00> : vector<16x8xf32>
    %477 = tpu.matmul %476, %463, %cst_223 {dimension_numbers = #tpu.dot_dimension_numbers<[1], [0], [0], [1], [0, 0, 1, 1], [], []>} : vector<16x24xf32>, vector<24x8xf32>, vector<16x8xf32> -> vector<16x8xf32>
    %c1_224 = arith.constant 1 : index
    %c1_225 = arith.constant 1 : index
    %c16_226 = arith.constant 16 : index
    %c0_227 = arith.constant 0 : index
    %478 = vector.load %arg5[%c1_224, %c1_225, %c16_226, %c0_227] : memref<2x2x32x32xf32, #tpu.memory_space<vmem>>, vector<1x1x8x32xf32>
    %479 = vector.shape_cast %478 : vector<1x1x8x32xf32> to vector<8x32xf32>
    %cst_228 = arith.constant dense<0.000000e+00> : vector<16x32xf32>
    %480 = tpu.matmul %477, %479, %cst_228 {dimension_numbers = #tpu.dot_dimension_numbers<[1], [0], [0], [1], [0, 0, 1, 1], [], []>} : vector<16x8xf32>, vector<8x32xf32>, vector<16x32xf32> -> vector<16x32xf32>
    %481 = arith.addf %460, %480 : vector<16x32xf32>
    %482 = vector.extract_strided_slice %418 {offsets = [0, 24], sizes = [16, 8], strides = [1, 1]} : vector<16x96xf32> to vector<16x8xf32>
    %483 = vector.extract_strided_slice %419 {offsets = [0, 56], sizes = [24, 8], strides = [1, 1]} : vector<24x96xf32> to vector<24x8xf32>
    %484 = vector.extract_strided_slice %419 {offsets = [0, 88], sizes = [24, 8], strides = [1, 1]} : vector<24x96xf32> to vector<24x8xf32>
    "tpu.trace_start"() <{level = 10 : i32, message = "qd,kd->qk"}> : () -> ()
    %cst_229 = arith.constant dense<0.000000e+00> : vector<16x24xf32>
    %485 = tpu.matmul %482, %483, %cst_229 {dimension_numbers = #tpu.dot_dimension_numbers<[1], [1], [0], [0], [0, 0, 1, 0], [], []>} : vector<16x8xf32>, vector<24x8xf32>, vector<16x24xf32> -> vector<16x24xf32>
    "tpu.trace_stop"() : () -> ()
    %cst_230 = arith.constant 0.353553385 : f32
    %486 = vector.broadcast %cst_230 : f32 to vector<16x24xf32>
    %487 = arith.mulf %485, %486 : vector<16x24xf32>
    %488 = arith.addf %487, %3 : vector<16x24xf32>
    %cst_231 = arith.constant dense<0xFF800000> : vector<16xf32>
    %489 = vector.multi_reduction <maximumf>, %488, %cst_231 [1] : vector<16x24xf32> to vector<16xf32>
    %490 = vector.shape_cast %489 : vector<16xf32> to vector<16x1xf32>
    %491 = vector.broadcast %490 : vector<16x1xf32> to vector<16x24xf32>
    %492 = arith.subf %488, %491 : vector<16x24xf32>
    %493 = math.exp %492 : vector<16x24xf32>
    %cst_232 = arith.constant dense<0.000000e+00> : vector<16xf32>
    %494 = vector.multi_reduction <add>, %493, %cst_232 [1] : vector<16x24xf32> to vector<16xf32>
    %495 = vector.shape_cast %494 : vector<16xf32> to vector<16x1xf32>
    %496 = vector.broadcast %495 : vector<16x1xf32> to vector<16x24xf32>
    %497 = arith.divf %493, %496 : vector<16x24xf32>
    %cst_233 = arith.constant dense<0.000000e+00> : vector<16x8xf32>
    %498 = tpu.matmul %497, %484, %cst_233 {dimension_numbers = #tpu.dot_dimension_numbers<[1], [0], [0], [1], [0, 0, 1, 1], [], []>} : vector<16x24xf32>, vector<24x8xf32>, vector<16x8xf32> -> vector<16x8xf32>
    %c1_234 = arith.constant 1 : index
    %c1_235 = arith.constant 1 : index
    %c24_236 = arith.constant 24 : index
    %c0_237 = arith.constant 0 : index
    %499 = vector.load %arg5[%c1_234, %c1_235, %c24_236, %c0_237] : memref<2x2x32x32xf32, #tpu.memory_space<vmem>>, vector<1x1x8x32xf32>
    %500 = vector.shape_cast %499 : vector<1x1x8x32xf32> to vector<8x32xf32>
    %cst_238 = arith.constant dense<0.000000e+00> : vector<16x32xf32>
    %501 = tpu.matmul %498, %500, %cst_238 {dimension_numbers = #tpu.dot_dimension_numbers<[1], [0], [0], [1], [0, 0, 1, 1], [], []>} : vector<16x8xf32>, vector<8x32xf32>, vector<16x32xf32> -> vector<16x32xf32>
    %502 = arith.addf %481, %501 : vector<16x32xf32>
    %c17 = arith.constant 17 : index
    %c0_239 = arith.constant 0 : index
    %503 = vector.load %arg8[%c17, %c0_239] : memref<22x64xf32, #tpu.memory_space<vmem>>, vector<1x32xf32>
    %504 = vector.broadcast %503 : vector<1x32xf32> to vector<16x32xf32>
    %505 = arith.addf %502, %504 : vector<16x32xf32>
    %506 = arith.addf %391, %505 : vector<16x32xf32>
    %c14 = arith.constant 14 : index
    %c0_240 = arith.constant 0 : index
    %507 = vector.load %arg8[%c14, %c0_240] : memref<22x64xf32, #tpu.memory_space<vmem>>, vector<1x32xf32>
    %c15 = arith.constant 15 : index
    %c0_241 = arith.constant 0 : index
    %508 = vector.load %arg8[%c15, %c0_241] : memref<22x64xf32, #tpu.memory_space<vmem>>, vector<1x32xf32>
    %cst_242 = arith.constant dense<0.000000e+00> : vector<16xf32>
    %509 = vector.multi_reduction <add>, %506, %cst_242 [1] : vector<16x32xf32> to vector<16xf32>
    %510 = vector.shape_cast %509 : vector<16xf32> to vector<16x1xf32>
    %cst_243 = arith.constant 3.200000e+01 : f32
    %511 = vector.broadcast %cst_243 : f32 to vector<16x1xf32>
    %512 = arith.divf %510, %511 : vector<16x1xf32>
    %513 = vector.broadcast %512 : vector<16x1xf32> to vector<16x32xf32>
    %514 = arith.subf %506, %513 : vector<16x32xf32>
    %515 = arith.mulf %514, %514 : vector<16x32xf32>
    %cst_244 = arith.constant dense<0.000000e+00> : vector<16xf32>
    %516 = vector.multi_reduction <add>, %515, %cst_244 [1] : vector<16x32xf32> to vector<16xf32>
    %517 = vector.shape_cast %516 : vector<16xf32> to vector<16x1xf32>
    %cst_245 = arith.constant 3.200000e+01 : f32
    %518 = vector.broadcast %cst_245 : f32 to vector<16x1xf32>
    %519 = arith.divf %517, %518 : vector<16x1xf32>
    %520 = vector.broadcast %512 : vector<16x1xf32> to vector<16x32xf32>
    %521 = arith.subf %506, %520 : vector<16x32xf32>
    %cst_246 = arith.constant 9.99999974E-6 : f32
    %522 = vector.broadcast %cst_246 : f32 to vector<16x1xf32>
    %523 = arith.addf %519, %522 : vector<16x1xf32>
    %524 = math.rsqrt %523 : vector<16x1xf32>
    %525 = vector.broadcast %524 : vector<16x1xf32> to vector<16x32xf32>
    %526 = arith.mulf %521, %525 : vector<16x32xf32>
    %527 = vector.broadcast %507 : vector<1x32xf32> to vector<16x32xf32>
    %528 = arith.mulf %526, %527 : vector<16x32xf32>
    %529 = vector.broadcast %508 : vector<1x32xf32> to vector<16x32xf32>
    %530 = arith.addf %528, %529 : vector<16x32xf32>
    %c1_247 = arith.constant 1 : index
    %c0_248 = arith.constant 0 : index
    %c0_249 = arith.constant 0 : index
    %531 = vector.load %arg6[%c1_247, %c0_248, %c0_249] : memref<2x32x64xf32, #tpu.memory_space<vmem>>, vector<1x32x64xf32>
    %532 = vector.shape_cast %531 : vector<1x32x64xf32> to vector<32x64xf32>
    %cst_250 = arith.constant dense<0.000000e+00> : vector<16x64xf32>
    %533 = tpu.matmul %530, %532, %cst_250 {dimension_numbers = #tpu.dot_dimension_numbers<[1], [0], [0], [1], [0, 0, 1, 1], [], []>} : vector<16x32xf32>, vector<32x64xf32>, vector<16x64xf32> -> vector<16x64xf32>
    %c18 = arith.constant 18 : index
    %c0_251 = arith.constant 0 : index
    %534 = vector.load %arg8[%c18, %c0_251] : memref<22x64xf32, #tpu.memory_space<vmem>>, vector<1x64xf32>
    %535 = vector.broadcast %534 : vector<1x64xf32> to vector<16x64xf32>
    %536 = arith.addf %533, %535 : vector<16x64xf32>
    %cst_252 = arith.constant 5.000000e-01 : f32
    %537 = vector.broadcast %cst_252 : f32 to vector<16x64xf32>
    %538 = arith.mulf %537, %536 : vector<16x64xf32>
    %cst_253 = arith.constant 0.707106769 : f32
    %539 = vector.broadcast %cst_253 : f32 to vector<16x64xf32>
    %540 = arith.mulf %536, %539 : vector<16x64xf32>
    %541 = math.erf %540 : vector<16x64xf32>
    %cst_254 = arith.constant 1.000000e+00 : f32
    %542 = vector.broadcast %cst_254 : f32 to vector<16x64xf32>
    %543 = arith.addf %542, %541 : vector<16x64xf32>
    %544 = arith.mulf %538, %543 : vector<16x64xf32>
    %c1_255 = arith.constant 1 : index
    %c0_256 = arith.constant 0 : index
    %c0_257 = arith.constant 0 : index
    %545 = vector.load %arg7[%c1_255, %c0_256, %c0_257] : memref<2x64x32xf32, #tpu.memory_space<vmem>>, vector<1x64x32xf32>
    %546 = vector.shape_cast %545 : vector<1x64x32xf32> to vector<64x32xf32>
    %cst_258 = arith.constant dense<0.000000e+00> : vector<16x32xf32>
    %547 = tpu.matmul %544, %546, %cst_258 {dimension_numbers = #tpu.dot_dimension_numbers<[1], [0], [0], [1], [0, 0, 1, 1], [], []>} : vector<16x64xf32>, vector<64x32xf32>, vector<16x32xf32> -> vector<16x32xf32>
    %c19 = arith.constant 19 : index
    %c0_259 = arith.constant 0 : index
    %548 = vector.load %arg8[%c19, %c0_259] : memref<22x64xf32, #tpu.memory_space<vmem>>, vector<1x32xf32>
    %549 = vector.broadcast %548 : vector<1x32xf32> to vector<16x32xf32>
    %550 = arith.addf %547, %549 : vector<16x32xf32>
    %551 = arith.addf %506, %550 : vector<16x32xf32>
    %c20 = arith.constant 20 : index
    %c0_260 = arith.constant 0 : index
    %552 = vector.load %arg8[%c20, %c0_260] : memref<22x64xf32, #tpu.memory_space<vmem>>, vector<1x32xf32>
    %c21 = arith.constant 21 : index
    %c0_261 = arith.constant 0 : index
    %553 = vector.load %arg8[%c21, %c0_261] : memref<22x64xf32, #tpu.memory_space<vmem>>, vector<1x32xf32>
    %cst_262 = arith.constant dense<0.000000e+00> : vector<16xf32>
    %554 = vector.multi_reduction <add>, %551, %cst_262 [1] : vector<16x32xf32> to vector<16xf32>
    %555 = vector.shape_cast %554 : vector<16xf32> to vector<16x1xf32>
    %cst_263 = arith.constant 3.200000e+01 : f32
    %556 = vector.broadcast %cst_263 : f32 to vector<16x1xf32>
    %557 = arith.divf %555, %556 : vector<16x1xf32>
    %558 = vector.broadcast %557 : vector<16x1xf32> to vector<16x32xf32>
    %559 = arith.subf %551, %558 : vector<16x32xf32>
    %560 = arith.mulf %559, %559 : vector<16x32xf32>
    %cst_264 = arith.constant dense<0.000000e+00> : vector<16xf32>
    %561 = vector.multi_reduction <add>, %560, %cst_264 [1] : vector<16x32xf32> to vector<16xf32>
    %562 = vector.shape_cast %561 : vector<16xf32> to vector<16x1xf32>
    %cst_265 = arith.constant 3.200000e+01 : f32
    %563 = vector.broadcast %cst_265 : f32 to vector<16x1xf32>
    %564 = arith.divf %562, %563 : vector<16x1xf32>
    %565 = vector.broadcast %557 : vector<16x1xf32> to vector<16x32xf32>
    %566 = arith.subf %551, %565 : vector<16x32xf32>
    %cst_266 = arith.constant 9.99999974E-6 : f32
    %567 = vector.broadcast %cst_266 : f32 to vector<16x1xf32>
    %568 = arith.addf %564, %567 : vector<16x1xf32>
    %569 = math.rsqrt %568 : vector<16x1xf32>
    %570 = vector.broadcast %569 : vector<16x1xf32> to vector<16x32xf32>
    %571 = arith.mulf %566, %570 : vector<16x32xf32>
    %572 = vector.broadcast %552 : vector<1x32xf32> to vector<16x32xf32>
    %573 = arith.mulf %571, %572 : vector<16x32xf32>
    %574 = vector.broadcast %553 : vector<1x32xf32> to vector<16x32xf32>
    %575 = arith.addf %573, %574 : vector<16x32xf32>
    %c0_267 = arith.constant 0 : index
    %c0_268 = arith.constant 0 : index
    %576 = vector.load %arg9[%c0_267, %c0_268] : memref<16x32xf32, #tpu.memory_space<vmem>>, vector<16x32xf32>
    tpu.vector_store %arg9[%c0_267, %c0_268], %575 {strides = array<i32>} : memref<16x32xf32, #tpu.memory_space<vmem>>, vector<16x32xf32>,
    return
  }
}

</mosaic_0001>

<llo_original>
// kernel: tpu_custom_call.1
$region0: #{tpu_custom_call.1}
  #allocation0 [shape = 'u32[]', space=smem, size = 0x4, offset = 0x4, fixed_abs, tag = 'smem constant byte address 0x4 - core index']
  #allocation1 [shape = 'u32[144,128]{1,0:T(1,128)}', space=vmem, size = 0x12000, scoped, tag = 'internal scratch']
  %s0 = inlined_call_operand.hbm [shape: f32[16,32], index: 0, kind: input, shape index: {}]
  %s1 = inlined_call_operand.hbm [shape: f32[24,32], index: 1, kind: input, shape index: {}]
  %s2 = inlined_call_operand.hbm [shape: f32[16,16], index: 2, kind: input, shape index: {}]
  %s3 = inlined_call_operand.hbm [shape: f32[16,24], index: 3, kind: input, shape index: {}]
  %s4 = inlined_call_operand.vmem [shape: f32[2,2,32,96], index: 4, kind: input, shape index: {}]
  %s5 = inlined_call_operand.hbm [shape: f32[2,2,32,32], index: 5, kind: input, shape index: {}]
  %s6 = inlined_call_operand.vmem [shape: f32[2,32,64], index: 6, kind: input, shape index: {}]
  %s7 = inlined_call_operand.vmem [shape: f32[2,64,32], index: 7, kind: input, shape index: {}]
  %s8 = inlined_call_operand.vmem [shape: f32[22,64], index: 8, kind: input, shape index: {}]
  %s9 = inlined_call_operand.hbm [shape: f32[16,32], index: 9, kind: output, shape index: {}]
  %s10 = sld [smem:[#allocation0]]
  $region66: #{tpu_custom_call.1} parent=0
    _
  %s12 = ssub.s32 1, %s10
  %s13 = scalar_select 0, %s12, %s10
  $region1: #{tpu_custom_call.1} parent=0
    #allocation2 [shape = 'u8[8192]{0}', space=vmem, size = 0x2000, scoped, tag = 'input window, operand 0, single buffered']
    #allocation3 [shape = 's32[1]{0}', space=sflag, size = 0x4, scoped, tag = 'scoped memory for tpu_custom_call.1']
    #allocation4 [shape = 's32[1]{0}', space=sflag, size = 0x4, scoped, tag = 'scoped memory for tpu_custom_call.1']
    #allocation5 [shape = 'u8[12288]{0}', space=vmem, size = 0x3000, scoped, tag = 'input window, operand 1, single buffered']
    #allocation6 [shape = 's32[1]{0}', space=sflag, size = 0x4, scoped, tag = 'scoped memory for tpu_custom_call.1']
    #allocation7 [shape = 'u8[8192]{0}', space=vmem, size = 0x2000, scoped, tag = 'input window, operand 2, single buffered']
    #allocation8 [shape = 'u8[8192]{0}', space=vmem, size = 0x2000, scoped, tag = 'input window, operand 3, single buffered']
    #allocation9 [shape = 's32[1]{0}', space=sflag, size = 0x4, scoped, tag = 'scoped memory for tpu_custom_call.1']
    #allocation10 [shape = 'u8[65536]{0}', space=vmem, size = 0x10000, scoped, tag = 'input window, operand 5, single buffered']
    #allocation11 [shape = 'u8[8192]{0}', space=vmem, size = 0x2000, scoped, tag = 'output window, operand 0, single buffered']
    %14 = vsyncpa [#allocation3], 0
    %15 = vsyncpa [#allocation6], 0
    %16 = vsyncpa [#allocation9], 0
    %17 = vsyncpa [#allocation4], 0
    // Predicated region
    $region2: #{tpu_custom_call.1} parent=1 // pred_check
      _
    $region3: #{tpu_custom_call.1} parent=1 // pred_check_branch
      %19 = sbr.rel (0) target = $region5
    $region4: #{tpu_custom_call.1} parent=1 // pred_region
      %s21 = ssub.s32 256, 256
      %22 = vsyncadd [#allocation3], %s21
      %s23 = sshll.u32 [#allocation2], 4
      %s24 = int_to_ptr.vmem [resolvable:$true] %s23
      %29 = dma.hbm_to_vmem [thread:$0]  %s0, 256, %s24, [#allocation3], 128, 128, 8
    $region5: #{tpu_custom_call.1} parent=1 // pred_fallthru
      _
    // Predicated region
    $region6: #{tpu_custom_call.1} parent=1 // pred_check
      _
    $region7: #{tpu_custom_call.1} parent=1 // pred_check_branch
      %31 = sbr.rel (0) target = $region9
    $region8: #{tpu_custom_call.1} parent=1 // pred_region
      %s33 = ssub.s32 384, 384
      %34 = vsyncadd [#allocation6], %s33
      %s35 = sshll.u32 [#allocation5], 4
      %s36 = int_to_ptr.vmem [resolvable:$true] %s35
      %41 = dma.hbm_to_vmem [thread:$0]  %s1, 384, %s36, [#allocation6], 128, 128, 8
    $region9: #{tpu_custom_call.1} parent=1 // pred_fallthru
      _
    // Predicated region
    $region10: #{tpu_custom_call.1} parent=1 // pred_check
      _
    $region11: #{tpu_custom_call.1} parent=1 // pred_check_branch
      %43 = sbr.rel (0) target = $region13
    $region12: #{tpu_custom_call.1} parent=1 // pred_region
      %s45 = ssub.s32 256, 256
      %46 = vsyncadd [#allocation6], %s45
      %s47 = sshll.u32 [#allocation7], 4
      %s48 = int_to_ptr.vmem [resolvable:$true] %s47
      %53 = dma.hbm_to_vmem [thread:$0]  %s2, 256, %s48, [#allocation6], 128, 128, 8
    $region13: #{tpu_custom_call.1} parent=1 // pred_fallthru
      _
    // Predicated region
    $region14: #{tpu_custom_call.1} parent=1 // pred_check
      _
    $region15: #{tpu_custom_call.1} parent=1 // pred_check_branch
      %55 = sbr.rel (0) target = $region17
    $region16: #{tpu_custom_call.1} parent=1 // pred_region
      %s57 = ssub.s32 256, 256
      %58 = vsyncadd [#allocation9], %s57
      %s59 = sshll.u32 [#allocation8], 4
      %s60 = int_to_ptr.vmem [resolvable:$true] %s59
      %65 = dma.hbm_to_vmem [thread:$0]  %s3, 256, %s60, [#allocation9], 128, 128, 8
    $region17: #{tpu_custom_call.1} parent=1 // pred_fallthru
      _
    // Predicated region
    $region18: #{tpu_custom_call.1} parent=1 // pred_check
      _
    $region19: #{tpu_custom_call.1} parent=1 // pred_check_branch
      %67 = sbr.rel (0) target = $region21
    $region20: #{tpu_custom_call.1} parent=1 // pred_region
      _
    $region21: #{tpu_custom_call.1} parent=1 // pred_fallthru
      _
    // Predicated region
    $region22: #{tpu_custom_call.1} parent=1 // pred_check
      _
    $region23: #{tpu_custom_call.1} parent=1 // pred_check_branch
      %69 = sbr.rel (0) target = $region25
    $region24: #{tpu_custom_call.1} parent=1 // pred_region
      %s71 = ssub.s32 2048, 2048
      %72 = vsyncadd [#allocation9], %s71
      %s73 = sshll.u32 [#allocation10], 4
      %s74 = int_to_ptr.vmem [resolvable:$true] %s73
      %79 = dma.hbm_to_vmem [thread:$0]  %s5, 2048, %s74, [#allocation9], 128, 128, 8
    $region25: #{tpu_custom_call.1} parent=1 // pred_fallthru
      _
    // Predicated region
    $region26: #{tpu_custom_call.1} parent=1 // pred_check
      _
    $region27: #{tpu_custom_call.1} parent=1 // pred_check_branch
      %81 = sbr.rel (0) target = $region29
    $region28: #{tpu_custom_call.1} parent=1 // pred_region
      _
    $region29: #{tpu_custom_call.1} parent=1 // pred_fallthru
      _
    // Predicated region
    $region30: #{tpu_custom_call.1} parent=1 // pred_check
      _
    $region31: #{tpu_custom_call.1} parent=1 // pred_check_branch
      %83 = sbr.rel (0) target = $region33
    $region32: #{tpu_custom_call.1} parent=1 // pred_region
      _
    $region33: #{tpu_custom_call.1} parent=1 // pred_fallthru
      _
    // Predicated region
    $region34: #{tpu_custom_call.1} parent=1 // pred_check
      _
    $region35: #{tpu_custom_call.1} parent=1 // pred_check_branch
      %85 = sbr.rel (0) target = $region37
    $region36: #{tpu_custom_call.1} parent=1 // pred_region
      _
    $region37: #{tpu_custom_call.1} parent=1 // pred_fallthru
      _
    // Predicated region
    $region38: #{tpu_custom_call.1} parent=1 // pred_check
      _
    $region39: #{tpu_custom_call.1} parent=1 // pred_check_branch
      %87 = sbr.rel (0) target = $region41
    $region40: #{tpu_custom_call.1} parent=1 // pred_region
      %88 = dma.done [#allocation3], 256
    $region41: #{tpu_custom_call.1} parent=1 // pred_fallthru
      _
    // Predicated region
    $region42: #{tpu_custom_call.1} parent=1 // pred_check
      _
    $region43: #{tpu_custom_call.1} parent=1 // pred_check_branch
      %90 = sbr.rel (0) target = $region45
    $region44: #{tpu_custom_call.1} parent=1 // pred_region
      %91 = dma.done [#allocation6], 384
    $region45: #{tpu_custom_call.1} parent=1 // pred_fallthru
      _
    // Predicated region
    $region46: #{tpu_custom_call.1} parent=1 // pred_check
      _
    $region47: #{tpu_custom_call.1} parent=1 // pred_check_branch
      %93 = sbr.rel (0) target = $region49
    $region48: #{tpu_custom_call.1} parent=1 // pred_region
      %94 = dma.done [#allocation6], 256
    $region49: #{tpu_custom_call.1} parent=1 // pred_fallthru
      _
    // Predicated region
    $region50: #{tpu_custom_call.1} parent=1 // pred_check
      _
    $region51: #{tpu_custom_call.1} parent=1 // pred_check_branch
      %96 = sbr.rel (0) target = $region53
    $region52: #{tpu_custom_call.1} parent=1 // pred_region
      %97 = dma.done [#allocation9], 256
    $region53: #{tpu_custom_call.1} parent=1 // pred_fallthru
      _
    // Predicated region
    $region54: #{tpu_custom_call.1} parent=1 // pred_check
      _
    $region55: #{tpu_custom_call.1} parent=1 // pred_check_branch
      %99 = sbr.rel (0) target = $region57
    $region56: #{tpu_custom_call.1} parent=1 // pred_region
      %100 = dma.done [#allocation9], 2048
    $region57: #{tpu_custom_call.1} parent=1 // pred_fallthru
      _
    %v101 = vld [vmem:[#allocation2] sm:$0xff]
    %v102 = vld [vmem:[#allocation2 + $0x8] sm:$0xff]
    %v103 = vld [vmem:[#allocation5] sm:$0xff]
    %v104 = vld [vmem:[#allocation5 + $0x8] sm:$0xff]
    %v105 = vld [vmem:[#allocation5 + $0x10] sm:$0xff]
    %v106 = vld [vmem:[#allocation7] sm:$0xff]
    %v107 = vld [vmem:[#allocation7 + $0x8] sm:$0xff]
    %v108 = vld [vmem:[#allocation8] sm:$0xff]
    %v109 = vld [vmem:[#allocation8 + $0x8] sm:$0xff]
    %v110 = vld [vmem:[%s8] sm:$0x1]
    %v111 = vld [vmem:[%s8 + $0x1] sm:$0x1]
    %vm112 = vcmask 261120
    %v113 = vsel %vm112, %v101, 0.0
    %114 = vadd.xlane.f32.xlu0 %v113
    %v115 = vpop.xlane.xlu0 %114
    %v116 = vsel %vm112, %v102, 0.0
    %117 = vadd.xlane.f32.xlu0 %v116
    %v118 = vpop.xlane.xlu0 %117
    %v119 = vrcp.pop 32.0
    %v120 = vmul.f32 %v115, %v119
    %v121 = vmul.f32 %v118, %v119
    %v122 = vsub.f32 %v101, %v120
    %v123 = vsub.f32 %v102, %v121
    %v124 = vmul.f32 %v122, %v122
    %v125 = vmul.f32 %v123, %v123
    %v126 = vsel %vm112, %v124, 0.0
    %127 = vadd.xlane.f32.xlu0 %v126
    %v128 = vpop.xlane.xlu0 %127
    %v129 = vsel %vm112, %v125, 0.0
    %130 = vadd.xlane.f32.xlu0 %v129
    %v131 = vpop.xlane.xlu0 %130
    %v132 = vmul.f32 %v128, %v119
    %v133 = vmul.f32 %v131, %v119
    %v134 = vadd.f32 %v132, 1e-05
    %v135 = vadd.f32 %v133, 1e-05
    %v136 = vrsqrt.pop %v134
    %v137 = vrsqrt.pop %v135
    %v138 = vmul.f32 %v122, %v136
    %v139 = vmul.f32 %v123, %v137
    %v140 = vlaneseq
    %v141 = vshrl.u32 %v140, 7
    %v142 = vsub.s32 0, %v141
    %v143 = vrot.slane %v110, %v142
    %v144 = vmul.f32 %v138, %v143
    %v145 = vmul.f32 %v139, %v143
    %v146 = vlaneseq
    %v147 = vshrl.u32 %v146, 7
    %v148 = vsub.s32 0, %v147
    %v149 = vrot.slane %v111, %v148
    %v150 = vadd.f32 %v144, %v149
    %v151 = vadd.f32 %v145, %v149
    %v152 = vld [vmem:[%s4] sm:$0xff]
    %v153 = vld [vmem:[%s4 + $0x8] sm:$0xff]
    %v154 = vld [vmem:[%s4 + $0x10] sm:$0xff]
    %v155 = vld [vmem:[%s4 + $0x18] sm:$0xff]
    %v157 = vsel %vm112, %v150, 0
    %v160 = vsel %vm112, %v151, 0
    %162 = vmatprep.subr.mxu0 0.0
    %163 = vmatpush1.msra.mxu0 %v152
    %164 = vmatprep.subr.mxu0 0.0
    %165 = vmatpush1.msra.mxu0 %v153
    %166 = vmatprep.subr.mxu0 0.0
    %167 = vmatpush1.msra.mxu0 %v154
    %168 = vmatprep.subr.mxu0 0.0
    %169 = vmatpush1.msra.mxu0 %v155
    %170 = vmatprep.subr.mxu0 0.0
    %171 = vmatpush1.msra.mxu0 0.0
    %172 = vmatprep.subr.mxu0 0.0
    %173 = vmatpush1.msra.mxu0 0.0
    %174 = vmatprep.subr.mxu0 0.0
    %175 = vmatpush1.msra.mxu0 0.0
    %176 = vmatprep.subr.mxu0 0.0
    %177 = vmatpush1.msra.mxu0 0.0
    %178 = vmatprep.subr.mxu0 0.0
    %179 = vmatpush1.msra.mxu0 0.0
    %180 = vmatprep.subr.mxu0 0.0
    %181 = vmatpush1.msra.mxu0 0.0
    %182 = vmatprep.subr.mxu0 0.0
    %183 = vmatpush1.msra.mxu0 0.0
    %184 = vmatprep.subr.mxu0 0.0
    %185 = vmatpush1.msra.mxu0 0.0
    %186 = vmatprep.subr.mxu0 0.0
    %187 = vmatpush1.msra.mxu0 0.0
    %188 = vmatprep.subr.mxu0 0.0
    %189 = vmatpush1.msra.mxu0 0.0
    %190 = vmatprep.subr.mxu0 0.0
    %191 = vmatpush1.msra.mxu0 0.0
    %192 = vmatprep.subr.mxu0 0.0
    %193 = vmatpush1.msra.mxu0 0.0
    %194 = vmatprep.subr.mxu0 0.0
    %195 = vmatpush1.msra.mxu0 0.0
    %196 = vmatprep.subr.mxu0 0.0
    %197 = vmatpush1.msra.mxu0 0.0
    %198 = vmatprep.subr.mxu0 0.0
    %199 = vmatpush1.msra.mxu0 0.0
    %200 = vmatprep.subr.mxu0 0.0
    %201 = vmatpush1.msra.mxu0 0.0
    %202 = vmatprep.subr.mxu0 0.0
    %203 = vmatpush1.msra.mxu0 0.0
    %204 = vmatprep.subr.mxu0 0.0
    %205 = vmatpush1.msra.mxu0 0.0
    %206 = vmatprep.subr.mxu0 0.0
    %207 = vmatpush1.msra.mxu0 0.0
    %208 = vmatprep.subr.mxu0 0.0
    %209 = vmatpush1.msra.mxu0 0.0
    %210 = vmatprep.subr.mxu0 0.0
    %211 = vmatpush1.msra.mxu0 0.0
    %212 = vmatprep.subr.mxu0 0.0
    %213 = vmatpush1.msra.mxu0 0.0
    %214 = vmatprep.subr.mxu0 0.0
    %215 = vmatpush1.msra.mxu0 0.0
    %216 = vmatprep.subr.mxu0 0.0
    %217 = vmatpush1.msra.mxu0 0.0
    %218 = vmatprep.subr.mxu0 0.0
    %219 = vmatpush1.msra.mxu0 0.0
    %220 = vmatprep.subr.mxu0 0.0
    %221 = vmatpush1.msra.mxu0 0.0
    %222 = vmatprep.subr.mxu0 0.0
    %223 = vmatpush1.msra.mxu0 0.0
    %224 = vmatprep.subr.mxu0 0.0
    %225 = vmatpush1.msra.mxu0 0.0
    %226 = vmatprep.mubr.f32.mxu0 0.0
    %227 = vmatmul.mubr.f32.gmra.mrb[0].mxu0 %v157
    %v228 = vpop.f32.mrb[0].mxu0
    %v229 = vadd.f32 0.0, %v228
    %v230 = vpop.f32.mrb[0].mxu0
    %231 = vmatprep.mubr.f32.mxu0 0.0
    %232 = vmatmul.mubr.f32.gmra.mrb[0].mxu0 %v160
    %v233 = vpop.f32.mrb[0].mxu0
    %v234 = vadd.f32 0.0, %v233
    %v235 = vpop.f32.mrb[0].mxu0
    %236 = vdwg.mxu0
    %239 = vrot.lane.b32.xlu0 %v229, 96
    %v240 = vpop.permute.xlu0 %239
    %241 = vrot.lane.b32.xlu0 %v234, 96
    %v242 = vpop.permute.xlu0 %241
    %vm243 = vcmask 64512
    %v244 = vsel %vm243, %v229, 0
    %v246 = vsel %vm243, %v234, 0
    %v248 = vsel %vm243, %v240, 0
    %v250 = vsel %vm243, %v242, 0
    %252 = vmatprep.subr.mxu0 0.0
    %253 = vmatpush1.xpose.msra.mxu0 %v248
    %254 = vmatprep.subr.mxu0 0.0
    %255 = vmatpush1.xpose.msra.mxu0 %v250
    %256 = vmatprep.subr.mxu0 0.0
    %257 = vmatpush1.xpose.msra.mxu0 0.0
    %258 = vmatprep.subr.mxu0 0.0
    %259 = vmatpush1.xpose.msra.mxu0 0.0
    %260 = vmatprep.subr.mxu0 0.0
    %261 = vmatpush1.xpose.msra.mxu0 0.0
    %262 = vmatprep.subr.mxu0 0.0
    %263 = vmatpush1.xpose.msra.mxu0 0.0
    %264 = vmatprep.subr.mxu0 0.0
    %265 = vmatpush1.xpose.msra.mxu0 0.0
    %266 = vmatprep.subr.mxu0 0.0
    %267 = vmatpush1.xpose.msra.mxu0 0.0
    %268 = vmatprep.subr.mxu0 0.0
    %269 = vmatpush1.xpose.msra.mxu0 0.0
    %270 = vmatprep.subr.mxu0 0.0
    %271 = vmatpush1.xpose.msra.mxu0 0.0
    %272 = vmatprep.subr.mxu0 0.0
    %273 = vmatpush1.xpose.msra.mxu0 0.0
    %274 = vmatprep.subr.mxu0 0.0
    %275 = vmatpush1.xpose.msra.mxu0 0.0
    %276 = vmatprep.subr.mxu0 0.0
    %277 = vmatpush1.xpose.msra.mxu0 0.0
    %278 = vmatprep.subr.mxu0 0.0
    %279 = vmatpush1.xpose.msra.mxu0 0.0
    %280 = vmatprep.subr.mxu0 0.0
    %281 = vmatpush1.xpose.msra.mxu0 0.0
    %282 = vmatprep.subr.mxu0 0.0
    %283 = vmatpush1.xpose.msra.mxu0 0.0
    %284 = vmatprep.subr.mxu0 0.0
    %285 = vmatpush1.xpose.msra.mxu0 0.0
    %286 = vmatprep.subr.mxu0 0.0
    %287 = vmatpush1.xpose.msra.mxu0 0.0
    %288 = vmatprep.subr.mxu0 0.0
    %289 = vmatpush1.xpose.msra.mxu0 0.0
    %290 = vmatprep.subr.mxu0 0.0
    %291 = vmatpush1.xpose.msra.mxu0 0.0
    %292 = vmatprep.subr.mxu0 0.0
    %293 = vmatpush1.xpose.msra.mxu0 0.0
    %294 = vmatprep.subr.mxu0 0.0
    %295 = vmatpush1.xpose.msra.mxu0 0.0
    %296 = vmatprep.subr.mxu0 0.0
    %297 = vmatpush1.xpose.msra.mxu0 0.0
    %298 = vmatprep.subr.mxu0 0.0
    %299 = vmatpush1.xpose.msra.mxu0 0.0
    %300 = vmatprep.subr.mxu0 0.0
    %301 = vmatpush1.xpose.msra.mxu0 0.0
    %302 = vmatprep.subr.mxu0 0.0
    %303 = vmatpush1.xpose.msra.mxu0 0.0
    %304 = vmatprep.subr.mxu0 0.0
    %305 = vmatpush1.xpose.msra.mxu0 0.0
    %306 = vmatprep.subr.mxu0 0.0
    %307 = vmatpush1.xpose.msra.mxu0 0.0
    %308 = vmatprep.subr.mxu0 0.0
    %309 = vmatpush1.xpose.msra.mxu0 0.0
    %310 = vmatprep.subr.mxu0 0.0
    %311 = vmatpush1.xpose.msra.mxu0 0.0
    %312 = vmatprep.subr.mxu0 0.0
    %313 = vmatpush1.xpose.msra.mxu0 0.0
    %314 = vmatprep.subr.mxu0 0.0
    %315 = vmatpush1.xpose.msra.mxu0 0.0
    %316 = vmatprep.mubr.f32.mxu0 0.0
    %317 = vmatmul.mubr.f32.gmra.mrb[0].mxu0 %v244
    %v318 = vpop.f32.mrb[0].mxu0
    %v319 = vadd.f32 0.0, %v318
    %v320 = vpop.f32.mrb[0].mxu0
    %321 = vmatprep.mubr.f32.mxu0 0.0
    %322 = vmatmul.mubr.f32.gmra.mrb[0].mxu0 %v246
    %v323 = vpop.f32.mrb[0].mxu0
    %v324 = vadd.f32 0.0, %v323
    %v325 = vpop.f32.mrb[0].mxu0
    %326 = vdwg.mxu0
    %v327 = vmul.f32 %v319, 0.35355338
    %v328 = vmul.f32 %v324, 0.35355338
    %v329 = vadd.f32 %v327, %v106
    %v330 = vadd.f32 %v328, %v107
    %vm331 = vcmask 130048
    %v332 = vsel %vm331, %v329, -inf
    %333 = vmax.xlane.f32.xlu0 %v332
    %v334 = vpop.xlane.xlu0 %333
    %v335 = vsel %vm331, %v330, -inf
    %336 = vmax.xlane.f32.xlu0 %v335
    %v337 = vpop.xlane.xlu0 %336
    %v338 = vsub.f32 %v329, %v334
    %v339 = vsub.f32 %v330, %v337
    %v340 = vmul.f32 %v338, 1.442695
    %v341 = vpow.pop %v340
    %v342 = vmul.f32 %v339, 1.442695
    %v343 = vpow.pop %v342
    %v344 = vsel %vm331, %v341, 0.0
    %345 = vadd.xlane.f32.xlu0 %v344
    %v346 = vpop.xlane.xlu0 %345
    %v347 = vsel %vm331, %v343, 0.0
    %348 = vadd.xlane.f32.xlu0 %v347
    %v349 = vpop.xlane.xlu0 %348
    %v350 = vrcp.pop %v346
    %v351 = vmul.f32 %v341, %v350
    %v352 = vrcp.pop %v349
    %v353 = vmul.f32 %v343, %v352
    %354 = vrot.lane.b32.xlu0 %v229, 64
    %v355 = vpop.permute.xlu0 %354
    %356 = vrot.lane.b32.xlu0 %v234, 64
    %v357 = vpop.permute.xlu0 %356
    %v361 = vsel %vm331, %v351, 0
    %v364 = vsel %vm331, %v353, 0
    %366 = vmatprep.subr.mxu0 0.0
    %367 = vmatpush1.msra.mxu0 %v355
    %368 = vmatprep.subr.mxu0 0.0
    %369 = vmatpush1.msra.mxu0 %v357
    %370 = vmatprep.subr.mxu0 0.0
    %371 = vmatpush1.msra.mxu0 0.0
    %372 = vmatprep.subr.mxu0 0.0
    %373 = vmatpush1.msra.mxu0 0.0
    %374 = vmatprep.subr.mxu0 0.0
    %375 = vmatpush1.msra.mxu0 0.0
    %376 = vmatprep.subr.mxu0 0.0
    %377 = vmatpush1.msra.mxu0 0.0
    %378 = vmatprep.subr.mxu0 0.0
    %379 = vmatpush1.msra.mxu0 0.0
    %380 = vmatprep.subr.mxu0 0.0
    %381 = vmatpush1.msra.mxu0 0.0
    %382 = vmatprep.subr.mxu0 0.0
    %383 = vmatpush1.msra.mxu0 0.0
    %384 = vmatprep.subr.mxu0 0.0
    %385 = vmatpush1.msra.mxu0 0.0
    %386 = vmatprep.subr.mxu0 0.0
    %387 = vmatpush1.msra.mxu0 0.0
    %388 = vmatprep.subr.mxu0 0.0
    %389 = vmatpush1.msra.mxu0 0.0
    %390 = vmatprep.subr.mxu0 0.0
    %391 = vmatpush1.msra.mxu0 0.0
    %392 = vmatprep.subr.mxu0 0.0
    %393 = vmatpush1.msra.mxu0 0.0
    %394 = vmatprep.subr.mxu0 0.0
    %395 = vmatpush1.msra.mxu0 0.0
    %396 = vmatprep.subr.mxu0 0.0
    %397 = vmatpush1.msra.mxu0 0.0
    %398 = vmatprep.subr.mxu0 0.0
    %399 = vmatpush1.msra.mxu0 0.0
    %400 = vmatprep.subr.mxu0 0.0
    %401 = vmatpush1.msra.mxu0 0.0
    %402 = vmatprep.subr.mxu0 0.0
    %403 = vmatpush1.msra.mxu0 0.0
    %404 = vmatprep.subr.mxu0 0.0
    %405 = vmatpush1.msra.mxu0 0.0
    %406 = vmatprep.subr.mxu0 0.0
    %407 = vmatpush1.msra.mxu0 0.0
    %408 = vmatprep.subr.mxu0 0.0
    %409 = vmatpush1.msra.mxu0 0.0
    %410 = vmatprep.subr.mxu0 0.0
    %411 = vmatpush1.msra.mxu0 0.0
    %412 = vmatprep.subr.mxu0 0.0
    %413 = vmatpush1.msra.mxu0 0.0
    %414 = vmatprep.subr.mxu0 0.0
    %415 = vmatpush1.msra.mxu0 0.0
    %416 = vmatprep.subr.mxu0 0.0
    %417 = vmatpush1.msra.mxu0 0.0
    %418 = vmatprep.subr.mxu0 0.0
    %419 = vmatpush1.msra.mxu0 0.0
    %420 = vmatprep.subr.mxu0 0.0
    %421 = vmatpush1.msra.mxu0 0.0
    %422 = vmatprep.subr.mxu0 0.0
    %423 = vmatpush1.msra.mxu0 0.0
    %424 = vmatprep.subr.mxu0 0.0
    %425 = vmatpush1.msra.mxu0 0.0
    %426 = vmatprep.subr.mxu0 0.0
    %427 = vmatpush1.msra.mxu0 0.0
    %428 = vmatprep.subr.mxu0 0.0
    %429 = vmatpush1.msra.mxu0 0.0
    %430 = vmatprep.mubr.f32.mxu0 0.0
    %431 = vmatmul.mubr.f32.gmra.mrb[0].mxu0 %v361
    %v432 = vpop.f32.mrb[0].mxu0
    %v433 = vadd.f32 0.0, %v432
    %v434 = vpop.f32.mrb[0].mxu0
    %435 = vmatprep.mubr.f32.mxu0 0.0
    %436 = vmatmul.mubr.f32.gmra.mrb[0].mxu0 %v364
    %v437 = vpop.f32.mrb[0].mxu0
    %v438 = vadd.f32 0.0, %v437
    %v439 = vpop.f32.mrb[0].mxu0
    %440 = vdwg.mxu0
    %v441 = vld [vmem:[#allocation10] sm:$0xff]
    %442 = vrot.lane.b32.xlu0 %v229, 120
    %v443 = vpop.permute.xlu0 %442
    %444 = vrot.lane.b32.xlu0 %v234, 120
    %v445 = vpop.permute.xlu0 %444
    %446 = vrot.lane.b32.xlu0 %v229, 88
    %v447 = vpop.permute.xlu0 %446
    %448 = vrot.lane.b32.xlu0 %v234, 88
    %v449 = vpop.permute.xlu0 %448
    %v450 = vsel %vm243, %v443, 0
    %v452 = vsel %vm243, %v445, 0
    %v454 = vsel %vm243, %v447, 0
    %v456 = vsel %vm243, %v449, 0
    %458 = vmatprep.subr.mxu0 0.0
    %459 = vmatpush1.xpose.msra.mxu0 %v454
    %460 = vmatprep.subr.mxu0 0.0
    %461 = vmatpush1.xpose.msra.mxu0 %v456
    %462 = vmatprep.subr.mxu0 0.0
    %463 = vmatpush1.xpose.msra.mxu0 0.0
    %464 = vmatprep.subr.mxu0 0.0
    %465 = vmatpush1.xpose.msra.mxu0 0.0
    %466 = vmatprep.subr.mxu0 0.0
    %467 = vmatpush1.xpose.msra.mxu0 0.0
    %468 = vmatprep.subr.mxu0 0.0
    %469 = vmatpush1.xpose.msra.mxu0 0.0
    %470 = vmatprep.subr.mxu0 0.0
    %471 = vmatpush1.xpose.msra.mxu0 0.0
    %472 = vmatprep.subr.mxu0 0.0
    %473 = vmatpush1.xpose.msra.mxu0 0.0
    %474 = vmatprep.subr.mxu0 0.0
    %475 = vmatpush1.xpose.msra.mxu0 0.0
    %476 = vmatprep.subr.mxu0 0.0
    %477 = vmatpush1.xpose.msra.mxu0 0.0
    %478 = vmatprep.subr.mxu0 0.0
    %479 = vmatpush1.xpose.msra.mxu0 0.0
    %480 = vmatprep.subr.mxu0 0.0
    %481 = vmatpush1.xpose.msra.mxu0 0.0
    %482 = vmatprep.subr.mxu0 0.0
    %483 = vmatpush1.xpose.msra.mxu0 0.0
    %484 = vmatprep.subr.mxu0 0.0
    %485 = vmatpush1.xpose.msra.mxu0 0.0
    %486 = vmatprep.subr.mxu0 0.0
    %487 = vmatpush1.xpose.msra.mxu0 0.0
    %488 = vmatprep.subr.mxu0 0.0
    %489 = vmatpush1.xpose.msra.mxu0 0.0
    %490 = vmatprep.subr.mxu0 0.0
    %491 = vmatpush1.xpose.msra.mxu0 0.0
    %492 = vmatprep.subr.mxu0 0.0
    %493 = vmatpush1.xpose.msra.mxu0 0.0
    %494 = vmatprep.subr.mxu0 0.0
    %495 = vmatpush1.xpose.msra.mxu0 0.0
    %496 = vmatprep.subr.mxu0 0.0
    %497 = vmatpush1.xpose.msra.mxu0 0.0
    %498 = vmatprep.subr.mxu0 0.0
    %499 = vmatpush1.xpose.msra.mxu0 0.0
    %500 = vmatprep.subr.mxu0 0.0
    %501 = vmatpush1.xpose.msra.mxu0 0.0
    %502 = vmatprep.subr.mxu0 0.0
    %503 = vmatpush1.xpose.msra.mxu0 0.0
    %504 = vmatprep.subr.mxu0 0.0
    %505 = vmatpush1.xpose.msra.mxu0 0.0
    %506 = vmatprep.subr.mxu0 0.0
    %507 = vmatpush1.xpose.msra.mxu0 0.0
    %508 = vmatprep.subr.mxu0 0.0
    %509 = vmatpush1.xpose.msra.mxu0 0.0
    %510 = vmatprep.subr.mxu0 0.0
    %511 = vmatpush1.xpose.msra.mxu0 0.0
    %512 = vmatprep.subr.mxu0 0.0
    %513 = vmatpush1.xpose.msra.mxu0 0.0
    %514 = vmatprep.subr.mxu0 0.0
    %515 = vmatpush1.xpose.msra.mxu0 0.0
    %516 = vmatprep.subr.mxu0 0.0
    %517 = vmatpush1.xpose.msra.mxu0 0.0
    %518 = vmatprep.subr.mxu0 0.0
    %519 = vmatpush1.xpose.msra.mxu0 0.0
    %520 = vmatprep.subr.mxu0 0.0
    %521 = vmatpush1.xpose.msra.mxu0 0.0
    %522 = vmatprep.mubr.f32.mxu0 0.0
    %523 = vmatmul.mubr.f32.gmra.mrb[0].mxu0 %v450
    %v524 = vpop.f32.mrb[0].mxu0
    %v525 = vadd.f32 0.0, %v524
    %v526 = vpop.f32.mrb[0].mxu0
    %527 = vmatprep.mubr.f32.mxu0 0.0
    %528 = vmatmul.mubr.f32.gmra.mrb[0].mxu0 %v452
    %v529 = vpop.f32.mrb[0].mxu0
    %v530 = vadd.f32 0.0, %v529
    %v531 = vpop.f32.mrb[0].mxu0
    %532 = vdwg.mxu0
    %v533 = vmul.f32 %v525, 0.35355338
    %v534 = vmul.f32 %v530, 0.35355338
    %v535 = vadd.f32 %v533, %v106
    %v536 = vadd.f32 %v534, %v107
    %v537 = vsel %vm331, %v535, -inf
    %538 = vmax.xlane.f32.xlu0 %v537
    %v539 = vpop.xlane.xlu0 %538
    %v540 = vsel %vm331, %v536, -inf
    %541 = vmax.xlane.f32.xlu0 %v540
    %v542 = vpop.xlane.xlu0 %541
    %v543 = vsub.f32 %v535, %v539
    %v544 = vsub.f32 %v536, %v542
    %v545 = vmul.f32 %v543, 1.442695
    %v546 = vpow.pop %v545
    %v547 = vmul.f32 %v544, 1.442695
    %v548 = vpow.pop %v547
    %v549 = vsel %vm331, %v546, 0.0
    %550 = vadd.xlane.f32.xlu0 %v549
    %v551 = vpop.xlane.xlu0 %550
    %v552 = vsel %vm331, %v548, 0.0
    %553 = vadd.xlane.f32.xlu0 %v552
    %v554 = vpop.xlane.xlu0 %553
    %v555 = vrcp.pop %v551
    %v556 = vmul.f32 %v546, %v555
    %v557 = vrcp.pop %v554
    %v558 = vmul.f32 %v548, %v557
    %559 = vrot.lane.b32.xlu0 %v229, 56
    %v560 = vpop.permute.xlu0 %559
    %561 = vrot.lane.b32.xlu0 %v234, 56
    %v562 = vpop.permute.xlu0 %561
    %v566 = vsel %vm331, %v556, 0
    %v569 = vsel %vm331, %v558, 0
    %571 = vmatprep.subr.mxu0 0.0
    %572 = vmatpush1.msra.mxu0 %v560
    %573 = vmatprep.subr.mxu0 0.0
    %574 = vmatpush1.msra.mxu0 %v562
    %575 = vmatprep.subr.mxu0 0.0
    %576 = vmatpush1.msra.mxu0 0.0
    %577 = vmatprep.subr.mxu0 0.0
    %578 = vmatpush1.msra.mxu0 0.0
    %579 = vmatprep.subr.mxu0 0.0
    %580 = vmatpush1.msra.mxu0 0.0
    %581 = vmatprep.subr.mxu0 0.0
    %582 = vmatpush1.msra.mxu0 0.0
    %583 = vmatprep.subr.mxu0 0.0
    %584 = vmatpush1.msra.mxu0 0.0
    %585 = vmatprep.subr.mxu0 0.0
    %586 = vmatpush1.msra.mxu0 0.0
    %587 = vmatprep.subr.mxu0 0.0
    %588 = vmatpush1.msra.mxu0 0.0
    %589 = vmatprep.subr.mxu0 0.0
    %590 = vmatpush1.msra.mxu0 0.0
    %591 = vmatprep.subr.mxu0 0.0
    %592 = vmatpush1.msra.mxu0 0.0
    %593 = vmatprep.subr.mxu0 0.0
    %594 = vmatpush1.msra.mxu0 0.0
    %595 = vmatprep.subr.mxu0 0.0
    %596 = vmatpush1.msra.mxu0 0.0
    %597 = vmatprep.subr.mxu0 0.0
    %598 = vmatpush1.msra.mxu0 0.0
    %599 = vmatprep.subr.mxu0 0.0
    %600 = vmatpush1.msra.mxu0 0.0
    %601 = vmatprep.subr.mxu0 0.0
    %602 = vmatpush1.msra.mxu0 0.0
    %603 = vmatprep.subr.mxu0 0.0
    %604 = vmatpush1.msra.mxu0 0.0
    %605 = vmatprep.subr.mxu0 0.0
    %606 = vmatpush1.msra.mxu0 0.0
    %607 = vmatprep.subr.mxu0 0.0
    %608 = vmatpush1.msra.mxu0 0.0
    %609 = vmatprep.subr.mxu0 0.0
    %610 = vmatpush1.msra.mxu0 0.0
    %611 = vmatprep.subr.mxu0 0.0
    %612 = vmatpush1.msra.mxu0 0.0
    %613 = vmatprep.subr.mxu0 0.0
    %614 = vmatpush1.msra.mxu0 0.0
    %615 = vmatprep.subr.mxu0 0.0
    %616 = vmatpush1.msra.mxu0 0.0
    %617 = vmatprep.subr.mxu0 0.0
    %618 = vmatpush1.msra.mxu0 0.0
    %619 = vmatprep.subr.mxu0 0.0
    %620 = vmatpush1.msra.mxu0 0.0
    %621 = vmatprep.subr.mxu0 0.0
    %622 = vmatpush1.msra.mxu0 0.0
    %623 = vmatprep.subr.mxu0 0.0
    %624 = vmatpush1.msra.mxu0 0.0
    %625 = vmatprep.subr.mxu0 0.0
    %626 = vmatpush1.msra.mxu0 0.0
    %627 = vmatprep.subr.mxu0 0.0
    %628 = vmatpush1.msra.mxu0 0.0
    %629 = vmatprep.subr.mxu0 0.0
    %630 = vmatpush1.msra.mxu0 0.0
    %631 = vmatprep.subr.mxu0 0.0
    %632 = vmatpush1.msra.mxu0 0.0
    %633 = vmatprep.subr.mxu0 0.0
    %634 = vmatpush1.msra.mxu0 0.0
    %635 = vmatprep.mubr.f32.mxu0 0.0
    %636 = vmatmul.mubr.f32.gmra.mrb[0].mxu0 %v566
    %v637 = vpop.f32.mrb[0].mxu0
    %v638 = vadd.f32 0.0, %v637
    %v639 = vpop.f32.mrb[0].mxu0
    %640 = vmatprep.mubr.f32.mxu0 0.0
    %641 = vmatmul.mubr.f32.gmra.mrb[0].mxu0 %v569
    %v642 = vpop.f32.mrb[0].mxu0
    %v643 = vadd.f32 0.0, %v642
    %v644 = vpop.f32.mrb[0].mxu0
    %645 = vdwg.mxu0
    %v646 = vld [vmem:[#allocation10 + $0x8] sm:$0xff]
    %v648 = vsel %vm243, %v638, 0
    %v651 = vsel %vm243, %v643, 0
    %653 = vmatprep.subr.mxu0 0.0
    %654 = vmatpush1.msra.mxu0 %v646
    %655 = vmatprep.subr.mxu0 0.0
    %656 = vmatpush1.msra.mxu0 0.0
    %657 = vmatprep.subr.mxu0 0.0
    %658 = vmatpush1.msra.mxu0 0.0
    %659 = vmatprep.subr.mxu0 0.0
    %660 = vmatpush1.msra.mxu0 0.0
    %661 = vmatprep.subr.mxu0 0.0
    %662 = vmatpush1.msra.mxu0 0.0
    %663 = vmatprep.subr.mxu0 0.0
    %664 = vmatpush1.msra.mxu0 0.0
    %665 = vmatprep.subr.mxu0 0.0
    %666 = vmatpush1.msra.mxu0 0.0
    %667 = vmatprep.subr.mxu0 0.0
    %668 = vmatpush1.msra.mxu0 0.0
    %669 = vmatprep.subr.mxu0 0.0
    %670 = vmatpush1.msra.mxu0 0.0
    %671 = vmatprep.subr.mxu0 0.0
    %672 = vmatpush1.msra.mxu0 0.0
    %673 = vmatprep.subr.mxu0 0.0
    %674 = vmatpush1.msra.mxu0 0.0
    %675 = vmatprep.subr.mxu0 0.0
    %676 = vmatpush1.msra.mxu0 0.0
    %677 = vmatprep.subr.mxu0 0.0
    %678 = vmatpush1.msra.mxu0 0.0
    %679 = vmatprep.subr.mxu0 0.0
    %680 = vmatpush1.msra.mxu0 0.0
    %681 = vmatprep.subr.mxu0 0.0
    %682 = vmatpush1.msra.mxu0 0.0
    %683 = vmatprep.subr.mxu0 0.0
    %684 = vmatpush1.msra.mxu0 0.0
    %685 = vmatprep.subr.mxu0 0.0
    %686 = vmatpush1.msra.mxu0 0.0
    %687 = vmatprep.subr.mxu0 0.0
    %688 = vmatpush1.msra.mxu0 0.0
    %689 = vmatprep.subr.mxu0 0.0
    %690 = vmatpush1.msra.mxu0 0.0
    %691 = vmatprep.subr.mxu0 0.0
    %692 = vmatpush1.msra.mxu0 0.0
    %693 = vmatprep.subr.mxu0 0.0
    %694 = vmatpush1.msra.mxu0 0.0
    %695 = vmatprep.subr.mxu0 0.0
    %696 = vmatpush1.msra.mxu0 0.0
    %697 = vmatprep.subr.mxu0 0.0
    %698 = vmatpush1.msra.mxu0 0.0
    %699 = vmatprep.subr.mxu0 0.0
    %700 = vmatpush1.msra.mxu0 0.0
    %701 = vmatprep.subr.mxu0 0.0
    %702 = vmatpush1.msra.mxu0 0.0
    %703 = vmatprep.subr.mxu0 0.0
    %704 = vmatpush1.msra.mxu0 0.0
    %705 = vmatprep.subr.mxu0 0.0
    %706 = vmatpush1.msra.mxu0 0.0
    %707 = vmatprep.subr.mxu0 0.0
    %708 = vmatpush1.msra.mxu0 0.0
    %709 = vmatprep.subr.mxu0 0.0
    %710 = vmatpush1.msra.mxu0 0.0
    %711 = vmatprep.subr.mxu0 0.0
    %712 = vmatpush1.msra.mxu0 0.0
    %713 = vmatprep.subr.mxu0 0.0
    %714 = vmatpush1.msra.mxu0 0.0
    %715 = vmatprep.subr.mxu0 0.0
    %716 = vmatpush1.msra.mxu0 0.0
    %717 = vmatprep.mubr.f32.mxu0 0.0
    %718 = vmatmul.mubr.f32.gmra.mrb[0].mxu0 %v648
    %v719 = vpop.f32.mrb[0].mxu0
    %v720 = vadd.f32 0.0, %v719
    %v721 = vpop.f32.mrb[0].mxu0
    %722 = vmatprep.mubr.f32.mxu0 0.0
    %723 = vmatmul.mubr.f32.gmra.mrb[0].mxu0 %v651
    %v724 = vpop.f32.mrb[0].mxu0
    %v725 = vadd.f32 0.0, %v724
    %v726 = vpop.f32.mrb[0].mxu0
    %727 = vdwg.mxu0
    %v729 = vsel %vm243, %v433, 0
    %v732 = vsel %vm243, %v438, 0
    %734 = vmatprep.subr.mxu0 0.0
    %735 = vmatpush1.msra.mxu0 %v441
    %736 = vmatprep.subr.mxu0 0.0
    %737 = vmatpush1.msra.mxu0 0.0
    %738 = vmatprep.subr.mxu0 0.0
    %739 = vmatpush1.msra.mxu0 0.0
    %740 = vmatprep.subr.mxu0 0.0
    %741 = vmatpush1.msra.mxu0 0.0
    %742 = vmatprep.subr.mxu0 0.0
    %743 = vmatpush1.msra.mxu0 0.0
    %744 = vmatprep.subr.mxu0 0.0
    %745 = vmatpush1.msra.mxu0 0.0
    %746 = vmatprep.subr.mxu0 0.0
    %747 = vmatpush1.msra.mxu0 0.0
    %748 = vmatprep.subr.mxu0 0.0
    %749 = vmatpush1.msra.mxu0 0.0
    %750 = vmatprep.subr.mxu0 0.0
    %751 = vmatpush1.msra.mxu0 0.0
    %752 = vmatprep.subr.mxu0 0.0
    %753 = vmatpush1.msra.mxu0 0.0
    %754 = vmatprep.subr.mxu0 0.0
    %755 = vmatpush1.msra.mxu0 0.0
    %756 = vmatprep.subr.mxu0 0.0
    %757 = vmatpush1.msra.mxu0 0.0
    %758 = vmatprep.subr.mxu0 0.0
    %759 = vmatpush1.msra.mxu0 0.0
    %760 = vmatprep.subr.mxu0 0.0
    %761 = vmatpush1.msra.mxu0 0.0
    %762 = vmatprep.subr.mxu0 0.0
    %763 = vmatpush1.msra.mxu0 0.0
    %764 = vmatprep.subr.mxu0 0.0
    %765 = vmatpush1.msra.mxu0 0.0
    %766 = vmatprep.subr.mxu0 0.0
    %767 = vmatpush1.msra.mxu0 0.0
    %768 = vmatprep.subr.mxu0 0.0
    %769 = vmatpush1.msra.mxu0 0.0
    %770 = vmatprep.subr.mxu0 0.0
    %771 = vmatpush1.msra.mxu0 0.0
    %772 = vmatprep.subr.mxu0 0.0
    %773 = vmatpush1.msra.mxu0 0.0
    %774 = vmatprep.subr.mxu0 0.0
    %775 = vmatpush1.msra.mxu0 0.0
    %776 = vmatprep.subr.mxu0 0.0
    %777 = vmatpush1.msra.mxu0 0.0
    %778 = vmatprep.subr.mxu0 0.0
    %779 = vmatpush1.msra.mxu0 0.0
    %780 = vmatprep.subr.mxu0 0.0
    %781 = vmatpush1.msra.mxu0 0.0
    %782 = vmatprep.subr.mxu0 0.0
    %783 = vmatpush1.msra.mxu0 0.0
    %784 = vmatprep.subr.mxu0 0.0
    %785 = vmatpush1.msra.mxu0 0.0
    %786 = vmatprep.subr.mxu0 0.0
    %787 = vmatpush1.msra.mxu0 0.0
    %788 = vmatprep.subr.mxu0 0.0
    %789 = vmatpush1.msra.mxu0 0.0
    %790 = vmatprep.subr.mxu0 0.0
    %791 = vmatpush1.msra.mxu0 0.0
    %792 = vmatprep.subr.mxu0 0.0
    %793 = vmatpush1.msra.mxu0 0.0
    %794 = vmatprep.subr.mxu0 0.0
    %795 = vmatpush1.msra.mxu0 0.0
    %796 = vmatprep.subr.mxu0 0.0
    %797 = vmatpush1.msra.mxu0 0.0
    %798 = vmatprep.mubr.f32.mxu0 0.0
    %799 = vmatmul.mubr.f32.gmra.mrb[0].mxu0 %v729
    %v800 = vpop.f32.mrb[0].mxu0
    %v801 = vadd.f32 %v720, %v800
    %v802 = vpop.f32.mrb[0].mxu0
    %803 = vmatprep.mubr.f32.mxu0 0.0
    %804 = vmatmul.mubr.f32.gmra.mrb[0].mxu0 %v732
    %v805 = vpop.f32.mrb[0].mxu0
    %v806 = vadd.f32 %v725, %v805
    %v807 = vpop.f32.mrb[0].mxu0
    %808 = vdwg.mxu0
    %809 = vrot.lane.b32.xlu0 %v229, 112
    %v810 = vpop.permute.xlu0 %809
    %811 = vrot.lane.b32.xlu0 %v234, 112
    %v812 = vpop.permute.xlu0 %811
    %813 = vrot.lane.b32.xlu0 %v229, 80
    %v814 = vpop.permute.xlu0 %813
    %815 = vrot.lane.b32.xlu0 %v234, 80
    %v816 = vpop.permute.xlu0 %815
    %v817 = vsel %vm243, %v810, 0
    %v819 = vsel %vm243, %v812, 0
    %v821 = vsel %vm243, %v814, 0
    %v823 = vsel %vm243, %v816, 0
    %825 = vmatprep.subr.mxu0 0.0
    %826 = vmatpush1.xpose.msra.mxu0 %v821
    %827 = vmatprep.subr.mxu0 0.0
    %828 = vmatpush1.xpose.msra.mxu0 %v823
    %829 = vmatprep.subr.mxu0 0.0
    %830 = vmatpush1.xpose.msra.mxu0 0.0
    %831 = vmatprep.subr.mxu0 0.0
    %832 = vmatpush1.xpose.msra.mxu0 0.0
    %833 = vmatprep.subr.mxu0 0.0
    %834 = vmatpush1.xpose.msra.mxu0 0.0
    %835 = vmatprep.subr.mxu0 0.0
    %836 = vmatpush1.xpose.msra.mxu0 0.0
    %837 = vmatprep.subr.mxu0 0.0
    %838 = vmatpush1.xpose.msra.mxu0 0.0
    %839 = vmatprep.subr.mxu0 0.0
    %840 = vmatpush1.xpose.msra.mxu0 0.0
    %841 = vmatprep.subr.mxu0 0.0
    %842 = vmatpush1.xpose.msra.mxu0 0.0
    %843 = vmatprep.subr.mxu0 0.0
    %844 = vmatpush1.xpose.msra.mxu0 0.0
    %845 = vmatprep.subr.mxu0 0.0
    %846 = vmatpush1.xpose.msra.mxu0 0.0
    %847 = vmatprep.subr.mxu0 0.0
    %848 = vmatpush1.xpose.msra.mxu0 0.0
    %849 = vmatprep.subr.mxu0 0.0
    %850 = vmatpush1.xpose.msra.mxu0 0.0
    %851 = vmatprep.subr.mxu0 0.0
    %852 = vmatpush1.xpose.msra.mxu0 0.0
    %853 = vmatprep.subr.mxu0 0.0
    %854 = vmatpush1.xpose.msra.mxu0 0.0
    %855 = vmatprep.subr.mxu0 0.0
    %856 = vmatpush1.xpose.msra.mxu0 0.0
    %857 = vmatprep.subr.mxu0 0.0
    %858 = vmatpush1.xpose.msra.mxu0 0.0
    %859 = vmatprep.subr.mxu0 0.0
    %860 = vmatpush1.xpose.msra.mxu0 0.0
    %861 = vmatprep.subr.mxu0 0.0
    %862 = vmatpush1.xpose.msra.mxu0 0.0
    %863 = vmatprep.subr.mxu0 0.0
    %864 = vmatpush1.xpose.msra.mxu0 0.0
    %865 = vmatprep.subr.mxu0 0.0
    %866 = vmatpush1.xpose.msra.mxu0 0.0
    %867 = vmatprep.subr.mxu0 0.0
    %868 = vmatpush1.xpose.msra.mxu0 0.0
    %869 = vmatprep.subr.mxu0 0.0
    %870 = vmatpush1.xpose.msra.mxu0 0.0
    %871 = vmatprep.subr.mxu0 0.0
    %872 = vmatpush1.xpose.msra.mxu0 0.0
    %873 = vmatprep.subr.mxu0 0.0
    %874 = vmatpush1.xpose.msra.mxu0 0.0
    %875 = vmatprep.subr.mxu0 0.0
    %876 = vmatpush1.xpose.msra.mxu0 0.0
    %877 = vmatprep.subr.mxu0 0.0
    %878 = vmatpush1.xpose.msra.mxu0 0.0
    %879 = vmatprep.subr.mxu0 0.0
    %880 = vmatpush1.xpose.msra.mxu0 0.0
    %881 = vmatprep.subr.mxu0 0.0
    %882 = vmatpush1.xpose.msra.mxu0 0.0
    %883 = vmatprep.subr.mxu0 0.0
    %884 = vmatpush1.xpose.msra.mxu0 0.0
    %885 = vmatprep.subr.mxu0 0.0
    %886 = vmatpush1.xpose.msra.mxu0 0.0
    %887 = vmatprep.subr.mxu0 0.0
    %888 = vmatpush1.xpose.msra.mxu0 0.0
    %889 = vmatprep.mubr.f32.mxu0 0.0
    %890 = vmatmul.mubr.f32.gmra.mrb[0].mxu0 %v817
    %v891 = vpop.f32.mrb[0].mxu0
    %v892 = vadd.f32 0.0, %v891
    %v893 = vpop.f32.mrb[0].mxu0
    %894 = vmatprep.mubr.f32.mxu0 0.0
    %895 = vmatmul.mubr.f32.gmra.mrb[0].mxu0 %v819
    %v896 = vpop.f32.mrb[0].mxu0
    %v897 = vadd.f32 0.0, %v896
    %v898 = vpop.f32.mrb[0].mxu0
    %899 = vdwg.mxu0
    %v900 = vmul.f32 %v892, 0.35355338
    %v901 = vmul.f32 %v897, 0.35355338
    %v902 = vadd.f32 %v900, %v106
    %v903 = vadd.f32 %v901, %v107
    %v904 = vsel %vm331, %v902, -inf
    %905 = vmax.xlane.f32.xlu0 %v904
    %v906 = vpop.xlane.xlu0 %905
    %v907 = vsel %vm331, %v903, -inf
    %908 = vmax.xlane.f32.xlu0 %v907
    %v909 = vpop.xlane.xlu0 %908
    %v910 = vsub.f32 %v902, %v906
    %v911 = vsub.f32 %v903, %v909
    %v912 = vmul.f32 %v910, 1.442695
    %v913 = vpow.pop %v912
    %v914 = vmul.f32 %v911, 1.442695
    %v915 = vpow.pop %v914
    %v916 = vsel %vm331, %v913, 0.0
    %917 = vadd.xlane.f32.xlu0 %v916
    %v918 = vpop.xlane.xlu0 %917
    %v919 = vsel %vm331, %v915, 0.0
    %920 = vadd.xlane.f32.xlu0 %v919
    %v921 = vpop.xlane.xlu0 %920
    %v922 = vrcp.pop %v918
    %v923 = vmul.f32 %v913, %v922
    %v924 = vrcp.pop %v921
    %v925 = vmul.f32 %v915, %v924
    %926 = vrot.lane.b32.xlu0 %v229, 48
    %v927 = vpop.permute.xlu0 %926
    %928 = vrot.lane.b32.xlu0 %v234, 48
    %v929 = vpop.permute.xlu0 %928
    %v933 = vsel %vm331, %v923, 0
    %v936 = vsel %vm331, %v925, 0
    %938 = vmatprep.subr.mxu0 0.0
    %939 = vmatpush1.msra.mxu0 %v927
    %940 = vmatprep.subr.mxu0 0.0
    %941 = vmatpush1.msra.mxu0 %v929
    %942 = vmatprep.subr.mxu0 0.0
    %943 = vmatpush1.msra.mxu0 0.0
    %944 = vmatprep.subr.mxu0 0.0
    %945 = vmatpush1.msra.mxu0 0.0
    %946 = vmatprep.subr.mxu0 0.0
    %947 = vmatpush1.msra.mxu0 0.0
    %948 = vmatprep.subr.mxu0 0.0
    %949 = vmatpush1.msra.mxu0 0.0
    %950 = vmatprep.subr.mxu0 0.0
    %951 = vmatpush1.msra.mxu0 0.0
    %952 = vmatprep.subr.mxu0 0.0
    %953 = vmatpush1.msra.mxu0 0.0
    %954 = vmatprep.subr.mxu0 0.0
    %955 = vmatpush1.msra.mxu0 0.0
    %956 = vmatprep.subr.mxu0 0.0
    %957 = vmatpush1.msra.mxu0 0.0
    %958 = vmatprep.subr.mxu0 0.0
    %959 = vmatpush1.msra.mxu0 0.0
    %960 = vmatprep.subr.mxu0 0.0
    %961 = vmatpush1.msra.mxu0 0.0
    %962 = vmatprep.subr.mxu0 0.0
    %963 = vmatpush1.msra.mxu0 0.0
    %964 = vmatprep.subr.mxu0 0.0
    %965 = vmatpush1.msra.mxu0 0.0
    %966 = vmatprep.subr.mxu0 0.0
    %967 = vmatpush1.msra.mxu0 0.0
    %968 = vmatprep.subr.mxu0 0.0
    %969 = vmatpush1.msra.mxu0 0.0
    %970 = vmatprep.subr.mxu0 0.0
    %971 = vmatpush1.msra.mxu0 0.0
    %972 = vmatprep.subr.mxu0 0.0
    %973 = vmatpush1.msra.mxu0 0.0
    %974 = vmatprep.subr.mxu0 0.0
    %975 = vmatpush1.msra.mxu0 0.0
    %976 = vmatprep.subr.mxu0 0.0
    %977 = vmatpush1.msra.mxu0 0.0
    %978 = vmatprep.subr.mxu0 0.0
    %979 = vmatpush1.msra.mxu0 0.0
    %980 = vmatprep.subr.mxu0 0.0
    %981 = vmatpush1.msra.mxu0 0.0
    %982 = vmatprep.subr.mxu0 0.0
    %983 = vmatpush1.msra.mxu0 0.0
    %984 = vmatprep.subr.mxu0 0.0
    %985 = vmatpush1.msra.mxu0 0.0
    %986 = vmatprep.subr.mxu0 0.0
    %987 = vmatpush1.msra.mxu0 0.0
    %988 = vmatprep.subr.mxu0 0.0
    %989 = vmatpush1.msra.mxu0 0.0
    %990 = vmatprep.subr.mxu0 0.0
    %991 = vmatpush1.msra.mxu0 0.0
    %992 = vmatprep.subr.mxu0 0.0
    %993 = vmatpush1.msra.mxu0 0.0
    %994 = vmatprep.subr.mxu0 0.0
    %995 = vmatpush1.msra.mxu0 0.0
    %996 = vmatprep.subr.mxu0 0.0
    %997 = vmatpush1.msra.mxu0 0.0
    %998 = vmatprep.subr.mxu0 0.0
    %999 = vmatpush1.msra.mxu0 0.0
    %1000 = vmatprep.subr.mxu0 0.0
    %1001 = vmatpush1.msra.mxu0 0.0
    %1002 = vmatprep.mubr.f32.mxu0 0.0
    %1003 = vmatmul.mubr.f32.gmra.mrb[0].mxu0 %v933
    %v1004 = vpop.f32.mrb[0].mxu0
    %v1005 = vadd.f32 0.0, %v1004
    %v1006 = vpop.f32.mrb[0].mxu0
    %1007 = vmatprep.mubr.f32.mxu0 0.0
    %1008 = vmatmul.mubr.f32.gmra.mrb[0].mxu0 %v936
    %v1009 = vpop.f32.mrb[0].mxu0
    %v1010 = vadd.f32 0.0, %v1009
    %v1011 = vpop.f32.mrb[0].mxu0
    %1012 = vdwg.mxu0
    %v1013 = vld [vmem:[#allocation10 + $0x10] sm:$0xff]
    %v1015 = vsel %vm243, %v1005, 0
    %v1018 = vsel %vm243, %v1010, 0
    %1020 = vmatprep.subr.mxu0 0.0
    %1021 = vmatpush1.msra.mxu0 %v1013
    %1022 = vmatprep.subr.mxu0 0.0
    %1023 = vmatpush1.msra.mxu0 0.0
    %1024 = vmatprep.subr.mxu0 0.0
    %1025 = vmatpush1.msra.mxu0 0.0
    %1026 = vmatprep.subr.mxu0 0.0
    %1027 = vmatpush1.msra.mxu0 0.0
    %1028 = vmatprep.subr.mxu0 0.0
    %1029 = vmatpush1.msra.mxu0 0.0
    %1030 = vmatprep.subr.mxu0 0.0
    %1031 = vmatpush1.msra.mxu0 0.0
    %1032 = vmatprep.subr.mxu0 0.0
    %1033 = vmatpush1.msra.mxu0 0.0
    %1034 = vmatprep.subr.mxu0 0.0
    %1035 = vmatpush1.msra.mxu0 0.0
    %1036 = vmatprep.subr.mxu0 0.0
    %1037 = vmatpush1.msra.mxu0 0.0
    %1038 = vmatprep.subr.mxu0 0.0
    %1039 = vmatpush1.msra.mxu0 0.0
    %1040 = vmatprep.subr.mxu0 0.0
    %1041 = vmatpush1.msra.mxu0 0.0
    %1042 = vmatprep.subr.mxu0 0.0
    %1043 = vmatpush1.msra.mxu0 0.0
    %1044 = vmatprep.subr.mxu0 0.0
    %1045 = vmatpush1.msra.mxu0 0.0
    %1046 = vmatprep.subr.mxu0 0.0
    %1047 = vmatpush1.msra.mxu0 0.0
    %1048 = vmatprep.subr.mxu0 0.0
    %1049 = vmatpush1.msra.mxu0 0.0
    %1050 = vmatprep.subr.mxu0 0.0
    %1051 = vmatpush1.msra.mxu0 0.0
    %1052 = vmatprep.subr.mxu0 0.0
    %1053 = vmatpush1.msra.mxu0 0.0
    %1054 = vmatprep.subr.mxu0 0.0
    %1055 = vmatpush1.msra.mxu0 0.0
    %1056 = vmatprep.subr.mxu0 0.0
    %1057 = vmatpush1.msra.mxu0 0.0
    %1058 = vmatprep.subr.mxu0 0.0
    %1059 = vmatpush1.msra.mxu0 0.0
    %1060 = vmatprep.subr.mxu0 0.0
    %1061 = vmatpush1.msra.mxu0 0.0
    %1062 = vmatprep.subr.mxu0 0.0
    %1063 = vmatpush1.msra.mxu0 0.0
    %1064 = vmatprep.subr.mxu0 0.0
    %1065 = vmatpush1.msra.mxu0 0.0
    %1066 = vmatprep.subr.mxu0 0.0
    %1067 = vmatpush1.msra.mxu0 0.0
    %1068 = vmatprep.subr.mxu0 0.0
    %1069 = vmatpush1.msra.mxu0 0.0
    %1070 = vmatprep.subr.mxu0 0.0
    %1071 = vmatpush1.msra.mxu0 0.0
    %1072 = vmatprep.subr.mxu0 0.0
    %1073 = vmatpush1.msra.mxu0 0.0
    %1074 = vmatprep.subr.mxu0 0.0
    %1075 = vmatpush1.msra.mxu0 0.0
    %1076 = vmatprep.subr.mxu0 0.0
    %1077 = vmatpush1.msra.mxu0 0.0
    %1078 = vmatprep.subr.mxu0 0.0
    %1079 = vmatpush1.msra.mxu0 0.0
    %1080 = vmatprep.subr.mxu0 0.0
    %1081 = vmatpush1.msra.mxu0 0.0
    %1082 = vmatprep.subr.mxu0 0.0
    %1083 = vmatpush1.msra.mxu0 0.0
    %1084 = vmatprep.mubr.f32.mxu0 0.0
    %1085 = vmatmul.mubr.f32.gmra.mrb[0].mxu0 %v1015
    %v1086 = vpop.f32.mrb[0].mxu0
    %v1087 = vadd.f32 0.0, %v1086
    %v1088 = vpop.f32.mrb[0].mxu0
    %1089 = vmatprep.mubr.f32.mxu0 0.0
    %1090 = vmatmul.mubr.f32.gmra.mrb[0].mxu0 %v1018
    %v1091 = vpop.f32.mrb[0].mxu0
    %v1092 = vadd.f32 0.0, %v1091
    %v1093 = vpop.f32.mrb[0].mxu0
    %1094 = vdwg.mxu0
    %v1095 = vadd.f32 %v801, %v1087
    %v1096 = vadd.f32 %v806, %v1092
    %1097 = vrot.lane.b32.xlu0 %v229, 104
    %v1098 = vpop.permute.xlu0 %1097
    %1099 = vrot.lane.b32.xlu0 %v234, 104
    %v1100 = vpop.permute.xlu0 %1099
    %1101 = vrot.lane.b32.xlu0 %v229, 72
    %v1102 = vpop.permute.xlu0 %1101
    %1103 = vrot.lane.b32.xlu0 %v234, 72
    %v1104 = vpop.permute.xlu0 %1103
    %v1105 = vsel %vm243, %v1098, 0
    %v1107 = vsel %vm243, %v1100, 0
    %v1109 = vsel %vm243, %v1102, 0
    %v1111 = vsel %vm243, %v1104, 0
    %1113 = vmatprep.subr.mxu0 0.0
    %1114 = vmatpush1.xpose.msra.mxu0 %v1109
    %1115 = vmatprep.subr.mxu0 0.0
    %1116 = vmatpush1.xpose.msra.mxu0 %v1111
    %1117 = vmatprep.subr.mxu0 0.0
    %1118 = vmatpush1.xpose.msra.mxu0 0.0
    %1119 = vmatprep.subr.mxu0 0.0
    %1120 = vmatpush1.xpose.msra.mxu0 0.0
    %1121 = vmatprep.subr.mxu0 0.0
    %1122 = vmatpush1.xpose.msra.mxu0 0.0
    %1123 = vmatprep.subr.mxu0 0.0
    %1124 = vmatpush1.xpose.msra.mxu0 0.0
    %1125 = vmatprep.subr.mxu0 0.0
    %1126 = vmatpush1.xpose.msra.mxu0 0.0
    %1127 = vmatprep.subr.mxu0 0.0
    %1128 = vmatpush1.xpose.msra.mxu0 0.0
    %1129 = vmatprep.subr.mxu0 0.0
    %1130 = vmatpush1.xpose.msra.mxu0 0.0
    %1131 = vmatprep.subr.mxu0 0.0
    %1132 = vmatpush1.xpose.msra.mxu0 0.0
    %1133 = vmatprep.subr.mxu0 0.0
    %1134 = vmatpush1.xpose.msra.mxu0 0.0
    %1135 = vmatprep.subr.mxu0 0.0
    %1136 = vmatpush1.xpose.msra.mxu0 0.0
    %1137 = vmatprep.subr.mxu0 0.0
    %1138 = vmatpush1.xpose.msra.mxu0 0.0
    %1139 = vmatprep.subr.mxu0 0.0
    %1140 = vmatpush1.xpose.msra.mxu0 0.0
    %1141 = vmatprep.subr.mxu0 0.0
    %1142 = vmatpush1.xpose.msra.mxu0 0.0
    %1143 = vmatprep.subr.mxu0 0.0
    %1144 = vmatpush1.xpose.msra.mxu0 0.0
    %1145 = vmatprep.subr.mxu0 0.0
    %1146 = vmatpush1.xpose.msra.mxu0 0.0
    %1147 = vmatprep.subr.mxu0 0.0
    %1148 = vmatpush1.xpose.msra.mxu0 0.0
    %1149 = vmatprep.subr.mxu0 0.0
    %1150 = vmatpush1.xpose.msra.mxu0 0.0
    %1151 = vmatprep.subr.mxu0 0.0
    %1152 = vmatpush1.xpose.msra.mxu0 0.0
    %1153 = vmatprep.subr.mxu0 0.0
    %1154 = vmatpush1.xpose.msra.mxu0 0.0
    %1155 = vmatprep.subr.mxu0 0.0
    %1156 = vmatpush1.xpose.msra.mxu0 0.0
    %1157 = vmatprep.subr.mxu0 0.0
    %1158 = vmatpush1.xpose.msra.mxu0 0.0
    %1159 = vmatprep.subr.mxu0 0.0
    %1160 = vmatpush1.xpose.msra.mxu0 0.0
    %1161 = vmatprep.subr.mxu0 0.0
    %1162 = vmatpush1.xpose.msra.mxu0 0.0
    %1163 = vmatprep.subr.mxu0 0.0
    %1164 = vmatpush1.xpose.msra.mxu0 0.0
    %1165 = vmatprep.subr.mxu0 0.0
    %1166 = vmatpush1.xpose.msra.mxu0 0.0
    %1167 = vmatprep.subr.mxu0 0.0
    %1168 = vmatpush1.xpose.msra.mxu0 0.0
    %1169 = vmatprep.subr.mxu0 0.0
    %1170 = vmatpush1.xpose.msra.mxu0 0.0
    %1171 = vmatprep.subr.mxu0 0.0
    %1172 = vmatpush1.xpose.msra.mxu0 0.0
    %1173 = vmatprep.subr.mxu0 0.0
    %1174 = vmatpush1.xpose.msra.mxu0 0.0
    %1175 = vmatprep.subr.mxu0 0.0
    %1176 = vmatpush1.xpose.msra.mxu0 0.0
    %1177 = vmatprep.mubr.f32.mxu0 0.0
    %1178 = vmatmul.mubr.f32.gmra.mrb[0].mxu0 %v1105
    %v1179 = vpop.f32.mrb[0].mxu0
    %v1180 = vadd.f32 0.0, %v1179
    %v1181 = vpop.f32.mrb[0].mxu0
    %1182 = vmatprep.mubr.f32.mxu0 0.0
    %1183 = vmatmul.mubr.f32.gmra.mrb[0].mxu0 %v1107
    %v1184 = vpop.f32.mrb[0].mxu0
    %v1185 = vadd.f32 0.0, %v1184
    %v1186 = vpop.f32.mrb[0].mxu0
    %1187 = vdwg.mxu0
    %v1188 = vmul.f32 %v1180, 0.35355338
    %v1189 = vmul.f32 %v1185, 0.35355338
    %v1190 = vadd.f32 %v1188, %v106
    %v1191 = vadd.f32 %v1189, %v107
    %v1192 = vsel %vm331, %v1190, -inf
    %1193 = vmax.xlane.f32.xlu0 %v1192
    %v1194 = vpop.xlane.xlu0 %1193
    %v1195 = vsel %vm331, %v1191, -inf
    %1196 = vmax.xlane.f32.xlu0 %v1195
    %v1197 = vpop.xlane.xlu0 %1196
    %v1198 = vsub.f32 %v1190, %v1194
    %v1199 = vsub.f32 %v1191, %v1197
    %v1200 = vmul.f32 %v1198, 1.442695
    %v1201 = vpow.pop %v1200
    %v1202 = vmul.f32 %v1199, 1.442695
    %v1203 = vpow.pop %v1202
    %v1204 = vsel %vm331, %v1201, 0.0
    %1205 = vadd.xlane.f32.xlu0 %v1204
    %v1206 = vpop.xlane.xlu0 %1205
    %v1207 = vsel %vm331, %v1203, 0.0
    %1208 = vadd.xlane.f32.xlu0 %v1207
    %v1209 = vpop.xlane.xlu0 %1208
    %v1210 = vrcp.pop %v1206
    %v1211 = vmul.f32 %v1201, %v1210
    %v1212 = vrcp.pop %v1209
    %v1213 = vmul.f32 %v1203, %v1212
    %1214 = vrot.lane.b32.xlu0 %v229, 40
    %v1215 = vpop.permute.xlu0 %1214
    %1216 = vrot.lane.b32.xlu0 %v234, 40
    %v1217 = vpop.permute.xlu0 %1216
    %v1221 = vsel %vm331, %v1211, 0
    %v1224 = vsel %vm331, %v1213, 0
    %1226 = vmatprep.subr.mxu0 0.0
    %1227 = vmatpush1.msra.mxu0 %v1215
    %1228 = vmatprep.subr.mxu0 0.0
    %1229 = vmatpush1.msra.mxu0 %v1217
    %1230 = vmatprep.subr.mxu0 0.0
    %1231 = vmatpush1.msra.mxu0 0.0
    %1232 = vmatprep.subr.mxu0 0.0
    %1233 = vmatpush1.msra.mxu0 0.0
    %1234 = vmatprep.subr.mxu0 0.0
    %1235 = vmatpush1.msra.mxu0 0.0
    %1236 = vmatprep.subr.mxu0 0.0
    %1237 = vmatpush1.msra.mxu0 0.0
    %1238 = vmatprep.subr.mxu0 0.0
    %1239 = vmatpush1.msra.mxu0 0.0
    %1240 = vmatprep.subr.mxu0 0.0
    %1241 = vmatpush1.msra.mxu0 0.0
    %1242 = vmatprep.subr.mxu0 0.0
    %1243 = vmatpush1.msra.mxu0 0.0
    %1244 = vmatprep.subr.mxu0 0.0
    %1245 = vmatpush1.msra.mxu0 0.0
    %1246 = vmatprep.subr.mxu0 0.0
    %1247 = vmatpush1.msra.mxu0 0.0
    %1248 = vmatprep.subr.mxu0 0.0
    %1249 = vmatpush1.msra.mxu0 0.0
    %1250 = vmatprep.subr.mxu0 0.0
    %1251 = vmatpush1.msra.mxu0 0.0
    %1252 = vmatprep.subr.mxu0 0.0
    %1253 = vmatpush1.msra.mxu0 0.0
    %1254 = vmatprep.subr.mxu0 0.0
    %1255 = vmatpush1.msra.mxu0 0.0
    %1256 = vmatprep.subr.mxu0 0.0
    %1257 = vmatpush1.msra.mxu0 0.0
    %1258 = vmatprep.subr.mxu0 0.0
    %1259 = vmatpush1.msra.mxu0 0.0
    %1260 = vmatprep.subr.mxu0 0.0
    %1261 = vmatpush1.msra.mxu0 0.0
    %1262 = vmatprep.subr.mxu0 0.0
    %1263 = vmatpush1.msra.mxu0 0.0
    %1264 = vmatprep.subr.mxu0 0.0
    %1265 = vmatpush1.msra.mxu0 0.0
    %1266 = vmatprep.subr.mxu0 0.0
    %1267 = vmatpush1.msra.mxu0 0.0
    %1268 = vmatprep.subr.mxu0 0.0
    %1269 = vmatpush1.msra.mxu0 0.0
    %1270 = vmatprep.subr.mxu0 0.0
    %1271 = vmatpush1.msra.mxu0 0.0
    %1272 = vmatprep.subr.mxu0 0.0
    %1273 = vmatpush1.msra.mxu0 0.0
    %1274 = vmatprep.subr.mxu0 0.0
    %1275 = vmatpush1.msra.mxu0 0.0
    %1276 = vmatprep.subr.mxu0 0.0
    %1277 = vmatpush1.msra.mxu0 0.0
    %1278 = vmatprep.subr.mxu0 0.0
    %1279 = vmatpush1.msra.mxu0 0.0
    %1280 = vmatprep.subr.mxu0 0.0
    %1281 = vmatpush1.msra.mxu0 0.0
    %1282 = vmatprep.subr.mxu0 0.0
    %1283 = vmatpush1.msra.mxu0 0.0
    %1284 = vmatprep.subr.mxu0 0.0
    %1285 = vmatpush1.msra.mxu0 0.0
    %1286 = vmatprep.subr.mxu0 0.0
    %1287 = vmatpush1.msra.mxu0 0.0
    %1288 = vmatprep.subr.mxu0 0.0
    %1289 = vmatpush1.msra.mxu0 0.0
    %1290 = vmatprep.mubr.f32.mxu0 0.0
    %1291 = vmatmul.mubr.f32.gmra.mrb[0].mxu0 %v1221
    %v1292 = vpop.f32.mrb[0].mxu0
    %v1293 = vadd.f32 0.0, %v1292
    %v1294 = vpop.f32.mrb[0].mxu0
    %1295 = vmatprep.mubr.f32.mxu0 0.0
    %1296 = vmatmul.mubr.f32.gmra.mrb[0].mxu0 %v1224
    %v1297 = vpop.f32.mrb[0].mxu0
    %v1298 = vadd.f32 0.0, %v1297
    %v1299 = vpop.f32.mrb[0].mxu0
    %1300 = vdwg.mxu0
    %v1301 = vld [vmem:[#allocation10 + $0x18] sm:$0xff]
    %v1303 = vsel %vm243, %v1293, 0
    %v1306 = vsel %vm243, %v1298, 0
    %1308 = vmatprep.subr.mxu0 0.0
    %1309 = vmatpush1.msra.mxu0 %v1301
    %1310 = vmatprep.subr.mxu0 0.0
    %1311 = vmatpush1.msra.mxu0 0.0
    %1312 = vmatprep.subr.mxu0 0.0
    %1313 = vmatpush1.msra.mxu0 0.0
    %1314 = vmatprep.subr.mxu0 0.0
    %1315 = vmatpush1.msra.mxu0 0.0
    %1316 = vmatprep.subr.mxu0 0.0
    %1317 = vmatpush1.msra.mxu0 0.0
    %1318 = vmatprep.subr.mxu0 0.0
    %1319 = vmatpush1.msra.mxu0 0.0
    %1320 = vmatprep.subr.mxu0 0.0
    %1321 = vmatpush1.msra.mxu0 0.0
    %1322 = vmatprep.subr.mxu0 0.0
    %1323 = vmatpush1.msra.mxu0 0.0
    %1324 = vmatprep.subr.mxu0 0.0
    %1325 = vmatpush1.msra.mxu0 0.0
    %1326 = vmatprep.subr.mxu0 0.0
    %1327 = vmatpush1.msra.mxu0 0.0
    %1328 = vmatprep.subr.mxu0 0.0
    %1329 = vmatpush1.msra.mxu0 0.0
    %1330 = vmatprep.subr.mxu0 0.0
    %1331 = vmatpush1.msra.mxu0 0.0
    %1332 = vmatprep.subr.mxu0 0.0
    %1333 = vmatpush1.msra.mxu0 0.0
    %1334 = vmatprep.subr.mxu0 0.0
    %1335 = vmatpush1.msra.mxu0 0.0
    %1336 = vmatprep.subr.mxu0 0.0
    %1337 = vmatpush1.msra.mxu0 0.0
    %1338 = vmatprep.subr.mxu0 0.0
    %1339 = vmatpush1.msra.mxu0 0.0
    %1340 = vmatprep.subr.mxu0 0.0
    %1341 = vmatpush1.msra.mxu0 0.0
    %1342 = vmatprep.subr.mxu0 0.0
    %1343 = vmatpush1.msra.mxu0 0.0
    %1344 = vmatprep.subr.mxu0 0.0
    %1345 = vmatpush1.msra.mxu0 0.0
    %1346 = vmatprep.subr.mxu0 0.0
    %1347 = vmatpush1.msra.mxu0 0.0
    %1348 = vmatprep.subr.mxu0 0.0
    %1349 = vmatpush1.msra.mxu0 0.0
    %1350 = vmatprep.subr.mxu0 0.0
    %1351 = vmatpush1.msra.mxu0 0.0
    %1352 = vmatprep.subr.mxu0 0.0
    %1353 = vmatpush1.msra.mxu0 0.0
    %1354 = vmatprep.subr.mxu0 0.0
    %1355 = vmatpush1.msra.mxu0 0.0
    %1356 = vmatprep.subr.mxu0 0.0
    %1357 = vmatpush1.msra.mxu0 0.0
    %1358 = vmatprep.subr.mxu0 0.0
    %1359 = vmatpush1.msra.mxu0 0.0
    %1360 = vmatprep.subr.mxu0 0.0
    %1361 = vmatpush1.msra.mxu0 0.0
    %1362 = vmatprep.subr.mxu0 0.0
    %1363 = vmatpush1.msra.mxu0 0.0
    %1364 = vmatprep.subr.mxu0 0.0
    %1365 = vmatpush1.msra.mxu0 0.0
    %1366 = vmatprep.subr.mxu0 0.0
    %1367 = vmatpush1.msra.mxu0 0.0
    %1368 = vmatprep.subr.mxu0 0.0
    %1369 = vmatpush1.msra.mxu0 0.0
    %1370 = vmatprep.subr.mxu0 0.0
    %1371 = vmatpush1.msra.mxu0 0.0
    %1372 = vmatprep.mubr.f32.mxu0 0.0
    %1373 = vmatmul.mubr.f32.gmra.mrb[0].mxu0 %v1303
    %v1374 = vpop.f32.mrb[0].mxu0
    %v1375 = vadd.f32 0.0, %v1374
    %v1376 = vpop.f32.mrb[0].mxu0
    %1377 = vmatprep.mubr.f32.mxu0 0.0
    %1378 = vmatmul.mubr.f32.gmra.mrb[0].mxu0 %v1306
    %v1379 = vpop.f32.mrb[0].mxu0
    %v1380 = vadd.f32 0.0, %v1379
    %v1381 = vpop.f32.mrb[0].mxu0
    %1382 = vdwg.mxu0
    %v1383 = vadd.f32 %v1095, %v1375
    %v1384 = vadd.f32 %v1096, %v1380
    %v1385 = vld [vmem:[%s8 + $0x6] sm:$0x1]
    %v1386 = vlaneseq
    %v1387 = vshrl.u32 %v1386, 7
    %v1388 = vsub.s32 0, %v1387
    %v1389 = vrot.slane %v1385, %v1388
    %v1390 = vadd.f32 %v1383, %v1389
    %v1391 = vadd.f32 %v1384, %v1389
    %v1392 = vadd.f32 %v101, %v1390
    %v1393 = vadd.f32 %v102, %v1391
    %v1394 = vld [vmem:[%s8 + $0x2] sm:$0x1]
    %v1395 = vld [vmem:[%s8 + $0x3] sm:$0x1]
    %v1396 = vsel %vm112, %v1392, 0.0
    %1397 = vadd.xlane.f32.xlu0 %v1396
    %v1398 = vpop.xlane.xlu0 %1397
    %v1399 = vsel %vm112, %v1393, 0.0
    %1400 = vadd.xlane.f32.xlu0 %v1399
    %v1401 = vpop.xlane.xlu0 %1400
    %v1402 = vmul.f32 %v1398, %v119
    %v1403 = vmul.f32 %v1401, %v119
    %v1404 = vsub.f32 %v1392, %v1402
    %v1405 = vsub.f32 %v1393, %v1403
    %v1406 = vmul.f32 %v1404, %v1404
    %v1407 = vmul.f32 %v1405, %v1405
    %v1408 = vsel %vm112, %v1406, 0.0
    %1409 = vadd.xlane.f32.xlu0 %v1408
    %v1410 = vpop.xlane.xlu0 %1409
    %v1411 = vsel %vm112, %v1407, 0.0
    %1412 = vadd.xlane.f32.xlu0 %v1411
    %v1413 = vpop.xlane.xlu0 %1412
    %v1414 = vmul.f32 %v1410, %v119
    %v1415 = vmul.f32 %v1413, %v119
    %v1416 = vadd.f32 %v1414, 1e-05
    %v1417 = vadd.f32 %v1415, 1e-05
    %v1418 = vrsqrt.pop %v1416
    %v1419 = vrsqrt.pop %v1417
    %v1420 = vmul.f32 %v1404, %v1418
    %v1421 = vmul.f32 %v1405, %v1419
    %v1422 = vlaneseq
    %v1423 = vshrl.u32 %v1422, 7
    %v1424 = vsub.s32 0, %v1423
    %v1425 = vrot.slane %v1394, %v1424
    %v1426 = vmul.f32 %v1420, %v1425
    %v1427 = vmul.f32 %v1421, %v1425
    %v1428 = vlaneseq
    %v1429 = vshrl.u32 %v1428, 7
    %v1430 = vsub.s32 0, %v1429
    %v1431 = vrot.slane %v1395, %v1430
    %v1432 = vadd.f32 %v1426, %v1431
    %v1433 = vadd.f32 %v1427, %v1431
    %s1434 = scalar_lea.vmem %s4, 64
    %v1435 = vld [vmem:[%s1434] sm:$0xff]
    %v1436 = vld [vmem:[%s1434 + $0x8] sm:$0xff]
    %v1437 = vld [vmem:[%s1434 + $0x10] sm:$0xff]
    %v1438 = vld [vmem:[%s1434 + $0x18] sm:$0xff]
    %v1440 = vsel %vm112, %v1432, 0
    %v1443 = vsel %vm112, %v1433, 0
    %1445 = vmatprep.subr.mxu0 0.0
    %1446 = vmatpush1.msra.mxu0 %v1435
    %1447 = vmatprep.subr.mxu0 0.0
    %1448 = vmatpush1.msra.mxu0 %v1436
    %1449 = vmatprep.subr.mxu0 0.0
    %1450 = vmatpush1.msra.mxu0 %v1437
    %1451 = vmatprep.subr.mxu0 0.0
    %1452 = vmatpush1.msra.mxu0 %v1438
    %1453 = vmatprep.subr.mxu0 0.0
    %1454 = vmatpush1.msra.mxu0 0.0
    %1455 = vmatprep.subr.mxu0 0.0
    %1456 = vmatpush1.msra.mxu0 0.0
    %1457 = vmatprep.subr.mxu0 0.0
    %1458 = vmatpush1.msra.mxu0 0.0
    %1459 = vmatprep.subr.mxu0 0.0
    %1460 = vmatpush1.msra.mxu0 0.0
    %1461 = vmatprep.subr.mxu0 0.0
    %1462 = vmatpush1.msra.mxu0 0.0
    %1463 = vmatprep.subr.mxu0 0.0
    %1464 = vmatpush1.msra.mxu0 0.0
    %1465 = vmatprep.subr.mxu0 0.0
    %1466 = vmatpush1.msra.mxu0 0.0
    %1467 = vmatprep.subr.mxu0 0.0
    %1468 = vmatpush1.msra.mxu0 0.0
    %1469 = vmatprep.subr.mxu0 0.0
    %1470 = vmatpush1.msra.mxu0 0.0
    %1471 = vmatprep.subr.mxu0 0.0
    %1472 = vmatpush1.msra.mxu0 0.0
    %1473 = vmatprep.subr.mxu0 0.0
    %1474 = vmatpush1.msra.mxu0 0.0
    %1475 = vmatprep.subr.mxu0 0.0
    %1476 = vmatpush1.msra.mxu0 0.0
    %1477 = vmatprep.subr.mxu0 0.0
    %1478 = vmatpush1.msra.mxu0 0.0
    %1479 = vmatprep.subr.mxu0 0.0
    %1480 = vmatpush1.msra.mxu0 0.0
    %1481 = vmatprep.subr.mxu0 0.0
    %1482 = vmatpush1.msra.mxu0 0.0
    %1483 = vmatprep.subr.mxu0 0.0
    %1484 = vmatpush1.msra.mxu0 0.0
    %1485 = vmatprep.subr.mxu0 0.0
    %1486 = vmatpush1.msra.mxu0 0.0
    %1487 = vmatprep.subr.mxu0 0.0
    %1488 = vmatpush1.msra.mxu0 0.0
    %1489 = vmatprep.subr.mxu0 0.0
    %1490 = vmatpush1.msra.mxu0 0.0
    %1491 = vmatprep.subr.mxu0 0.0
    %1492 = vmatpush1.msra.mxu0 0.0
    %1493 = vmatprep.subr.mxu0 0.0
    %1494 = vmatpush1.msra.mxu0 0.0
    %1495 = vmatprep.subr.mxu0 0.0
    %1496 = vmatpush1.msra.mxu0 0.0
    %1497 = vmatprep.subr.mxu0 0.0
    %1498 = vmatpush1.msra.mxu0 0.0
    %1499 = vmatprep.subr.mxu0 0.0
    %1500 = vmatpush1.msra.mxu0 0.0
    %1501 = vmatprep.subr.mxu0 0.0
    %1502 = vmatpush1.msra.mxu0 0.0
    %1503 = vmatprep.subr.mxu0 0.0
    %1504 = vmatpush1.msra.mxu0 0.0
    %1505 = vmatprep.subr.mxu0 0.0
    %1506 = vmatpush1.msra.mxu0 0.0
    %1507 = vmatprep.subr.mxu0 0.0
    %1508 = vmatpush1.msra.mxu0 0.0
    %1509 = vmatprep.mubr.f32.mxu0 0.0
    %1510 = vmatmul.mubr.f32.gmra.mrb[0].mxu0 %v1440
    %v1511 = vpop.f32.mrb[0].mxu0
    %v1512 = vadd.f32 0.0, %v1511
    %v1513 = vpop.f32.mrb[0].mxu0
    %1514 = vmatprep.mubr.f32.mxu0 0.0
    %1515 = vmatmul.mubr.f32.gmra.mrb[0].mxu0 %v1443
    %v1516 = vpop.f32.mrb[0].mxu0
    %v1517 = vadd.f32 0.0, %v1516
    %v1518 = vpop.f32.mrb[0].mxu0
    %1519 = vdwg.mxu0
    %v1521 = vsel %vm112, %v103, 0
    %v1524 = vsel %vm112, %v104, 0
    %v1527 = vsel %vm112, %v105, 0
    %1529 = vmatprep.subr.mxu0 0.0
    %1530 = vmatpush1.msra.mxu0 %v1435
    %1531 = vmatprep.subr.mxu0 0.0
    %1532 = vmatpush1.msra.mxu0 %v1436
    %1533 = vmatprep.subr.mxu0 0.0
    %1534 = vmatpush1.msra.mxu0 %v1437
    %1535 = vmatprep.subr.mxu0 0.0
    %1536 = vmatpush1.msra.mxu0 %v1438
    %1537 = vmatprep.subr.mxu0 0.0
    %1538 = vmatpush1.msra.mxu0 0.0
    %1539 = vmatprep.subr.mxu0 0.0
    %1540 = vmatpush1.msra.mxu0 0.0
    %1541 = vmatprep.subr.mxu0 0.0
    %1542 = vmatpush1.msra.mxu0 0.0
    %1543 = vmatprep.subr.mxu0 0.0
    %1544 = vmatpush1.msra.mxu0 0.0
    %1545 = vmatprep.subr.mxu0 0.0
    %1546 = vmatpush1.msra.mxu0 0.0
    %1547 = vmatprep.subr.mxu0 0.0
    %1548 = vmatpush1.msra.mxu0 0.0
    %1549 = vmatprep.subr.mxu0 0.0
    %1550 = vmatpush1.msra.mxu0 0.0
    %1551 = vmatprep.subr.mxu0 0.0
    %1552 = vmatpush1.msra.mxu0 0.0
    %1553 = vmatprep.subr.mxu0 0.0
    %1554 = vmatpush1.msra.mxu0 0.0
    %1555 = vmatprep.subr.mxu0 0.0
    %1556 = vmatpush1.msra.mxu0 0.0
    %1557 = vmatprep.subr.mxu0 0.0
    %1558 = vmatpush1.msra.mxu0 0.0
    %1559 = vmatprep.subr.mxu0 0.0
    %1560 = vmatpush1.msra.mxu0 0.0
    %1561 = vmatprep.subr.mxu0 0.0
    %1562 = vmatpush1.msra.mxu0 0.0
    %1563 = vmatprep.subr.mxu0 0.0
    %1564 = vmatpush1.msra.mxu0 0.0
    %1565 = vmatprep.subr.mxu0 0.0
    %1566 = vmatpush1.msra.mxu0 0.0
    %1567 = vmatprep.subr.mxu0 0.0
    %1568 = vmatpush1.msra.mxu0 0.0
    %1569 = vmatprep.subr.mxu0 0.0
    %1570 = vmatpush1.msra.mxu0 0.0
    %1571 = vmatprep.subr.mxu0 0.0
    %1572 = vmatpush1.msra.mxu0 0.0
    %1573 = vmatprep.subr.mxu0 0.0
    %1574 = vmatpush1.msra.mxu0 0.0
    %1575 = vmatprep.subr.mxu0 0.0
    %1576 = vmatpush1.msra.mxu0 0.0
    %1577 = vmatprep.subr.mxu0 0.0
    %1578 = vmatpush1.msra.mxu0 0.0
    %1579 = vmatprep.subr.mxu0 0.0
    %1580 = vmatpush1.msra.mxu0 0.0
    %1581 = vmatprep.subr.mxu0 0.0
    %1582 = vmatpush1.msra.mxu0 0.0
    %1583 = vmatprep.subr.mxu0 0.0
    %1584 = vmatpush1.msra.mxu0 0.0
    %1585 = vmatprep.subr.mxu0 0.0
    %1586 = vmatpush1.msra.mxu0 0.0
    %1587 = vmatprep.subr.mxu0 0.0
    %1588 = vmatpush1.msra.mxu0 0.0
    %1589 = vmatprep.subr.mxu0 0.0
    %1590 = vmatpush1.msra.mxu0 0.0
    %1591 = vmatprep.subr.mxu0 0.0
    %1592 = vmatpush1.msra.mxu0 0.0
    %1593 = vmatprep.mubr.f32.mxu0 0.0
    %1594 = vmatmul.mubr.f32.gmra.mrb[0].mxu0 %v1521
    %v1595 = vpop.f32.mrb[0].mxu0
    %v1596 = vadd.f32 0.0, %v1595
    %v1597 = vpop.f32.mrb[0].mxu0
    %1598 = vmatprep.mubr.f32.mxu0 0.0
    %1599 = vmatmul.mubr.f32.gmra.mrb[0].mxu0 %v1524
    %v1600 = vpop.f32.mrb[0].mxu0
    %v1601 = vadd.f32 0.0, %v1600
    %v1602 = vpop.f32.mrb[0].mxu0
    %1603 = vmatprep.mubr.f32.mxu0 0.0
    %1604 = vmatmul.mubr.f32.gmra.mrb[0].mxu0 %v1527
    %v1605 = vpop.f32.mrb[0].mxu0
    %v1606 = vadd.f32 0.0, %v1605
    %v1607 = vpop.f32.mrb[0].mxu0
    %1608 = vdwg.mxu0
    %1612 = vrot.lane.b32.xlu0 %v1596, 96
    %v1613 = vpop.permute.xlu0 %1612
    %1614 = vrot.lane.b32.xlu0 %v1601, 96
    %v1615 = vpop.permute.xlu0 %1614
    %1616 = vrot.lane.b32.xlu0 %v1606, 96
    %v1617 = vpop.permute.xlu0 %1616
    %v1619 = vsel %vm243, %v1512, 0
    %v1622 = vsel %vm243, %v1517, 0
    %v1624 = vsel %vm243, %v1613, 0
    %v1626 = vsel %vm243, %v1615, 0
    %v1628 = vsel %vm243, %v1617, 0
    %1630 = vmatprep.subr.mxu0 0.0
    %1631 = vmatpush1.xpose.msra.mxu0 %v1624
    %1632 = vmatprep.subr.mxu0 0.0
    %1633 = vmatpush1.xpose.msra.mxu0 %v1626
    %1634 = vmatprep.subr.mxu0 0.0
    %1635 = vmatpush1.xpose.msra.mxu0 %v1628
    %1636 = vmatprep.subr.mxu0 0.0
    %1637 = vmatpush1.xpose.msra.mxu0 0.0
    %1638 = vmatprep.subr.mxu0 0.0
    %1639 = vmatpush1.xpose.msra.mxu0 0.0
    %1640 = vmatprep.subr.mxu0 0.0
    %1641 = vmatpush1.xpose.msra.mxu0 0.0
    %1642 = vmatprep.subr.mxu0 0.0
    %1643 = vmatpush1.xpose.msra.mxu0 0.0
    %1644 = vmatprep.subr.mxu0 0.0
    %1645 = vmatpush1.xpose.msra.mxu0 0.0
    %1646 = vmatprep.subr.mxu0 0.0
    %1647 = vmatpush1.xpose.msra.mxu0 0.0
    %1648 = vmatprep.subr.mxu0 0.0
    %1649 = vmatpush1.xpose.msra.mxu0 0.0
    %1650 = vmatprep.subr.mxu0 0.0
    %1651 = vmatpush1.xpose.msra.mxu0 0.0
    %1652 = vmatprep.subr.mxu0 0.0
    %1653 = vmatpush1.xpose.msra.mxu0 0.0
    %1654 = vmatprep.subr.mxu0 0.0
    %1655 = vmatpush1.xpose.msra.mxu0 0.0
    %1656 = vmatprep.subr.mxu0 0.0
    %1657 = vmatpush1.xpose.msra.mxu0 0.0
    %1658 = vmatprep.subr.mxu0 0.0
    %1659 = vmatpush1.xpose.msra.mxu0 0.0
    %1660 = vmatprep.subr.mxu0 0.0
    %1661 = vmatpush1.xpose.msra.mxu0 0.0
    %1662 = vmatprep.subr.mxu0 0.0
    %1663 = vmatpush1.xpose.msra.mxu0 0.0
    %1664 = vmatprep.subr.mxu0 0.0
    %1665 = vmatpush1.xpose.msra.mxu0 0.0
    %1666 = vmatprep.subr.mxu0 0.0
    %1667 = vmatpush1.xpose.msra.mxu0 0.0
    %1668 = vmatprep.subr.mxu0 0.0
    %1669 = vmatpush1.xpose.msra.mxu0 0.0
    %1670 = vmatprep.subr.mxu0 0.0
    %1671 = vmatpush1.xpose.msra.mxu0 0.0
    %1672 = vmatprep.subr.mxu0 0.0
    %1673 = vmatpush1.xpose.msra.mxu0 0.0
    %1674 = vmatprep.subr.mxu0 0.0
    %1675 = vmatpush1.xpose.msra.mxu0 0.0
    %1676 = vmatprep.subr.mxu0 0.0
    %1677 = vmatpush1.xpose.msra.mxu0 0.0
    %1678 = vmatprep.subr.mxu0 0.0
    %1679 = vmatpush1.xpose.msra.mxu0 0.0
    %1680 = vmatprep.subr.mxu0 0.0
    %1681 = vmatpush1.xpose.msra.mxu0 0.0
    %1682 = vmatprep.subr.mxu0 0.0
    %1683 = vmatpush1.xpose.msra.mxu0 0.0
    %1684 = vmatprep.subr.mxu0 0.0
    %1685 = vmatpush1.xpose.msra.mxu0 0.0
    %1686 = vmatprep.subr.mxu0 0.0
    %1687 = vmatpush1.xpose.msra.mxu0 0.0
    %1688 = vmatprep.subr.mxu0 0.0
    %1689 = vmatpush1.xpose.msra.mxu0 0.0
    %1690 = vmatprep.subr.mxu0 0.0
    %1691 = vmatpush1.xpose.msra.mxu0 0.0
    %1692 = vmatprep.subr.mxu0 0.0
    %1693 = vmatpush1.xpose.msra.mxu0 0.0
    %1694 = vmatprep.mubr.f32.mxu0 0.0
    %1695 = vmatmul.mubr.f32.gmra.mrb[0].mxu0 %v1619
    %v1696 = vpop.f32.mrb[0].mxu0
    %v1697 = vadd.f32 0.0, %v1696
    %v1698 = vpop.f32.mrb[0].mxu0
    %1699 = vmatprep.mubr.f32.mxu0 0.0
    %1700 = vmatmul.mubr.f32.gmra.mrb[0].mxu0 %v1622
    %v1701 = vpop.f32.mrb[0].mxu0
    %v1702 = vadd.f32 0.0, %v1701
    %v1703 = vpop.f32.mrb[0].mxu0
    %1704 = vdwg.mxu0
    %v1705 = vmul.f32 %v1697, 0.35355338
    %v1706 = vmul.f32 %v1702, 0.35355338
    %v1707 = vadd.f32 %v1705, %v108
    %v1708 = vadd.f32 %v1706, %v109
    %vm1709 = vcmask 195584
    %v1710 = vsel %vm1709, %v1707, -inf
    %1711 = vmax.xlane.f32.xlu0 %v1710
    %v1712 = vpop.xlane.xlu0 %1711
    %v1713 = vsel %vm1709, %v1708, -inf
    %1714 = vmax.xlane.f32.xlu0 %v1713
    %v1715 = vpop.xlane.xlu0 %1714
    %v1716 = vsub.f32 %v1707, %v1712
    %v1717 = vsub.f32 %v1708, %v1715
    %v1718 = vmul.f32 %v1716, 1.442695
    %v1719 = vpow.pop %v1718
    %v1720 = vmul.f32 %v1717, 1.442695
    %v1721 = vpow.pop %v1720
    %v1722 = vsel %vm1709, %v1719, 0.0
    %1723 = vadd.xlane.f32.xlu0 %v1722
    %v1724 = vpop.xlane.xlu0 %1723
    %v1725 = vsel %vm1709, %v1721, 0.0
    %1726 = vadd.xlane.f32.xlu0 %v1725
    %v1727 = vpop.xlane.xlu0 %1726
    %v1728 = vrcp.pop %v1724
    %v1729 = vmul.f32 %v1719, %v1728
    %v1730 = vrcp.pop %v1727
    %v1731 = vmul.f32 %v1721, %v1730
    %1732 = vrot.lane.b32.xlu0 %v1596, 64
    %v1733 = vpop.permute.xlu0 %1732
    %1734 = vrot.lane.b32.xlu0 %v1601, 64
    %v1735 = vpop.permute.xlu0 %1734
    %1736 = vrot.lane.b32.xlu0 %v1606, 64
    %v1737 = vpop.permute.xlu0 %1736
    %v1742 = vsel %vm1709, %v1729, 0
    %v1745 = vsel %vm1709, %v1731, 0
    %1747 = vmatprep.subr.mxu0 0.0
    %1748 = vmatpush1.msra.mxu0 %v1733
    %1749 = vmatprep.subr.mxu0 0.0
    %1750 = vmatpush1.msra.mxu0 %v1735
    %1751 = vmatprep.subr.mxu0 0.0
    %1752 = vmatpush1.msra.mxu0 %v1737
    %1753 = vmatprep.subr.mxu0 0.0
    %1754 = vmatpush1.msra.mxu0 0.0
    %1755 = vmatprep.subr.mxu0 0.0
    %1756 = vmatpush1.msra.mxu0 0.0
    %1757 = vmatprep.subr.mxu0 0.0
    %1758 = vmatpush1.msra.mxu0 0.0
    %1759 = vmatprep.subr.mxu0 0.0
    %1760 = vmatpush1.msra.mxu0 0.0
    %1761 = vmatprep.subr.mxu0 0.0
    %1762 = vmatpush1.msra.mxu0 0.0
    %1763 = vmatprep.subr.mxu0 0.0
    %1764 = vmatpush1.msra.mxu0 0.0
    %1765 = vmatprep.subr.mxu0 0.0
    %1766 = vmatpush1.msra.mxu0 0.0
    %1767 = vmatprep.subr.mxu0 0.0
    %1768 = vmatpush1.msra.mxu0 0.0
    %1769 = vmatprep.subr.mxu0 0.0
    %1770 = vmatpush1.msra.mxu0 0.0
    %1771 = vmatprep.subr.mxu0 0.0
    %1772 = vmatpush1.msra.mxu0 0.0
    %1773 = vmatprep.subr.mxu0 0.0
    %1774 = vmatpush1.msra.mxu0 0.0
    %1775 = vmatprep.subr.mxu0 0.0
    %1776 = vmatpush1.msra.mxu0 0.0
    %1777 = vmatprep.subr.mxu0 0.0
    %1778 = vmatpush1.msra.mxu0 0.0
    %1779 = vmatprep.subr.mxu0 0.0
    %1780 = vmatpush1.msra.mxu0 0.0
    %1781 = vmatprep.subr.mxu0 0.0
    %1782 = vmatpush1.msra.mxu0 0.0
    %1783 = vmatprep.subr.mxu0 0.0
    %1784 = vmatpush1.msra.mxu0 0.0
    %1785 = vmatprep.subr.mxu0 0.0
    %1786 = vmatpush1.msra.mxu0 0.0
    %1787 = vmatprep.subr.mxu0 0.0
    %1788 = vmatpush1.msra.mxu0 0.0
    %1789 = vmatprep.subr.mxu0 0.0
    %1790 = vmatpush1.msra.mxu0 0.0
    %1791 = vmatprep.subr.mxu0 0.0
    %1792 = vmatpush1.msra.mxu0 0.0
    %1793 = vmatprep.subr.mxu0 0.0
    %1794 = vmatpush1.msra.mxu0 0.0
    %1795 = vmatprep.subr.mxu0 0.0
    %1796 = vmatpush1.msra.mxu0 0.0
    %1797 = vmatprep.subr.mxu0 0.0
    %1798 = vmatpush1.msra.mxu0 0.0
    %1799 = vmatprep.subr.mxu0 0.0
    %1800 = vmatpush1.msra.mxu0 0.0
    %1801 = vmatprep.subr.mxu0 0.0
    %1802 = vmatpush1.msra.mxu0 0.0
    %1803 = vmatprep.subr.mxu0 0.0
    %1804 = vmatpush1.msra.mxu0 0.0
    %1805 = vmatprep.subr.mxu0 0.0
    %1806 = vmatpush1.msra.mxu0 0.0
    %1807 = vmatprep.subr.mxu0 0.0
    %1808 = vmatpush1.msra.mxu0 0.0
    %1809 = vmatprep.subr.mxu0 0.0
    %1810 = vmatpush1.msra.mxu0 0.0
    %1811 = vmatprep.mubr.f32.mxu0 0.0
    %1812 = vmatmul.mubr.f32.gmra.mrb[0].mxu0 %v1742
    %v1813 = vpop.f32.mrb[0].mxu0
    %v1814 = vadd.f32 0.0, %v1813
    %v1815 = vpop.f32.mrb[0].mxu0
    %1816 = vmatprep.mubr.f32.mxu0 0.0
    %1817 = vmatmul.mubr.f32.gmra.mrb[0].mxu0 %v1745
    %v1818 = vpop.f32.mrb[0].mxu0
    %v1819 = vadd.f32 0.0, %v1818
    %v1820 = vpop.f32.mrb[0].mxu0
    %1821 = vdwg.mxu0
    %s1822 = scalar_lea.vmem [#allocation10], 64
    %v1823 = vld [vmem:[%s1822] sm:$0xff]
    %1824 = vrot.lane.b32.xlu0 %v1512, 120
    %v1825 = vpop.permute.xlu0 %1824
    %1826 = vrot.lane.b32.xlu0 %v1517, 120
    %v1827 = vpop.permute.xlu0 %1826
    %1828 = vrot.lane.b32.xlu0 %v1596, 88
    %v1829 = vpop.permute.xlu0 %1828
    %1830 = vrot.lane.b32.xlu0 %v1601, 88
    %v1831 = vpop.permute.xlu0 %1830
    %1832 = vrot.lane.b32.xlu0 %v1606, 88
    %v1833 = vpop.permute.xlu0 %1832
    %v1834 = vsel %vm243, %v1825, 0
    %v1836 = vsel %vm243, %v1827, 0
    %v1838 = vsel %vm243, %v1829, 0
    %v1840 = vsel %vm243, %v1831, 0
    %v1842 = vsel %vm243, %v1833, 0
    %1844 = vmatprep.subr.mxu0 0.0
    %1845 = vmatpush1.xpose.msra.mxu0 %v1838
    %1846 = vmatprep.subr.mxu0 0.0
    %1847 = vmatpush1.xpose.msra.mxu0 %v1840
    %1848 = vmatprep.subr.mxu0 0.0
    %1849 = vmatpush1.xpose.msra.mxu0 %v1842
    %1850 = vmatprep.subr.mxu0 0.0
    %1851 = vmatpush1.xpose.msra.mxu0 0.0
    %1852 = vmatprep.subr.mxu0 0.0
    %1853 = vmatpush1.xpose.msra.mxu0 0.0
    %1854 = vmatprep.subr.mxu0 0.0
    %1855 = vmatpush1.xpose.msra.mxu0 0.0
    %1856 = vmatprep.subr.mxu0 0.0
    %1857 = vmatpush1.xpose.msra.mxu0 0.0
    %1858 = vmatprep.subr.mxu0 0.0
    %1859 = vmatpush1.xpose.msra.mxu0 0.0
    %1860 = vmatprep.subr.mxu0 0.0
    %1861 = vmatpush1.xpose.msra.mxu0 0.0
    %1862 = vmatprep.subr.mxu0 0.0
    %1863 = vmatpush1.xpose.msra.mxu0 0.0
    %1864 = vmatprep.subr.mxu0 0.0
    %1865 = vmatpush1.xpose.msra.mxu0 0.0
    %1866 = vmatprep.subr.mxu0 0.0
    %1867 = vmatpush1.xpose.msra.mxu0 0.0
    %1868 = vmatprep.subr.mxu0 0.0
    %1869 = vmatpush1.xpose.msra.mxu0 0.0
    %1870 = vmatprep.subr.mxu0 0.0
    %1871 = vmatpush1.xpose.msra.mxu0 0.0
    %1872 = vmatprep.subr.mxu0 0.0
    %1873 = vmatpush1.xpose.msra.mxu0 0.0
    %1874 = vmatprep.subr.mxu0 0.0
    %1875 = vmatpush1.xpose.msra.mxu0 0.0
    %1876 = vmatprep.subr.mxu0 0.0
    %1877 = vmatpush1.xpose.msra.mxu0 0.0
    %1878 = vmatprep.subr.mxu0 0.0
    %1879 = vmatpush1.xpose.msra.mxu0 0.0
    %1880 = vmatprep.subr.mxu0 0.0
    %1881 = vmatpush1.xpose.msra.mxu0 0.0
    %1882 = vmatprep.subr.mxu0 0.0
    %1883 = vmatpush1.xpose.msra.mxu0 0.0
    %1884 = vmatprep.subr.mxu0 0.0
    %1885 = vmatpush1.xpose.msra.mxu0 0.0
    %1886 = vmatprep.subr.mxu0 0.0
    %1887 = vmatpush1.xpose.msra.mxu0 0.0
    %1888 = vmatprep.subr.mxu0 0.0
    %1889 = vmatpush1.xpose.msra.mxu0 0.0
    %1890 = vmatprep.subr.mxu0 0.0
    %1891 = vmatpush1.xpose.msra.mxu0 0.0
    %1892 = vmatprep.subr.mxu0 0.0
    %1893 = vmatpush1.xpose.msra.mxu0 0.0
    %1894 = vmatprep.subr.mxu0 0.0
    %1895 = vmatpush1.xpose.msra.mxu0 0.0
    %1896 = vmatprep.subr.mxu0 0.0
    %1897 = vmatpush1.xpose.msra.mxu0 0.0
    %1898 = vmatprep.subr.mxu0 0.0
    %1899 = vmatpush1.xpose.msra.mxu0 0.0
    %1900 = vmatprep.subr.mxu0 0.0
    %1901 = vmatpush1.xpose.msra.mxu0 0.0
    %1902 = vmatprep.subr.mxu0 0.0
    %1903 = vmatpush1.xpose.msra.mxu0 0.0
    %1904 = vmatprep.subr.mxu0 0.0
    %1905 = vmatpush1.xpose.msra.mxu0 0.0
    %1906 = vmatprep.subr.mxu0 0.0
    %1907 = vmatpush1.xpose.msra.mxu0 0.0
    %1908 = vmatprep.mubr.f32.mxu0 0.0
    %1909 = vmatmul.mubr.f32.gmra.mrb[0].mxu0 %v1834
    %v1910 = vpop.f32.mrb[0].mxu0
    %v1911 = vadd.f32 0.0, %v1910
    %v1912 = vpop.f32.mrb[0].mxu0
    %1913 = vmatprep.mubr.f32.mxu0 0.0
    %1914 = vmatmul.mubr.f32.gmra.mrb[0].mxu0 %v1836
    %v1915 = vpop.f32.mrb[0].mxu0
    %v1916 = vadd.f32 0.0, %v1915
    %v1917 = vpop.f32.mrb[0].mxu0
    %1918 = vdwg.mxu0
    %v1919 = vmul.f32 %v1911, 0.35355338
    %v1920 = vmul.f32 %v1916, 0.35355338
    %v1921 = vadd.f32 %v1919, %v108
    %v1922 = vadd.f32 %v1920, %v109
    %v1923 = vsel %vm1709, %v1921, -inf
    %1924 = vmax.xlane.f32.xlu0 %v1923
    %v1925 = vpop.xlane.xlu0 %1924
    %v1926 = vsel %vm1709, %v1922, -inf
    %1927 = vmax.xlane.f32.xlu0 %v1926
    %v1928 = vpop.xlane.xlu0 %1927
    %v1929 = vsub.f32 %v1921, %v1925
    %v1930 = vsub.f32 %v1922, %v1928
    %v1931 = vmul.f32 %v1929, 1.442695
    %v1932 = vpow.pop %v1931
    %v1933 = vmul.f32 %v1930, 1.442695
    %v1934 = vpow.pop %v1933
    %v1935 = vsel %vm1709, %v1932, 0.0
    %1936 = vadd.xlane.f32.xlu0 %v1935
    %v1937 = vpop.xlane.xlu0 %1936
    %v1938 = vsel %vm1709, %v1934, 0.0
    %1939 = vadd.xlane.f32.xlu0 %v1938
    %v1940 = vpop.xlane.xlu0 %1939
    %v1941 = vrcp.pop %v1937
    %v1942 = vmul.f32 %v1932, %v1941
    %v1943 = vrcp.pop %v1940
    %v1944 = vmul.f32 %v1934, %v1943
    %1945 = vrot.lane.b32.xlu0 %v1596, 56
    %v1946 = vpop.permute.xlu0 %1945
    %1947 = vrot.lane.b32.xlu0 %v1601, 56
    %v1948 = vpop.permute.xlu0 %1947
    %1949 = vrot.lane.b32.xlu0 %v1606, 56
    %v1950 = vpop.permute.xlu0 %1949
    %v1955 = vsel %vm1709, %v1942, 0
    %v1958 = vsel %vm1709, %v1944, 0
    %1960 = vmatprep.subr.mxu0 0.0
    %1961 = vmatpush1.msra.mxu0 %v1946
    %1962 = vmatprep.subr.mxu0 0.0
    %1963 = vmatpush1.msra.mxu0 %v1948
    %1964 = vmatprep.subr.mxu0 0.0
    %1965 = vmatpush1.msra.mxu0 %v1950
    %1966 = vmatprep.subr.mxu0 0.0
    %1967 = vmatpush1.msra.mxu0 0.0
    %1968 = vmatprep.subr.mxu0 0.0
    %1969 = vmatpush1.msra.mxu0 0.0
    %1970 = vmatprep.subr.mxu0 0.0
    %1971 = vmatpush1.msra.mxu0 0.0
    %1972 = vmatprep.subr.mxu0 0.0
    %1973 = vmatpush1.msra.mxu0 0.0
    %1974 = vmatprep.subr.mxu0 0.0
    %1975 = vmatpush1.msra.mxu0 0.0
    %1976 = vmatprep.subr.mxu0 0.0
    %1977 = vmatpush1.msra.mxu0 0.0
    %1978 = vmatprep.subr.mxu0 0.0
    %1979 = vmatpush1.msra.mxu0 0.0
    %1980 = vmatprep.subr.mxu0 0.0
    %1981 = vmatpush1.msra.mxu0 0.0
    %1982 = vmatprep.subr.mxu0 0.0
    %1983 = vmatpush1.msra.mxu0 0.0
    %1984 = vmatprep.subr.mxu0 0.0
    %1985 = vmatpush1.msra.mxu0 0.0
    %1986 = vmatprep.subr.mxu0 0.0
    %1987 = vmatpush1.msra.mxu0 0.0
    %1988 = vmatprep.subr.mxu0 0.0
    %1989 = vmatpush1.msra.mxu0 0.0
    %1990 = vmatprep.subr.mxu0 0.0
    %1991 = vmatpush1.msra.mxu0 0.0
    %1992 = vmatprep.subr.mxu0 0.0
    %1993 = vmatpush1.msra.mxu0 0.0
    %1994 = vmatprep.subr.mxu0 0.0
    %1995 = vmatpush1.msra.mxu0 0.0
    %1996 = vmatprep.subr.mxu0 0.0
    %1997 = vmatpush1.msra.mxu0 0.0
    %1998 = vmatprep.subr.mxu0 0.0
    %1999 = vmatpush1.msra.mxu0 0.0
    %2000 = vmatprep.subr.mxu0 0.0
    %2001 = vmatpush1.msra.mxu0 0.0
    %2002 = vmatprep.subr.mxu0 0.0
    %2003 = vmatpush1.msra.mxu0 0.0
    %2004 = vmatprep.subr.mxu0 0.0
    %2005 = vmatpush1.msra.mxu0 0.0
    %2006 = vmatprep.subr.mxu0 0.0
    %2007 = vmatpush1.msra.mxu0 0.0
    %2008 = vmatprep.subr.mxu0 0.0
    %2009 = vmatpush1.msra.mxu0 0.0
    %2010 = vmatprep.subr.mxu0 0.0
    %2011 = vmatpush1.msra.mxu0 0.0
    %2012 = vmatprep.subr.mxu0 0.0
    %2013 = vmatpush1.msra.mxu0 0.0
    %2014 = vmatprep.subr.mxu0 0.0
    %2015 = vmatpush1.msra.mxu0 0.0
    %2016 = vmatprep.subr.mxu0 0.0
    %2017 = vmatpush1.msra.mxu0 0.0
    %2018 = vmatprep.subr.mxu0 0.0
    %2019 = vmatpush1.msra.mxu0 0.0
    %2020 = vmatprep.subr.mxu0 0.0
    %2021 = vmatpush1.msra.mxu0 0.0
    %2022 = vmatprep.subr.mxu0 0.0
    %2023 = vmatpush1.msra.mxu0 0.0
    %2024 = vmatprep.mubr.f32.mxu0 0.0
    %2025 = vmatmul.mubr.f32.gmra.mrb[0].mxu0 %v1955
    %v2026 = vpop.f32.mrb[0].mxu0
    %v2027 = vadd.f32 0.0, %v2026
    %v2028 = vpop.f32.mrb[0].mxu0
    %2029 = vmatprep.mubr.f32.mxu0 0.0
    %2030 = vmatmul.mubr.f32.gmra.mrb[0].mxu0 %v1958
    %v2031 = vpop.f32.mrb[0].mxu0
    %v2032 = vadd.f32 0.0, %v2031
    %v2033 = vpop.f32.mrb[0].mxu0
    %2034 = vdwg.mxu0
    %v2035 = vld [vmem:[%s1822 + $0x8] sm:$0xff]
    %v2037 = vsel %vm243, %v2027, 0
    %v2040 = vsel %vm243, %v2032, 0
    %2042 = vmatprep.subr.mxu0 0.0
    %2043 = vmatpush1.msra.mxu0 %v2035
    %2044 = vmatprep.subr.mxu0 0.0
    %2045 = vmatpush1.msra.mxu0 0.0
    %2046 = vmatprep.subr.mxu0 0.0
    %2047 = vmatpush1.msra.mxu0 0.0
    %2048 = vmatprep.subr.mxu0 0.0
    %2049 = vmatpush1.msra.mxu0 0.0
    %2050 = vmatprep.subr.mxu0 0.0
    %2051 = vmatpush1.msra.mxu0 0.0
    %2052 = vmatprep.subr.mxu0 0.0
    %2053 = vmatpush1.msra.mxu0 0.0
    %2054 = vmatprep.subr.mxu0 0.0
    %2055 = vmatpush1.msra.mxu0 0.0
    %2056 = vmatprep.subr.mxu0 0.0
    %2057 = vmatpush1.msra.mxu0 0.0
    %2058 = vmatprep.subr.mxu0 0.0
    %2059 = vmatpush1.msra.mxu0 0.0
    %2060 = vmatprep.subr.mxu0 0.0
    %2061 = vmatpush1.msra.mxu0 0.0
    %2062 = vmatprep.subr.mxu0 0.0
    %2063 = vmatpush1.msra.mxu0 0.0
    %2064 = vmatprep.subr.mxu0 0.0
    %2065 = vmatpush1.msra.mxu0 0.0
    %2066 = vmatprep.subr.mxu0 0.0
    %2067 = vmatpush1.msra.mxu0 0.0
    %2068 = vmatprep.subr.mxu0 0.0
    %2069 = vmatpush1.msra.mxu0 0.0
    %2070 = vmatprep.subr.mxu0 0.0
    %2071 = vmatpush1.msra.mxu0 0.0
    %2072 = vmatprep.subr.mxu0 0.0
    %2073 = vmatpush1.msra.mxu0 0.0
    %2074 = vmatprep.subr.mxu0 0.0
    %2075 = vmatpush1.msra.mxu0 0.0
    %2076 = vmatprep.subr.mxu0 0.0
    %2077 = vmatpush1.msra.mxu0 0.0
    %2078 = vmatprep.subr.mxu0 0.0
    %2079 = vmatpush1.msra.mxu0 0.0
    %2080 = vmatprep.subr.mxu0 0.0
    %2081 = vmatpush1.msra.mxu0 0.0
    %2082 = vmatprep.subr.mxu0 0.0
    %2083 = vmatpush1.msra.mxu0 0.0
    %2084 = vmatprep.subr.mxu0 0.0
    %2085 = vmatpush1.msra.mxu0 0.0
    %2086 = vmatprep.subr.mxu0 0.0
    %2087 = vmatpush1.msra.mxu0 0.0
    %2088 = vmatprep.subr.mxu0 0.0
    %2089 = vmatpush1.msra.mxu0 0.0
    %2090 = vmatprep.subr.mxu0 0.0
    %2091 = vmatpush1.msra.mxu0 0.0
    %2092 = vmatprep.subr.mxu0 0.0
    %2093 = vmatpush1.msra.mxu0 0.0
    %2094 = vmatprep.subr.mxu0 0.0
    %2095 = vmatpush1.msra.mxu0 0.0
    %2096 = vmatprep.subr.mxu0 0.0
    %2097 = vmatpush1.msra.mxu0 0.0
    %2098 = vmatprep.subr.mxu0 0.0
    %2099 = vmatpush1.msra.mxu0 0.0
    %2100 = vmatprep.subr.mxu0 0.0
    %2101 = vmatpush1.msra.mxu0 0.0
    %2102 = vmatprep.subr.mxu0 0.0
    %2103 = vmatpush1.msra.mxu0 0.0
    %2104 = vmatprep.subr.mxu0 0.0
    %2105 = vmatpush1.msra.mxu0 0.0
    %2106 = vmatprep.mubr.f32.mxu0 0.0
    %2107 = vmatmul.mubr.f32.gmra.mrb[0].mxu0 %v2037
    %v2108 = vpop.f32.mrb[0].mxu0
    %v2109 = vadd.f32 0.0, %v2108
    %v2110 = vpop.f32.mrb[0].mxu0
    %2111 = vmatprep.mubr.f32.mxu0 0.0
    %2112 = vmatmul.mubr.f32.gmra.mrb[0].mxu0 %v2040
    %v2113 = vpop.f32.mrb[0].mxu0
    %v2114 = vadd.f32 0.0, %v2113
    %v2115 = vpop.f32.mrb[0].mxu0
    %2116 = vdwg.mxu0
    %v2118 = vsel %vm243, %v1814, 0
    %v2121 = vsel %vm243, %v1819, 0
    %2123 = vmatprep.subr.mxu0 0.0
    %2124 = vmatpush1.msra.mxu0 %v1823
    %2125 = vmatprep.subr.mxu0 0.0
    %2126 = vmatpush1.msra.mxu0 0.0
    %2127 = vmatprep.subr.mxu0 0.0
    %2128 = vmatpush1.msra.mxu0 0.0
    %2129 = vmatprep.subr.mxu0 0.0
    %2130 = vmatpush1.msra.mxu0 0.0
    %2131 = vmatprep.subr.mxu0 0.0
    %2132 = vmatpush1.msra.mxu0 0.0
    %2133 = vmatprep.subr.mxu0 0.0
    %2134 = vmatpush1.msra.mxu0 0.0
    %2135 = vmatprep.subr.mxu0 0.0
    %2136 = vmatpush1.msra.mxu0 0.0
    %2137 = vmatprep.subr.mxu0 0.0
    %2138 = vmatpush1.msra.mxu0 0.0
    %2139 = vmatprep.subr.mxu0 0.0
    %2140 = vmatpush1.msra.mxu0 0.0
    %2141 = vmatprep.subr.mxu0 0.0
    %2142 = vmatpush1.msra.mxu0 0.0
    %2143 = vmatprep.subr.mxu0 0.0
    %2144 = vmatpush1.msra.mxu0 0.0
    %2145 = vmatprep.subr.mxu0 0.0
    %2146 = vmatpush1.msra.mxu0 0.0
    %2147 = vmatprep.subr.mxu0 0.0
    %2148 = vmatpush1.msra.mxu0 0.0
    %2149 = vmatprep.subr.mxu0 0.0
    %2150 = vmatpush1.msra.mxu0 0.0
    %2151 = vmatprep.subr.mxu0 0.0
    %2152 = vmatpush1.msra.mxu0 0.0
    %2153 = vmatprep.subr.mxu0 0.0
    %2154 = vmatpush1.msra.mxu0 0.0
    %2155 = vmatprep.subr.mxu0 0.0
    %2156 = vmatpush1.msra.mxu0 0.0
    %2157 = vmatprep.subr.mxu0 0.0
    %2158 = vmatpush1.msra.mxu0 0.0
    %2159 = vmatprep.subr.mxu0 0.0
    %2160 = vmatpush1.msra.mxu0 0.0
    %2161 = vmatprep.subr.mxu0 0.0
    %2162 = vmatpush1.msra.mxu0 0.0
    %2163 = vmatprep.subr.mxu0 0.0
    %2164 = vmatpush1.msra.mxu0 0.0
    %2165 = vmatprep.subr.mxu0 0.0
    %2166 = vmatpush1.msra.mxu0 0.0
    %2167 = vmatprep.subr.mxu0 0.0
    %2168 = vmatpush1.msra.mxu0 0.0
    %2169 = vmatprep.subr.mxu0 0.0
    %2170 = vmatpush1.msra.mxu0 0.0
    %2171 = vmatprep.subr.mxu0 0.0
    %2172 = vmatpush1.msra.mxu0 0.0
    %2173 = vmatprep.subr.mxu0 0.0
    %2174 = vmatpush1.msra.mxu0 0.0
    %2175 = vmatprep.subr.mxu0 0.0
    %2176 = vmatpush1.msra.mxu0 0.0
    %2177 = vmatprep.subr.mxu0 0.0
    %2178 = vmatpush1.msra.mxu0 0.0
    %2179 = vmatprep.subr.mxu0 0.0
    %2180 = vmatpush1.msra.mxu0 0.0
    %2181 = vmatprep.subr.mxu0 0.0
    %2182 = vmatpush1.msra.mxu0 0.0
    %2183 = vmatprep.subr.mxu0 0.0
    %2184 = vmatpush1.msra.mxu0 0.0
    %2185 = vmatprep.subr.mxu0 0.0
    %2186 = vmatpush1.msra.mxu0 0.0
    %2187 = vmatprep.mubr.f32.mxu0 0.0
    %2188 = vmatmul.mubr.f32.gmra.mrb[0].mxu0 %v2118
    %v2189 = vpop.f32.mrb[0].mxu0
    %v2190 = vadd.f32 %v2109, %v2189
    %v2191 = vpop.f32.mrb[0].mxu0
    %2192 = vmatprep.mubr.f32.mxu0 0.0
    %2193 = vmatmul.mubr.f32.gmra.mrb[0].mxu0 %v2121
    %v2194 = vpop.f32.mrb[0].mxu0
    %v2195 = vadd.f32 %v2114, %v2194
    %v2196 = vpop.f32.mrb[0].mxu0
    %2197 = vdwg.mxu0
    %2198 = vrot.lane.b32.xlu0 %v1512, 112
    %v2199 = vpop.permute.xlu0 %2198
    %2200 = vrot.lane.b32.xlu0 %v1517, 112
    %v2201 = vpop.permute.xlu0 %2200
    %2202 = vrot.lane.b32.xlu0 %v1596, 80
    %v2203 = vpop.permute.xlu0 %2202
    %2204 = vrot.lane.b32.xlu0 %v1601, 80
    %v2205 = vpop.permute.xlu0 %2204
    %2206 = vrot.lane.b32.xlu0 %v1606, 80
    %v2207 = vpop.permute.xlu0 %2206
    %v2208 = vsel %vm243, %v2199, 0
    %v2210 = vsel %vm243, %v2201, 0
    %v2212 = vsel %vm243, %v2203, 0
    %v2214 = vsel %vm243, %v2205, 0
    %v2216 = vsel %vm243, %v2207, 0
    %2218 = vmatprep.subr.mxu0 0.0
    %2219 = vmatpush1.xpose.msra.mxu0 %v2212
    %2220 = vmatprep.subr.mxu0 0.0
    %2221 = vmatpush1.xpose.msra.mxu0 %v2214
    %2222 = vmatprep.subr.mxu0 0.0
    %2223 = vmatpush1.xpose.msra.mxu0 %v2216
    %2224 = vmatprep.subr.mxu0 0.0
    %2225 = vmatpush1.xpose.msra.mxu0 0.0
    %2226 = vmatprep.subr.mxu0 0.0
    %2227 = vmatpush1.xpose.msra.mxu0 0.0
    %2228 = vmatprep.subr.mxu0 0.0
    %2229 = vmatpush1.xpose.msra.mxu0 0.0
    %2230 = vmatprep.subr.mxu0 0.0
    %2231 = vmatpush1.xpose.msra.mxu0 0.0
    %2232 = vmatprep.subr.mxu0 0.0
    %2233 = vmatpush1.xpose.msra.mxu0 0.0
    %2234 = vmatprep.subr.mxu0 0.0
    %2235 = vmatpush1.xpose.msra.mxu0 0.0
    %2236 = vmatprep.subr.mxu0 0.0
    %2237 = vmatpush1.xpose.msra.mxu0 0.0
    %2238 = vmatprep.subr.mxu0 0.0
    %2239 = vmatpush1.xpose.msra.mxu0 0.0
    %2240 = vmatprep.subr.mxu0 0.0
    %2241 = vmatpush1.xpose.msra.mxu0 0.0
    %2242 = vmatprep.subr.mxu0 0.0
    %2243 = vmatpush1.xpose.msra.mxu0 0.0
    %2244 = vmatprep.subr.mxu0 0.0
    %2245 = vmatpush1.xpose.msra.mxu0 0.0
    %2246 = vmatprep.subr.mxu0 0.0
    %2247 = vmatpush1.xpose.msra.mxu0 0.0
    %2248 = vmatprep.subr.mxu0 0.0
    %2249 = vmatpush1.xpose.msra.mxu0 0.0
    %2250 = vmatprep.subr.mxu0 0.0
    %2251 = vmatpush1.xpose.msra.mxu0 0.0
    %2252 = vmatprep.subr.mxu0 0.0
    %2253 = vmatpush1.xpose.msra.mxu0 0.0
    %2254 = vmatprep.subr.mxu0 0.0
    %2255 = vmatpush1.xpose.msra.mxu0 0.0
    %2256 = vmatprep.subr.mxu0 0.0
    %2257 = vmatpush1.xpose.msra.mxu0 0.0
    %2258 = vmatprep.subr.mxu0 0.0
    %2259 = vmatpush1.xpose.msra.mxu0 0.0
    %2260 = vmatprep.subr.mxu0 0.0
    %2261 = vmatpush1.xpose.msra.mxu0 0.0
    %2262 = vmatprep.subr.mxu0 0.0
    %2263 = vmatpush1.xpose.msra.mxu0 0.0
    %2264 = vmatprep.subr.mxu0 0.0
    %2265 = vmatpush1.xpose.msra.mxu0 0.0
    %2266 = vmatprep.subr.mxu0 0.0
    %2267 = vmatpush1.xpose.msra.mxu0 0.0
    %2268 = vmatprep.subr.mxu0 0.0
    %2269 = vmatpush1.xpose.msra.mxu0 0.0
    %2270 = vmatprep.subr.mxu0 0.0
    %2271 = vmatpush1.xpose.msra.mxu0 0.0
    %2272 = vmatprep.subr.mxu0 0.0
    %2273 = vmatpush1.xpose.msra.mxu0 0.0
    %2274 = vmatprep.subr.mxu0 0.0
    %2275 = vmatpush1.xpose.msra.mxu0 0.0
    %2276 = vmatprep.subr.mxu0 0.0
    %2277 = vmatpush1.xpose.msra.mxu0 0.0
    %2278 = vmatprep.subr.mxu0 0.0
    %2279 = vmatpush1.xpose.msra.mxu0 0.0
    %2280 = vmatprep.subr.mxu0 0.0
    %2281 = vmatpush1.xpose.msra.mxu0 0.0
    %2282 = vmatprep.mubr.f32.mxu0 0.0
    %2283 = vmatmul.mubr.f32.gmra.mrb[0].mxu0 %v2208
    %v2284 = vpop.f32.mrb[0].mxu0
    %v2285 = vadd.f32 0.0, %v2284
    %v2286 = vpop.f32.mrb[0].mxu0
    %2287 = vmatprep.mubr.f32.mxu0 0.0
    %2288 = vmatmul.mubr.f32.gmra.mrb[0].mxu0 %v2210
    %v2289 = vpop.f32.mrb[0].mxu0
    %v2290 = vadd.f32 0.0, %v2289
    %v2291 = vpop.f32.mrb[0].mxu0
    %2292 = vdwg.mxu0
    %v2293 = vmul.f32 %v2285, 0.35355338
    %v2294 = vmul.f32 %v2290, 0.35355338
    %v2295 = vadd.f32 %v2293, %v108
    %v2296 = vadd.f32 %v2294, %v109
    %v2297 = vsel %vm1709, %v2295, -inf
    %2298 = vmax.xlane.f32.xlu0 %v2297
    %v2299 = vpop.xlane.xlu0 %2298
    %v2300 = vsel %vm1709, %v2296, -inf
    %2301 = vmax.xlane.f32.xlu0 %v2300
    %v2302 = vpop.xlane.xlu0 %2301
    %v2303 = vsub.f32 %v2295, %v2299
    %v2304 = vsub.f32 %v2296, %v2302
    %v2305 = vmul.f32 %v2303, 1.442695
    %v2306 = vpow.pop %v2305
    %v2307 = vmul.f32 %v2304, 1.442695
    %v2308 = vpow.pop %v2307
    %v2309 = vsel %vm1709, %v2306, 0.0
    %2310 = vadd.xlane.f32.xlu0 %v2309
    %v2311 = vpop.xlane.xlu0 %2310
    %v2312 = vsel %vm1709, %v2308, 0.0
    %2313 = vadd.xlane.f32.xlu0 %v2312
    %v2314 = vpop.xlane.xlu0 %2313
    %v2315 = vrcp.pop %v2311
    %v2316 = vmul.f32 %v2306, %v2315
    %v2317 = vrcp.pop %v2314
    %v2318 = vmul.f32 %v2308, %v2317
    %2319 = vrot.lane.b32.xlu0 %v1596, 48
    %v2320 = vpop.permute.xlu0 %2319
    %2321 = vrot.lane.b32.xlu0 %v1601, 48
    %v2322 = vpop.permute.xlu0 %2321
    %2323 = vrot.lane.b32.xlu0 %v1606, 48
    %v2324 = vpop.permute.xlu0 %2323
    %v2329 = vsel %vm1709, %v2316, 0
    %v2332 = vsel %vm1709, %v2318, 0
    %2334 = vmatprep.subr.mxu0 0.0
    %2335 = vmatpush1.msra.mxu0 %v2320
    %2336 = vmatprep.subr.mxu0 0.0
    %2337 = vmatpush1.msra.mxu0 %v2322
    %2338 = vmatprep.subr.mxu0 0.0
    %2339 = vmatpush1.msra.mxu0 %v2324
    %2340 = vmatprep.subr.mxu0 0.0
    %2341 = vmatpush1.msra.mxu0 0.0
    %2342 = vmatprep.subr.mxu0 0.0
    %2343 = vmatpush1.msra.mxu0 0.0
    %2344 = vmatprep.subr.mxu0 0.0
    %2345 = vmatpush1.msra.mxu0 0.0
    %2346 = vmatprep.subr.mxu0 0.0
    %2347 = vmatpush1.msra.mxu0 0.0
    %2348 = vmatprep.subr.mxu0 0.0
    %2349 = vmatpush1.msra.mxu0 0.0
    %2350 = vmatprep.subr.mxu0 0.0
    %2351 = vmatpush1.msra.mxu0 0.0
    %2352 = vmatprep.subr.mxu0 0.0
    %2353 = vmatpush1.msra.mxu0 0.0
    %2354 = vmatprep.subr.mxu0 0.0
    %2355 = vmatpush1.msra.mxu0 0.0
    %2356 = vmatprep.subr.mxu0 0.0
    %2357 = vmatpush1.msra.mxu0 0.0
    %2358 = vmatprep.subr.mxu0 0.0
    %2359 = vmatpush1.msra.mxu0 0.0
    %2360 = vmatprep.subr.mxu0 0.0
    %2361 = vmatpush1.msra.mxu0 0.0
    %2362 = vmatprep.subr.mxu0 0.0
    %2363 = vmatpush1.msra.mxu0 0.0
    %2364 = vmatprep.subr.mxu0 0.0
    %2365 = vmatpush1.msra.mxu0 0.0
    %2366 = vmatprep.subr.mxu0 0.0
    %2367 = vmatpush1.msra.mxu0 0.0
    %2368 = vmatprep.subr.mxu0 0.0
    %2369 = vmatpush1.msra.mxu0 0.0
    %2370 = vmatprep.subr.mxu0 0.0
    %2371 = vmatpush1.msra.mxu0 0.0
    %2372 = vmatprep.subr.mxu0 0.0
    %2373 = vmatpush1.msra.mxu0 0.0
    %2374 = vmatprep.subr.mxu0 0.0
    %2375 = vmatpush1.msra.mxu0 0.0
    %2376 = vmatprep.subr.mxu0 0.0
    %2377 = vmatpush1.msra.mxu0 0.0
    %2378 = vmatprep.subr.mxu0 0.0
    %2379 = vmatpush1.msra.mxu0 0.0
    %2380 = vmatprep.subr.mxu0 0.0
    %2381 = vmatpush1.msra.mxu0 0.0
    %2382 = vmatprep.subr.mxu0 0.0
    %2383 = vmatpush1.msra.mxu0 0.0
    %2384 = vmatprep.subr.mxu0 0.0
    %2385 = vmatpush1.msra.mxu0 0.0
    %2386 = vmatprep.subr.mxu0 0.0
    %2387 = vmatpush1.msra.mxu0 0.0
    %2388 = vmatprep.subr.mxu0 0.0
    %2389 = vmatpush1.msra.mxu0 0.0
    %2390 = vmatprep.subr.mxu0 0.0
    %2391 = vmatpush1.msra.mxu0 0.0
    %2392 = vmatprep.subr.mxu0 0.0
    %2393 = vmatpush1.msra.mxu0 0.0
    %2394 = vmatprep.subr.mxu0 0.0
    %2395 = vmatpush1.msra.mxu0 0.0
    %2396 = vmatprep.subr.mxu0 0.0
    %2397 = vmatpush1.msra.mxu0 0.0
    %2398 = vmatprep.mubr.f32.mxu0 0.0
    %2399 = vmatmul.mubr.f32.gmra.mrb[0].mxu0 %v2329
    %v2400 = vpop.f32.mrb[0].mxu0
    %v2401 = vadd.f32 0.0, %v2400
    %v2402 = vpop.f32.mrb[0].mxu0
    %2403 = vmatprep.mubr.f32.mxu0 0.0
    %2404 = vmatmul.mubr.f32.gmra.mrb[0].mxu0 %v2332
    %v2405 = vpop.f32.mrb[0].mxu0
    %v2406 = vadd.f32 0.0, %v2405
    %v2407 = vpop.f32.mrb[0].mxu0
    %2408 = vdwg.mxu0
    %v2409 = vld [vmem:[%s1822 + $0x10] sm:$0xff]
    %v2411 = vsel %vm243, %v2401, 0
    %v2414 = vsel %vm243, %v2406, 0
    %2416 = vmatprep.subr.mxu0 0.0
    %2417 = vmatpush1.msra.mxu0 %v2409
    %2418 = vmatprep.subr.mxu0 0.0
    %2419 = vmatpush1.msra.mxu0 0.0
    %2420 = vmatprep.subr.mxu0 0.0
    %2421 = vmatpush1.msra.mxu0 0.0
    %2422 = vmatprep.subr.mxu0 0.0
    %2423 = vmatpush1.msra.mxu0 0.0
    %2424 = vmatprep.subr.mxu0 0.0
    %2425 = vmatpush1.msra.mxu0 0.0
    %2426 = vmatprep.subr.mxu0 0.0
    %2427 = vmatpush1.msra.mxu0 0.0
    %2428 = vmatprep.subr.mxu0 0.0
    %2429 = vmatpush1.msra.mxu0 0.0
    %2430 = vmatprep.subr.mxu0 0.0
    %2431 = vmatpush1.msra.mxu0 0.0
    %2432 = vmatprep.subr.mxu0 0.0
    %2433 = vmatpush1.msra.mxu0 0.0
    %2434 = vmatprep.subr.mxu0 0.0
    %2435 = vmatpush1.msra.mxu0 0.0
    %2436 = vmatprep.subr.mxu0 0.0
    %2437 = vmatpush1.msra.mxu0 0.0
    %2438 = vmatprep.subr.mxu0 0.0
    %2439 = vmatpush1.msra.mxu0 0.0
    %2440 = vmatprep.subr.mxu0 0.0
    %2441 = vmatpush1.msra.mxu0 0.0
    %2442 = vmatprep.subr.mxu0 0.0
    %2443 = vmatpush1.msra.mxu0 0.0
    %2444 = vmatprep.subr.mxu0 0.0
    %2445 = vmatpush1.msra.mxu0 0.0
    %2446 = vmatprep.subr.mxu0 0.0
    %2447 = vmatpush1.msra.mxu0 0.0
    %2448 = vmatprep.subr.mxu0 0.0
    %2449 = vmatpush1.msra.mxu0 0.0
    %2450 = vmatprep.subr.mxu0 0.0
    %2451 = vmatpush1.msra.mxu0 0.0
    %2452 = vmatprep.subr.mxu0 0.0
    %2453 = vmatpush1.msra.mxu0 0.0
    %2454 = vmatprep.subr.mxu0 0.0
    %2455 = vmatpush1.msra.mxu0 0.0
    %2456 = vmatprep.subr.mxu0 0.0
    %2457 = vmatpush1.msra.mxu0 0.0
    %2458 = vmatprep.subr.mxu0 0.0
    %2459 = vmatpush1.msra.mxu0 0.0
    %2460 = vmatprep.subr.mxu0 0.0
    %2461 = vmatpush1.msra.mxu0 0.0
    %2462 = vmatprep.subr.mxu0 0.0
    %2463 = vmatpush1.msra.mxu0 0.0
    %2464 = vmatprep.subr.mxu0 0.0
    %2465 = vmatpush1.msra.mxu0 0.0
    %2466 = vmatprep.subr.mxu0 0.0
    %2467 = vmatpush1.msra.mxu0 0.0
    %2468 = vmatprep.subr.mxu0 0.0
    %2469 = vmatpush1.msra.mxu0 0.0
    %2470 = vmatprep.subr.mxu0 0.0
    %2471 = vmatpush1.msra.mxu0 0.0
    %2472 = vmatprep.subr.mxu0 0.0
    %2473 = vmatpush1.msra.mxu0 0.0
    %2474 = vmatprep.subr.mxu0 0.0
    %2475 = vmatpush1.msra.mxu0 0.0
    %2476 = vmatprep.subr.mxu0 0.0
    %2477 = vmatpush1.msra.mxu0 0.0
    %2478 = vmatprep.subr.mxu0 0.0
    %2479 = vmatpush1.msra.mxu0 0.0
    %2480 = vmatprep.mubr.f32.mxu0 0.0
    %2481 = vmatmul.mubr.f32.gmra.mrb[0].mxu0 %v2411
    %v2482 = vpop.f32.mrb[0].mxu0
    %v2483 = vadd.f32 0.0, %v2482
    %v2484 = vpop.f32.mrb[0].mxu0
    %2485 = vmatprep.mubr.f32.mxu0 0.0
    %2486 = vmatmul.mubr.f32.gmra.mrb[0].mxu0 %v2414
    %v2487 = vpop.f32.mrb[0].mxu0
    %v2488 = vadd.f32 0.0, %v2487
    %v2489 = vpop.f32.mrb[0].mxu0
    %2490 = vdwg.mxu0
    %v2491 = vadd.f32 %v2190, %v2483
    %v2492 = vadd.f32 %v2195, %v2488
    %2493 = vrot.lane.b32.xlu0 %v1512, 104
    %v2494 = vpop.permute.xlu0 %2493
    %2495 = vrot.lane.b32.xlu0 %v1517, 104
    %v2496 = vpop.permute.xlu0 %2495
    %2497 = vrot.lane.b32.xlu0 %v1596, 72
    %v2498 = vpop.permute.xlu0 %2497
    %2499 = vrot.lane.b32.xlu0 %v1601, 72
    %v2500 = vpop.permute.xlu0 %2499
    %2501 = vrot.lane.b32.xlu0 %v1606, 72
    %v2502 = vpop.permute.xlu0 %2501
    %v2503 = vsel %vm243, %v2494, 0
    %v2505 = vsel %vm243, %v2496, 0
    %v2507 = vsel %vm243, %v2498, 0
    %v2509 = vsel %vm243, %v2500, 0
    %v2511 = vsel %vm243, %v2502, 0
    %2513 = vmatprep.subr.mxu0 0.0
    %2514 = vmatpush1.xpose.msra.mxu0 %v2507
    %2515 = vmatprep.subr.mxu0 0.0
    %2516 = vmatpush1.xpose.msra.mxu0 %v2509
    %2517 = vmatprep.subr.mxu0 0.0
    %2518 = vmatpush1.xpose.msra.mxu0 %v2511
    %2519 = vmatprep.subr.mxu0 0.0
    %2520 = vmatpush1.xpose.msra.mxu0 0.0
    %2521 = vmatprep.subr.mxu0 0.0
    %2522 = vmatpush1.xpose.msra.mxu0 0.0
    %2523 = vmatprep.subr.mxu0 0.0
    %2524 = vmatpush1.xpose.msra.mxu0 0.0
    %2525 = vmatprep.subr.mxu0 0.0
    %2526 = vmatpush1.xpose.msra.mxu0 0.0
    %2527 = vmatprep.subr.mxu0 0.0
    %2528 = vmatpush1.xpose.msra.mxu0 0.0
    %2529 = vmatprep.subr.mxu0 0.0
    %2530 = vmatpush1.xpose.msra.mxu0 0.0
    %2531 = vmatprep.subr.mxu0 0.0
    %2532 = vmatpush1.xpose.msra.mxu0 0.0
    %2533 = vmatprep.subr.mxu0 0.0
    %2534 = vmatpush1.xpose.msra.mxu0 0.0
    %2535 = vmatprep.subr.mxu0 0.0
    %2536 = vmatpush1.xpose.msra.mxu0 0.0
    %2537 = vmatprep.subr.mxu0 0.0
    %2538 = vmatpush1.xpose.msra.mxu0 0.0
    %2539 = vmatprep.subr.mxu0 0.0
    %2540 = vmatpush1.xpose.msra.mxu0 0.0
    %2541 = vmatprep.subr.mxu0 0.0
    %2542 = vmatpush1.xpose.msra.mxu0 0.0
    %2543 = vmatprep.subr.mxu0 0.0
    %2544 = vmatpush1.xpose.msra.mxu0 0.0
    %2545 = vmatprep.subr.mxu0 0.0
    %2546 = vmatpush1.xpose.msra.mxu0 0.0
    %2547 = vmatprep.subr.mxu0 0.0
    %2548 = vmatpush1.xpose.msra.mxu0 0.0
    %2549 = vmatprep.subr.mxu0 0.0
    %2550 = vmatpush1.xpose.msra.mxu0 0.0
    %2551 = vmatprep.subr.mxu0 0.0
    %2552 = vmatpush1.xpose.msra.mxu0 0.0
    %2553 = vmatprep.subr.mxu0 0.0
    %2554 = vmatpush1.xpose.msra.mxu0 0.0
    %2555 = vmatprep.subr.mxu0 0.0
    %2556 = vmatpush1.xpose.msra.mxu0 0.0
    %2557 = vmatprep.subr.mxu0 0.0
    %2558 = vmatpush1.xpose.msra.mxu0 0.0
    %2559 = vmatprep.subr.mxu0 0.0
    %2560 = vmatpush1.xpose.msra.mxu0 0.0
    %2561 = vmatprep.subr.mxu0 0.0
    %2562 = vmatpush1.xpose.msra.mxu0 0.0
    %2563 = vmatprep.subr.mxu0 0.0
    %2564 = vmatpush1.xpose.msra.mxu0 0.0
    %2565 = vmatprep.subr.mxu0 0.0
    %2566 = vmatpush1.xpose.msra.mxu0 0.0
    %2567 = vmatprep.subr.mxu0 0.0
    %2568 = vmatpush1.xpose.msra.mxu0 0.0
    %2569 = vmatprep.subr.mxu0 0.0
    %2570 = vmatpush1.xpose.msra.mxu0 0.0
    %2571 = vmatprep.subr.mxu0 0.0
    %2572 = vmatpush1.xpose.msra.mxu0 0.0
    %2573 = vmatprep.subr.mxu0 0.0
    %2574 = vmatpush1.xpose.msra.mxu0 0.0
    %2575 = vmatprep.subr.mxu0 0.0
    %2576 = vmatpush1.xpose.msra.mxu0 0.0
    %2577 = vmatprep.mubr.f32.mxu0 0.0
    %2578 = vmatmul.mubr.f32.gmra.mrb[0].mxu0 %v2503
    %v2579 = vpop.f32.mrb[0].mxu0
    %v2580 = vadd.f32 0.0, %v2579
    %v2581 = vpop.f32.mrb[0].mxu0
    %2582 = vmatprep.mubr.f32.mxu0 0.0
    %2583 = vmatmul.mubr.f32.gmra.mrb[0].mxu0 %v2505
    %v2584 = vpop.f32.mrb[0].mxu0
    %v2585 = vadd.f32 0.0, %v2584
    %v2586 = vpop.f32.mrb[0].mxu0
    %2587 = vdwg.mxu0
    %v2588 = vmul.f32 %v2580, 0.35355338
    %v2589 = vmul.f32 %v2585, 0.35355338
    %v2590 = vadd.f32 %v2588, %v108
    %v2591 = vadd.f32 %v2589, %v109
    %v2592 = vsel %vm1709, %v2590, -inf
    %2593 = vmax.xlane.f32.xlu0 %v2592
    %v2594 = vpop.xlane.xlu0 %2593
    %v2595 = vsel %vm1709, %v2591, -inf
    %2596 = vmax.xlane.f32.xlu0 %v2595
    %v2597 = vpop.xlane.xlu0 %2596
    %v2598 = vsub.f32 %v2590, %v2594
    %v2599 = vsub.f32 %v2591, %v2597
    %v2600 = vmul.f32 %v2598, 1.442695
    %v2601 = vpow.pop %v2600
    %v2602 = vmul.f32 %v2599, 1.442695
    %v2603 = vpow.pop %v2602
    %v2604 = vsel %vm1709, %v2601, 0.0
    %2605 = vadd.xlane.f32.xlu0 %v2604
    %v2606 = vpop.xlane.xlu0 %2605
    %v2607 = vsel %vm1709, %v2603, 0.0
    %2608 = vadd.xlane.f32.xlu0 %v2607
    %v2609 = vpop.xlane.xlu0 %2608
    %v2610 = vrcp.pop %v2606
    %v2611 = vmul.f32 %v2601, %v2610
    %v2612 = vrcp.pop %v2609
    %v2613 = vmul.f32 %v2603, %v2612
    %2614 = vrot.lane.b32.xlu0 %v1596, 40
    %v2615 = vpop.permute.xlu0 %2614
    %2616 = vrot.lane.b32.xlu0 %v1601, 40
    %v2617 = vpop.permute.xlu0 %2616
    %2618 = vrot.lane.b32.xlu0 %v1606, 40
    %v2619 = vpop.permute.xlu0 %2618
    %v2624 = vsel %vm1709, %v2611, 0
    %v2627 = vsel %vm1709, %v2613, 0
    %2629 = vmatprep.subr.mxu0 0.0
    %2630 = vmatpush1.msra.mxu0 %v2615
    %2631 = vmatprep.subr.mxu0 0.0
    %2632 = vmatpush1.msra.mxu0 %v2617
    %2633 = vmatprep.subr.mxu0 0.0
    %2634 = vmatpush1.msra.mxu0 %v2619
    %2635 = vmatprep.subr.mxu0 0.0
    %2636 = vmatpush1.msra.mxu0 0.0
    %2637 = vmatprep.subr.mxu0 0.0
    %2638 = vmatpush1.msra.mxu0 0.0
    %2639 = vmatprep.subr.mxu0 0.0
    %2640 = vmatpush1.msra.mxu0 0.0
    %2641 = vmatprep.subr.mxu0 0.0
    %2642 = vmatpush1.msra.mxu0 0.0
    %2643 = vmatprep.subr.mxu0 0.0
    %2644 = vmatpush1.msra.mxu0 0.0
    %2645 = vmatprep.subr.mxu0 0.0
    %2646 = vmatpush1.msra.mxu0 0.0
    %2647 = vmatprep.subr.mxu0 0.0
    %2648 = vmatpush1.msra.mxu0 0.0
    %2649 = vmatprep.subr.mxu0 0.0
    %2650 = vmatpush1.msra.mxu0 0.0
    %2651 = vmatprep.subr.mxu0 0.0
    %2652 = vmatpush1.msra.mxu0 0.0
    %2653 = vmatprep.subr.mxu0 0.0
    %2654 = vmatpush1.msra.mxu0 0.0
    %2655 = vmatprep.subr.mxu0 0.0
    %2656 = vmatpush1.msra.mxu0 0.0
    %2657 = vmatprep.subr.mxu0 0.0
    %2658 = vmatpush1.msra.mxu0 0.0
    %2659 = vmatprep.subr.mxu0 0.0
    %2660 = vmatpush1.msra.mxu0 0.0
    %2661 = vmatprep.subr.mxu0 0.0
    %2662 = vmatpush1.msra.mxu0 0.0
    %2663 = vmatprep.subr.mxu0 0.0
    %2664 = vmatpush1.msra.mxu0 0.0
    %2665 = vmatprep.subr.mxu0 0.0
    %2666 = vmatpush1.msra.mxu0 0.0
    %2667 = vmatprep.subr.mxu0 0.0
    %2668 = vmatpush1.msra.mxu0 0.0
    %2669 = vmatprep.subr.mxu0 0.0
    %2670 = vmatpush1.msra.mxu0 0.0
    %2671 = vmatprep.subr.mxu0 0.0
    %2672 = vmatpush1.msra.mxu0 0.0
    %2673 = vmatprep.subr.mxu0 0.0
    %2674 = vmatpush1.msra.mxu0 0.0
    %2675 = vmatprep.subr.mxu0 0.0
    %2676 = vmatpush1.msra.mxu0 0.0
    %2677 = vmatprep.subr.mxu0 0.0
    %2678 = vmatpush1.msra.mxu0 0.0
    %2679 = vmatprep.subr.mxu0 0.0
    %2680 = vmatpush1.msra.mxu0 0.0
    %2681 = vmatprep.subr.mxu0 0.0
    %2682 = vmatpush1.msra.mxu0 0.0
    %2683 = vmatprep.subr.mxu0 0.0
    %2684 = vmatpush1.msra.mxu0 0.0
    %2685 = vmatprep.subr.mxu0 0.0
    %2686 = vmatpush1.msra.mxu0 0.0
    %2687 = vmatprep.subr.mxu0 0.0
    %2688 = vmatpush1.msra.mxu0 0.0
    %2689 = vmatprep.subr.mxu0 0.0
    %2690 = vmatpush1.msra.mxu0 0.0
    %2691 = vmatprep.subr.mxu0 0.0
    %2692 = vmatpush1.msra.mxu0 0.0
    %2693 = vmatprep.mubr.f32.mxu0 0.0
    %2694 = vmatmul.mubr.f32.gmra.mrb[0].mxu0 %v2624
    %v2695 = vpop.f32.mrb[0].mxu0
    %v2696 = vadd.f32 0.0, %v2695
    %v2697 = vpop.f32.mrb[0].mxu0
    %2698 = vmatprep.mubr.f32.mxu0 0.0
    %2699 = vmatmul.mubr.f32.gmra.mrb[0].mxu0 %v2627
    %v2700 = vpop.f32.mrb[0].mxu0
    %v2701 = vadd.f32 0.0, %v2700
    %v2702 = vpop.f32.mrb[0].mxu0
    %2703 = vdwg.mxu0
    %v2704 = vld [vmem:[%s1822 + $0x18] sm:$0xff]
    %v2706 = vsel %vm243, %v2696, 0
    %v2709 = vsel %vm243, %v2701, 0
    %2711 = vmatprep.subr.mxu0 0.0
    %2712 = vmatpush1.msra.mxu0 %v2704
    %2713 = vmatprep.subr.mxu0 0.0
    %2714 = vmatpush1.msra.mxu0 0.0
    %2715 = vmatprep.subr.mxu0 0.0
    %2716 = vmatpush1.msra.mxu0 0.0
    %2717 = vmatprep.subr.mxu0 0.0
    %2718 = vmatpush1.msra.mxu0 0.0
    %2719 = vmatprep.subr.mxu0 0.0
    %2720 = vmatpush1.msra.mxu0 0.0
    %2721 = vmatprep.subr.mxu0 0.0
    %2722 = vmatpush1.msra.mxu0 0.0
    %2723 = vmatprep.subr.mxu0 0.0
    %2724 = vmatpush1.msra.mxu0 0.0
    %2725 = vmatprep.subr.mxu0 0.0
    %2726 = vmatpush1.msra.mxu0 0.0
    %2727 = vmatprep.subr.mxu0 0.0
    %2728 = vmatpush1.msra.mxu0 0.0
    %2729 = vmatprep.subr.mxu0 0.0
    %2730 = vmatpush1.msra.mxu0 0.0
    %2731 = vmatprep.subr.mxu0 0.0
    %2732 = vmatpush1.msra.mxu0 0.0
    %2733 = vmatprep.subr.mxu0 0.0
    %2734 = vmatpush1.msra.mxu0 0.0
    %2735 = vmatprep.subr.mxu0 0.0
    %2736 = vmatpush1.msra.mxu0 0.0
    %2737 = vmatprep.subr.mxu0 0.0
    %2738 = vmatpush1.msra.mxu0 0.0
    %2739 = vmatprep.subr.mxu0 0.0
    %2740 = vmatpush1.msra.mxu0 0.0
    %2741 = vmatprep.subr.mxu0 0.0
    %2742 = vmatpush1.msra.mxu0 0.0
    %2743 = vmatprep.subr.mxu0 0.0
    %2744 = vmatpush1.msra.mxu0 0.0
    %2745 = vmatprep.subr.mxu0 0.0
    %2746 = vmatpush1.msra.mxu0 0.0
    %2747 = vmatprep.subr.mxu0 0.0
    %2748 = vmatpush1.msra.mxu0 0.0
    %2749 = vmatprep.subr.mxu0 0.0
    %2750 = vmatpush1.msra.mxu0 0.0
    %2751 = vmatprep.subr.mxu0 0.0
    %2752 = vmatpush1.msra.mxu0 0.0
    %2753 = vmatprep.subr.mxu0 0.0
    %2754 = vmatpush1.msra.mxu0 0.0
    %2755 = vmatprep.subr.mxu0 0.0
    %2756 = vmatpush1.msra.mxu0 0.0
    %2757 = vmatprep.subr.mxu0 0.0
    %2758 = vmatpush1.msra.mxu0 0.0
    %2759 = vmatprep.subr.mxu0 0.0
    %2760 = vmatpush1.msra.mxu0 0.0
    %2761 = vmatprep.subr.mxu0 0.0
    %2762 = vmatpush1.msra.mxu0 0.0
    %2763 = vmatprep.subr.mxu0 0.0
    %2764 = vmatpush1.msra.mxu0 0.0
    %2765 = vmatprep.subr.mxu0 0.0
    %2766 = vmatpush1.msra.mxu0 0.0
    %2767 = vmatprep.subr.mxu0 0.0
    %2768 = vmatpush1.msra.mxu0 0.0
    %2769 = vmatprep.subr.mxu0 0.0
    %2770 = vmatpush1.msra.mxu0 0.0
    %2771 = vmatprep.subr.mxu0 0.0
    %2772 = vmatpush1.msra.mxu0 0.0
    %2773 = vmatprep.subr.mxu0 0.0
    %2774 = vmatpush1.msra.mxu0 0.0
    %2775 = vmatprep.mubr.f32.mxu0 0.0
    %2776 = vmatmul.mubr.f32.gmra.mrb[0].mxu0 %v2706
    %v2777 = vpop.f32.mrb[0].mxu0
    %v2778 = vadd.f32 0.0, %v2777
    %v2779 = vpop.f32.mrb[0].mxu0
    %2780 = vmatprep.mubr.f32.mxu0 0.0
    %2781 = vmatmul.mubr.f32.gmra.mrb[0].mxu0 %v2709
    %v2782 = vpop.f32.mrb[0].mxu0
    %v2783 = vadd.f32 0.0, %v2782
    %v2784 = vpop.f32.mrb[0].mxu0
    %2785 = vdwg.mxu0
    %v2786 = vadd.f32 %v2491, %v2778
    %v2787 = vadd.f32 %v2492, %v2783
    %v2788 = vld [vmem:[%s8 + $0x7] sm:$0x1]
    %v2789 = vlaneseq
    %v2790 = vshrl.u32 %v2789, 7
    %v2791 = vsub.s32 0, %v2790
    %v2792 = vrot.slane %v2788, %v2791
    %v2793 = vadd.f32 %v2786, %v2792
    %v2794 = vadd.f32 %v2787, %v2792
    %v2795 = vadd.f32 %v1392, %v2793
    %v2796 = vadd.f32 %v1393, %v2794
    %v2797 = vld [vmem:[%s8 + $0x4] sm:$0x1]
    %v2798 = vld [vmem:[%s8 + $0x5] sm:$0x1]
    %v2799 = vsel %vm112, %v2795, 0.0
    %2800 = vadd.xlane.f32.xlu0 %v2799
    %v2801 = vpop.xlane.xlu0 %2800
    %v2802 = vsel %vm112, %v2796, 0.0
    %2803 = vadd.xlane.f32.xlu0 %v2802
    %v2804 = vpop.xlane.xlu0 %2803
    %v2805 = vmul.f32 %v2801, %v119
    %v2806 = vmul.f32 %v2804, %v119
    %v2807 = vsub.f32 %v2795, %v2805
    %v2808 = vsub.f32 %v2796, %v2806
    %v2809 = vmul.f32 %v2807, %v2807
    %v2810 = vmul.f32 %v2808, %v2808
    %v2811 = vsel %vm112, %v2809, 0.0
    %2812 = vadd.xlane.f32.xlu0 %v2811
    %v2813 = vpop.xlane.xlu0 %2812
    %v2814 = vsel %vm112, %v2810, 0.0
    %2815 = vadd.xlane.f32.xlu0 %v2814
    %v2816 = vpop.xlane.xlu0 %2815
    %v2817 = vmul.f32 %v2813, %v119
    %v2818 = vmul.f32 %v2816, %v119
    %v2819 = vadd.f32 %v2817, 1e-05
    %v2820 = vadd.f32 %v2818, 1e-05
    %v2821 = vrsqrt.pop %v2819
    %v2822 = vrsqrt.pop %v2820
    %v2823 = vmul.f32 %v2807, %v2821
    %v2824 = vmul.f32 %v2808, %v2822
    %v2825 = vlaneseq
    %v2826 = vshrl.u32 %v2825, 7
    %v2827 = vsub.s32 0, %v2826
    %v2828 = vrot.slane %v2797, %v2827
    %v2829 = vmul.f32 %v2823, %v2828
    %v2830 = vmul.f32 %v2824, %v2828
    %v2831 = vlaneseq
    %v2832 = vshrl.u32 %v2831, 7
    %v2833 = vsub.s32 0, %v2832
    %v2834 = vrot.slane %v2798, %v2833
    %v2835 = vadd.f32 %v2829, %v2834
    %v2836 = vadd.f32 %v2830, %v2834
    %v2837 = vld [vmem:[%s6] sm:$0xff]
    %v2838 = vld [vmem:[%s6 + $0x8] sm:$0xff]
    %v2839 = vld [vmem:[%s6 + $0x10] sm:$0xff]
    %v2840 = vld [vmem:[%s6 + $0x18] sm:$0xff]
    %v2841 = vld [vmem:[%s8 + $0x8] sm:$0x1]
    %v2842 = vlaneseq
    %v2843 = vshrl.u32 %v2842, 7
    %v2844 = vsub.s32 0, %v2843
    %v2845 = vrot.slane %v2841, %v2844
    %v2847 = vsel %vm112, %v2835, 0
    %v2850 = vsel %vm112, %v2836, 0
    %2852 = vmatprep.subr.mxu0 0.0
    %2853 = vmatpush1.msra.mxu0 %v2837
    %2854 = vmatprep.subr.mxu0 0.0
    %2855 = vmatpush1.msra.mxu0 %v2838
    %2856 = vmatprep.subr.mxu0 0.0
    %2857 = vmatpush1.msra.mxu0 %v2839
    %2858 = vmatprep.subr.mxu0 0.0
    %2859 = vmatpush1.msra.mxu0 %v2840
    %2860 = vmatprep.subr.mxu0 0.0
    %2861 = vmatpush1.msra.mxu0 0.0
    %2862 = vmatprep.subr.mxu0 0.0
    %2863 = vmatpush1.msra.mxu0 0.0
    %2864 = vmatprep.subr.mxu0 0.0
    %2865 = vmatpush1.msra.mxu0 0.0
    %2866 = vmatprep.subr.mxu0 0.0
    %2867 = vmatpush1.msra.mxu0 0.0
    %2868 = vmatprep.subr.mxu0 0.0
    %2869 = vmatpush1.msra.mxu0 0.0
    %2870 = vmatprep.subr.mxu0 0.0
    %2871 = vmatpush1.msra.mxu0 0.0
    %2872 = vmatprep.subr.mxu0 0.0
    %2873 = vmatpush1.msra.mxu0 0.0
    %2874 = vmatprep.subr.mxu0 0.0
    %2875 = vmatpush1.msra.mxu0 0.0
    %2876 = vmatprep.subr.mxu0 0.0
    %2877 = vmatpush1.msra.mxu0 0.0
    %2878 = vmatprep.subr.mxu0 0.0
    %2879 = vmatpush1.msra.mxu0 0.0
    %2880 = vmatprep.subr.mxu0 0.0
    %2881 = vmatpush1.msra.mxu0 0.0
    %2882 = vmatprep.subr.mxu0 0.0
    %2883 = vmatpush1.msra.mxu0 0.0
    %2884 = vmatprep.subr.mxu0 0.0
    %2885 = vmatpush1.msra.mxu0 0.0
    %2886 = vmatprep.subr.mxu0 0.0
    %2887 = vmatpush1.msra.mxu0 0.0
    %2888 = vmatprep.subr.mxu0 0.0
    %2889 = vmatpush1.msra.mxu0 0.0
    %2890 = vmatprep.subr.mxu0 0.0
    %2891 = vmatpush1.msra.mxu0 0.0
    %2892 = vmatprep.subr.mxu0 0.0
    %2893 = vmatpush1.msra.mxu0 0.0
    %2894 = vmatprep.subr.mxu0 0.0
    %2895 = vmatpush1.msra.mxu0 0.0
    %2896 = vmatprep.subr.mxu0 0.0
    %2897 = vmatpush1.msra.mxu0 0.0
    %2898 = vmatprep.subr.mxu0 0.0
    %2899 = vmatpush1.msra.mxu0 0.0
    %2900 = vmatprep.subr.mxu0 0.0
    %2901 = vmatpush1.msra.mxu0 0.0
    %2902 = vmatprep.subr.mxu0 0.0
    %2903 = vmatpush1.msra.mxu0 0.0
    %2904 = vmatprep.subr.mxu0 0.0
    %2905 = vmatpush1.msra.mxu0 0.0
    %2906 = vmatprep.subr.mxu0 0.0
    %2907 = vmatpush1.msra.mxu0 0.0
    %2908 = vmatprep.subr.mxu0 0.0
    %2909 = vmatpush1.msra.mxu0 0.0
    %2910 = vmatprep.subr.mxu0 0.0
    %2911 = vmatpush1.msra.mxu0 0.0
    %2912 = vmatprep.subr.mxu0 0.0
    %2913 = vmatpush1.msra.mxu0 0.0
    %2914 = vmatprep.subr.mxu0 0.0
    %2915 = vmatpush1.msra.mxu0 0.0
    %2916 = vmatprep.mubr.f32.mxu0 0.0
    %2917 = vmatmul.mubr.f32.gmra.mrb[0].mxu0 %v2847
    %v2918 = vpop.f32.mrb[0].mxu0
    %v2919 = vadd.f32 %v2845, %v2918
    %v2920 = vpop.f32.mrb[0].mxu0
    %2921 = vmatprep.mubr.f32.mxu0 0.0
    %2922 = vmatmul.mubr.f32.gmra.mrb[0].mxu0 %v2850
    %v2923 = vpop.f32.mrb[0].mxu0
    %v2924 = vadd.f32 %v2845, %v2923
    %v2925 = vpop.f32.mrb[0].mxu0
    %2926 = vdwg.mxu0
    %v2927 = vmul.f32 %v2919, 0.5
    %v2928 = vmul.f32 %v2924, 0.5
    %v2929 = vmul.f32 %v2919, 0.70710677
    %v2930 = vmul.f32 %v2924, 0.70710677
    %v2931 = verf.f32.pop %v2929
    %v2932 = verf.f32.pop %v2930
    %v2933 = vadd.f32 %v2931, 1.0
    %v2934 = vadd.f32 %v2932, 1.0
    %v2935 = vmul.f32 %v2927, %v2933
    %v2936 = vmul.f32 %v2928, %v2934
    %v2937 = vld [vmem:[%s7] sm:$0xff]
    %v2938 = vld [vmem:[%s7 + $0x8] sm:$0xff]
    %v2939 = vld [vmem:[%s7 + $0x10] sm:$0xff]
    %v2940 = vld [vmem:[%s7 + $0x18] sm:$0xff]
    %v2941 = vld [vmem:[%s7 + $0x20] sm:$0xff]
    %v2942 = vld [vmem:[%s7 + $0x28] sm:$0xff]
    %v2943 = vld [vmem:[%s7 + $0x30] sm:$0xff]
    %v2944 = vld [vmem:[%s7 + $0x38] sm:$0xff]
    %v2945 = vld [vmem:[%s8 + $0x9] sm:$0x1]
    %v2946 = vlaneseq
    %v2947 = vshrl.u32 %v2946, 7
    %v2948 = vsub.s32 0, %v2947
    %v2949 = vrot.slane %v2945, %v2948
    %vm2950 = vcmask 523264
    %v2952 = vsel %vm2950, %v2935, 0
    %v2955 = vsel %vm2950, %v2936, 0
    %2957 = vmatprep.subr.mxu0 0.0
    %2958 = vmatpush1.msra.mxu0 %v2937
    %2959 = vmatprep.subr.mxu0 0.0
    %2960 = vmatpush1.msra.mxu0 %v2938
    %2961 = vmatprep.subr.mxu0 0.0
    %2962 = vmatpush1.msra.mxu0 %v2939
    %2963 = vmatprep.subr.mxu0 0.0
    %2964 = vmatpush1.msra.mxu0 %v2940
    %2965 = vmatprep.subr.mxu0 0.0
    %2966 = vmatpush1.msra.mxu0 %v2941
    %2967 = vmatprep.subr.mxu0 0.0
    %2968 = vmatpush1.msra.mxu0 %v2942
    %2969 = vmatprep.subr.mxu0 0.0
    %2970 = vmatpush1.msra.mxu0 %v2943
    %2971 = vmatprep.subr.mxu0 0.0
    %2972 = vmatpush1.msra.mxu0 %v2944
    %2973 = vmatprep.subr.mxu0 0.0
    %2974 = vmatpush1.msra.mxu0 0.0
    %2975 = vmatprep.subr.mxu0 0.0
    %2976 = vmatpush1.msra.mxu0 0.0
    %2977 = vmatprep.subr.mxu0 0.0
    %2978 = vmatpush1.msra.mxu0 0.0
    %2979 = vmatprep.subr.mxu0 0.0
    %2980 = vmatpush1.msra.mxu0 0.0
    %2981 = vmatprep.subr.mxu0 0.0
    %2982 = vmatpush1.msra.mxu0 0.0
    %2983 = vmatprep.subr.mxu0 0.0
    %2984 = vmatpush1.msra.mxu0 0.0
    %2985 = vmatprep.subr.mxu0 0.0
    %2986 = vmatpush1.msra.mxu0 0.0
    %2987 = vmatprep.subr.mxu0 0.0
    %2988 = vmatpush1.msra.mxu0 0.0
    %2989 = vmatprep.subr.mxu0 0.0
    %2990 = vmatpush1.msra.mxu0 0.0
    %2991 = vmatprep.subr.mxu0 0.0
    %2992 = vmatpush1.msra.mxu0 0.0
    %2993 = vmatprep.subr.mxu0 0.0
    %2994 = vmatpush1.msra.mxu0 0.0
    %2995 = vmatprep.subr.mxu0 0.0
    %2996 = vmatpush1.msra.mxu0 0.0
    %2997 = vmatprep.subr.mxu0 0.0
    %2998 = vmatpush1.msra.mxu0 0.0
    %2999 = vmatprep.subr.mxu0 0.0
    %3000 = vmatpush1.msra.mxu0 0.0
    %3001 = vmatprep.subr.mxu0 0.0
    %3002 = vmatpush1.msra.mxu0 0.0
    %3003 = vmatprep.subr.mxu0 0.0
    %3004 = vmatpush1.msra.mxu0 0.0
    %3005 = vmatprep.subr.mxu0 0.0
    %3006 = vmatpush1.msra.mxu0 0.0
    %3007 = vmatprep.subr.mxu0 0.0
    %3008 = vmatpush1.msra.mxu0 0.0
    %3009 = vmatprep.subr.mxu0 0.0
    %3010 = vmatpush1.msra.mxu0 0.0
    %3011 = vmatprep.subr.mxu0 0.0
    %3012 = vmatpush1.msra.mxu0 0.0
    %3013 = vmatprep.subr.mxu0 0.0
    %3014 = vmatpush1.msra.mxu0 0.0
    %3015 = vmatprep.subr.mxu0 0.0
    %3016 = vmatpush1.msra.mxu0 0.0
    %3017 = vmatprep.subr.mxu0 0.0
    %3018 = vmatpush1.msra.mxu0 0.0
    %3019 = vmatprep.subr.mxu0 0.0
    %3020 = vmatpush1.msra.mxu0 0.0
    %3021 = vmatprep.mubr.f32.mxu0 0.0
    %3022 = vmatmul.mubr.f32.gmra.mrb[0].mxu0 %v2952
    %v3023 = vpop.f32.mrb[0].mxu0
    %v3024 = vadd.f32 %v2949, %v3023
    %v3025 = vpop.f32.mrb[0].mxu0
    %3026 = vmatprep.mubr.f32.mxu0 0.0
    %3027 = vmatmul.mubr.f32.gmra.mrb[0].mxu0 %v2955
    %v3028 = vpop.f32.mrb[0].mxu0
    %v3029 = vadd.f32 %v2949, %v3028
    %v3030 = vpop.f32.mrb[0].mxu0
    %3031 = vdwg.mxu0
    %v3032 = vadd.f32 %v2795, %v3024
    %v3033 = vadd.f32 %v2796, %v3029
    %v3034 = vld [vmem:[%s8 + $0xa] sm:$0x1]
    %v3035 = vld [vmem:[%s8 + $0xb] sm:$0x1]
    %v3036 = vsel %vm112, %v3032, 0.0
    %3037 = vadd.xlane.f32.xlu0 %v3036
    %v3038 = vpop.xlane.xlu0 %3037
    %v3039 = vsel %vm112, %v3033, 0.0
    %3040 = vadd.xlane.f32.xlu0 %v3039
    %v3041 = vpop.xlane.xlu0 %3040
    %v3042 = vmul.f32 %v3038, %v119
    %v3043 = vmul.f32 %v3041, %v119
    %v3044 = vsub.f32 %v3032, %v3042
    %v3045 = vsub.f32 %v3033, %v3043
    %v3046 = vmul.f32 %v3044, %v3044
    %v3047 = vmul.f32 %v3045, %v3045
    %v3048 = vsel %vm112, %v3046, 0.0
    %3049 = vadd.xlane.f32.xlu0 %v3048
    %v3050 = vpop.xlane.xlu0 %3049
    %v3051 = vsel %vm112, %v3047, 0.0
    %3052 = vadd.xlane.f32.xlu0 %v3051
    %v3053 = vpop.xlane.xlu0 %3052
    %v3054 = vmul.f32 %v3050, %v119
    %v3055 = vmul.f32 %v3053, %v119
    %v3056 = vadd.f32 %v3054, 1e-05
    %v3057 = vadd.f32 %v3055, 1e-05
    %v3058 = vrsqrt.pop %v3056
    %v3059 = vrsqrt.pop %v3057
    %v3060 = vmul.f32 %v3044, %v3058
    %v3061 = vmul.f32 %v3045, %v3059
    %v3062 = vlaneseq
    %v3063 = vshrl.u32 %v3062, 7
    %v3064 = vsub.s32 0, %v3063
    %v3065 = vrot.slane %v3034, %v3064
    %v3066 = vmul.f32 %v3060, %v3065
    %v3067 = vmul.f32 %v3061, %v3065
    %v3068 = vlaneseq
    %v3069 = vshrl.u32 %v3068, 7
    %v3070 = vsub.s32 0, %v3069
    %v3071 = vrot.slane %v3035, %v3070
    %v3072 = vadd.f32 %v3066, %v3071
    %v3073 = vadd.f32 %v3067, %v3071
    %s3074 = scalar_lea.vmem %s4, 32
    %v3075 = vld [vmem:[%s3074] sm:$0xff]
    %v3076 = vld [vmem:[%s3074 + $0x8] sm:$0xff]
    %v3077 = vld [vmem:[%s3074 + $0x10] sm:$0xff]
    %v3078 = vld [vmem:[%s3074 + $0x18] sm:$0xff]
    %v3080 = vsel %vm112, %v3072, 0
    %v3083 = vsel %vm112, %v3073, 0
    %3085 = vmatprep.subr.mxu0 0.0
    %3086 = vmatpush1.msra.mxu0 %v3075
    %3087 = vmatprep.subr.mxu0 0.0
    %3088 = vmatpush1.msra.mxu0 %v3076
    %3089 = vmatprep.subr.mxu0 0.0
    %3090 = vmatpush1.msra.mxu0 %v3077
    %3091 = vmatprep.subr.mxu0 0.0
    %3092 = vmatpush1.msra.mxu0 %v3078
    %3093 = vmatprep.subr.mxu0 0.0
    %3094 = vmatpush1.msra.mxu0 0.0
    %3095 = vmatprep.subr.mxu0 0.0
    %3096 = vmatpush1.msra.mxu0 0.0
    %3097 = vmatprep.subr.mxu0 0.0
    %3098 = vmatpush1.msra.mxu0 0.0
    %3099 = vmatprep.subr.mxu0 0.0
    %3100 = vmatpush1.msra.mxu0 0.0
    %3101 = vmatprep.subr.mxu0 0.0
    %3102 = vmatpush1.msra.mxu0 0.0
    %3103 = vmatprep.subr.mxu0 0.0
    %3104 = vmatpush1.msra.mxu0 0.0
    %3105 = vmatprep.subr.mxu0 0.0
    %3106 = vmatpush1.msra.mxu0 0.0
    %3107 = vmatprep.subr.mxu0 0.0
    %3108 = vmatpush1.msra.mxu0 0.0
    %3109 = vmatprep.subr.mxu0 0.0
    %3110 = vmatpush1.msra.mxu0 0.0
    %3111 = vmatprep.subr.mxu0 0.0
    %3112 = vmatpush1.msra.mxu0 0.0
    %3113 = vmatprep.subr.mxu0 0.0
    %3114 = vmatpush1.msra.mxu0 0.0
    %3115 = vmatprep.subr.mxu0 0.0
    %3116 = vmatpush1.msra.mxu0 0.0
    %3117 = vmatprep.subr.mxu0 0.0
    %3118 = vmatpush1.msra.mxu0 0.0
    %3119 = vmatprep.subr.mxu0 0.0
    %3120 = vmatpush1.msra.mxu0 0.0
    %3121 = vmatprep.subr.mxu0 0.0
    %3122 = vmatpush1.msra.mxu0 0.0
    %3123 = vmatprep.subr.mxu0 0.0
    %3124 = vmatpush1.msra.mxu0 0.0
    %3125 = vmatprep.subr.mxu0 0.0
    %3126 = vmatpush1.msra.mxu0 0.0
    %3127 = vmatprep.subr.mxu0 0.0
    %3128 = vmatpush1.msra.mxu0 0.0
    %3129 = vmatprep.subr.mxu0 0.0
    %3130 = vmatpush1.msra.mxu0 0.0
    %3131 = vmatprep.subr.mxu0 0.0
    %3132 = vmatpush1.msra.mxu0 0.0
    %3133 = vmatprep.subr.mxu0 0.0
    %3134 = vmatpush1.msra.mxu0 0.0
    %3135 = vmatprep.subr.mxu0 0.0
    %3136 = vmatpush1.msra.mxu0 0.0
    %3137 = vmatprep.subr.mxu0 0.0
    %3138 = vmatpush1.msra.mxu0 0.0
    %3139 = vmatprep.subr.mxu0 0.0
    %3140 = vmatpush1.msra.mxu0 0.0
    %3141 = vmatprep.subr.mxu0 0.0
    %3142 = vmatpush1.msra.mxu0 0.0
    %3143 = vmatprep.subr.mxu0 0.0
    %3144 = vmatpush1.msra.mxu0 0.0
    %3145 = vmatprep.subr.mxu0 0.0
    %3146 = vmatpush1.msra.mxu0 0.0
    %3147 = vmatprep.subr.mxu0 0.0
    %3148 = vmatpush1.msra.mxu0 0.0
    %3149 = vmatprep.mubr.f32.mxu0 0.0
    %3150 = vmatmul.mubr.f32.gmra.mrb[0].mxu0 %v3080
    %v3151 = vpop.f32.mrb[0].mxu0
    %v3152 = vadd.f32 0.0, %v3151
    %v3153 = vpop.f32.mrb[0].mxu0
    %3154 = vmatprep.mubr.f32.mxu0 0.0
    %3155 = vmatmul.mubr.f32.gmra.mrb[0].mxu0 %v3083
    %v3156 = vpop.f32.mrb[0].mxu0
    %v3157 = vadd.f32 0.0, %v3156
    %v3158 = vpop.f32.mrb[0].mxu0
    %3159 = vdwg.mxu0
    %3162 = vrot.lane.b32.xlu0 %v3152, 96
    %v3163 = vpop.permute.xlu0 %3162
    %3164 = vrot.lane.b32.xlu0 %v3157, 96
    %v3165 = vpop.permute.xlu0 %3164
    %v3166 = vsel %vm243, %v3152, 0
    %v3168 = vsel %vm243, %v3157, 0
    %v3170 = vsel %vm243, %v3163, 0
    %v3172 = vsel %vm243, %v3165, 0
    %3174 = vmatprep.subr.mxu0 0.0
    %3175 = vmatpush1.xpose.msra.mxu0 %v3170
    %3176 = vmatprep.subr.mxu0 0.0
    %3177 = vmatpush1.xpose.msra.mxu0 %v3172
    %3178 = vmatprep.subr.mxu0 0.0
    %3179 = vmatpush1.xpose.msra.mxu0 0.0
    %3180 = vmatprep.subr.mxu0 0.0
    %3181 = vmatpush1.xpose.msra.mxu0 0.0
    %3182 = vmatprep.subr.mxu0 0.0
    %3183 = vmatpush1.xpose.msra.mxu0 0.0
    %3184 = vmatprep.subr.mxu0 0.0
    %3185 = vmatpush1.xpose.msra.mxu0 0.0
    %3186 = vmatprep.subr.mxu0 0.0
    %3187 = vmatpush1.xpose.msra.mxu0 0.0
    %3188 = vmatprep.subr.mxu0 0.0
    %3189 = vmatpush1.xpose.msra.mxu0 0.0
    %3190 = vmatprep.subr.mxu0 0.0
    %3191 = vmatpush1.xpose.msra.mxu0 0.0
    %3192 = vmatprep.subr.mxu0 0.0
    %3193 = vmatpush1.xpose.msra.mxu0 0.0
    %3194 = vmatprep.subr.mxu0 0.0
    %3195 = vmatpush1.xpose.msra.mxu0 0.0
    %3196 = vmatprep.subr.mxu0 0.0
    %3197 = vmatpush1.xpose.msra.mxu0 0.0
    %3198 = vmatprep.subr.mxu0 0.0
    %3199 = vmatpush1.xpose.msra.mxu0 0.0
    %3200 = vmatprep.subr.mxu0 0.0
    %3201 = vmatpush1.xpose.msra.mxu0 0.0
    %3202 = vmatprep.subr.mxu0 0.0
    %3203 = vmatpush1.xpose.msra.mxu0 0.0
    %3204 = vmatprep.subr.mxu0 0.0
    %3205 = vmatpush1.xpose.msra.mxu0 0.0
    %3206 = vmatprep.subr.mxu0 0.0
    %3207 = vmatpush1.xpose.msra.mxu0 0.0
    %3208 = vmatprep.subr.mxu0 0.0
    %3209 = vmatpush1.xpose.msra.mxu0 0.0
    %3210 = vmatprep.subr.mxu0 0.0
    %3211 = vmatpush1.xpose.msra.mxu0 0.0
    %3212 = vmatprep.subr.mxu0 0.0
    %3213 = vmatpush1.xpose.msra.mxu0 0.0
    %3214 = vmatprep.subr.mxu0 0.0
    %3215 = vmatpush1.xpose.msra.mxu0 0.0
    %3216 = vmatprep.subr.mxu0 0.0
    %3217 = vmatpush1.xpose.msra.mxu0 0.0
    %3218 = vmatprep.subr.mxu0 0.0
    %3219 = vmatpush1.xpose.msra.mxu0 0.0
    %3220 = vmatprep.subr.mxu0 0.0
    %3221 = vmatpush1.xpose.msra.mxu0 0.0
    %3222 = vmatprep.subr.mxu0 0.0
    %3223 = vmatpush1.xpose.msra.mxu0 0.0
    %3224 = vmatprep.subr.mxu0 0.0
    %3225 = vmatpush1.xpose.msra.mxu0 0.0
    %3226 = vmatprep.subr.mxu0 0.0
    %3227 = vmatpush1.xpose.msra.mxu0 0.0
    %3228 = vmatprep.subr.mxu0 0.0
    %3229 = vmatpush1.xpose.msra.mxu0 0.0
    %3230 = vmatprep.subr.mxu0 0.0
    %3231 = vmatpush1.xpose.msra.mxu0 0.0
    %3232 = vmatprep.subr.mxu0 0.0
    %3233 = vmatpush1.xpose.msra.mxu0 0.0
    %3234 = vmatprep.subr.mxu0 0.0
    %3235 = vmatpush1.xpose.msra.mxu0 0.0
    %3236 = vmatprep.subr.mxu0 0.0
    %3237 = vmatpush1.xpose.msra.mxu0 0.0
    %3238 = vmatprep.mubr.f32.mxu0 0.0
    %3239 = vmatmul.mubr.f32.gmra.mrb[0].mxu0 %v3166
    %v3240 = vpop.f32.mrb[0].mxu0
    %v3241 = vadd.f32 0.0, %v3240
    %v3242 = vpop.f32.mrb[0].mxu0
    %3243 = vmatprep.mubr.f32.mxu0 0.0
    %3244 = vmatmul.mubr.f32.gmra.mrb[0].mxu0 %v3168
    %v3245 = vpop.f32.mrb[0].mxu0
    %v3246 = vadd.f32 0.0, %v3245
    %v3247 = vpop.f32.mrb[0].mxu0
    %3248 = vdwg.mxu0
    %v3249 = vmul.f32 %v3241, 0.35355338
    %v3250 = vmul.f32 %v3246, 0.35355338
    %v3251 = vadd.f32 %v3249, %v106
    %v3252 = vadd.f32 %v3250, %v107
    %v3253 = vsel %vm331, %v3251, -inf
    %3254 = vmax.xlane.f32.xlu0 %v3253
    %v3255 = vpop.xlane.xlu0 %3254
    %v3256 = vsel %vm331, %v3252, -inf
    %3257 = vmax.xlane.f32.xlu0 %v3256
    %v3258 = vpop.xlane.xlu0 %3257
    %v3259 = vsub.f32 %v3251, %v3255
    %v3260 = vsub.f32 %v3252, %v3258
    %v3261 = vmul.f32 %v3259, 1.442695
    %v3262 = vpow.pop %v3261
    %v3263 = vmul.f32 %v3260, 1.442695
    %v3264 = vpow.pop %v3263
    %v3265 = vsel %vm331, %v3262, 0.0
    %3266 = vadd.xlane.f32.xlu0 %v3265
    %v3267 = vpop.xlane.xlu0 %3266
    %v3268 = vsel %vm331, %v3264, 0.0
    %3269 = vadd.xlane.f32.xlu0 %v3268
    %v3270 = vpop.xlane.xlu0 %3269
    %v3271 = vrcp.pop %v3267
    %v3272 = vmul.f32 %v3262, %v3271
    %v3273 = vrcp.pop %v3270
    %v3274 = vmul.f32 %v3264, %v3273
    %3275 = vrot.lane.b32.xlu0 %v3152, 64
    %v3276 = vpop.permute.xlu0 %3275
    %3277 = vrot.lane.b32.xlu0 %v3157, 64
    %v3278 = vpop.permute.xlu0 %3277
    %v3282 = vsel %vm331, %v3272, 0
    %v3285 = vsel %vm331, %v3274, 0
    %3287 = vmatprep.subr.mxu0 0.0
    %3288 = vmatpush1.msra.mxu0 %v3276
    %3289 = vmatprep.subr.mxu0 0.0
    %3290 = vmatpush1.msra.mxu0 %v3278
    %3291 = vmatprep.subr.mxu0 0.0
    %3292 = vmatpush1.msra.mxu0 0.0
    %3293 = vmatprep.subr.mxu0 0.0
    %3294 = vmatpush1.msra.mxu0 0.0
    %3295 = vmatprep.subr.mxu0 0.0
    %3296 = vmatpush1.msra.mxu0 0.0
    %3297 = vmatprep.subr.mxu0 0.0
    %3298 = vmatpush1.msra.mxu0 0.0
    %3299 = vmatprep.subr.mxu0 0.0
    %3300 = vmatpush1.msra.mxu0 0.0
    %3301 = vmatprep.subr.mxu0 0.0
    %3302 = vmatpush1.msra.mxu0 0.0
    %3303 = vmatprep.subr.mxu0 0.0
    %3304 = vmatpush1.msra.mxu0 0.0
    %3305 = vmatprep.subr.mxu0 0.0
    %3306 = vmatpush1.msra.mxu0 0.0
    %3307 = vmatprep.subr.mxu0 0.0
    %3308 = vmatpush1.msra.mxu0 0.0
    %3309 = vmatprep.subr.mxu0 0.0
    %3310 = vmatpush1.msra.mxu0 0.0
    %3311 = vmatprep.subr.mxu0 0.0
    %3312 = vmatpush1.msra.mxu0 0.0
    %3313 = vmatprep.subr.mxu0 0.0
    %3314 = vmatpush1.msra.mxu0 0.0
    %3315 = vmatprep.subr.mxu0 0.0
    %3316 = vmatpush1.msra.mxu0 0.0
    %3317 = vmatprep.subr.mxu0 0.0
    %3318 = vmatpush1.msra.mxu0 0.0
    %3319 = vmatprep.subr.mxu0 0.0
    %3320 = vmatpush1.msra.mxu0 0.0
    %3321 = vmatprep.subr.mxu0 0.0
    %3322 = vmatpush1.msra.mxu0 0.0
    %3323 = vmatprep.subr.mxu0 0.0
    %3324 = vmatpush1.msra.mxu0 0.0
    %3325 = vmatprep.subr.mxu0 0.0
    %3326 = vmatpush1.msra.mxu0 0.0
    %3327 = vmatprep.subr.mxu0 0.0
    %3328 = vmatpush1.msra.mxu0 0.0
    %3329 = vmatprep.subr.mxu0 0.0
    %3330 = vmatpush1.msra.mxu0 0.0
    %3331 = vmatprep.subr.mxu0 0.0
    %3332 = vmatpush1.msra.mxu0 0.0
    %3333 = vmatprep.subr.mxu0 0.0
    %3334 = vmatpush1.msra.mxu0 0.0
    %3335 = vmatprep.subr.mxu0 0.0
    %3336 = vmatpush1.msra.mxu0 0.0
    %3337 = vmatprep.subr.mxu0 0.0
    %3338 = vmatpush1.msra.mxu0 0.0
    %3339 = vmatprep.subr.mxu0 0.0
    %3340 = vmatpush1.msra.mxu0 0.0
    %3341 = vmatprep.subr.mxu0 0.0
    %3342 = vmatpush1.msra.mxu0 0.0
    %3343 = vmatprep.subr.mxu0 0.0
    %3344 = vmatpush1.msra.mxu0 0.0
    %3345 = vmatprep.subr.mxu0 0.0
    %3346 = vmatpush1.msra.mxu0 0.0
    %3347 = vmatprep.subr.mxu0 0.0
    %3348 = vmatpush1.msra.mxu0 0.0
    %3349 = vmatprep.subr.mxu0 0.0
    %3350 = vmatpush1.msra.mxu0 0.0
    %3351 = vmatprep.mubr.f32.mxu0 0.0
    %3352 = vmatmul.mubr.f32.gmra.mrb[0].mxu0 %v3282
    %v3353 = vpop.f32.mrb[0].mxu0
    %v3354 = vadd.f32 0.0, %v3353
    %v3355 = vpop.f32.mrb[0].mxu0
    %3356 = vmatprep.mubr.f32.mxu0 0.0
    %3357 = vmatmul.mubr.f32.gmra.mrb[0].mxu0 %v3285
    %v3358 = vpop.f32.mrb[0].mxu0
    %v3359 = vadd.f32 0.0, %v3358
    %v3360 = vpop.f32.mrb[0].mxu0
    %3361 = vdwg.mxu0
    %s3362 = scalar_lea.vmem [#allocation10], 32
    %v3363 = vld [vmem:[%s3362] sm:$0xff]
    %3364 = vrot.lane.b32.xlu0 %v3152, 120
    %v3365 = vpop.permute.xlu0 %3364
    %3366 = vrot.lane.b32.xlu0 %v3157, 120
    %v3367 = vpop.permute.xlu0 %3366
    %3368 = vrot.lane.b32.xlu0 %v3152, 88
    %v3369 = vpop.permute.xlu0 %3368
    %3370 = vrot.lane.b32.xlu0 %v3157, 88
    %v3371 = vpop.permute.xlu0 %3370
    %v3372 = vsel %vm243, %v3365, 0
    %v3374 = vsel %vm243, %v3367, 0
    %v3376 = vsel %vm243, %v3369, 0
    %v3378 = vsel %vm243, %v3371, 0
    %3380 = vmatprep.subr.mxu0 0.0
    %3381 = vmatpush1.xpose.msra.mxu0 %v3376
    %3382 = vmatprep.subr.mxu0 0.0
    %3383 = vmatpush1.xpose.msra.mxu0 %v3378
    %3384 = vmatprep.subr.mxu0 0.0
    %3385 = vmatpush1.xpose.msra.mxu0 0.0
    %3386 = vmatprep.subr.mxu0 0.0
    %3387 = vmatpush1.xpose.msra.mxu0 0.0
    %3388 = vmatprep.subr.mxu0 0.0
    %3389 = vmatpush1.xpose.msra.mxu0 0.0
    %3390 = vmatprep.subr.mxu0 0.0
    %3391 = vmatpush1.xpose.msra.mxu0 0.0
    %3392 = vmatprep.subr.mxu0 0.0
    %3393 = vmatpush1.xpose.msra.mxu0 0.0
    %3394 = vmatprep.subr.mxu0 0.0
    %3395 = vmatpush1.xpose.msra.mxu0 0.0
    %3396 = vmatprep.subr.mxu0 0.0
    %3397 = vmatpush1.xpose.msra.mxu0 0.0
    %3398 = vmatprep.subr.mxu0 0.0
    %3399 = vmatpush1.xpose.msra.mxu0 0.0
    %3400 = vmatprep.subr.mxu0 0.0
    %3401 = vmatpush1.xpose.msra.mxu0 0.0
    %3402 = vmatprep.subr.mxu0 0.0
    %3403 = vmatpush1.xpose.msra.mxu0 0.0
    %3404 = vmatprep.subr.mxu0 0.0
    %3405 = vmatpush1.xpose.msra.mxu0 0.0
    %3406 = vmatprep.subr.mxu0 0.0
    %3407 = vmatpush1.xpose.msra.mxu0 0.0
    %3408 = vmatprep.subr.mxu0 0.0
    %3409 = vmatpush1.xpose.msra.mxu0 0.0
    %3410 = vmatprep.subr.mxu0 0.0
    %3411 = vmatpush1.xpose.msra.mxu0 0.0
    %3412 = vmatprep.subr.mxu0 0.0
    %3413 = vmatpush1.xpose.msra.mxu0 0.0
    %3414 = vmatprep.subr.mxu0 0.0
    %3415 = vmatpush1.xpose.msra.mxu0 0.0
    %3416 = vmatprep.subr.mxu0 0.0
    %3417 = vmatpush1.xpose.msra.mxu0 0.0
    %3418 = vmatprep.subr.mxu0 0.0
    %3419 = vmatpush1.xpose.msra.mxu0 0.0
    %3420 = vmatprep.subr.mxu0 0.0
    %3421 = vmatpush1.xpose.msra.mxu0 0.0
    %3422 = vmatprep.subr.mxu0 0.0
    %3423 = vmatpush1.xpose.msra.mxu0 0.0
    %3424 = vmatprep.subr.mxu0 0.0
    %3425 = vmatpush1.xpose.msra.mxu0 0.0
    %3426 = vmatprep.subr.mxu0 0.0
    %3427 = vmatpush1.xpose.msra.mxu0 0.0
    %3428 = vmatprep.subr.mxu0 0.0
    %3429 = vmatpush1.xpose.msra.mxu0 0.0
    %3430 = vmatprep.subr.mxu0 0.0
    %3431 = vmatpush1.xpose.msra.mxu0 0.0
    %3432 = vmatprep.subr.mxu0 0.0
    %3433 = vmatpush1.xpose.msra.mxu0 0.0
    %3434 = vmatprep.subr.mxu0 0.0
    %3435 = vmatpush1.xpose.msra.mxu0 0.0
    %3436 = vmatprep.subr.mxu0 0.0
    %3437 = vmatpush1.xpose.msra.mxu0 0.0
    %3438 = vmatprep.subr.mxu0 0.0
    %3439 = vmatpush1.xpose.msra.mxu0 0.0
    %3440 = vmatprep.subr.mxu0 0.0
    %3441 = vmatpush1.xpose.msra.mxu0 0.0
    %3442 = vmatprep.subr.mxu0 0.0
    %3443 = vmatpush1.xpose.msra.mxu0 0.0
    %3444 = vmatprep.mubr.f32.mxu0 0.0
    %3445 = vmatmul.mubr.f32.gmra.mrb[0].mxu0 %v3372
    %v3446 = vpop.f32.mrb[0].mxu0
    %v3447 = vadd.f32 0.0, %v3446
    %v3448 = vpop.f32.mrb[0].mxu0
    %3449 = vmatprep.mubr.f32.mxu0 0.0
    %3450 = vmatmul.mubr.f32.gmra.mrb[0].mxu0 %v3374
    %v3451 = vpop.f32.mrb[0].mxu0
    %v3452 = vadd.f32 0.0, %v3451
    %v3453 = vpop.f32.mrb[0].mxu0
    %3454 = vdwg.mxu0
    %v3455 = vmul.f32 %v3447, 0.35355338
    %v3456 = vmul.f32 %v3452, 0.35355338
    %v3457 = vadd.f32 %v3455, %v106
    %v3458 = vadd.f32 %v3456, %v107
    %v3459 = vsel %vm331, %v3457, -inf
    %3460 = vmax.xlane.f32.xlu0 %v3459
    %v3461 = vpop.xlane.xlu0 %3460
    %v3462 = vsel %vm331, %v3458, -inf
    %3463 = vmax.xlane.f32.xlu0 %v3462
    %v3464 = vpop.xlane.xlu0 %3463
    %v3465 = vsub.f32 %v3457, %v3461
    %v3466 = vsub.f32 %v3458, %v3464
    %v3467 = vmul.f32 %v3465, 1.442695
    %v3468 = vpow.pop %v3467
    %v3469 = vmul.f32 %v3466, 1.442695
    %v3470 = vpow.pop %v3469
    %v3471 = vsel %vm331, %v3468, 0.0
    %3472 = vadd.xlane.f32.xlu0 %v3471
    %v3473 = vpop.xlane.xlu0 %3472
    %v3474 = vsel %vm331, %v3470, 0.0
    %3475 = vadd.xlane.f32.xlu0 %v3474
    %v3476 = vpop.xlane.xlu0 %3475
    %v3477 = vrcp.pop %v3473
    %v3478 = vmul.f32 %v3468, %v3477
    %v3479 = vrcp.pop %v3476
    %v3480 = vmul.f32 %v3470, %v3479
    %3481 = vrot.lane.b32.xlu0 %v3152, 56
    %v3482 = vpop.permute.xlu0 %3481
    %3483 = vrot.lane.b32.xlu0 %v3157, 56
    %v3484 = vpop.permute.xlu0 %3483
    %v3488 = vsel %vm331, %v3478, 0
    %v3491 = vsel %vm331, %v3480, 0
    %3493 = vmatprep.subr.mxu0 0.0
    %3494 = vmatpush1.msra.mxu0 %v3482
    %3495 = vmatprep.subr.mxu0 0.0
    %3496 = vmatpush1.msra.mxu0 %v3484
    %3497 = vmatprep.subr.mxu0 0.0
    %3498 = vmatpush1.msra.mxu0 0.0
    %3499 = vmatprep.subr.mxu0 0.0
    %3500 = vmatpush1.msra.mxu0 0.0
    %3501 = vmatprep.subr.mxu0 0.0
    %3502 = vmatpush1.msra.mxu0 0.0
    %3503 = vmatprep.subr.mxu0 0.0
    %3504 = vmatpush1.msra.mxu0 0.0
    %3505 = vmatprep.subr.mxu0 0.0
    %3506 = vmatpush1.msra.mxu0 0.0
    %3507 = vmatprep.subr.mxu0 0.0
    %3508 = vmatpush1.msra.mxu0 0.0
    %3509 = vmatprep.subr.mxu0 0.0
    %3510 = vmatpush1.msra.mxu0 0.0
    %3511 = vmatprep.subr.mxu0 0.0
    %3512 = vmatpush1.msra.mxu0 0.0
    %3513 = vmatprep.subr.mxu0 0.0
    %3514 = vmatpush1.msra.mxu0 0.0
    %3515 = vmatprep.subr.mxu0 0.0
    %3516 = vmatpush1.msra.mxu0 0.0
    %3517 = vmatprep.subr.mxu0 0.0
    %3518 = vmatpush1.msra.mxu0 0.0
    %3519 = vmatprep.subr.mxu0 0.0
    %3520 = vmatpush1.msra.mxu0 0.0
    %3521 = vmatprep.subr.mxu0 0.0
    %3522 = vmatpush1.msra.mxu0 0.0
    %3523 = vmatprep.subr.mxu0 0.0
    %3524 = vmatpush1.msra.mxu0 0.0
    %3525 = vmatprep.subr.mxu0 0.0
    %3526 = vmatpush1.msra.mxu0 0.0
    %3527 = vmatprep.subr.mxu0 0.0
    %3528 = vmatpush1.msra.mxu0 0.0
    %3529 = vmatprep.subr.mxu0 0.0
    %3530 = vmatpush1.msra.mxu0 0.0
    %3531 = vmatprep.subr.mxu0 0.0
    %3532 = vmatpush1.msra.mxu0 0.0
    %3533 = vmatprep.subr.mxu0 0.0
    %3534 = vmatpush1.msra.mxu0 0.0
    %3535 = vmatprep.subr.mxu0 0.0
    %3536 = vmatpush1.msra.mxu0 0.0
    %3537 = vmatprep.subr.mxu0 0.0
    %3538 = vmatpush1.msra.mxu0 0.0
    %3539 = vmatprep.subr.mxu0 0.0
    %3540 = vmatpush1.msra.mxu0 0.0
    %3541 = vmatprep.subr.mxu0 0.0
    %3542 = vmatpush1.msra.mxu0 0.0
    %3543 = vmatprep.subr.mxu0 0.0
    %3544 = vmatpush1.msra.mxu0 0.0
    %3545 = vmatprep.subr.mxu0 0.0
    %3546 = vmatpush1.msra.mxu0 0.0
    %3547 = vmatprep.subr.mxu0 0.0
    %3548 = vmatpush1.msra.mxu0 0.0
    %3549 = vmatprep.subr.mxu0 0.0
    %3550 = vmatpush1.msra.mxu0 0.0
    %3551 = vmatprep.subr.mxu0 0.0
    %3552 = vmatpush1.msra.mxu0 0.0
    %3553 = vmatprep.subr.mxu0 0.0
    %3554 = vmatpush1.msra.mxu0 0.0
    %3555 = vmatprep.subr.mxu0 0.0
    %3556 = vmatpush1.msra.mxu0 0.0
    %3557 = vmatprep.mubr.f32.mxu0 0.0
    %3558 = vmatmul.mubr.f32.gmra.mrb[0].mxu0 %v3488
    %v3559 = vpop.f32.mrb[0].mxu0
    %v3560 = vadd.f32 0.0, %v3559
    %v3561 = vpop.f32.mrb[0].mxu0
    %3562 = vmatprep.mubr.f32.mxu0 0.0
    %3563 = vmatmul.mubr.f32.gmra.mrb[0].mxu0 %v3491
    %v3564 = vpop.f32.mrb[0].mxu0
    %v3565 = vadd.f32 0.0, %v3564
    %v3566 = vpop.f32.mrb[0].mxu0
    %3567 = vdwg.mxu0
    %v3568 = vld [vmem:[%s3362 + $0x8] sm:$0xff]
    %v3570 = vsel %vm243, %v3560, 0
    %v3573 = vsel %vm243, %v3565, 0
    %3575 = vmatprep.subr.mxu0 0.0
    %3576 = vmatpush1.msra.mxu0 %v3568
    %3577 = vmatprep.subr.mxu0 0.0
    %3578 = vmatpush1.msra.mxu0 0.0
    %3579 = vmatprep.subr.mxu0 0.0
    %3580 = vmatpush1.msra.mxu0 0.0
    %3581 = vmatprep.subr.mxu0 0.0
    %3582 = vmatpush1.msra.mxu0 0.0
    %3583 = vmatprep.subr.mxu0 0.0
    %3584 = vmatpush1.msra.mxu0 0.0
    %3585 = vmatprep.subr.mxu0 0.0
    %3586 = vmatpush1.msra.mxu0 0.0
    %3587 = vmatprep.subr.mxu0 0.0
    %3588 = vmatpush1.msra.mxu0 0.0
    %3589 = vmatprep.subr.mxu0 0.0
    %3590 = vmatpush1.msra.mxu0 0.0
    %3591 = vmatprep.subr.mxu0 0.0
    %3592 = vmatpush1.msra.mxu0 0.0
    %3593 = vmatprep.subr.mxu0 0.0
    %3594 = vmatpush1.msra.mxu0 0.0
    %3595 = vmatprep.subr.mxu0 0.0
    %3596 = vmatpush1.msra.mxu0 0.0
    %3597 = vmatprep.subr.mxu0 0.0
    %3598 = vmatpush1.msra.mxu0 0.0
    %3599 = vmatprep.subr.mxu0 0.0
    %3600 = vmatpush1.msra.mxu0 0.0
    %3601 = vmatprep.subr.mxu0 0.0
    %3602 = vmatpush1.msra.mxu0 0.0
    %3603 = vmatprep.subr.mxu0 0.0
    %3604 = vmatpush1.msra.mxu0 0.0
    %3605 = vmatprep.subr.mxu0 0.0
    %3606 = vmatpush1.msra.mxu0 0.0
    %3607 = vmatprep.subr.mxu0 0.0
    %3608 = vmatpush1.msra.mxu0 0.0
    %3609 = vmatprep.subr.mxu0 0.0
    %3610 = vmatpush1.msra.mxu0 0.0
    %3611 = vmatprep.subr.mxu0 0.0
    %3612 = vmatpush1.msra.mxu0 0.0
    %3613 = vmatprep.subr.mxu0 0.0
    %3614 = vmatpush1.msra.mxu0 0.0
    %3615 = vmatprep.subr.mxu0 0.0
    %3616 = vmatpush1.msra.mxu0 0.0
    %3617 = vmatprep.subr.mxu0 0.0
    %3618 = vmatpush1.msra.mxu0 0.0
    %3619 = vmatprep.subr.mxu0 0.0
    %3620 = vmatpush1.msra.mxu0 0.0
    %3621 = vmatprep.subr.mxu0 0.0
    %3622 = vmatpush1.msra.mxu0 0.0
    %3623 = vmatprep.subr.mxu0 0.0
    %3624 = vmatpush1.msra.mxu0 0.0
    %3625 = vmatprep.subr.mxu0 0.0
    %3626 = vmatpush1.msra.mxu0 0.0
    %3627 = vmatprep.subr.mxu0 0.0
    %3628 = vmatpush1.msra.mxu0 0.0
    %3629 = vmatprep.subr.mxu0 0.0
    %3630 = vmatpush1.msra.mxu0 0.0
    %3631 = vmatprep.subr.mxu0 0.0
    %3632 = vmatpush1.msra.mxu0 0.0
    %3633 = vmatprep.subr.mxu0 0.0
    %3634 = vmatpush1.msra.mxu0 0.0
    %3635 = vmatprep.subr.mxu0 0.0
    %3636 = vmatpush1.msra.mxu0 0.0
    %3637 = vmatprep.subr.mxu0 0.0
    %3638 = vmatpush1.msra.mxu0 0.0
    %3639 = vmatprep.mubr.f32.mxu0 0.0
    %3640 = vmatmul.mubr.f32.gmra.mrb[0].mxu0 %v3570
    %v3641 = vpop.f32.mrb[0].mxu0
    %v3642 = vadd.f32 0.0, %v3641
    %v3643 = vpop.f32.mrb[0].mxu0
    %3644 = vmatprep.mubr.f32.mxu0 0.0
    %3645 = vmatmul.mubr.f32.gmra.mrb[0].mxu0 %v3573
    %v3646 = vpop.f32.mrb[0].mxu0
    %v3647 = vadd.f32 0.0, %v3646
    %v3648 = vpop.f32.mrb[0].mxu0
    %3649 = vdwg.mxu0
    %v3651 = vsel %vm243, %v3354, 0
    %v3654 = vsel %vm243, %v3359, 0
    %3656 = vmatprep.subr.mxu0 0.0
    %3657 = vmatpush1.msra.mxu0 %v3363
    %3658 = vmatprep.subr.mxu0 0.0
    %3659 = vmatpush1.msra.mxu0 0.0
    %3660 = vmatprep.subr.mxu0 0.0
    %3661 = vmatpush1.msra.mxu0 0.0
    %3662 = vmatprep.subr.mxu0 0.0
    %3663 = vmatpush1.msra.mxu0 0.0
    %3664 = vmatprep.subr.mxu0 0.0
    %3665 = vmatpush1.msra.mxu0 0.0
    %3666 = vmatprep.subr.mxu0 0.0
    %3667 = vmatpush1.msra.mxu0 0.0
    %3668 = vmatprep.subr.mxu0 0.0
    %3669 = vmatpush1.msra.mxu0 0.0
    %3670 = vmatprep.subr.mxu0 0.0
    %3671 = vmatpush1.msra.mxu0 0.0
    %3672 = vmatprep.subr.mxu0 0.0
    %3673 = vmatpush1.msra.mxu0 0.0
    %3674 = vmatprep.subr.mxu0 0.0
    %3675 = vmatpush1.msra.mxu0 0.0
    %3676 = vmatprep.subr.mxu0 0.0
    %3677 = vmatpush1.msra.mxu0 0.0
    %3678 = vmatprep.subr.mxu0 0.0
    %3679 = vmatpush1.msra.mxu0 0.0
    %3680 = vmatprep.subr.mxu0 0.0
    %3681 = vmatpush1.msra.mxu0 0.0
    %3682 = vmatprep.subr.mxu0 0.0
    %3683 = vmatpush1.msra.mxu0 0.0
    %3684 = vmatprep.subr.mxu0 0.0
    %3685 = vmatpush1.msra.mxu0 0.0
    %3686 = vmatprep.subr.mxu0 0.0
    %3687 = vmatpush1.msra.mxu0 0.0
    %3688 = vmatprep.subr.mxu0 0.0
    %3689 = vmatpush1.msra.mxu0 0.0
    %3690 = vmatprep.subr.mxu0 0.0
    %3691 = vmatpush1.msra.mxu0 0.0
    %3692 = vmatprep.subr.mxu0 0.0
    %3693 = vmatpush1.msra.mxu0 0.0
    %3694 = vmatprep.subr.mxu0 0.0
    %3695 = vmatpush1.msra.mxu0 0.0
    %3696 = vmatprep.subr.mxu0 0.0
    %3697 = vmatpush1.msra.mxu0 0.0
    %3698 = vmatprep.subr.mxu0 0.0
    %3699 = vmatpush1.msra.mxu0 0.0
    %3700 = vmatprep.subr.mxu0 0.0
    %3701 = vmatpush1.msra.mxu0 0.0
    %3702 = vmatprep.subr.mxu0 0.0
    %3703 = vmatpush1.msra.mxu0 0.0
    %3704 = vmatprep.subr.mxu0 0.0
    %3705 = vmatpush1.msra.mxu0 0.0
    %3706 = vmatprep.subr.mxu0 0.0
    %3707 = vmatpush1.msra.mxu0 0.0
    %3708 = vmatprep.subr.mxu0 0.0
    %3709 = vmatpush1.msra.mxu0 0.0
    %3710 = vmatprep.subr.mxu0 0.0
    %3711 = vmatpush1.msra.mxu0 0.0
    %3712 = vmatprep.subr.mxu0 0.0
    %3713 = vmatpush1.msra.mxu0 0.0
    %3714 = vmatprep.subr.mxu0 0.0
    %3715 = vmatpush1.msra.mxu0 0.0
    %3716 = vmatprep.subr.mxu0 0.0
    %3717 = vmatpush1.msra.mxu0 0.0
    %3718 = vmatprep.subr.mxu0 0.0
    %3719 = vmatpush1.msra.mxu0 0.0
    %3720 = vmatprep.mubr.f32.mxu0 0.0
    %3721 = vmatmul.mubr.f32.gmra.mrb[0].mxu0 %v3651
    %v3722 = vpop.f32.mrb[0].mxu0
    %v3723 = vadd.f32 %v3642, %v3722
    %v3724 = vpop.f32.mrb[0].mxu0
    %3725 = vmatprep.mubr.f32.mxu0 0.0
    %3726 = vmatmul.mubr.f32.gmra.mrb[0].mxu0 %v3654
    %v3727 = vpop.f32.mrb[0].mxu0
    %v3728 = vadd.f32 %v3647, %v3727
    %v3729 = vpop.f32.mrb[0].mxu0
    %3730 = vdwg.mxu0
    %3731 = vrot.lane.b32.xlu0 %v3152, 112
    %v3732 = vpop.permute.xlu0 %3731
    %3733 = vrot.lane.b32.xlu0 %v3157, 112
    %v3734 = vpop.permute.xlu0 %3733
    %3735 = vrot.lane.b32.xlu0 %v3152, 80
    %v3736 = vpop.permute.xlu0 %3735
    %3737 = vrot.lane.b32.xlu0 %v3157, 80
    %v3738 = vpop.permute.xlu0 %3737
    %v3739 = vsel %vm243, %v3732, 0
    %v3741 = vsel %vm243, %v3734, 0
    %v3743 = vsel %vm243, %v3736, 0
    %v3745 = vsel %vm243, %v3738, 0
    %3747 = vmatprep.subr.mxu0 0.0
    %3748 = vmatpush1.xpose.msra.mxu0 %v3743
    %3749 = vmatprep.subr.mxu0 0.0
    %3750 = vmatpush1.xpose.msra.mxu0 %v3745
    %3751 = vmatprep.subr.mxu0 0.0
    %3752 = vmatpush1.xpose.msra.mxu0 0.0
    %3753 = vmatprep.subr.mxu0 0.0
    %3754 = vmatpush1.xpose.msra.mxu0 0.0
    %3755 = vmatprep.subr.mxu0 0.0
    %3756 = vmatpush1.xpose.msra.mxu0 0.0
    %3757 = vmatprep.subr.mxu0 0.0
    %3758 = vmatpush1.xpose.msra.mxu0 0.0
    %3759 = vmatprep.subr.mxu0 0.0
    %3760 = vmatpush1.xpose.msra.mxu0 0.0
    %3761 = vmatprep.subr.mxu0 0.0
    %3762 = vmatpush1.xpose.msra.mxu0 0.0
    %3763 = vmatprep.subr.mxu0 0.0
    %3764 = vmatpush1.xpose.msra.mxu0 0.0
    %3765 = vmatprep.subr.mxu0 0.0
    %3766 = vmatpush1.xpose.msra.mxu0 0.0
    %3767 = vmatprep.subr.mxu0 0.0
    %3768 = vmatpush1.xpose.msra.mxu0 0.0
    %3769 = vmatprep.subr.mxu0 0.0
    %3770 = vmatpush1.xpose.msra.mxu0 0.0
    %3771 = vmatprep.subr.mxu0 0.0
    %3772 = vmatpush1.xpose.msra.mxu0 0.0
    %3773 = vmatprep.subr.mxu0 0.0
    %3774 = vmatpush1.xpose.msra.mxu0 0.0
    %3775 = vmatprep.subr.mxu0 0.0
    %3776 = vmatpush1.xpose.msra.mxu0 0.0
    %3777 = vmatprep.subr.mxu0 0.0
    %3778 = vmatpush1.xpose.msra.mxu0 0.0
    %3779 = vmatprep.subr.mxu0 0.0
    %3780 = vmatpush1.xpose.msra.mxu0 0.0
    %3781 = vmatprep.subr.mxu0 0.0
    %3782 = vmatpush1.xpose.msra.mxu0 0.0
    %3783 = vmatprep.subr.mxu0 0.0
    %3784 = vmatpush1.xpose.msra.mxu0 0.0
    %3785 = vmatprep.subr.mxu0 0.0
    %3786 = vmatpush1.xpose.msra.mxu0 0.0
    %3787 = vmatprep.subr.mxu0 0.0
    %3788 = vmatpush1.xpose.msra.mxu0 0.0
    %3789 = vmatprep.subr.mxu0 0.0
    %3790 = vmatpush1.xpose.msra.mxu0 0.0
    %3791 = vmatprep.subr.mxu0 0.0
    %3792 = vmatpush1.xpose.msra.mxu0 0.0
    %3793 = vmatprep.subr.mxu0 0.0
    %3794 = vmatpush1.xpose.msra.mxu0 0.0
    %3795 = vmatprep.subr.mxu0 0.0
    %3796 = vmatpush1.xpose.msra.mxu0 0.0
    %3797 = vmatprep.subr.mxu0 0.0
    %3798 = vmatpush1.xpose.msra.mxu0 0.0
    %3799 = vmatprep.subr.mxu0 0.0
    %3800 = vmatpush1.xpose.msra.mxu0 0.0
    %3801 = vmatprep.subr.mxu0 0.0
    %3802 = vmatpush1.xpose.msra.mxu0 0.0
    %3803 = vmatprep.subr.mxu0 0.0
    %3804 = vmatpush1.xpose.msra.mxu0 0.0
    %3805 = vmatprep.subr.mxu0 0.0
    %3806 = vmatpush1.xpose.msra.mxu0 0.0
    %3807 = vmatprep.subr.mxu0 0.0
    %3808 = vmatpush1.xpose.msra.mxu0 0.0
    %3809 = vmatprep.subr.mxu0 0.0
    %3810 = vmatpush1.xpose.msra.mxu0 0.0
    %3811 = vmatprep.mubr.f32.mxu0 0.0
    %3812 = vmatmul.mubr.f32.gmra.mrb[0].mxu0 %v3739
    %v3813 = vpop.f32.mrb[0].mxu0
    %v3814 = vadd.f32 0.0, %v3813
    %v3815 = vpop.f32.mrb[0].mxu0
    %3816 = vmatprep.mubr.f32.mxu0 0.0
    %3817 = vmatmul.mubr.f32.gmra.mrb[0].mxu0 %v3741
    %v3818 = vpop.f32.mrb[0].mxu0
    %v3819 = vadd.f32 0.0, %v3818
    %v3820 = vpop.f32.mrb[0].mxu0
    %3821 = vdwg.mxu0
    %v3822 = vmul.f32 %v3814, 0.35355338
    %v3823 = vmul.f32 %v3819, 0.35355338
    %v3824 = vadd.f32 %v3822, %v106
    %v3825 = vadd.f32 %v3823, %v107
    %v3826 = vsel %vm331, %v3824, -inf
    %3827 = vmax.xlane.f32.xlu0 %v3826
    %v3828 = vpop.xlane.xlu0 %3827
    %v3829 = vsel %vm331, %v3825, -inf
    %3830 = vmax.xlane.f32.xlu0 %v3829
    %v3831 = vpop.xlane.xlu0 %3830
    %v3832 = vsub.f32 %v3824, %v3828
    %v3833 = vsub.f32 %v3825, %v3831
    %v3834 = vmul.f32 %v3832, 1.442695
    %v3835 = vpow.pop %v3834
    %v3836 = vmul.f32 %v3833, 1.442695
    %v3837 = vpow.pop %v3836
    %v3838 = vsel %vm331, %v3835, 0.0
    %3839 = vadd.xlane.f32.xlu0 %v3838
    %v3840 = vpop.xlane.xlu0 %3839
    %v3841 = vsel %vm331, %v3837, 0.0
    %3842 = vadd.xlane.f32.xlu0 %v3841
    %v3843 = vpop.xlane.xlu0 %3842
    %v3844 = vrcp.pop %v3840
    %v3845 = vmul.f32 %v3835, %v3844
    %v3846 = vrcp.pop %v3843
    %v3847 = vmul.f32 %v3837, %v3846
    %3848 = vrot.lane.b32.xlu0 %v3152, 48
    %v3849 = vpop.permute.xlu0 %3848
    %3850 = vrot.lane.b32.xlu0 %v3157, 48
    %v3851 = vpop.permute.xlu0 %3850
    %v3855 = vsel %vm331, %v3845, 0
    %v3858 = vsel %vm331, %v3847, 0
    %3860 = vmatprep.subr.mxu0 0.0
    %3861 = vmatpush1.msra.mxu0 %v3849
    %3862 = vmatprep.subr.mxu0 0.0
    %3863 = vmatpush1.msra.mxu0 %v3851
    %3864 = vmatprep.subr.mxu0 0.0
    %3865 = vmatpush1.msra.mxu0 0.0
    %3866 = vmatprep.subr.mxu0 0.0
    %3867 = vmatpush1.msra.mxu0 0.0
    %3868 = vmatprep.subr.mxu0 0.0
    %3869 = vmatpush1.msra.mxu0 0.0
    %3870 = vmatprep.subr.mxu0 0.0
    %3871 = vmatpush1.msra.mxu0 0.0
    %3872 = vmatprep.subr.mxu0 0.0
    %3873 = vmatpush1.msra.mxu0 0.0
    %3874 = vmatprep.subr.mxu0 0.0
    %3875 = vmatpush1.msra.mxu0 0.0
    %3876 = vmatprep.subr.mxu0 0.0
    %3877 = vmatpush1.msra.mxu0 0.0
    %3878 = vmatprep.subr.mxu0 0.0
    %3879 = vmatpush1.msra.mxu0 0.0
    %3880 = vmatprep.subr.mxu0 0.0
    %3881 = vmatpush1.msra.mxu0 0.0
    %3882 = vmatprep.subr.mxu0 0.0
    %3883 = vmatpush1.msra.mxu0 0.0
    %3884 = vmatprep.subr.mxu0 0.0
    %3885 = vmatpush1.msra.mxu0 0.0
    %3886 = vmatprep.subr.mxu0 0.0
    %3887 = vmatpush1.msra.mxu0 0.0
    %3888 = vmatprep.subr.mxu0 0.0
    %3889 = vmatpush1.msra.mxu0 0.0
    %3890 = vmatprep.subr.mxu0 0.0
    %3891 = vmatpush1.msra.mxu0 0.0
    %3892 = vmatprep.subr.mxu0 0.0
    %3893 = vmatpush1.msra.mxu0 0.0
    %3894 = vmatprep.subr.mxu0 0.0
    %3895 = vmatpush1.msra.mxu0 0.0
    %3896 = vmatprep.subr.mxu0 0.0
    %3897 = vmatpush1.msra.mxu0 0.0
    %3898 = vmatprep.subr.mxu0 0.0
    %3899 = vmatpush1.msra.mxu0 0.0
    %3900 = vmatprep.subr.mxu0 0.0
    %3901 = vmatpush1.msra.mxu0 0.0
    %3902 = vmatprep.subr.mxu0 0.0
    %3903 = vmatpush1.msra.mxu0 0.0
    %3904 = vmatprep.subr.mxu0 0.0
    %3905 = vmatpush1.msra.mxu0 0.0
    %3906 = vmatprep.subr.mxu0 0.0
    %3907 = vmatpush1.msra.mxu0 0.0
    %3908 = vmatprep.subr.mxu0 0.0
    %3909 = vmatpush1.msra.mxu0 0.0
    %3910 = vmatprep.subr.mxu0 0.0
    %3911 = vmatpush1.msra.mxu0 0.0
    %3912 = vmatprep.subr.mxu0 0.0
    %3913 = vmatpush1.msra.mxu0 0.0
    %3914 = vmatprep.subr.mxu0 0.0
    %3915 = vmatpush1.msra.mxu0 0.0
    %3916 = vmatprep.subr.mxu0 0.0
    %3917 = vmatpush1.msra.mxu0 0.0
    %3918 = vmatprep.subr.mxu0 0.0
    %3919 = vmatpush1.msra.mxu0 0.0
    %3920 = vmatprep.subr.mxu0 0.0
    %3921 = vmatpush1.msra.mxu0 0.0
    %3922 = vmatprep.subr.mxu0 0.0
    %3923 = vmatpush1.msra.mxu0 0.0
    %3924 = vmatprep.mubr.f32.mxu0 0.0
    %3925 = vmatmul.mubr.f32.gmra.mrb[0].mxu0 %v3855
    %v3926 = vpop.f32.mrb[0].mxu0
    %v3927 = vadd.f32 0.0, %v3926
    %v3928 = vpop.f32.mrb[0].mxu0
    %3929 = vmatprep.mubr.f32.mxu0 0.0
    %3930 = vmatmul.mubr.f32.gmra.mrb[0].mxu0 %v3858
    %v3931 = vpop.f32.mrb[0].mxu0
    %v3932 = vadd.f32 0.0, %v3931
    %v3933 = vpop.f32.mrb[0].mxu0
    %3934 = vdwg.mxu0
    %v3935 = vld [vmem:[%s3362 + $0x10] sm:$0xff]
    %v3937 = vsel %vm243, %v3927, 0
    %v3940 = vsel %vm243, %v3932, 0
    %3942 = vmatprep.subr.mxu0 0.0
    %3943 = vmatpush1.msra.mxu0 %v3935
    %3944 = vmatprep.subr.mxu0 0.0
    %3945 = vmatpush1.msra.mxu0 0.0
    %3946 = vmatprep.subr.mxu0 0.0
    %3947 = vmatpush1.msra.mxu0 0.0
    %3948 = vmatprep.subr.mxu0 0.0
    %3949 = vmatpush1.msra.mxu0 0.0
    %3950 = vmatprep.subr.mxu0 0.0
    %3951 = vmatpush1.msra.mxu0 0.0
    %3952 = vmatprep.subr.mxu0 0.0
    %3953 = vmatpush1.msra.mxu0 0.0
    %3954 = vmatprep.subr.mxu0 0.0
    %3955 = vmatpush1.msra.mxu0 0.0
    %3956 = vmatprep.subr.mxu0 0.0
    %3957 = vmatpush1.msra.mxu0 0.0
    %3958 = vmatprep.subr.mxu0 0.0
    %3959 = vmatpush1.msra.mxu0 0.0
    %3960 = vmatprep.subr.mxu0 0.0
    %3961 = vmatpush1.msra.mxu0 0.0
    %3962 = vmatprep.subr.mxu0 0.0
    %3963 = vmatpush1.msra.mxu0 0.0
    %3964 = vmatprep.subr.mxu0 0.0
    %3965 = vmatpush1.msra.mxu0 0.0
    %3966 = vmatprep.subr.mxu0 0.0
    %3967 = vmatpush1.msra.mxu0 0.0
    %3968 = vmatprep.subr.mxu0 0.0
    %3969 = vmatpush1.msra.mxu0 0.0
    %3970 = vmatprep.subr.mxu0 0.0
    %3971 = vmatpush1.msra.mxu0 0.0
    %3972 = vmatprep.subr.mxu0 0.0
    %3973 = vmatpush1.msra.mxu0 0.0
    %3974 = vmatprep.subr.mxu0 0.0
    %3975 = vmatpush1.msra.mxu0 0.0
    %3976 = vmatprep.subr.mxu0 0.0
    %3977 = vmatpush1.msra.mxu0 0.0
    %3978 = vmatprep.subr.mxu0 0.0
    %3979 = vmatpush1.msra.mxu0 0.0
    %3980 = vmatprep.subr.mxu0 0.0
    %3981 = vmatpush1.msra.mxu0 0.0
    %3982 = vmatprep.subr.mxu0 0.0
    %3983 = vmatpush1.msra.mxu0 0.0
    %3984 = vmatprep.subr.mxu0 0.0
    %3985 = vmatpush1.msra.mxu0 0.0
    %3986 = vmatprep.subr.mxu0 0.0
    %3987 = vmatpush1.msra.mxu0 0.0
    %3988 = vmatprep.subr.mxu0 0.0
    %3989 = vmatpush1.msra.mxu0 0.0
    %3990 = vmatprep.subr.mxu0 0.0
    %3991 = vmatpush1.msra.mxu0 0.0
    %3992 = vmatprep.subr.mxu0 0.0
    %3993 = vmatpush1.msra.mxu0 0.0
    %3994 = vmatprep.subr.mxu0 0.0
    %3995 = vmatpush1.msra.mxu0 0.0
    %3996 = vmatprep.subr.mxu0 0.0
    %3997 = vmatpush1.msra.mxu0 0.0
    %3998 = vmatprep.subr.mxu0 0.0
    %3999 = vmatpush1.msra.mxu0 0.0
    %4000 = vmatprep.subr.mxu0 0.0
    %4001 = vmatpush1.msra.mxu0 0.0
    %4002 = vmatprep.subr.mxu0 0.0
    %4003 = vmatpush1.msra.mxu0 0.0
    %4004 = vmatprep.subr.mxu0 0.0
    %4005 = vmatpush1.msra.mxu0 0.0
    %4006 = vmatprep.mubr.f32.mxu0 0.0
    %4007 = vmatmul.mubr.f32.gmra.mrb[0].mxu0 %v3937
    %v4008 = vpop.f32.mrb[0].mxu0
    %v4009 = vadd.f32 0.0, %v4008
    %v4010 = vpop.f32.mrb[0].mxu0
    %4011 = vmatprep.mubr.f32.mxu0 0.0
    %4012 = vmatmul.mubr.f32.gmra.mrb[0].mxu0 %v3940
    %v4013 = vpop.f32.mrb[0].mxu0
    %v4014 = vadd.f32 0.0, %v4013
    %v4015 = vpop.f32.mrb[0].mxu0
    %4016 = vdwg.mxu0
    %v4017 = vadd.f32 %v3723, %v4009
    %v4018 = vadd.f32 %v3728, %v4014
    %4019 = vrot.lane.b32.xlu0 %v3152, 104
    %v4020 = vpop.permute.xlu0 %4019
    %4021 = vrot.lane.b32.xlu0 %v3157, 104
    %v4022 = vpop.permute.xlu0 %4021
    %4023 = vrot.lane.b32.xlu0 %v3152, 72
    %v4024 = vpop.permute.xlu0 %4023
    %4025 = vrot.lane.b32.xlu0 %v3157, 72
    %v4026 = vpop.permute.xlu0 %4025
    %v4027 = vsel %vm243, %v4020, 0
    %v4029 = vsel %vm243, %v4022, 0
    %v4031 = vsel %vm243, %v4024, 0
    %v4033 = vsel %vm243, %v4026, 0
    %4035 = vmatprep.subr.mxu0 0.0
    %4036 = vmatpush1.xpose.msra.mxu0 %v4031
    %4037 = vmatprep.subr.mxu0 0.0
    %4038 = vmatpush1.xpose.msra.mxu0 %v4033
    %4039 = vmatprep.subr.mxu0 0.0
    %4040 = vmatpush1.xpose.msra.mxu0 0.0
    %4041 = vmatprep.subr.mxu0 0.0
    %4042 = vmatpush1.xpose.msra.mxu0 0.0
    %4043 = vmatprep.subr.mxu0 0.0
    %4044 = vmatpush1.xpose.msra.mxu0 0.0
    %4045 = vmatprep.subr.mxu0 0.0
    %4046 = vmatpush1.xpose.msra.mxu0 0.0
    %4047 = vmatprep.subr.mxu0 0.0
    %4048 = vmatpush1.xpose.msra.mxu0 0.0
    %4049 = vmatprep.subr.mxu0 0.0
    %4050 = vmatpush1.xpose.msra.mxu0 0.0
    %4051 = vmatprep.subr.mxu0 0.0
    %4052 = vmatpush1.xpose.msra.mxu0 0.0
    %4053 = vmatprep.subr.mxu0 0.0
    %4054 = vmatpush1.xpose.msra.mxu0 0.0
    %4055 = vmatprep.subr.mxu0 0.0
    %4056 = vmatpush1.xpose.msra.mxu0 0.0
    %4057 = vmatprep.subr.mxu0 0.0
    %4058 = vmatpush1.xpose.msra.mxu0 0.0
    %4059 = vmatprep.subr.mxu0 0.0
    %4060 = vmatpush1.xpose.msra.mxu0 0.0
    %4061 = vmatprep.subr.mxu0 0.0
    %4062 = vmatpush1.xpose.msra.mxu0 0.0
    %4063 = vmatprep.subr.mxu0 0.0
    %4064 = vmatpush1.xpose.msra.mxu0 0.0
    %4065 = vmatprep.subr.mxu0 0.0
    %4066 = vmatpush1.xpose.msra.mxu0 0.0
    %4067 = vmatprep.subr.mxu0 0.0
    %4068 = vmatpush1.xpose.msra.mxu0 0.0
    %4069 = vmatprep.subr.mxu0 0.0
    %4070 = vmatpush1.xpose.msra.mxu0 0.0
    %4071 = vmatprep.subr.mxu0 0.0
    %4072 = vmatpush1.xpose.msra.mxu0 0.0
    %4073 = vmatprep.subr.mxu0 0.0
    %4074 = vmatpush1.xpose.msra.mxu0 0.0
    %4075 = vmatprep.subr.mxu0 0.0
    %4076 = vmatpush1.xpose.msra.mxu0 0.0
    %4077 = vmatprep.subr.mxu0 0.0
    %4078 = vmatpush1.xpose.msra.mxu0 0.0
    %4079 = vmatprep.subr.mxu0 0.0
    %4080 = vmatpush1.xpose.msra.mxu0 0.0
    %4081 = vmatprep.subr.mxu0 0.0
    %4082 = vmatpush1.xpose.msra.mxu0 0.0
    %4083 = vmatprep.subr.mxu0 0.0
    %4084 = vmatpush1.xpose.msra.mxu0 0.0
    %4085 = vmatprep.subr.mxu0 0.0
    %4086 = vmatpush1.xpose.msra.mxu0 0.0
    %4087 = vmatprep.subr.mxu0 0.0
    %4088 = vmatpush1.xpose.msra.mxu0 0.0
    %4089 = vmatprep.subr.mxu0 0.0
    %4090 = vmatpush1.xpose.msra.mxu0 0.0
    %4091 = vmatprep.subr.mxu0 0.0
    %4092 = vmatpush1.xpose.msra.mxu0 0.0
    %4093 = vmatprep.subr.mxu0 0.0
    %4094 = vmatpush1.xpose.msra.mxu0 0.0
    %4095 = vmatprep.subr.mxu0 0.0
    %4096 = vmatpush1.xpose.msra.mxu0 0.0
    %4097 = vmatprep.subr.mxu0 0.0
    %4098 = vmatpush1.xpose.msra.mxu0 0.0
    %4099 = vmatprep.mubr.f32.mxu0 0.0
    %4100 = vmatmul.mubr.f32.gmra.mrb[0].mxu0 %v4027
    %v4101 = vpop.f32.mrb[0].mxu0
    %v4102 = vadd.f32 0.0, %v4101
    %v4103 = vpop.f32.mrb[0].mxu0
    %4104 = vmatprep.mubr.f32.mxu0 0.0
    %4105 = vmatmul.mubr.f32.gmra.mrb[0].mxu0 %v4029
    %v4106 = vpop.f32.mrb[0].mxu0
    %v4107 = vadd.f32 0.0, %v4106
    %v4108 = vpop.f32.mrb[0].mxu0
    %4109 = vdwg.mxu0
    %v4110 = vmul.f32 %v4102, 0.35355338
    %v4111 = vmul.f32 %v4107, 0.35355338
    %v4112 = vadd.f32 %v4110, %v106
    %v4113 = vadd.f32 %v4111, %v107
    %v4114 = vsel %vm331, %v4112, -inf
    %4115 = vmax.xlane.f32.xlu0 %v4114
    %v4116 = vpop.xlane.xlu0 %4115
    %v4117 = vsel %vm331, %v4113, -inf
    %4118 = vmax.xlane.f32.xlu0 %v4117
    %v4119 = vpop.xlane.xlu0 %4118
    %v4120 = vsub.f32 %v4112, %v4116
    %v4121 = vsub.f32 %v4113, %v4119
    %v4122 = vmul.f32 %v4120, 1.442695
    %v4123 = vpow.pop %v4122
    %v4124 = vmul.f32 %v4121, 1.442695
    %v4125 = vpow.pop %v4124
    %v4126 = vsel %vm331, %v4123, 0.0
    %4127 = vadd.xlane.f32.xlu0 %v4126
    %v4128 = vpop.xlane.xlu0 %4127
    %v4129 = vsel %vm331, %v4125, 0.0
    %4130 = vadd.xlane.f32.xlu0 %v4129
    %v4131 = vpop.xlane.xlu0 %4130
    %v4132 = vrcp.pop %v4128
    %v4133 = vmul.f32 %v4123, %v4132
    %v4134 = vrcp.pop %v4131
    %v4135 = vmul.f32 %v4125, %v4134
    %4136 = vrot.lane.b32.xlu0 %v3152, 40
    %v4137 = vpop.permute.xlu0 %4136
    %4138 = vrot.lane.b32.xlu0 %v3157, 40
    %v4139 = vpop.permute.xlu0 %4138
    %v4143 = vsel %vm331, %v4133, 0
    %v4146 = vsel %vm331, %v4135, 0
    %4148 = vmatprep.subr.mxu0 0.0
    %4149 = vmatpush1.msra.mxu0 %v4137
    %4150 = vmatprep.subr.mxu0 0.0
    %4151 = vmatpush1.msra.mxu0 %v4139
    %4152 = vmatprep.subr.mxu0 0.0
    %4153 = vmatpush1.msra.mxu0 0.0
    %4154 = vmatprep.subr.mxu0 0.0
    %4155 = vmatpush1.msra.mxu0 0.0
    %4156 = vmatprep.subr.mxu0 0.0
    %4157 = vmatpush1.msra.mxu0 0.0
    %4158 = vmatprep.subr.mxu0 0.0
    %4159 = vmatpush1.msra.mxu0 0.0
    %4160 = vmatprep.subr.mxu0 0.0
    %4161 = vmatpush1.msra.mxu0 0.0
    %4162 = vmatprep.subr.mxu0 0.0
    %4163 = vmatpush1.msra.mxu0 0.0
    %4164 = vmatprep.subr.mxu0 0.0
    %4165 = vmatpush1.msra.mxu0 0.0
    %4166 = vmatprep.subr.mxu0 0.0
    %4167 = vmatpush1.msra.mxu0 0.0
    %4168 = vmatprep.subr.mxu0 0.0
    %4169 = vmatpush1.msra.mxu0 0.0
    %4170 = vmatprep.subr.mxu0 0.0
    %4171 = vmatpush1.msra.mxu0 0.0
    %4172 = vmatprep.subr.mxu0 0.0
    %4173 = vmatpush1.msra.mxu0 0.0
    %4174 = vmatprep.subr.mxu0 0.0
    %4175 = vmatpush1.msra.mxu0 0.0
    %4176 = vmatprep.subr.mxu0 0.0
    %4177 = vmatpush1.msra.mxu0 0.0
    %4178 = vmatprep.subr.mxu0 0.0
    %4179 = vmatpush1.msra.mxu0 0.0
    %4180 = vmatprep.subr.mxu0 0.0
    %4181 = vmatpush1.msra.mxu0 0.0
    %4182 = vmatprep.subr.mxu0 0.0
    %4183 = vmatpush1.msra.mxu0 0.0
    %4184 = vmatprep.subr.mxu0 0.0
    %4185 = vmatpush1.msra.mxu0 0.0
    %4186 = vmatprep.subr.mxu0 0.0
    %4187 = vmatpush1.msra.mxu0 0.0
    %4188 = vmatprep.subr.mxu0 0.0
    %4189 = vmatpush1.msra.mxu0 0.0
    %4190 = vmatprep.subr.mxu0 0.0
    %4191 = vmatpush1.msra.mxu0 0.0
    %4192 = vmatprep.subr.mxu0 0.0
    %4193 = vmatpush1.msra.mxu0 0.0
    %4194 = vmatprep.subr.mxu0 0.0
    %4195 = vmatpush1.msra.mxu0 0.0
    %4196 = vmatprep.subr.mxu0 0.0
    %4197 = vmatpush1.msra.mxu0 0.0
    %4198 = vmatprep.subr.mxu0 0.0
    %4199 = vmatpush1.msra.mxu0 0.0
    %4200 = vmatprep.subr.mxu0 0.0
    %4201 = vmatpush1.msra.mxu0 0.0
    %4202 = vmatprep.subr.mxu0 0.0
    %4203 = vmatpush1.msra.mxu0 0.0
    %4204 = vmatprep.subr.mxu0 0.0
    %4205 = vmatpush1.msra.mxu0 0.0
    %4206 = vmatprep.subr.mxu0 0.0
    %4207 = vmatpush1.msra.mxu0 0.0
    %4208 = vmatprep.subr.mxu0 0.0
    %4209 = vmatpush1.msra.mxu0 0.0
    %4210 = vmatprep.subr.mxu0 0.0
    %4211 = vmatpush1.msra.mxu0 0.0
    %4212 = vmatprep.mubr.f32.mxu0 0.0
    %4213 = vmatmul.mubr.f32.gmra.mrb[0].mxu0 %v4143
    %v4214 = vpop.f32.mrb[0].mxu0
    %v4215 = vadd.f32 0.0, %v4214
    %v4216 = vpop.f32.mrb[0].mxu0
    %4217 = vmatprep.mubr.f32.mxu0 0.0
    %4218 = vmatmul.mubr.f32.gmra.mrb[0].mxu0 %v4146
    %v4219 = vpop.f32.mrb[0].mxu0
    %v4220 = vadd.f32 0.0, %v4219
    %v4221 = vpop.f32.mrb[0].mxu0
    %4222 = vdwg.mxu0
    %v4223 = vld [vmem:[%s3362 + $0x18] sm:$0xff]
    %v4225 = vsel %vm243, %v4215, 0
    %v4228 = vsel %vm243, %v4220, 0
    %4230 = vmatprep.subr.mxu0 0.0
    %4231 = vmatpush1.msra.mxu0 %v4223
    %4232 = vmatprep.subr.mxu0 0.0
    %4233 = vmatpush1.msra.mxu0 0.0
    %4234 = vmatprep.subr.mxu0 0.0
    %4235 = vmatpush1.msra.mxu0 0.0
    %4236 = vmatprep.subr.mxu0 0.0
    %4237 = vmatpush1.msra.mxu0 0.0
    %4238 = vmatprep.subr.mxu0 0.0
    %4239 = vmatpush1.msra.mxu0 0.0
    %4240 = vmatprep.subr.mxu0 0.0
    %4241 = vmatpush1.msra.mxu0 0.0
    %4242 = vmatprep.subr.mxu0 0.0
    %4243 = vmatpush1.msra.mxu0 0.0
    %4244 = vmatprep.subr.mxu0 0.0
    %4245 = vmatpush1.msra.mxu0 0.0
    %4246 = vmatprep.subr.mxu0 0.0
    %4247 = vmatpush1.msra.mxu0 0.0
    %4248 = vmatprep.subr.mxu0 0.0
    %4249 = vmatpush1.msra.mxu0 0.0
    %4250 = vmatprep.subr.mxu0 0.0
    %4251 = vmatpush1.msra.mxu0 0.0
    %4252 = vmatprep.subr.mxu0 0.0
    %4253 = vmatpush1.msra.mxu0 0.0
    %4254 = vmatprep.subr.mxu0 0.0
    %4255 = vmatpush1.msra.mxu0 0.0
    %4256 = vmatprep.subr.mxu0 0.0
    %4257 = vmatpush1.msra.mxu0 0.0
    %4258 = vmatprep.subr.mxu0 0.0
    %4259 = vmatpush1.msra.mxu0 0.0
    %4260 = vmatprep.subr.mxu0 0.0
    %4261 = vmatpush1.msra.mxu0 0.0
    %4262 = vmatprep.subr.mxu0 0.0
    %4263 = vmatpush1.msra.mxu0 0.0
    %4264 = vmatprep.subr.mxu0 0.0
    %4265 = vmatpush1.msra.mxu0 0.0
    %4266 = vmatprep.subr.mxu0 0.0
    %4267 = vmatpush1.msra.mxu0 0.0
    %4268 = vmatprep.subr.mxu0 0.0
    %4269 = vmatpush1.msra.mxu0 0.0
    %4270 = vmatprep.subr.mxu0 0.0
    %4271 = vmatpush1.msra.mxu0 0.0
    %4272 = vmatprep.subr.mxu0 0.0
    %4273 = vmatpush1.msra.mxu0 0.0
    %4274 = vmatprep.subr.mxu0 0.0
    %4275 = vmatpush1.msra.mxu0 0.0
    %4276 = vmatprep.subr.mxu0 0.0
    %4277 = vmatpush1.msra.mxu0 0.0
    %4278 = vmatprep.subr.mxu0 0.0
    %4279 = vmatpush1.msra.mxu0 0.0
    %4280 = vmatprep.subr.mxu0 0.0
    %4281 = vmatpush1.msra.mxu0 0.0
    %4282 = vmatprep.subr.mxu0 0.0
    %4283 = vmatpush1.msra.mxu0 0.0
    %4284 = vmatprep.subr.mxu0 0.0
    %4285 = vmatpush1.msra.mxu0 0.0
    %4286 = vmatprep.subr.mxu0 0.0
    %4287 = vmatpush1.msra.mxu0 0.0
    %4288 = vmatprep.subr.mxu0 0.0
    %4289 = vmatpush1.msra.mxu0 0.0
    %4290 = vmatprep.subr.mxu0 0.0
    %4291 = vmatpush1.msra.mxu0 0.0
    %4292 = vmatprep.subr.mxu0 0.0
    %4293 = vmatpush1.msra.mxu0 0.0
    %4294 = vmatprep.mubr.f32.mxu0 0.0
    %4295 = vmatmul.mubr.f32.gmra.mrb[0].mxu0 %v4225
    %v4296 = vpop.f32.mrb[0].mxu0
    %v4297 = vadd.f32 0.0, %v4296
    %v4298 = vpop.f32.mrb[0].mxu0
    %4299 = vmatprep.mubr.f32.mxu0 0.0
    %4300 = vmatmul.mubr.f32.gmra.mrb[0].mxu0 %v4228
    %v4301 = vpop.f32.mrb[0].mxu0
    %v4302 = vadd.f32 0.0, %v4301
    %v4303 = vpop.f32.mrb[0].mxu0
    %4304 = vdwg.mxu0
    %v4305 = vadd.f32 %v4017, %v4297
    %v4306 = vadd.f32 %v4018, %v4302
    %v4307 = vld [vmem:[%s8 + $0x10] sm:$0x1]
    %v4308 = vlaneseq
    %v4309 = vshrl.u32 %v4308, 7
    %v4310 = vsub.s32 0, %v4309
    %v4311 = vrot.slane %v4307, %v4310
    %v4312 = vadd.f32 %v4305, %v4311
    %v4313 = vadd.f32 %v4306, %v4311
    %v4314 = vadd.f32 %v3032, %v4312
    %v4315 = vadd.f32 %v3033, %v4313
    %v4316 = vld [vmem:[%s8 + $0xc] sm:$0x1]
    %v4317 = vld [vmem:[%s8 + $0xd] sm:$0x1]
    %v4318 = vsel %vm112, %v4314, 0.0
    %4319 = vadd.xlane.f32.xlu0 %v4318
    %v4320 = vpop.xlane.xlu0 %4319
    %v4321 = vsel %vm112, %v4315, 0.0
    %4322 = vadd.xlane.f32.xlu0 %v4321
    %v4323 = vpop.xlane.xlu0 %4322
    %v4324 = vmul.f32 %v4320, %v119
    %v4325 = vmul.f32 %v4323, %v119
    %v4326 = vsub.f32 %v4314, %v4324
    %v4327 = vsub.f32 %v4315, %v4325
    %v4328 = vmul.f32 %v4326, %v4326
    %v4329 = vmul.f32 %v4327, %v4327
    %v4330 = vsel %vm112, %v4328, 0.0
    %4331 = vadd.xlane.f32.xlu0 %v4330
    %v4332 = vpop.xlane.xlu0 %4331
    %v4333 = vsel %vm112, %v4329, 0.0
    %4334 = vadd.xlane.f32.xlu0 %v4333
    %v4335 = vpop.xlane.xlu0 %4334
    %v4336 = vmul.f32 %v4332, %v119
    %v4337 = vmul.f32 %v4335, %v119
    %v4338 = vadd.f32 %v4336, 1e-05
    %v4339 = vadd.f32 %v4337, 1e-05
    %v4340 = vrsqrt.pop %v4338
    %v4341 = vrsqrt.pop %v4339
    %v4342 = vmul.f32 %v4326, %v4340
    %v4343 = vmul.f32 %v4327, %v4341
    %v4344 = vlaneseq
    %v4345 = vshrl.u32 %v4344, 7
    %v4346 = vsub.s32 0, %v4345
    %v4347 = vrot.slane %v4316, %v4346
    %v4348 = vmul.f32 %v4342, %v4347
    %v4349 = vmul.f32 %v4343, %v4347
    %v4350 = vlaneseq
    %v4351 = vshrl.u32 %v4350, 7
    %v4352 = vsub.s32 0, %v4351
    %v4353 = vrot.slane %v4317, %v4352
    %v4354 = vadd.f32 %v4348, %v4353
    %v4355 = vadd.f32 %v4349, %v4353
    %s4356 = scalar_lea.vmem %s4, 96
    %v4357 = vld [vmem:[%s4356] sm:$0xff]
    %v4358 = vld [vmem:[%s4356 + $0x8] sm:$0xff]
    %v4359 = vld [vmem:[%s4356 + $0x10] sm:$0xff]
    %v4360 = vld [vmem:[%s4356 + $0x18] sm:$0xff]
    %v4362 = vsel %vm112, %v4354, 0
    %v4365 = vsel %vm112, %v4355, 0
    %4367 = vmatprep.subr.mxu0 0.0
    %4368 = vmatpush1.msra.mxu0 %v4357
    %4369 = vmatprep.subr.mxu0 0.0
    %4370 = vmatpush1.msra.mxu0 %v4358
    %4371 = vmatprep.subr.mxu0 0.0
    %4372 = vmatpush1.msra.mxu0 %v4359
    %4373 = vmatprep.subr.mxu0 0.0
    %4374 = vmatpush1.msra.mxu0 %v4360
    %4375 = vmatprep.subr.mxu0 0.0
    %4376 = vmatpush1.msra.mxu0 0.0
    %4377 = vmatprep.subr.mxu0 0.0
    %4378 = vmatpush1.msra.mxu0 0.0
    %4379 = vmatprep.subr.mxu0 0.0
    %4380 = vmatpush1.msra.mxu0 0.0
    %4381 = vmatprep.subr.mxu0 0.0
    %4382 = vmatpush1.msra.mxu0 0.0
    %4383 = vmatprep.subr.mxu0 0.0
    %4384 = vmatpush1.msra.mxu0 0.0
    %4385 = vmatprep.subr.mxu0 0.0
    %4386 = vmatpush1.msra.mxu0 0.0
    %4387 = vmatprep.subr.mxu0 0.0
    %4388 = vmatpush1.msra.mxu0 0.0
    %4389 = vmatprep.subr.mxu0 0.0
    %4390 = vmatpush1.msra.mxu0 0.0
    %4391 = vmatprep.subr.mxu0 0.0
    %4392 = vmatpush1.msra.mxu0 0.0
    %4393 = vmatprep.subr.mxu0 0.0
    %4394 = vmatpush1.msra.mxu0 0.0
    %4395 = vmatprep.subr.mxu0 0.0
    %4396 = vmatpush1.msra.mxu0 0.0
    %4397 = vmatprep.subr.mxu0 0.0
    %4398 = vmatpush1.msra.mxu0 0.0
    %4399 = vmatprep.subr.mxu0 0.0
    %4400 = vmatpush1.msra.mxu0 0.0
    %4401 = vmatprep.subr.mxu0 0.0
    %4402 = vmatpush1.msra.mxu0 0.0
    %4403 = vmatprep.subr.mxu0 0.0
    %4404 = vmatpush1.msra.mxu0 0.0
    %4405 = vmatprep.subr.mxu0 0.0
    %4406 = vmatpush1.msra.mxu0 0.0
    %4407 = vmatprep.subr.mxu0 0.0
    %4408 = vmatpush1.msra.mxu0 0.0
    %4409 = vmatprep.subr.mxu0 0.0
    %4410 = vmatpush1.msra.mxu0 0.0
    %4411 = vmatprep.subr.mxu0 0.0
    %4412 = vmatpush1.msra.mxu0 0.0
    %4413 = vmatprep.subr.mxu0 0.0
    %4414 = vmatpush1.msra.mxu0 0.0
    %4415 = vmatprep.subr.mxu0 0.0
    %4416 = vmatpush1.msra.mxu0 0.0
    %4417 = vmatprep.subr.mxu0 0.0
    %4418 = vmatpush1.msra.mxu0 0.0
    %4419 = vmatprep.subr.mxu0 0.0
    %4420 = vmatpush1.msra.mxu0 0.0
    %4421 = vmatprep.subr.mxu0 0.0
    %4422 = vmatpush1.msra.mxu0 0.0
    %4423 = vmatprep.subr.mxu0 0.0
    %4424 = vmatpush1.msra.mxu0 0.0
    %4425 = vmatprep.subr.mxu0 0.0
    %4426 = vmatpush1.msra.mxu0 0.0
    %4427 = vmatprep.subr.mxu0 0.0
    %4428 = vmatpush1.msra.mxu0 0.0
    %4429 = vmatprep.subr.mxu0 0.0
    %4430 = vmatpush1.msra.mxu0 0.0
    %4431 = vmatprep.mubr.f32.mxu0 0.0
    %4432 = vmatmul.mubr.f32.gmra.mrb[0].mxu0 %v4362
    %v4433 = vpop.f32.mrb[0].mxu0
    %v4434 = vadd.f32 0.0, %v4433
    %v4435 = vpop.f32.mrb[0].mxu0
    %4436 = vmatprep.mubr.f32.mxu0 0.0
    %4437 = vmatmul.mubr.f32.gmra.mrb[0].mxu0 %v4365
    %v4438 = vpop.f32.mrb[0].mxu0
    %v4439 = vadd.f32 0.0, %v4438
    %v4440 = vpop.f32.mrb[0].mxu0
    %4441 = vdwg.mxu0
    %4442 = vmatprep.subr.mxu0 0.0
    %4443 = vmatpush1.msra.mxu0 %v4357
    %4444 = vmatprep.subr.mxu0 0.0
    %4445 = vmatpush1.msra.mxu0 %v4358
    %4446 = vmatprep.subr.mxu0 0.0
    %4447 = vmatpush1.msra.mxu0 %v4359
    %4448 = vmatprep.subr.mxu0 0.0
    %4449 = vmatpush1.msra.mxu0 %v4360
    %4450 = vmatprep.subr.mxu0 0.0
    %4451 = vmatpush1.msra.mxu0 0.0
    %4452 = vmatprep.subr.mxu0 0.0
    %4453 = vmatpush1.msra.mxu0 0.0
    %4454 = vmatprep.subr.mxu0 0.0
    %4455 = vmatpush1.msra.mxu0 0.0
    %4456 = vmatprep.subr.mxu0 0.0
    %4457 = vmatpush1.msra.mxu0 0.0
    %4458 = vmatprep.subr.mxu0 0.0
    %4459 = vmatpush1.msra.mxu0 0.0
    %4460 = vmatprep.subr.mxu0 0.0
    %4461 = vmatpush1.msra.mxu0 0.0
    %4462 = vmatprep.subr.mxu0 0.0
    %4463 = vmatpush1.msra.mxu0 0.0
    %4464 = vmatprep.subr.mxu0 0.0
    %4465 = vmatpush1.msra.mxu0 0.0
    %4466 = vmatprep.subr.mxu0 0.0
    %4467 = vmatpush1.msra.mxu0 0.0
    %4468 = vmatprep.subr.mxu0 0.0
    %4469 = vmatpush1.msra.mxu0 0.0
    %4470 = vmatprep.subr.mxu0 0.0
    %4471 = vmatpush1.msra.mxu0 0.0
    %4472 = vmatprep.subr.mxu0 0.0
    %4473 = vmatpush1.msra.mxu0 0.0
    %4474 = vmatprep.subr.mxu0 0.0
    %4475 = vmatpush1.msra.mxu0 0.0
    %4476 = vmatprep.subr.mxu0 0.0
    %4477 = vmatpush1.msra.mxu0 0.0
    %4478 = vmatprep.subr.mxu0 0.0
    %4479 = vmatpush1.msra.mxu0 0.0
    %4480 = vmatprep.subr.mxu0 0.0
    %4481 = vmatpush1.msra.mxu0 0.0
    %4482 = vmatprep.subr.mxu0 0.0
    %4483 = vmatpush1.msra.mxu0 0.0
    %4484 = vmatprep.subr.mxu0 0.0
    %4485 = vmatpush1.msra.mxu0 0.0
    %4486 = vmatprep.subr.mxu0 0.0
    %4487 = vmatpush1.msra.mxu0 0.0
    %4488 = vmatprep.subr.mxu0 0.0
    %4489 = vmatpush1.msra.mxu0 0.0
    %4490 = vmatprep.subr.mxu0 0.0
    %4491 = vmatpush1.msra.mxu0 0.0
    %4492 = vmatprep.subr.mxu0 0.0
    %4493 = vmatpush1.msra.mxu0 0.0
    %4494 = vmatprep.subr.mxu0 0.0
    %4495 = vmatpush1.msra.mxu0 0.0
    %4496 = vmatprep.subr.mxu0 0.0
    %4497 = vmatpush1.msra.mxu0 0.0
    %4498 = vmatprep.subr.mxu0 0.0
    %4499 = vmatpush1.msra.mxu0 0.0
    %4500 = vmatprep.subr.mxu0 0.0
    %4501 = vmatpush1.msra.mxu0 0.0
    %4502 = vmatprep.subr.mxu0 0.0
    %4503 = vmatpush1.msra.mxu0 0.0
    %4504 = vmatprep.subr.mxu0 0.0
    %4505 = vmatpush1.msra.mxu0 0.0
    %4506 = vmatprep.mubr.f32.mxu0 0.0
    %4507 = vmatmul.mubr.f32.gmra.mrb[0].mxu0 %v1521
    %v4508 = vpop.f32.mrb[0].mxu0
    %v4509 = vadd.f32 0.0, %v4508
    %v4510 = vpop.f32.mrb[0].mxu0
    %4511 = vmatprep.mubr.f32.mxu0 0.0
    %4512 = vmatmul.mubr.f32.gmra.mrb[0].mxu0 %v1524
    %v4513 = vpop.f32.mrb[0].mxu0
    %v4514 = vadd.f32 0.0, %v4513
    %v4515 = vpop.f32.mrb[0].mxu0
    %4516 = vmatprep.mubr.f32.mxu0 0.0
    %4517 = vmatmul.mubr.f32.gmra.mrb[0].mxu0 %v1527
    %v4518 = vpop.f32.mrb[0].mxu0
    %v4519 = vadd.f32 0.0, %v4518
    %v4520 = vpop.f32.mrb[0].mxu0
    %4521 = vdwg.mxu0
    %4525 = vrot.lane.b32.xlu0 %v4509, 96
    %v4526 = vpop.permute.xlu0 %4525
    %4527 = vrot.lane.b32.xlu0 %v4514, 96
    %v4528 = vpop.permute.xlu0 %4527
    %4529 = vrot.lane.b32.xlu0 %v4519, 96
    %v4530 = vpop.permute.xlu0 %4529
    %v4532 = vsel %vm243, %v4434, 0
    %v4535 = vsel %vm243, %v4439, 0
    %v4537 = vsel %vm243, %v4526, 0
    %v4539 = vsel %vm243, %v4528, 0
    %v4541 = vsel %vm243, %v4530, 0
    %4543 = vmatprep.subr.mxu0 0.0
    %4544 = vmatpush1.xpose.msra.mxu0 %v4537
    %4545 = vmatprep.subr.mxu0 0.0
    %4546 = vmatpush1.xpose.msra.mxu0 %v4539
    %4547 = vmatprep.subr.mxu0 0.0
    %4548 = vmatpush1.xpose.msra.mxu0 %v4541
    %4549 = vmatprep.subr.mxu0 0.0
    %4550 = vmatpush1.xpose.msra.mxu0 0.0
    %4551 = vmatprep.subr.mxu0 0.0
    %4552 = vmatpush1.xpose.msra.mxu0 0.0
    %4553 = vmatprep.subr.mxu0 0.0
    %4554 = vmatpush1.xpose.msra.mxu0 0.0
    %4555 = vmatprep.subr.mxu0 0.0
    %4556 = vmatpush1.xpose.msra.mxu0 0.0
    %4557 = vmatprep.subr.mxu0 0.0
    %4558 = vmatpush1.xpose.msra.mxu0 0.0
    %4559 = vmatprep.subr.mxu0 0.0
    %4560 = vmatpush1.xpose.msra.mxu0 0.0
    %4561 = vmatprep.subr.mxu0 0.0
    %4562 = vmatpush1.xpose.msra.mxu0 0.0
    %4563 = vmatprep.subr.mxu0 0.0
    %4564 = vmatpush1.xpose.msra.mxu0 0.0
    %4565 = vmatprep.subr.mxu0 0.0
    %4566 = vmatpush1.xpose.msra.mxu0 0.0
    %4567 = vmatprep.subr.mxu0 0.0
    %4568 = vmatpush1.xpose.msra.mxu0 0.0
    %4569 = vmatprep.subr.mxu0 0.0
    %4570 = vmatpush1.xpose.msra.mxu0 0.0
    %4571 = vmatprep.subr.mxu0 0.0
    %4572 = vmatpush1.xpose.msra.mxu0 0.0
    %4573 = vmatprep.subr.mxu0 0.0
    %4574 = vmatpush1.xpose.msra.mxu0 0.0
    %4575 = vmatprep.subr.mxu0 0.0
    %4576 = vmatpush1.xpose.msra.mxu0 0.0
    %4577 = vmatprep.subr.mxu0 0.0
    %4578 = vmatpush1.xpose.msra.mxu0 0.0
    %4579 = vmatprep.subr.mxu0 0.0
    %4580 = vmatpush1.xpose.msra.mxu0 0.0
    %4581 = vmatprep.subr.mxu0 0.0
    %4582 = vmatpush1.xpose.msra.mxu0 0.0
    %4583 = vmatprep.subr.mxu0 0.0
    %4584 = vmatpush1.xpose.msra.mxu0 0.0
    %4585 = vmatprep.subr.mxu0 0.0
    %4586 = vmatpush1.xpose.msra.mxu0 0.0
    %4587 = vmatprep.subr.mxu0 0.0
    %4588 = vmatpush1.xpose.msra.mxu0 0.0
    %4589 = vmatprep.subr.mxu0 0.0
    %4590 = vmatpush1.xpose.msra.mxu0 0.0
    %4591 = vmatprep.subr.mxu0 0.0
    %4592 = vmatpush1.xpose.msra.mxu0 0.0
    %4593 = vmatprep.subr.mxu0 0.0
    %4594 = vmatpush1.xpose.msra.mxu0 0.0
    %4595 = vmatprep.subr.mxu0 0.0
    %4596 = vmatpush1.xpose.msra.mxu0 0.0
    %4597 = vmatprep.subr.mxu0 0.0
    %4598 = vmatpush1.xpose.msra.mxu0 0.0
    %4599 = vmatprep.subr.mxu0 0.0
    %4600 = vmatpush1.xpose.msra.mxu0 0.0
    %4601 = vmatprep.subr.mxu0 0.0
    %4602 = vmatpush1.xpose.msra.mxu0 0.0
    %4603 = vmatprep.subr.mxu0 0.0
    %4604 = vmatpush1.xpose.msra.mxu0 0.0
    %4605 = vmatprep.subr.mxu0 0.0
    %4606 = vmatpush1.xpose.msra.mxu0 0.0
    %4607 = vmatprep.mubr.f32.mxu0 0.0
    %4608 = vmatmul.mubr.f32.gmra.mrb[0].mxu0 %v4532
    %v4609 = vpop.f32.mrb[0].mxu0
    %v4610 = vadd.f32 0.0, %v4609
    %v4611 = vpop.f32.mrb[0].mxu0
    %4612 = vmatprep.mubr.f32.mxu0 0.0
    %4613 = vmatmul.mubr.f32.gmra.mrb[0].mxu0 %v4535
    %v4614 = vpop.f32.mrb[0].mxu0
    %v4615 = vadd.f32 0.0, %v4614
    %v4616 = vpop.f32.mrb[0].mxu0
    %4617 = vdwg.mxu0
    %v4618 = vmul.f32 %v4610, 0.35355338
    %v4619 = vmul.f32 %v4615, 0.35355338
    %v4620 = vadd.f32 %v4618, %v108
    %v4621 = vadd.f32 %v4619, %v109
    %v4622 = vsel %vm1709, %v4620, -inf
    %4623 = vmax.xlane.f32.xlu0 %v4622
    %v4624 = vpop.xlane.xlu0 %4623
    %v4625 = vsel %vm1709, %v4621, -inf
    %4626 = vmax.xlane.f32.xlu0 %v4625
    %v4627 = vpop.xlane.xlu0 %4626
    %v4628 = vsub.f32 %v4620, %v4624
    %v4629 = vsub.f32 %v4621, %v4627
    %v4630 = vmul.f32 %v4628, 1.442695
    %v4631 = vpow.pop %v4630
    %v4632 = vmul.f32 %v4629, 1.442695
    %v4633 = vpow.pop %v4632
    %v4634 = vsel %vm1709, %v4631, 0.0
    %4635 = vadd.xlane.f32.xlu0 %v4634
    %v4636 = vpop.xlane.xlu0 %4635
    %v4637 = vsel %vm1709, %v4633, 0.0
    %4638 = vadd.xlane.f32.xlu0 %v4637
    %v4639 = vpop.xlane.xlu0 %4638
    %v4640 = vrcp.pop %v4636
    %v4641 = vmul.f32 %v4631, %v4640
    %v4642 = vrcp.pop %v4639
    %v4643 = vmul.f32 %v4633, %v4642
    %4644 = vrot.lane.b32.xlu0 %v4509, 64
    %v4645 = vpop.permute.xlu0 %4644
    %4646 = vrot.lane.b32.xlu0 %v4514, 64
    %v4647 = vpop.permute.xlu0 %4646
    %4648 = vrot.lane.b32.xlu0 %v4519, 64
    %v4649 = vpop.permute.xlu0 %4648
    %v4654 = vsel %vm1709, %v4641, 0
    %v4657 = vsel %vm1709, %v4643, 0
    %4659 = vmatprep.subr.mxu0 0.0
    %4660 = vmatpush1.msra.mxu0 %v4645
    %4661 = vmatprep.subr.mxu0 0.0
    %4662 = vmatpush1.msra.mxu0 %v4647
    %4663 = vmatprep.subr.mxu0 0.0
    %4664 = vmatpush1.msra.mxu0 %v4649
    %4665 = vmatprep.subr.mxu0 0.0
    %4666 = vmatpush1.msra.mxu0 0.0
    %4667 = vmatprep.subr.mxu0 0.0
    %4668 = vmatpush1.msra.mxu0 0.0
    %4669 = vmatprep.subr.mxu0 0.0
    %4670 = vmatpush1.msra.mxu0 0.0
    %4671 = vmatprep.subr.mxu0 0.0
    %4672 = vmatpush1.msra.mxu0 0.0
    %4673 = vmatprep.subr.mxu0 0.0
    %4674 = vmatpush1.msra.mxu0 0.0
    %4675 = vmatprep.subr.mxu0 0.0
    %4676 = vmatpush1.msra.mxu0 0.0
    %4677 = vmatprep.subr.mxu0 0.0
    %4678 = vmatpush1.msra.mxu0 0.0
    %4679 = vmatprep.subr.mxu0 0.0
    %4680 = vmatpush1.msra.mxu0 0.0
    %4681 = vmatprep.subr.mxu0 0.0
    %4682 = vmatpush1.msra.mxu0 0.0
    %4683 = vmatprep.subr.mxu0 0.0
    %4684 = vmatpush1.msra.mxu0 0.0
    %4685 = vmatprep.subr.mxu0 0.0
    %4686 = vmatpush1.msra.mxu0 0.0
    %4687 = vmatprep.subr.mxu0 0.0
    %4688 = vmatpush1.msra.mxu0 0.0
    %4689 = vmatprep.subr.mxu0 0.0
    %4690 = vmatpush1.msra.mxu0 0.0
    %4691 = vmatprep.subr.mxu0 0.0
    %4692 = vmatpush1.msra.mxu0 0.0
    %4693 = vmatprep.subr.mxu0 0.0
    %4694 = vmatpush1.msra.mxu0 0.0
    %4695 = vmatprep.subr.mxu0 0.0
    %4696 = vmatpush1.msra.mxu0 0.0
    %4697 = vmatprep.subr.mxu0 0.0
    %4698 = vmatpush1.msra.mxu0 0.0
    %4699 = vmatprep.subr.mxu0 0.0
    %4700 = vmatpush1.msra.mxu0 0.0
    %4701 = vmatprep.subr.mxu0 0.0
    %4702 = vmatpush1.msra.mxu0 0.0
    %4703 = vmatprep.subr.mxu0 0.0
    %4704 = vmatpush1.msra.mxu0 0.0
    %4705 = vmatprep.subr.mxu0 0.0
    %4706 = vmatpush1.msra.mxu0 0.0
    %4707 = vmatprep.subr.mxu0 0.0
    %4708 = vmatpush1.msra.mxu0 0.0
    %4709 = vmatprep.subr.mxu0 0.0
    %4710 = vmatpush1.msra.mxu0 0.0
    %4711 = vmatprep.subr.mxu0 0.0
    %4712 = vmatpush1.msra.mxu0 0.0
    %4713 = vmatprep.subr.mxu0 0.0
    %4714 = vmatpush1.msra.mxu0 0.0
    %4715 = vmatprep.subr.mxu0 0.0
    %4716 = vmatpush1.msra.mxu0 0.0
    %4717 = vmatprep.subr.mxu0 0.0
    %4718 = vmatpush1.msra.mxu0 0.0
    %4719 = vmatprep.subr.mxu0 0.0
    %4720 = vmatpush1.msra.mxu0 0.0
    %4721 = vmatprep.subr.mxu0 0.0
    %4722 = vmatpush1.msra.mxu0 0.0
    %4723 = vmatprep.mubr.f32.mxu0 0.0
    %4724 = vmatmul.mubr.f32.gmra.mrb[0].mxu0 %v4654
    %v4725 = vpop.f32.mrb[0].mxu0
    %v4726 = vadd.f32 0.0, %v4725
    %v4727 = vpop.f32.mrb[0].mxu0
    %4728 = vmatprep.mubr.f32.mxu0 0.0
    %4729 = vmatmul.mubr.f32.gmra.mrb[0].mxu0 %v4657
    %v4730 = vpop.f32.mrb[0].mxu0
    %v4731 = vadd.f32 0.0, %v4730
    %v4732 = vpop.f32.mrb[0].mxu0
    %4733 = vdwg.mxu0
    %s4734 = scalar_lea.vmem [#allocation10], 96
    %v4735 = vld [vmem:[%s4734] sm:$0xff]
    %4736 = vrot.lane.b32.xlu0 %v4434, 120
    %v4737 = vpop.permute.xlu0 %4736
    %4738 = vrot.lane.b32.xlu0 %v4439, 120
    %v4739 = vpop.permute.xlu0 %4738
    %4740 = vrot.lane.b32.xlu0 %v4509, 88
    %v4741 = vpop.permute.xlu0 %4740
    %4742 = vrot.lane.b32.xlu0 %v4514, 88
    %v4743 = vpop.permute.xlu0 %4742
    %4744 = vrot.lane.b32.xlu0 %v4519, 88
    %v4745 = vpop.permute.xlu0 %4744
    %v4746 = vsel %vm243, %v4737, 0
    %v4748 = vsel %vm243, %v4739, 0
    %v4750 = vsel %vm243, %v4741, 0
    %v4752 = vsel %vm243, %v4743, 0
    %v4754 = vsel %vm243, %v4745, 0
    %4756 = vmatprep.subr.mxu0 0.0
    %4757 = vmatpush1.xpose.msra.mxu0 %v4750
    %4758 = vmatprep.subr.mxu0 0.0
    %4759 = vmatpush1.xpose.msra.mxu0 %v4752
    %4760 = vmatprep.subr.mxu0 0.0
    %4761 = vmatpush1.xpose.msra.mxu0 %v4754
    %4762 = vmatprep.subr.mxu0 0.0
    %4763 = vmatpush1.xpose.msra.mxu0 0.0
    %4764 = vmatprep.subr.mxu0 0.0
    %4765 = vmatpush1.xpose.msra.mxu0 0.0
    %4766 = vmatprep.subr.mxu0 0.0
    %4767 = vmatpush1.xpose.msra.mxu0 0.0
    %4768 = vmatprep.subr.mxu0 0.0
    %4769 = vmatpush1.xpose.msra.mxu0 0.0
    %4770 = vmatprep.subr.mxu0 0.0
    %4771 = vmatpush1.xpose.msra.mxu0 0.0
    %4772 = vmatprep.subr.mxu0 0.0
    %4773 = vmatpush1.xpose.msra.mxu0 0.0
    %4774 = vmatprep.subr.mxu0 0.0
    %4775 = vmatpush1.xpose.msra.mxu0 0.0
    %4776 = vmatprep.subr.mxu0 0.0
    %4777 = vmatpush1.xpose.msra.mxu0 0.0
    %4778 = vmatprep.subr.mxu0 0.0
    %4779 = vmatpush1.xpose.msra.mxu0 0.0
    %4780 = vmatprep.subr.mxu0 0.0
    %4781 = vmatpush1.xpose.msra.mxu0 0.0
    %4782 = vmatprep.subr.mxu0 0.0
    %4783 = vmatpush1.xpose.msra.mxu0 0.0
    %4784 = vmatprep.subr.mxu0 0.0
    %4785 = vmatpush1.xpose.msra.mxu0 0.0
    %4786 = vmatprep.subr.mxu0 0.0
    %4787 = vmatpush1.xpose.msra.mxu0 0.0
    %4788 = vmatprep.subr.mxu0 0.0
    %4789 = vmatpush1.xpose.msra.mxu0 0.0
    %4790 = vmatprep.subr.mxu0 0.0
    %4791 = vmatpush1.xpose.msra.mxu0 0.0
    %4792 = vmatprep.subr.mxu0 0.0
    %4793 = vmatpush1.xpose.msra.mxu0 0.0
    %4794 = vmatprep.subr.mxu0 0.0
    %4795 = vmatpush1.xpose.msra.mxu0 0.0
    %4796 = vmatprep.subr.mxu0 0.0
    %4797 = vmatpush1.xpose.msra.mxu0 0.0
    %4798 = vmatprep.subr.mxu0 0.0
    %4799 = vmatpush1.xpose.msra.mxu0 0.0
    %4800 = vmatprep.subr.mxu0 0.0
    %4801 = vmatpush1.xpose.msra.mxu0 0.0
    %4802 = vmatprep.subr.mxu0 0.0
    %4803 = vmatpush1.xpose.msra.mxu0 0.0
    %4804 = vmatprep.subr.mxu0 0.0
    %4805 = vmatpush1.xpose.msra.mxu0 0.0
    %4806 = vmatprep.subr.mxu0 0.0
    %4807 = vmatpush1.xpose.msra.mxu0 0.0
    %4808 = vmatprep.subr.mxu0 0.0
    %4809 = vmatpush1.xpose.msra.mxu0 0.0
    %4810 = vmatprep.subr.mxu0 0.0
    %4811 = vmatpush1.xpose.msra.mxu0 0.0
    %4812 = vmatprep.subr.mxu0 0.0
    %4813 = vmatpush1.xpose.msra.mxu0 0.0
    %4814 = vmatprep.subr.mxu0 0.0
    %4815 = vmatpush1.xpose.msra.mxu0 0.0
    %4816 = vmatprep.subr.mxu0 0.0
    %4817 = vmatpush1.xpose.msra.mxu0 0.0
    %4818 = vmatprep.subr.mxu0 0.0
    %4819 = vmatpush1.xpose.msra.mxu0 0.0
    %4820 = vmatprep.mubr.f32.mxu0 0.0
    %4821 = vmatmul.mubr.f32.gmra.mrb[0].mxu0 %v4746
    %v4822 = vpop.f32.mrb[0].mxu0
    %v4823 = vadd.f32 0.0, %v4822
    %v4824 = vpop.f32.mrb[0].mxu0
    %4825 = vmatprep.mubr.f32.mxu0 0.0
    %4826 = vmatmul.mubr.f32.gmra.mrb[0].mxu0 %v4748
    %v4827 = vpop.f32.mrb[0].mxu0
    %v4828 = vadd.f32 0.0, %v4827
    %v4829 = vpop.f32.mrb[0].mxu0
    %4830 = vdwg.mxu0
    %v4831 = vmul.f32 %v4823, 0.35355338
    %v4832 = vmul.f32 %v4828, 0.35355338
    %v4833 = vadd.f32 %v4831, %v108
    %v4834 = vadd.f32 %v4832, %v109
    %v4835 = vsel %vm1709, %v4833, -inf
    %4836 = vmax.xlane.f32.xlu0 %v4835
    %v4837 = vpop.xlane.xlu0 %4836
    %v4838 = vsel %vm1709, %v4834, -inf
    %4839 = vmax.xlane.f32.xlu0 %v4838
    %v4840 = vpop.xlane.xlu0 %4839
    %v4841 = vsub.f32 %v4833, %v4837
    %v4842 = vsub.f32 %v4834, %v4840
    %v4843 = vmul.f32 %v4841, 1.442695
    %v4844 = vpow.pop %v4843
    %v4845 = vmul.f32 %v4842, 1.442695
    %v4846 = vpow.pop %v4845
    %v4847 = vsel %vm1709, %v4844, 0.0
    %4848 = vadd.xlane.f32.xlu0 %v4847
    %v4849 = vpop.xlane.xlu0 %4848
    %v4850 = vsel %vm1709, %v4846, 0.0
    %4851 = vadd.xlane.f32.xlu0 %v4850
    %v4852 = vpop.xlane.xlu0 %4851
    %v4853 = vrcp.pop %v4849
    %v4854 = vmul.f32 %v4844, %v4853
    %v4855 = vrcp.pop %v4852
    %v4856 = vmul.f32 %v4846, %v4855
    %4857 = vrot.lane.b32.xlu0 %v4509, 56
    %v4858 = vpop.permute.xlu0 %4857
    %4859 = vrot.lane.b32.xlu0 %v4514, 56
    %v4860 = vpop.permute.xlu0 %4859
    %4861 = vrot.lane.b32.xlu0 %v4519, 56
    %v4862 = vpop.permute.xlu0 %4861
    %v4867 = vsel %vm1709, %v4854, 0
    %v4870 = vsel %vm1709, %v4856, 0
    %4872 = vmatprep.subr.mxu0 0.0
    %4873 = vmatpush1.msra.mxu0 %v4858
    %4874 = vmatprep.subr.mxu0 0.0
    %4875 = vmatpush1.msra.mxu0 %v4860
    %4876 = vmatprep.subr.mxu0 0.0
    %4877 = vmatpush1.msra.mxu0 %v4862
    %4878 = vmatprep.subr.mxu0 0.0
    %4879 = vmatpush1.msra.mxu0 0.0
    %4880 = vmatprep.subr.mxu0 0.0
    %4881 = vmatpush1.msra.mxu0 0.0
    %4882 = vmatprep.subr.mxu0 0.0
    %4883 = vmatpush1.msra.mxu0 0.0
    %4884 = vmatprep.subr.mxu0 0.0
    %4885 = vmatpush1.msra.mxu0 0.0
    %4886 = vmatprep.subr.mxu0 0.0
    %4887 = vmatpush1.msra.mxu0 0.0
    %4888 = vmatprep.subr.mxu0 0.0
    %4889 = vmatpush1.msra.mxu0 0.0
    %4890 = vmatprep.subr.mxu0 0.0
    %4891 = vmatpush1.msra.mxu0 0.0
    %4892 = vmatprep.subr.mxu0 0.0
    %4893 = vmatpush1.msra.mxu0 0.0
    %4894 = vmatprep.subr.mxu0 0.0
    %4895 = vmatpush1.msra.mxu0 0.0
    %4896 = vmatprep.subr.mxu0 0.0
    %4897 = vmatpush1.msra.mxu0 0.0
    %4898 = vmatprep.subr.mxu0 0.0
    %4899 = vmatpush1.msra.mxu0 0.0
    %4900 = vmatprep.subr.mxu0 0.0
    %4901 = vmatpush1.msra.mxu0 0.0
    %4902 = vmatprep.subr.mxu0 0.0
    %4903 = vmatpush1.msra.mxu0 0.0
    %4904 = vmatprep.subr.mxu0 0.0
    %4905 = vmatpush1.msra.mxu0 0.0
    %4906 = vmatprep.subr.mxu0 0.0
    %4907 = vmatpush1.msra.mxu0 0.0
    %4908 = vmatprep.subr.mxu0 0.0
    %4909 = vmatpush1.msra.mxu0 0.0
    %4910 = vmatprep.subr.mxu0 0.0
    %4911 = vmatpush1.msra.mxu0 0.0
    %4912 = vmatprep.subr.mxu0 0.0
    %4913 = vmatpush1.msra.mxu0 0.0
    %4914 = vmatprep.subr.mxu0 0.0
    %4915 = vmatpush1.msra.mxu0 0.0
    %4916 = vmatprep.subr.mxu0 0.0
    %4917 = vmatpush1.msra.mxu0 0.0
    %4918 = vmatprep.subr.mxu0 0.0
    %4919 = vmatpush1.msra.mxu0 0.0
    %4920 = vmatprep.subr.mxu0 0.0
    %4921 = vmatpush1.msra.mxu0 0.0
    %4922 = vmatprep.subr.mxu0 0.0
    %4923 = vmatpush1.msra.mxu0 0.0
    %4924 = vmatprep.subr.mxu0 0.0
    %4925 = vmatpush1.msra.mxu0 0.0
    %4926 = vmatprep.subr.mxu0 0.0
    %4927 = vmatpush1.msra.mxu0 0.0
    %4928 = vmatprep.subr.mxu0 0.0
    %4929 = vmatpush1.msra.mxu0 0.0
    %4930 = vmatprep.subr.mxu0 0.0
    %4931 = vmatpush1.msra.mxu0 0.0
    %4932 = vmatprep.subr.mxu0 0.0
    %4933 = vmatpush1.msra.mxu0 0.0
    %4934 = vmatprep.subr.mxu0 0.0
    %4935 = vmatpush1.msra.mxu0 0.0
    %4936 = vmatprep.mubr.f32.mxu0 0.0
    %4937 = vmatmul.mubr.f32.gmra.mrb[0].mxu0 %v4867
    %v4938 = vpop.f32.mrb[0].mxu0
    %v4939 = vadd.f32 0.0, %v4938
    %v4940 = vpop.f32.mrb[0].mxu0
    %4941 = vmatprep.mubr.f32.mxu0 0.0
    %4942 = vmatmul.mubr.f32.gmra.mrb[0].mxu0 %v4870
    %v4943 = vpop.f32.mrb[0].mxu0
    %v4944 = vadd.f32 0.0, %v4943
    %v4945 = vpop.f32.mrb[0].mxu0
    %4946 = vdwg.mxu0
    %v4947 = vld [vmem:[%s4734 + $0x8] sm:$0xff]
    %v4949 = vsel %vm243, %v4939, 0
    %v4952 = vsel %vm243, %v4944, 0
    %4954 = vmatprep.subr.mxu0 0.0
    %4955 = vmatpush1.msra.mxu0 %v4947
    %4956 = vmatprep.subr.mxu0 0.0
    %4957 = vmatpush1.msra.mxu0 0.0
    %4958 = vmatprep.subr.mxu0 0.0
    %4959 = vmatpush1.msra.mxu0 0.0
    %4960 = vmatprep.subr.mxu0 0.0
    %4961 = vmatpush1.msra.mxu0 0.0
    %4962 = vmatprep.subr.mxu0 0.0
    %4963 = vmatpush1.msra.mxu0 0.0
    %4964 = vmatprep.subr.mxu0 0.0
    %4965 = vmatpush1.msra.mxu0 0.0
    %4966 = vmatprep.subr.mxu0 0.0
    %4967 = vmatpush1.msra.mxu0 0.0
    %4968 = vmatprep.subr.mxu0 0.0
    %4969 = vmatpush1.msra.mxu0 0.0
    %4970 = vmatprep.subr.mxu0 0.0
    %4971 = vmatpush1.msra.mxu0 0.0
    %4972 = vmatprep.subr.mxu0 0.0
    %4973 = vmatpush1.msra.mxu0 0.0
    %4974 = vmatprep.subr.mxu0 0.0
    %4975 = vmatpush1.msra.mxu0 0.0
    %4976 = vmatprep.subr.mxu0 0.0
    %4977 = vmatpush1.msra.mxu0 0.0
    %4978 = vmatprep.subr.mxu0 0.0
    %4979 = vmatpush1.msra.mxu0 0.0
    %4980 = vmatprep.subr.mxu0 0.0
    %4981 = vmatpush1.msra.mxu0 0.0
    %4982 = vmatprep.subr.mxu0 0.0
    %4983 = vmatpush1.msra.mxu0 0.0
    %4984 = vmatprep.subr.mxu0 0.0
    %4985 = vmatpush1.msra.mxu0 0.0
    %4986 = vmatprep.subr.mxu0 0.0
    %4987 = vmatpush1.msra.mxu0 0.0
    %4988 = vmatprep.subr.mxu0 0.0
    %4989 = vmatpush1.msra.mxu0 0.0
    %4990 = vmatprep.subr.mxu0 0.0
    %4991 = vmatpush1.msra.mxu0 0.0
    %4992 = vmatprep.subr.mxu0 0.0
    %4993 = vmatpush1.msra.mxu0 0.0
    %4994 = vmatprep.subr.mxu0 0.0
    %4995 = vmatpush1.msra.mxu0 0.0
    %4996 = vmatprep.subr.mxu0 0.0
    %4997 = vmatpush1.msra.mxu0 0.0
    %4998 = vmatprep.subr.mxu0 0.0
    %4999 = vmatpush1.msra.mxu0 0.0
    %5000 = vmatprep.subr.mxu0 0.0
    %5001 = vmatpush1.msra.mxu0 0.0
    %5002 = vmatprep.subr.mxu0 0.0
    %5003 = vmatpush1.msra.mxu0 0.0
    %5004 = vmatprep.subr.mxu0 0.0
    %5005 = vmatpush1.msra.mxu0 0.0
    %5006 = vmatprep.subr.mxu0 0.0
    %5007 = vmatpush1.msra.mxu0 0.0
    %5008 = vmatprep.subr.mxu0 0.0
    %5009 = vmatpush1.msra.mxu0 0.0
    %5010 = vmatprep.subr.mxu0 0.0
    %5011 = vmatpush1.msra.mxu0 0.0
    %5012 = vmatprep.subr.mxu0 0.0
    %5013 = vmatpush1.msra.mxu0 0.0
    %5014 = vmatprep.subr.mxu0 0.0
    %5015 = vmatpush1.msra.mxu0 0.0
    %5016 = vmatprep.subr.mxu0 0.0
    %5017 = vmatpush1.msra.mxu0 0.0
    %5018 = vmatprep.mubr.f32.mxu0 0.0
    %5019 = vmatmul.mubr.f32.gmra.mrb[0].mxu0 %v4949
    %v5020 = vpop.f32.mrb[0].mxu0
    %v5021 = vadd.f32 0.0, %v5020
    %v5022 = vpop.f32.mrb[0].mxu0
    %5023 = vmatprep.mubr.f32.mxu0 0.0
    %5024 = vmatmul.mubr.f32.gmra.mrb[0].mxu0 %v4952
    %v5025 = vpop.f32.mrb[0].mxu0
    %v5026 = vadd.f32 0.0, %v5025
    %v5027 = vpop.f32.mrb[0].mxu0
    %5028 = vdwg.mxu0
    %v5030 = vsel %vm243, %v4726, 0
    %v5033 = vsel %vm243, %v4731, 0
    %5035 = vmatprep.subr.mxu0 0.0
    %5036 = vmatpush1.msra.mxu0 %v4735
    %5037 = vmatprep.subr.mxu0 0.0
    %5038 = vmatpush1.msra.mxu0 0.0
    %5039 = vmatprep.subr.mxu0 0.0
    %5040 = vmatpush1.msra.mxu0 0.0
    %5041 = vmatprep.subr.mxu0 0.0
    %5042 = vmatpush1.msra.mxu0 0.0
    %5043 = vmatprep.subr.mxu0 0.0
    %5044 = vmatpush1.msra.mxu0 0.0
    %5045 = vmatprep.subr.mxu0 0.0
    %5046 = vmatpush1.msra.mxu0 0.0
    %5047 = vmatprep.subr.mxu0 0.0
    %5048 = vmatpush1.msra.mxu0 0.0
    %5049 = vmatprep.subr.mxu0 0.0
    %5050 = vmatpush1.msra.mxu0 0.0
    %5051 = vmatprep.subr.mxu0 0.0
    %5052 = vmatpush1.msra.mxu0 0.0
    %5053 = vmatprep.subr.mxu0 0.0
    %5054 = vmatpush1.msra.mxu0 0.0
    %5055 = vmatprep.subr.mxu0 0.0
    %5056 = vmatpush1.msra.mxu0 0.0
    %5057 = vmatprep.subr.mxu0 0.0
    %5058 = vmatpush1.msra.mxu0 0.0
    %5059 = vmatprep.subr.mxu0 0.0
    %5060 = vmatpush1.msra.mxu0 0.0
    %5061 = vmatprep.subr.mxu0 0.0
    %5062 = vmatpush1.msra.mxu0 0.0
    %5063 = vmatprep.subr.mxu0 0.0
    %5064 = vmatpush1.msra.mxu0 0.0
    %5065 = vmatprep.subr.mxu0 0.0
    %5066 = vmatpush1.msra.mxu0 0.0
    %5067 = vmatprep.subr.mxu0 0.0
    %5068 = vmatpush1.msra.mxu0 0.0
    %5069 = vmatprep.subr.mxu0 0.0
    %5070 = vmatpush1.msra.mxu0 0.0
    %5071 = vmatprep.subr.mxu0 0.0
    %5072 = vmatpush1.msra.mxu0 0.0
    %5073 = vmatprep.subr.mxu0 0.0
    %5074 = vmatpush1.msra.mxu0 0.0
    %5075 = vmatprep.subr.mxu0 0.0
    %5076 = vmatpush1.msra.mxu0 0.0
    %5077 = vmatprep.subr.mxu0 0.0
    %5078 = vmatpush1.msra.mxu0 0.0
    %5079 = vmatprep.subr.mxu0 0.0
    %5080 = vmatpush1.msra.mxu0 0.0
    %5081 = vmatprep.subr.mxu0 0.0
    %5082 = vmatpush1.msra.mxu0 0.0
    %5083 = vmatprep.subr.mxu0 0.0
    %5084 = vmatpush1.msra.mxu0 0.0
    %5085 = vmatprep.subr.mxu0 0.0
    %5086 = vmatpush1.msra.mxu0 0.0
    %5087 = vmatprep.subr.mxu0 0.0
    %5088 = vmatpush1.msra.mxu0 0.0
    %5089 = vmatprep.subr.mxu0 0.0
    %5090 = vmatpush1.msra.mxu0 0.0
    %5091 = vmatprep.subr.mxu0 0.0
    %5092 = vmatpush1.msra.mxu0 0.0
    %5093 = vmatprep.subr.mxu0 0.0
    %5094 = vmatpush1.msra.mxu0 0.0
    %5095 = vmatprep.subr.mxu0 0.0
    %5096 = vmatpush1.msra.mxu0 0.0
    %5097 = vmatprep.subr.mxu0 0.0
    %5098 = vmatpush1.msra.mxu0 0.0
    %5099 = vmatprep.mubr.f32.mxu0 0.0
    %5100 = vmatmul.mubr.f32.gmra.mrb[0].mxu0 %v5030
    %v5101 = vpop.f32.mrb[0].mxu0
    %v5102 = vadd.f32 %v5021, %v5101
    %v5103 = vpop.f32.mrb[0].mxu0
    %5104 = vmatprep.mubr.f32.mxu0 0.0
    %5105 = vmatmul.mubr.f32.gmra.mrb[0].mxu0 %v5033
    %v5106 = vpop.f32.mrb[0].mxu0
    %v5107 = vadd.f32 %v5026, %v5106
    %v5108 = vpop.f32.mrb[0].mxu0
    %5109 = vdwg.mxu0
    %5110 = vrot.lane.b32.xlu0 %v4434, 112
    %v5111 = vpop.permute.xlu0 %5110
    %5112 = vrot.lane.b32.xlu0 %v4439, 112
    %v5113 = vpop.permute.xlu0 %5112
    %5114 = vrot.lane.b32.xlu0 %v4509, 80
    %v5115 = vpop.permute.xlu0 %5114
    %5116 = vrot.lane.b32.xlu0 %v4514, 80
    %v5117 = vpop.permute.xlu0 %5116
    %5118 = vrot.lane.b32.xlu0 %v4519, 80
    %v5119 = vpop.permute.xlu0 %5118
    %v5120 = vsel %vm243, %v5111, 0
    %v5122 = vsel %vm243, %v5113, 0
    %v5124 = vsel %vm243, %v5115, 0
    %v5126 = vsel %vm243, %v5117, 0
    %v5128 = vsel %vm243, %v5119, 0
    %5130 = vmatprep.subr.mxu0 0.0
    %5131 = vmatpush1.xpose.msra.mxu0 %v5124
    %5132 = vmatprep.subr.mxu0 0.0
    %5133 = vmatpush1.xpose.msra.mxu0 %v5126
    %5134 = vmatprep.subr.mxu0 0.0
    %5135 = vmatpush1.xpose.msra.mxu0 %v5128
    %5136 = vmatprep.subr.mxu0 0.0
    %5137 = vmatpush1.xpose.msra.mxu0 0.0
    %5138 = vmatprep.subr.mxu0 0.0
    %5139 = vmatpush1.xpose.msra.mxu0 0.0
    %5140 = vmatprep.subr.mxu0 0.0
    %5141 = vmatpush1.xpose.msra.mxu0 0.0
    %5142 = vmatprep.subr.mxu0 0.0
    %5143 = vmatpush1.xpose.msra.mxu0 0.0
    %5144 = vmatprep.subr.mxu0 0.0
    %5145 = vmatpush1.xpose.msra.mxu0 0.0
    %5146 = vmatprep.subr.mxu0 0.0
    %5147 = vmatpush1.xpose.msra.mxu0 0.0
    %5148 = vmatprep.subr.mxu0 0.0
    %5149 = vmatpush1.xpose.msra.mxu0 0.0
    %5150 = vmatprep.subr.mxu0 0.0
    %5151 = vmatpush1.xpose.msra.mxu0 0.0
    %5152 = vmatprep.subr.mxu0 0.0
    %5153 = vmatpush1.xpose.msra.mxu0 0.0
    %5154 = vmatprep.subr.mxu0 0.0
    %5155 = vmatpush1.xpose.msra.mxu0 0.0
    %5156 = vmatprep.subr.mxu0 0.0
    %5157 = vmatpush1.xpose.msra.mxu0 0.0
    %5158 = vmatprep.subr.mxu0 0.0
    %5159 = vmatpush1.xpose.msra.mxu0 0.0
    %5160 = vmatprep.subr.mxu0 0.0
    %5161 = vmatpush1.xpose.msra.mxu0 0.0
    %5162 = vmatprep.subr.mxu0 0.0
    %5163 = vmatpush1.xpose.msra.mxu0 0.0
    %5164 = vmatprep.subr.mxu0 0.0
    %5165 = vmatpush1.xpose.msra.mxu0 0.0
    %5166 = vmatprep.subr.mxu0 0.0
    %5167 = vmatpush1.xpose.msra.mxu0 0.0
    %5168 = vmatprep.subr.mxu0 0.0
    %5169 = vmatpush1.xpose.msra.mxu0 0.0
    %5170 = vmatprep.subr.mxu0 0.0
    %5171 = vmatpush1.xpose.msra.mxu0 0.0
    %5172 = vmatprep.subr.mxu0 0.0
    %5173 = vmatpush1.xpose.msra.mxu0 0.0
    %5174 = vmatprep.subr.mxu0 0.0
    %5175 = vmatpush1.xpose.msra.mxu0 0.0
    %5176 = vmatprep.subr.mxu0 0.0
    %5177 = vmatpush1.xpose.msra.mxu0 0.0
    %5178 = vmatprep.subr.mxu0 0.0
    %5179 = vmatpush1.xpose.msra.mxu0 0.0
    %5180 = vmatprep.subr.mxu0 0.0
    %5181 = vmatpush1.xpose.msra.mxu0 0.0
    %5182 = vmatprep.subr.mxu0 0.0
    %5183 = vmatpush1.xpose.msra.mxu0 0.0
    %5184 = vmatprep.subr.mxu0 0.0
    %5185 = vmatpush1.xpose.msra.mxu0 0.0
    %5186 = vmatprep.subr.mxu0 0.0
    %5187 = vmatpush1.xpose.msra.mxu0 0.0
    %5188 = vmatprep.subr.mxu0 0.0
    %5189 = vmatpush1.xpose.msra.mxu0 0.0
    %5190 = vmatprep.subr.mxu0 0.0
    %5191 = vmatpush1.xpose.msra.mxu0 0.0
    %5192 = vmatprep.subr.mxu0 0.0
    %5193 = vmatpush1.xpose.msra.mxu0 0.0
    %5194 = vmatprep.mubr.f32.mxu0 0.0
    %5195 = vmatmul.mubr.f32.gmra.mrb[0].mxu0 %v5120
    %v5196 = vpop.f32.mrb[0].mxu0
    %v5197 = vadd.f32 0.0, %v5196
    %v5198 = vpop.f32.mrb[0].mxu0
    %5199 = vmatprep.mubr.f32.mxu0 0.0
    %5200 = vmatmul.mubr.f32.gmra.mrb[0].mxu0 %v5122
    %v5201 = vpop.f32.mrb[0].mxu0
    %v5202 = vadd.f32 0.0, %v5201
    %v5203 = vpop.f32.mrb[0].mxu0
    %5204 = vdwg.mxu0
    %v5205 = vmul.f32 %v5197, 0.35355338
    %v5206 = vmul.f32 %v5202, 0.35355338
    %v5207 = vadd.f32 %v5205, %v108
    %v5208 = vadd.f32 %v5206, %v109
    %v5209 = vsel %vm1709, %v5207, -inf
    %5210 = vmax.xlane.f32.xlu0 %v5209
    %v5211 = vpop.xlane.xlu0 %5210
    %v5212 = vsel %vm1709, %v5208, -inf
    %5213 = vmax.xlane.f32.xlu0 %v5212
    %v5214 = vpop.xlane.xlu0 %5213
    %v5215 = vsub.f32 %v5207, %v5211
    %v5216 = vsub.f32 %v5208, %v5214
    %v5217 = vmul.f32 %v5215, 1.442695
    %v5218 = vpow.pop %v5217
    %v5219 = vmul.f32 %v5216, 1.442695
    %v5220 = vpow.pop %v5219
    %v5221 = vsel %vm1709, %v5218, 0.0
    %5222 = vadd.xlane.f32.xlu0 %v5221
    %v5223 = vpop.xlane.xlu0 %5222
    %v5224 = vsel %vm1709, %v5220, 0.0
    %5225 = vadd.xlane.f32.xlu0 %v5224
    %v5226 = vpop.xlane.xlu0 %5225
    %v5227 = vrcp.pop %v5223
    %v5228 = vmul.f32 %v5218, %v5227
    %v5229 = vrcp.pop %v5226
    %v5230 = vmul.f32 %v5220, %v5229
    %5231 = vrot.lane.b32.xlu0 %v4509, 48
    %v5232 = vpop.permute.xlu0 %5231
    %5233 = vrot.lane.b32.xlu0 %v4514, 48
    %v5234 = vpop.permute.xlu0 %5233
    %5235 = vrot.lane.b32.xlu0 %v4519, 48
    %v5236 = vpop.permute.xlu0 %5235
    %v5241 = vsel %vm1709, %v5228, 0
    %v5244 = vsel %vm1709, %v5230, 0
    %5246 = vmatprep.subr.mxu0 0.0
    %5247 = vmatpush1.msra.mxu0 %v5232
    %5248 = vmatprep.subr.mxu0 0.0
    %5249 = vmatpush1.msra.mxu0 %v5234
    %5250 = vmatprep.subr.mxu0 0.0
    %5251 = vmatpush1.msra.mxu0 %v5236
    %5252 = vmatprep.subr.mxu0 0.0
    %5253 = vmatpush1.msra.mxu0 0.0
    %5254 = vmatprep.subr.mxu0 0.0
    %5255 = vmatpush1.msra.mxu0 0.0
    %5256 = vmatprep.subr.mxu0 0.0
    %5257 = vmatpush1.msra.mxu0 0.0
    %5258 = vmatprep.subr.mxu0 0.0
    %5259 = vmatpush1.msra.mxu0 0.0
    %5260 = vmatprep.subr.mxu0 0.0
    %5261 = vmatpush1.msra.mxu0 0.0
    %5262 = vmatprep.subr.mxu0 0.0
    %5263 = vmatpush1.msra.mxu0 0.0
    %5264 = vmatprep.subr.mxu0 0.0
    %5265 = vmatpush1.msra.mxu0 0.0
    %5266 = vmatprep.subr.mxu0 0.0
    %5267 = vmatpush1.msra.mxu0 0.0
    %5268 = vmatprep.subr.mxu0 0.0
    %5269 = vmatpush1.msra.mxu0 0.0
    %5270 = vmatprep.subr.mxu0 0.0
    %5271 = vmatpush1.msra.mxu0 0.0
    %5272 = vmatprep.subr.mxu0 0.0
    %5273 = vmatpush1.msra.mxu0 0.0
    %5274 = vmatprep.subr.mxu0 0.0
    %5275 = vmatpush1.msra.mxu0 0.0
    %5276 = vmatprep.subr.mxu0 0.0
    %5277 = vmatpush1.msra.mxu0 0.0
    %5278 = vmatprep.subr.mxu0 0.0
    %5279 = vmatpush1.msra.mxu0 0.0
    %5280 = vmatprep.subr.mxu0 0.0
    %5281 = vmatpush1.msra.mxu0 0.0
    %5282 = vmatprep.subr.mxu0 0.0
    %5283 = vmatpush1.msra.mxu0 0.0
    %5284 = vmatprep.subr.mxu0 0.0
    %5285 = vmatpush1.msra.mxu0 0.0
    %5286 = vmatprep.subr.mxu0 0.0
    %5287 = vmatpush1.msra.mxu0 0.0
    %5288 = vmatprep.subr.mxu0 0.0
    %5289 = vmatpush1.msra.mxu0 0.0
    %5290 = vmatprep.subr.mxu0 0.0
    %5291 = vmatpush1.msra.mxu0 0.0
    %5292 = vmatprep.subr.mxu0 0.0
    %5293 = vmatpush1.msra.mxu0 0.0
    %5294 = vmatprep.subr.mxu0 0.0
    %5295 = vmatpush1.msra.mxu0 0.0
    %5296 = vmatprep.subr.mxu0 0.0
    %5297 = vmatpush1.msra.mxu0 0.0
    %5298 = vmatprep.subr.mxu0 0.0
    %5299 = vmatpush1.msra.mxu0 0.0
    %5300 = vmatprep.subr.mxu0 0.0
    %5301 = vmatpush1.msra.mxu0 0.0
    %5302 = vmatprep.subr.mxu0 0.0
    %5303 = vmatpush1.msra.mxu0 0.0
    %5304 = vmatprep.subr.mxu0 0.0
    %5305 = vmatpush1.msra.mxu0 0.0
    %5306 = vmatprep.subr.mxu0 0.0
    %5307 = vmatpush1.msra.mxu0 0.0
    %5308 = vmatprep.subr.mxu0 0.0
    %5309 = vmatpush1.msra.mxu0 0.0
    %5310 = vmatprep.mubr.f32.mxu0 0.0
    %5311 = vmatmul.mubr.f32.gmra.mrb[0].mxu0 %v5241
    %v5312 = vpop.f32.mrb[0].mxu0
    %v5313 = vadd.f32 0.0, %v5312
    %v5314 = vpop.f32.mrb[0].mxu0
    %5315 = vmatprep.mubr.f32.mxu0 0.0
    %5316 = vmatmul.mubr.f32.gmra.mrb[0].mxu0 %v5244
    %v5317 = vpop.f32.mrb[0].mxu0
    %v5318 = vadd.f32 0.0, %v5317
    %v5319 = vpop.f32.mrb[0].mxu0
    %5320 = vdwg.mxu0
    %v5321 = vld [vmem:[%s4734 + $0x10] sm:$0xff]
    %v5323 = vsel %vm243, %v5313, 0
    %v5326 = vsel %vm243, %v5318, 0
    %5328 = vmatprep.subr.mxu0 0.0
    %5329 = vmatpush1.msra.mxu0 %v5321
    %5330 = vmatprep.subr.mxu0 0.0
    %5331 = vmatpush1.msra.mxu0 0.0
    %5332 = vmatprep.subr.mxu0 0.0
    %5333 = vmatpush1.msra.mxu0 0.0
    %5334 = vmatprep.subr.mxu0 0.0
    %5335 = vmatpush1.msra.mxu0 0.0
    %5336 = vmatprep.subr.mxu0 0.0
    %5337 = vmatpush1.msra.mxu0 0.0
    %5338 = vmatprep.subr.mxu0 0.0
    %5339 = vmatpush1.msra.mxu0 0.0
    %5340 = vmatprep.subr.mxu0 0.0
    %5341 = vmatpush1.msra.mxu0 0.0
    %5342 = vmatprep.subr.mxu0 0.0
    %5343 = vmatpush1.msra.mxu0 0.0
    %5344 = vmatprep.subr.mxu0 0.0
    %5345 = vmatpush1.msra.mxu0 0.0
    %5346 = vmatprep.subr.mxu0 0.0
    %5347 = vmatpush1.msra.mxu0 0.0
    %5348 = vmatprep.subr.mxu0 0.0
    %5349 = vmatpush1.msra.mxu0 0.0
    %5350 = vmatprep.subr.mxu0 0.0
    %5351 = vmatpush1.msra.mxu0 0.0
    %5352 = vmatprep.subr.mxu0 0.0
    %5353 = vmatpush1.msra.mxu0 0.0
    %5354 = vmatprep.subr.mxu0 0.0
    %5355 = vmatpush1.msra.mxu0 0.0
    %5356 = vmatprep.subr.mxu0 0.0
    %5357 = vmatpush1.msra.mxu0 0.0
    %5358 = vmatprep.subr.mxu0 0.0
    %5359 = vmatpush1.msra.mxu0 0.0
    %5360 = vmatprep.subr.mxu0 0.0
    %5361 = vmatpush1.msra.mxu0 0.0
    %5362 = vmatprep.subr.mxu0 0.0
    %5363 = vmatpush1.msra.mxu0 0.0
    %5364 = vmatprep.subr.mxu0 0.0
    %5365 = vmatpush1.msra.mxu0 0.0
    %5366 = vmatprep.subr.mxu0 0.0
    %5367 = vmatpush1.msra.mxu0 0.0
    %5368 = vmatprep.subr.mxu0 0.0
    %5369 = vmatpush1.msra.mxu0 0.0
    %5370 = vmatprep.subr.mxu0 0.0
    %5371 = vmatpush1.msra.mxu0 0.0
    %5372 = vmatprep.subr.mxu0 0.0
    %5373 = vmatpush1.msra.mxu0 0.0
    %5374 = vmatprep.subr.mxu0 0.0
    %5375 = vmatpush1.msra.mxu0 0.0
    %5376 = vmatprep.subr.mxu0 0.0
    %5377 = vmatpush1.msra.mxu0 0.0
    %5378 = vmatprep.subr.mxu0 0.0
    %5379 = vmatpush1.msra.mxu0 0.0
    %5380 = vmatprep.subr.mxu0 0.0
    %5381 = vmatpush1.msra.mxu0 0.0
    %5382 = vmatprep.subr.mxu0 0.0
    %5383 = vmatpush1.msra.mxu0 0.0
    %5384 = vmatprep.subr.mxu0 0.0
    %5385 = vmatpush1.msra.mxu0 0.0
    %5386 = vmatprep.subr.mxu0 0.0
    %5387 = vmatpush1.msra.mxu0 0.0
    %5388 = vmatprep.subr.mxu0 0.0
    %5389 = vmatpush1.msra.mxu0 0.0
    %5390 = vmatprep.subr.mxu0 0.0
    %5391 = vmatpush1.msra.mxu0 0.0
    %5392 = vmatprep.mubr.f32.mxu0 0.0
    %5393 = vmatmul.mubr.f32.gmra.mrb[0].mxu0 %v5323
    %v5394 = vpop.f32.mrb[0].mxu0
    %v5395 = vadd.f32 0.0, %v5394
    %v5396 = vpop.f32.mrb[0].mxu0
    %5397 = vmatprep.mubr.f32.mxu0 0.0
    %5398 = vmatmul.mubr.f32.gmra.mrb[0].mxu0 %v5326
    %v5399 = vpop.f32.mrb[0].mxu0
    %v5400 = vadd.f32 0.0, %v5399
    %v5401 = vpop.f32.mrb[0].mxu0
    %5402 = vdwg.mxu0
    %v5403 = vadd.f32 %v5102, %v5395
    %v5404 = vadd.f32 %v5107, %v5400
    %5405 = vrot.lane.b32.xlu0 %v4434, 104
    %v5406 = vpop.permute.xlu0 %5405
    %5407 = vrot.lane.b32.xlu0 %v4439, 104
    %v5408 = vpop.permute.xlu0 %5407
    %5409 = vrot.lane.b32.xlu0 %v4509, 72
    %v5410 = vpop.permute.xlu0 %5409
    %5411 = vrot.lane.b32.xlu0 %v4514, 72
    %v5412 = vpop.permute.xlu0 %5411
    %5413 = vrot.lane.b32.xlu0 %v4519, 72
    %v5414 = vpop.permute.xlu0 %5413
    %v5415 = vsel %vm243, %v5406, 0
    %v5417 = vsel %vm243, %v5408, 0
    %v5419 = vsel %vm243, %v5410, 0
    %v5421 = vsel %vm243, %v5412, 0
    %v5423 = vsel %vm243, %v5414, 0
    %5425 = vmatprep.subr.mxu0 0.0
    %5426 = vmatpush1.xpose.msra.mxu0 %v5419
    %5427 = vmatprep.subr.mxu0 0.0
    %5428 = vmatpush1.xpose.msra.mxu0 %v5421
    %5429 = vmatprep.subr.mxu0 0.0
    %5430 = vmatpush1.xpose.msra.mxu0 %v5423
    %5431 = vmatprep.subr.mxu0 0.0
    %5432 = vmatpush1.xpose.msra.mxu0 0.0
    %5433 = vmatprep.subr.mxu0 0.0
    %5434 = vmatpush1.xpose.msra.mxu0 0.0
    %5435 = vmatprep.subr.mxu0 0.0
    %5436 = vmatpush1.xpose.msra.mxu0 0.0
    %5437 = vmatprep.subr.mxu0 0.0
    %5438 = vmatpush1.xpose.msra.mxu0 0.0
    %5439 = vmatprep.subr.mxu0 0.0
    %5440 = vmatpush1.xpose.msra.mxu0 0.0
    %5441 = vmatprep.subr.mxu0 0.0
    %5442 = vmatpush1.xpose.msra.mxu0 0.0
    %5443 = vmatprep.subr.mxu0 0.0
    %5444 = vmatpush1.xpose.msra.mxu0 0.0
    %5445 = vmatprep.subr.mxu0 0.0
    %5446 = vmatpush1.xpose.msra.mxu0 0.0
    %5447 = vmatprep.subr.mxu0 0.0
    %5448 = vmatpush1.xpose.msra.mxu0 0.0
    %5449 = vmatprep.subr.mxu0 0.0
    %5450 = vmatpush1.xpose.msra.mxu0 0.0
    %5451 = vmatprep.subr.mxu0 0.0
    %5452 = vmatpush1.xpose.msra.mxu0 0.0
    %5453 = vmatprep.subr.mxu0 0.0
    %5454 = vmatpush1.xpose.msra.mxu0 0.0
    %5455 = vmatprep.subr.mxu0 0.0
    %5456 = vmatpush1.xpose.msra.mxu0 0.0
    %5457 = vmatprep.subr.mxu0 0.0
    %5458 = vmatpush1.xpose.msra.mxu0 0.0
    %5459 = vmatprep.subr.mxu0 0.0
    %5460 = vmatpush1.xpose.msra.mxu0 0.0
    %5461 = vmatprep.subr.mxu0 0.0
    %5462 = vmatpush1.xpose.msra.mxu0 0.0
    %5463 = vmatprep.subr.mxu0 0.0
    %5464 = vmatpush1.xpose.msra.mxu0 0.0
    %5465 = vmatprep.subr.mxu0 0.0
    %5466 = vmatpush1.xpose.msra.mxu0 0.0
    %5467 = vmatprep.subr.mxu0 0.0
    %5468 = vmatpush1.xpose.msra.mxu0 0.0
    %5469 = vmatprep.subr.mxu0 0.0
    %5470 = vmatpush1.xpose.msra.mxu0 0.0
    %5471 = vmatprep.subr.mxu0 0.0
    %5472 = vmatpush1.xpose.msra.mxu0 0.0
    %5473 = vmatprep.subr.mxu0 0.0
    %5474 = vmatpush1.xpose.msra.mxu0 0.0
    %5475 = vmatprep.subr.mxu0 0.0
    %5476 = vmatpush1.xpose.msra.mxu0 0.0
    %5477 = vmatprep.subr.mxu0 0.0
    %5478 = vmatpush1.xpose.msra.mxu0 0.0
    %5479 = vmatprep.subr.mxu0 0.0
    %5480 = vmatpush1.xpose.msra.mxu0 0.0
    %5481 = vmatprep.subr.mxu0 0.0
    %5482 = vmatpush1.xpose.msra.mxu0 0.0
    %5483 = vmatprep.subr.mxu0 0.0
    %5484 = vmatpush1.xpose.msra.mxu0 0.0
    %5485 = vmatprep.subr.mxu0 0.0
    %5486 = vmatpush1.xpose.msra.mxu0 0.0
    %5487 = vmatprep.subr.mxu0 0.0
    %5488 = vmatpush1.xpose.msra.mxu0 0.0
    %5489 = vmatprep.mubr.f32.mxu0 0.0
    %5490 = vmatmul.mubr.f32.gmra.mrb[0].mxu0 %v5415
    %v5491 = vpop.f32.mrb[0].mxu0
    %v5492 = vadd.f32 0.0, %v5491
    %v5493 = vpop.f32.mrb[0].mxu0
    %5494 = vmatprep.mubr.f32.mxu0 0.0
    %5495 = vmatmul.mubr.f32.gmra.mrb[0].mxu0 %v5417
    %v5496 = vpop.f32.mrb[0].mxu0
    %v5497 = vadd.f32 0.0, %v5496
    %v5498 = vpop.f32.mrb[0].mxu0
    %5499 = vdwg.mxu0
    %v5500 = vmul.f32 %v5492, 0.35355338
    %v5501 = vmul.f32 %v5497, 0.35355338
    %v5502 = vadd.f32 %v5500, %v108
    %v5503 = vadd.f32 %v5501, %v109
    %v5504 = vsel %vm1709, %v5502, -inf
    %5505 = vmax.xlane.f32.xlu0 %v5504
    %v5506 = vpop.xlane.xlu0 %5505
    %v5507 = vsel %vm1709, %v5503, -inf
    %5508 = vmax.xlane.f32.xlu0 %v5507
    %v5509 = vpop.xlane.xlu0 %5508
    %v5510 = vsub.f32 %v5502, %v5506
    %v5511 = vsub.f32 %v5503, %v5509
    %v5512 = vmul.f32 %v5510, 1.442695
    %v5513 = vpow.pop %v5512
    %v5514 = vmul.f32 %v5511, 1.442695
    %v5515 = vpow.pop %v5514
    %v5516 = vsel %vm1709, %v5513, 0.0
    %5517 = vadd.xlane.f32.xlu0 %v5516
    %v5518 = vpop.xlane.xlu0 %5517
    %v5519 = vsel %vm1709, %v5515, 0.0
    %5520 = vadd.xlane.f32.xlu0 %v5519
    %v5521 = vpop.xlane.xlu0 %5520
    %v5522 = vrcp.pop %v5518
    %v5523 = vmul.f32 %v5513, %v5522
    %v5524 = vrcp.pop %v5521
    %v5525 = vmul.f32 %v5515, %v5524
    %5526 = vrot.lane.b32.xlu0 %v4509, 40
    %v5527 = vpop.permute.xlu0 %5526
    %5528 = vrot.lane.b32.xlu0 %v4514, 40
    %v5529 = vpop.permute.xlu0 %5528
    %5530 = vrot.lane.b32.xlu0 %v4519, 40
    %v5531 = vpop.permute.xlu0 %5530
    %v5536 = vsel %vm1709, %v5523, 0
    %v5539 = vsel %vm1709, %v5525, 0
    %5541 = vmatprep.subr.mxu0 0.0
    %5542 = vmatpush1.msra.mxu0 %v5527
    %5543 = vmatprep.subr.mxu0 0.0
    %5544 = vmatpush1.msra.mxu0 %v5529
    %5545 = vmatprep.subr.mxu0 0.0
    %5546 = vmatpush1.msra.mxu0 %v5531
    %5547 = vmatprep.subr.mxu0 0.0
    %5548 = vmatpush1.msra.mxu0 0.0
    %5549 = vmatprep.subr.mxu0 0.0
    %5550 = vmatpush1.msra.mxu0 0.0
    %5551 = vmatprep.subr.mxu0 0.0
    %5552 = vmatpush1.msra.mxu0 0.0
    %5553 = vmatprep.subr.mxu0 0.0
    %5554 = vmatpush1.msra.mxu0 0.0
    %5555 = vmatprep.subr.mxu0 0.0
    %5556 = vmatpush1.msra.mxu0 0.0
    %5557 = vmatprep.subr.mxu0 0.0
    %5558 = vmatpush1.msra.mxu0 0.0
    %5559 = vmatprep.subr.mxu0 0.0
    %5560 = vmatpush1.msra.mxu0 0.0
    %5561 = vmatprep.subr.mxu0 0.0
    %5562 = vmatpush1.msra.mxu0 0.0
    %5563 = vmatprep.subr.mxu0 0.0
    %5564 = vmatpush1.msra.mxu0 0.0
    %5565 = vmatprep.subr.mxu0 0.0
    %5566 = vmatpush1.msra.mxu0 0.0
    %5567 = vmatprep.subr.mxu0 0.0
    %5568 = vmatpush1.msra.mxu0 0.0
    %5569 = vmatprep.subr.mxu0 0.0
    %5570 = vmatpush1.msra.mxu0 0.0
    %5571 = vmatprep.subr.mxu0 0.0
    %5572 = vmatpush1.msra.mxu0 0.0
    %5573 = vmatprep.subr.mxu0 0.0
    %5574 = vmatpush1.msra.mxu0 0.0
    %5575 = vmatprep.subr.mxu0 0.0
    %5576 = vmatpush1.msra.mxu0 0.0
    %5577 = vmatprep.subr.mxu0 0.0
    %5578 = vmatpush1.msra.mxu0 0.0
    %5579 = vmatprep.subr.mxu0 0.0
    %5580 = vmatpush1.msra.mxu0 0.0
    %5581 = vmatprep.subr.mxu0 0.0
    %5582 = vmatpush1.msra.mxu0 0.0
    %5583 = vmatprep.subr.mxu0 0.0
    %5584 = vmatpush1.msra.mxu0 0.0
    %5585 = vmatprep.subr.mxu0 0.0
    %5586 = vmatpush1.msra.mxu0 0.0
    %5587 = vmatprep.subr.mxu0 0.0
    %5588 = vmatpush1.msra.mxu0 0.0
    %5589 = vmatprep.subr.mxu0 0.0
    %5590 = vmatpush1.msra.mxu0 0.0
    %5591 = vmatprep.subr.mxu0 0.0
    %5592 = vmatpush1.msra.mxu0 0.0
    %5593 = vmatprep.subr.mxu0 0.0
    %5594 = vmatpush1.msra.mxu0 0.0
    %5595 = vmatprep.subr.mxu0 0.0
    %5596 = vmatpush1.msra.mxu0 0.0
    %5597 = vmatprep.subr.mxu0 0.0
    %5598 = vmatpush1.msra.mxu0 0.0
    %5599 = vmatprep.subr.mxu0 0.0
    %5600 = vmatpush1.msra.mxu0 0.0
    %5601 = vmatprep.subr.mxu0 0.0
    %5602 = vmatpush1.msra.mxu0 0.0
    %5603 = vmatprep.subr.mxu0 0.0
    %5604 = vmatpush1.msra.mxu0 0.0
    %5605 = vmatprep.mubr.f32.mxu0 0.0
    %5606 = vmatmul.mubr.f32.gmra.mrb[0].mxu0 %v5536
    %v5607 = vpop.f32.mrb[0].mxu0
    %v5608 = vadd.f32 0.0, %v5607
    %v5609 = vpop.f32.mrb[0].mxu0
    %5610 = vmatprep.mubr.f32.mxu0 0.0
    %5611 = vmatmul.mubr.f32.gmra.mrb[0].mxu0 %v5539
    %v5612 = vpop.f32.mrb[0].mxu0
    %v5613 = vadd.f32 0.0, %v5612
    %v5614 = vpop.f32.mrb[0].mxu0
    %5615 = vdwg.mxu0
    %v5616 = vld [vmem:[%s4734 + $0x18] sm:$0xff]
    %v5618 = vsel %vm243, %v5608, 0
    %v5621 = vsel %vm243, %v5613, 0
    %5623 = vmatprep.subr.mxu0 0.0
    %5624 = vmatpush1.msra.mxu0 %v5616
    %5625 = vmatprep.subr.mxu0 0.0
    %5626 = vmatpush1.msra.mxu0 0.0
    %5627 = vmatprep.subr.mxu0 0.0
    %5628 = vmatpush1.msra.mxu0 0.0
    %5629 = vmatprep.subr.mxu0 0.0
    %5630 = vmatpush1.msra.mxu0 0.0
    %5631 = vmatprep.subr.mxu0 0.0
    %5632 = vmatpush1.msra.mxu0 0.0
    %5633 = vmatprep.subr.mxu0 0.0
    %5634 = vmatpush1.msra.mxu0 0.0
    %5635 = vmatprep.subr.mxu0 0.0
    %5636 = vmatpush1.msra.mxu0 0.0
    %5637 = vmatprep.subr.mxu0 0.0
    %5638 = vmatpush1.msra.mxu0 0.0
    %5639 = vmatprep.subr.mxu0 0.0
    %5640 = vmatpush1.msra.mxu0 0.0
    %5641 = vmatprep.subr.mxu0 0.0
    %5642 = vmatpush1.msra.mxu0 0.0
    %5643 = vmatprep.subr.mxu0 0.0
    %5644 = vmatpush1.msra.mxu0 0.0
    %5645 = vmatprep.subr.mxu0 0.0
    %5646 = vmatpush1.msra.mxu0 0.0
    %5647 = vmatprep.subr.mxu0 0.0
    %5648 = vmatpush1.msra.mxu0 0.0
    %5649 = vmatprep.subr.mxu0 0.0
    %5650 = vmatpush1.msra.mxu0 0.0
    %5651 = vmatprep.subr.mxu0 0.0
    %5652 = vmatpush1.msra.mxu0 0.0
    %5653 = vmatprep.subr.mxu0 0.0
    %5654 = vmatpush1.msra.mxu0 0.0
    %5655 = vmatprep.subr.mxu0 0.0
    %5656 = vmatpush1.msra.mxu0 0.0
    %5657 = vmatprep.subr.mxu0 0.0
    %5658 = vmatpush1.msra.mxu0 0.0
    %5659 = vmatprep.subr.mxu0 0.0
    %5660 = vmatpush1.msra.mxu0 0.0
    %5661 = vmatprep.subr.mxu0 0.0
    %5662 = vmatpush1.msra.mxu0 0.0
    %5663 = vmatprep.subr.mxu0 0.0
    %5664 = vmatpush1.msra.mxu0 0.0
    %5665 = vmatprep.subr.mxu0 0.0
    %5666 = vmatpush1.msra.mxu0 0.0
    %5667 = vmatprep.subr.mxu0 0.0
    %5668 = vmatpush1.msra.mxu0 0.0
    %5669 = vmatprep.subr.mxu0 0.0
    %5670 = vmatpush1.msra.mxu0 0.0
    %5671 = vmatprep.subr.mxu0 0.0
    %5672 = vmatpush1.msra.mxu0 0.0
    %5673 = vmatprep.subr.mxu0 0.0
    %5674 = vmatpush1.msra.mxu0 0.0
    %5675 = vmatprep.subr.mxu0 0.0
    %5676 = vmatpush1.msra.mxu0 0.0
    %5677 = vmatprep.subr.mxu0 0.0
    %5678 = vmatpush1.msra.mxu0 0.0
    %5679 = vmatprep.subr.mxu0 0.0
    %5680 = vmatpush1.msra.mxu0 0.0
    %5681 = vmatprep.subr.mxu0 0.0
    %5682 = vmatpush1.msra.mxu0 0.0
    %5683 = vmatprep.subr.mxu0 0.0
    %5684 = vmatpush1.msra.mxu0 0.0
    %5685 = vmatprep.subr.mxu0 0.0
    %5686 = vmatpush1.msra.mxu0 0.0
    %5687 = vmatprep.mubr.f32.mxu0 0.0
    %5688 = vmatmul.mubr.f32.gmra.mrb[0].mxu0 %v5618
    %v5689 = vpop.f32.mrb[0].mxu0
    %v5690 = vadd.f32 0.0, %v5689
    %v5691 = vpop.f32.mrb[0].mxu0
    %5692 = vmatprep.mubr.f32.mxu0 0.0
    %5693 = vmatmul.mubr.f32.gmra.mrb[0].mxu0 %v5621
    %v5694 = vpop.f32.mrb[0].mxu0
    %v5695 = vadd.f32 0.0, %v5694
    %v5696 = vpop.f32.mrb[0].mxu0
    %5697 = vdwg.mxu0
    %v5698 = vadd.f32 %v5403, %v5690
    %v5699 = vadd.f32 %v5404, %v5695
    %v5700 = vld [vmem:[%s8 + $0x11] sm:$0x1]
    %v5701 = vlaneseq
    %v5702 = vshrl.u32 %v5701, 7
    %v5703 = vsub.s32 0, %v5702
    %v5704 = vrot.slane %v5700, %v5703
    %v5705 = vadd.f32 %v5698, %v5704
    %v5706 = vadd.f32 %v5699, %v5704
    %v5707 = vadd.f32 %v4314, %v5705
    %v5708 = vadd.f32 %v4315, %v5706
    %v5709 = vld [vmem:[%s8 + $0xe] sm:$0x1]
    %v5710 = vld [vmem:[%s8 + $0xf] sm:$0x1]
    %v5711 = vsel %vm112, %v5707, 0.0
    %5712 = vadd.xlane.f32.xlu0 %v5711
    %v5713 = vpop.xlane.xlu0 %5712
    %v5714 = vsel %vm112, %v5708, 0.0
    %5715 = vadd.xlane.f32.xlu0 %v5714
    %v5716 = vpop.xlane.xlu0 %5715
    %v5717 = vmul.f32 %v5713, %v119
    %v5718 = vmul.f32 %v5716, %v119
    %v5719 = vsub.f32 %v5707, %v5717
    %v5720 = vsub.f32 %v5708, %v5718
    %v5721 = vmul.f32 %v5719, %v5719
    %v5722 = vmul.f32 %v5720, %v5720
    %v5723 = vsel %vm112, %v5721, 0.0
    %5724 = vadd.xlane.f32.xlu0 %v5723
    %v5725 = vpop.xlane.xlu0 %5724
    %v5726 = vsel %vm112, %v5722, 0.0
    %5727 = vadd.xlane.f32.xlu0 %v5726
    %v5728 = vpop.xlane.xlu0 %5727
    %v5729 = vmul.f32 %v5725, %v119
    %v5730 = vmul.f32 %v5728, %v119
    %v5731 = vadd.f32 %v5729, 1e-05
    %v5732 = vadd.f32 %v5730, 1e-05
    %v5733 = vrsqrt.pop %v5731
    %v5734 = vrsqrt.pop %v5732
    %v5735 = vmul.f32 %v5719, %v5733
    %v5736 = vmul.f32 %v5720, %v5734
    %v5737 = vlaneseq
    %v5738 = vshrl.u32 %v5737, 7
    %v5739 = vsub.s32 0, %v5738
    %v5740 = vrot.slane %v5709, %v5739
    %v5741 = vmul.f32 %v5735, %v5740
    %v5742 = vmul.f32 %v5736, %v5740
    %v5743 = vlaneseq
    %v5744 = vshrl.u32 %v5743, 7
    %v5745 = vsub.s32 0, %v5744
    %v5746 = vrot.slane %v5710, %v5745
    %v5747 = vadd.f32 %v5741, %v5746
    %v5748 = vadd.f32 %v5742, %v5746
    %s5749 = scalar_lea.vmem %s6, 32
    %v5750 = vld [vmem:[%s5749] sm:$0xff]
    %v5751 = vld [vmem:[%s5749 + $0x8] sm:$0xff]
    %v5752 = vld [vmem:[%s5749 + $0x10] sm:$0xff]
    %v5753 = vld [vmem:[%s5749 + $0x18] sm:$0xff]
    %v5754 = vld [vmem:[%s8 + $0x12] sm:$0x1]
    %v5755 = vlaneseq
    %v5756 = vshrl.u32 %v5755, 7
    %v5757 = vsub.s32 0, %v5756
    %v5758 = vrot.slane %v5754, %v5757
    %v5760 = vsel %vm112, %v5747, 0
    %v5763 = vsel %vm112, %v5748, 0
    %5765 = vmatprep.subr.mxu0 0.0
    %5766 = vmatpush1.msra.mxu0 %v5750
    %5767 = vmatprep.subr.mxu0 0.0
    %5768 = vmatpush1.msra.mxu0 %v5751
    %5769 = vmatprep.subr.mxu0 0.0
    %5770 = vmatpush1.msra.mxu0 %v5752
    %5771 = vmatprep.subr.mxu0 0.0
    %5772 = vmatpush1.msra.mxu0 %v5753
    %5773 = vmatprep.subr.mxu0 0.0
    %5774 = vmatpush1.msra.mxu0 0.0
    %5775 = vmatprep.subr.mxu0 0.0
    %5776 = vmatpush1.msra.mxu0 0.0
    %5777 = vmatprep.subr.mxu0 0.0
    %5778 = vmatpush1.msra.mxu0 0.0
    %5779 = vmatprep.subr.mxu0 0.0
    %5780 = vmatpush1.msra.mxu0 0.0
    %5781 = vmatprep.subr.mxu0 0.0
    %5782 = vmatpush1.msra.mxu0 0.0
    %5783 = vmatprep.subr.mxu0 0.0
    %5784 = vmatpush1.msra.mxu0 0.0
    %5785 = vmatprep.subr.mxu0 0.0
    %5786 = vmatpush1.msra.mxu0 0.0
    %5787 = vmatprep.subr.mxu0 0.0
    %5788 = vmatpush1.msra.mxu0 0.0
    %5789 = vmatprep.subr.mxu0 0.0
    %5790 = vmatpush1.msra.mxu0 0.0
    %5791 = vmatprep.subr.mxu0 0.0
    %5792 = vmatpush1.msra.mxu0 0.0
    %5793 = vmatprep.subr.mxu0 0.0
    %5794 = vmatpush1.msra.mxu0 0.0
    %5795 = vmatprep.subr.mxu0 0.0
    %5796 = vmatpush1.msra.mxu0 0.0
    %5797 = vmatprep.subr.mxu0 0.0
    %5798 = vmatpush1.msra.mxu0 0.0
    %5799 = vmatprep.subr.mxu0 0.0
    %5800 = vmatpush1.msra.mxu0 0.0
    %5801 = vmatprep.subr.mxu0 0.0
    %5802 = vmatpush1.msra.mxu0 0.0
    %5803 = vmatprep.subr.mxu0 0.0
    %5804 = vmatpush1.msra.mxu0 0.0
    %5805 = vmatprep.subr.mxu0 0.0
    %5806 = vmatpush1.msra.mxu0 0.0
    %5807 = vmatprep.subr.mxu0 0.0
    %5808 = vmatpush1.msra.mxu0 0.0
    %5809 = vmatprep.subr.mxu0 0.0
    %5810 = vmatpush1.msra.mxu0 0.0
    %5811 = vmatprep.subr.mxu0 0.0
    %5812 = vmatpush1.msra.mxu0 0.0
    %5813 = vmatprep.subr.mxu0 0.0
    %5814 = vmatpush1.msra.mxu0 0.0
    %5815 = vmatprep.subr.mxu0 0.0
    %5816 = vmatpush1.msra.mxu0 0.0
    %5817 = vmatprep.subr.mxu0 0.0
    %5818 = vmatpush1.msra.mxu0 0.0
    %5819 = vmatprep.subr.mxu0 0.0
    %5820 = vmatpush1.msra.mxu0 0.0
    %5821 = vmatprep.subr.mxu0 0.0
    %5822 = vmatpush1.msra.mxu0 0.0
    %5823 = vmatprep.subr.mxu0 0.0
    %5824 = vmatpush1.msra.mxu0 0.0
    %5825 = vmatprep.subr.mxu0 0.0
    %5826 = vmatpush1.msra.mxu0 0.0
    %5827 = vmatprep.subr.mxu0 0.0
    %5828 = vmatpush1.msra.mxu0 0.0
    %5829 = vmatprep.mubr.f32.mxu0 0.0
    %5830 = vmatmul.mubr.f32.gmra.mrb[0].mxu0 %v5760
    %v5831 = vpop.f32.mrb[0].mxu0
    %v5832 = vadd.f32 %v5758, %v5831
    %v5833 = vpop.f32.mrb[0].mxu0
    %5834 = vmatprep.mubr.f32.mxu0 0.0
    %5835 = vmatmul.mubr.f32.gmra.mrb[0].mxu0 %v5763
    %v5836 = vpop.f32.mrb[0].mxu0
    %v5837 = vadd.f32 %v5758, %v5836
    %v5838 = vpop.f32.mrb[0].mxu0
    %5839 = vdwg.mxu0
    %v5840 = vmul.f32 %v5832, 0.5
    %v5841 = vmul.f32 %v5837, 0.5
    %v5842 = vmul.f32 %v5832, 0.70710677
    %v5843 = vmul.f32 %v5837, 0.70710677
    %v5844 = verf.f32.pop %v5842
    %v5845 = verf.f32.pop %v5843
    %v5846 = vadd.f32 %v5844, 1.0
    %v5847 = vadd.f32 %v5845, 1.0
    %v5848 = vmul.f32 %v5840, %v5846
    %v5849 = vmul.f32 %v5841, %v5847
    %s5850 = scalar_lea.vmem %s7, 64
    %v5851 = vld [vmem:[%s5850] sm:$0xff]
    %v5852 = vld [vmem:[%s5850 + $0x8] sm:$0xff]
    %v5853 = vld [vmem:[%s5850 + $0x10] sm:$0xff]
    %v5854 = vld [vmem:[%s5850 + $0x18] sm:$0xff]
    %v5855 = vld [vmem:[%s5850 + $0x20] sm:$0xff]
    %v5856 = vld [vmem:[%s5850 + $0x28] sm:$0xff]
    %v5857 = vld [vmem:[%s5850 + $0x30] sm:$0xff]
    %v5858 = vld [vmem:[%s5850 + $0x38] sm:$0xff]
    %v5859 = vld [vmem:[%s8 + $0x13] sm:$0x1]
    %v5860 = vlaneseq
    %v5861 = vshrl.u32 %v5860, 7
    %v5862 = vsub.s32 0, %v5861
    %v5863 = vrot.slane %v5859, %v5862
    %v5865 = vsel %vm2950, %v5848, 0
    %v5868 = vsel %vm2950, %v5849, 0
    %5870 = vmatprep.subr.mxu0 0.0
    %5871 = vmatpush1.msra.mxu0 %v5851
    %5872 = vmatprep.subr.mxu0 0.0
    %5873 = vmatpush1.msra.mxu0 %v5852
    %5874 = vmatprep.subr.mxu0 0.0
    %5875 = vmatpush1.msra.mxu0 %v5853
    %5876 = vmatprep.subr.mxu0 0.0
    %5877 = vmatpush1.msra.mxu0 %v5854
    %5878 = vmatprep.subr.mxu0 0.0
    %5879 = vmatpush1.msra.mxu0 %v5855
    %5880 = vmatprep.subr.mxu0 0.0
    %5881 = vmatpush1.msra.mxu0 %v5856
    %5882 = vmatprep.subr.mxu0 0.0
    %5883 = vmatpush1.msra.mxu0 %v5857
    %5884 = vmatprep.subr.mxu0 0.0
    %5885 = vmatpush1.msra.mxu0 %v5858
    %5886 = vmatprep.subr.mxu0 0.0
    %5887 = vmatpush1.msra.mxu0 0.0
    %5888 = vmatprep.subr.mxu0 0.0
    %5889 = vmatpush1.msra.mxu0 0.0
    %5890 = vmatprep.subr.mxu0 0.0
    %5891 = vmatpush1.msra.mxu0 0.0
    %5892 = vmatprep.subr.mxu0 0.0
    %5893 = vmatpush1.msra.mxu0 0.0
    %5894 = vmatprep.subr.mxu0 0.0
    %5895 = vmatpush1.msra.mxu0 0.0
    %5896 = vmatprep.subr.mxu0 0.0
    %5897 = vmatpush1.msra.mxu0 0.0
    %5898 = vmatprep.subr.mxu0 0.0
    %5899 = vmatpush1.msra.mxu0 0.0
    %5900 = vmatprep.subr.mxu0 0.0
    %5901 = vmatpush1.msra.mxu0 0.0
    %5902 = vmatprep.subr.mxu0 0.0
    %5903 = vmatpush1.msra.mxu0 0.0
    %5904 = vmatprep.subr.mxu0 0.0
    %5905 = vmatpush1.msra.mxu0 0.0
    %5906 = vmatprep.subr.mxu0 0.0
    %5907 = vmatpush1.msra.mxu0 0.0
    %5908 = vmatprep.subr.mxu0 0.0
    %5909 = vmatpush1.msra.mxu0 0.0
    %5910 = vmatprep.subr.mxu0 0.0
    %5911 = vmatpush1.msra.mxu0 0.0
    %5912 = vmatprep.subr.mxu0 0.0
    %5913 = vmatpush1.msra.mxu0 0.0
    %5914 = vmatprep.subr.mxu0 0.0
    %5915 = vmatpush1.msra.mxu0 0.0
    %5916 = vmatprep.subr.mxu0 0.0
    %5917 = vmatpush1.msra.mxu0 0.0
    %5918 = vmatprep.subr.mxu0 0.0
    %5919 = vmatpush1.msra.mxu0 0.0
    %5920 = vmatprep.subr.mxu0 0.0
    %5921 = vmatpush1.msra.mxu0 0.0
    %5922 = vmatprep.subr.mxu0 0.0
    %5923 = vmatpush1.msra.mxu0 0.0
    %5924 = vmatprep.subr.mxu0 0.0
    %5925 = vmatpush1.msra.mxu0 0.0
    %5926 = vmatprep.subr.mxu0 0.0
    %5927 = vmatpush1.msra.mxu0 0.0
    %5928 = vmatprep.subr.mxu0 0.0
    %5929 = vmatpush1.msra.mxu0 0.0
    %5930 = vmatprep.subr.mxu0 0.0
    %5931 = vmatpush1.msra.mxu0 0.0
    %5932 = vmatprep.subr.mxu0 0.0
    %5933 = vmatpush1.msra.mxu0 0.0
    %5934 = vmatprep.mubr.f32.mxu0 0.0
    %5935 = vmatmul.mubr.f32.gmra.mrb[0].mxu0 %v5865
    %v5936 = vpop.f32.mrb[0].mxu0
    %v5937 = vadd.f32 %v5863, %v5936
    %v5938 = vpop.f32.mrb[0].mxu0
    %5939 = vmatprep.mubr.f32.mxu0 0.0
    %5940 = vmatmul.mubr.f32.gmra.mrb[0].mxu0 %v5868
    %v5941 = vpop.f32.mrb[0].mxu0
    %v5942 = vadd.f32 %v5863, %v5941
    %v5943 = vpop.f32.mrb[0].mxu0
    %5944 = vdwg.mxu0
    %v5945 = vadd.f32 %v5707, %v5937
    %v5946 = vadd.f32 %v5708, %v5942
    %v5947 = vld [vmem:[%s8 + $0x14] sm:$0x1]
    %v5948 = vld [vmem:[%s8 + $0x15] sm:$0x1]
    %v5949 = vsel %vm112, %v5945, 0.0
    %5950 = vadd.xlane.f32.xlu0 %v5949
    %v5951 = vpop.xlane.xlu0 %5950
    %v5952 = vsel %vm112, %v5946, 0.0
    %5953 = vadd.xlane.f32.xlu0 %v5952
    %v5954 = vpop.xlane.xlu0 %5953
    %v5955 = vmul.f32 %v5951, %v119
    %v5956 = vmul.f32 %v5954, %v119
    %v5957 = vsub.f32 %v5945, %v5955
    %v5958 = vsub.f32 %v5946, %v5956
    %v5959 = vmul.f32 %v5957, %v5957
    %v5960 = vmul.f32 %v5958, %v5958
    %v5961 = vsel %vm112, %v5959, 0.0
    %5962 = vadd.xlane.f32.xlu0 %v5961
    %v5963 = vpop.xlane.xlu0 %5962
    %v5964 = vsel %vm112, %v5960, 0.0
    %5965 = vadd.xlane.f32.xlu0 %v5964
    %v5966 = vpop.xlane.xlu0 %5965
    %v5967 = vmul.f32 %v5963, %v119
    %v5968 = vmul.f32 %v5966, %v119
    %v5969 = vadd.f32 %v5967, 1e-05
    %v5970 = vadd.f32 %v5968, 1e-05
    %v5971 = vrsqrt.pop %v5969
    %v5972 = vrsqrt.pop %v5970
    %v5973 = vmul.f32 %v5957, %v5971
    %v5974 = vmul.f32 %v5958, %v5972
    %v5975 = vlaneseq
    %v5976 = vshrl.u32 %v5975, 7
    %v5977 = vsub.s32 0, %v5976
    %v5978 = vrot.slane %v5947, %v5977
    %v5979 = vmul.f32 %v5973, %v5978
    %v5980 = vmul.f32 %v5974, %v5978
    %v5981 = vlaneseq
    %v5982 = vshrl.u32 %v5981, 7
    %v5983 = vsub.s32 0, %v5982
    %v5984 = vrot.slane %v5948, %v5983
    %v5985 = vadd.f32 %v5979, %v5984
    %v5986 = vadd.f32 %v5980, %v5984
    %5987 = vst.msk [vmem:[#allocation11] sm:$0xff] %vm112, %v5985
    %5988 = vst.msk [vmem:[#allocation11 + $0x8] sm:$0xff] %vm112, %v5986
    // Predicated region
    $region58: #{tpu_custom_call.1} parent=1 // pred_check
      _
    $region59: #{tpu_custom_call.1} parent=1 // pred_check_branch
      %5990 = sbr.rel (0) target = $region61
    $region60: #{tpu_custom_call.1} parent=1 // pred_region
      %s5992 = ssub.s32 256, 256
      %5993 = vsyncadd [#allocation4], %s5992
      %s5994 = sshll.u32 [#allocation11], 4
      %s5995 = int_to_ptr.vmem [resolvable:$true] %s5994
      %6000 = dma.vmem_to_hbm [thread:$0]  %s5995, 256, %s9, [#allocation4], 128, 128, 8
    $region61: #{tpu_custom_call.1} parent=1 // pred_fallthru
      _
    // Predicated region
    $region62: #{tpu_custom_call.1} parent=1 // pred_check
      _
    $region63: #{tpu_custom_call.1} parent=1 // pred_check_branch
      %6002 = sbr.rel (0) target = $region65
    $region64: #{tpu_custom_call.1} parent=1 // pred_region
      %6003 = dma.done [#allocation4], 256
    $region65: #{tpu_custom_call.1} parent=1 // pred_fallthru
      _
    %6004 = vsyncpa [#allocation3], 1
    %6005 = vsyncpa [#allocation6], 1
    %6006 = vsyncpa [#allocation9], 1
    %6007 = vsyncpa [#allocation4], 1

</llo_original>
